<compile_context>
chip_gen: v5e
topology: v5e:2x2
jax: 0.10.0
libtpu: 0.0.40
codegen_flags: <defaults>
</compile_context>

<pallas_src>
import functools

import jax
import jax.numpy as jnp
from jax.experimental import pallas as pl
from jax.experimental.pallas import tpu as pltpu


# ----------------------------------------------------------------------------
# Fused GreenBlock kernel (one batch sample per grid step)
# ----------------------------------------------------------------------------
def _green_block_kernel(x_ref, mask_ref, g0_ref, b0_ref, w0_ref, c0b_ref,
                        g1_ref, b1_ref, w2_ref, c2b_ref,
                        o_ref, act_ref, slab_ref, acc_ref,
                        *, wp, lc, guard, inv_count, eps, slope):
    c = act_ref.shape[-1]

    def gn_lrelu(v, mask, gamma, beta):
        # GroupNorm(num_groups=1): one-pass stats over real pixels (zeros
        # outside the data region contribute nothing to the sums).
        s = jnp.sum(jnp.sum(v, axis=1, keepdims=True), axis=0, keepdims=True)
        ss = jnp.sum(jnp.sum(v * v, axis=1, keepdims=True), axis=0,
                     keepdims=True)
        mean = s * inv_count
        var = ss * inv_count - mean * mean
        inv_std = jax.lax.rsqrt(var + eps)
        scale = inv_std * gamma                    # (1, C)
        shift = beta - mean * scale                # (1, C)
        xn = v * scale + shift
        # LeakyReLU, then re-zero halo/guards so the conv sees zero padding.
        return jnp.where(xn > 0, xn, slope * xn) * mask

    def conv3x3(w_ref):
        # Fold the 9 taps into the contraction dim: build an im2col slab of
        # shape (Lc, 9*C) in bf16 from 9 shifted views of the f32 activation
        # scratch, then ONE MXU matmul with K = 9*C.
        for dy in range(3):
            for dx in range(3):
                start = dy * wp + dx               # static offsets
                k = dy * 3 + dx
                slab_ref[:, k * c:(k + 1) * c] = (
                    act_ref[start:start + lc, :].astype(jnp.bfloat16))
        acc_ref[...] = jnp.dot(slab_ref[...], w_ref[...],
                               preferred_element_type=jnp.float32)

    mask_full = mask_ref[0]                                 # (Lbuf, 1)
    mask_core = mask_ref[0, guard:guard + lc, :]            # (Lc, 1)

    # ---- Stage 0: GN0 -> LeakyReLU -> conv0 ---------------------------------
    act_ref[...] = gn_lrelu(x_ref[0], mask_full, g0_ref[...], b0_ref[...])
    conv3x3(w0_ref)

    # ---- Stage 1: +bias0 -> GN1 -> LeakyReLU -> conv2 -----------------------
    h1 = (acc_ref[...] + c0b_ref[...]) * mask_core          # (Lc, C) f32
    # Guard strips of act_ref keep stage-0's zeros; only the core is rewritten.
    act_ref[guard:guard + lc, :] = gn_lrelu(h1, mask_core,
                                            g1_ref[...], b1_ref[...])
    conv3x3(w2_ref)

    # ---- +bias2 -> dropout (identity) -> + residual --------------------------
    # TODO(synk): F.dropout(p=0.4) treated as identity (inference semantics).
    o_ref[0] = (acc_ref[...] + c2b_ref[...]
                + x_ref[0, guard:guard + lc, :]).astype(o_ref.dtype)


def _padded_bytes(shape, dtype):
    """Rough VMEM footprint of an array padded to (8, 128) tiles."""
    rows = shape[-2] if len(shape) >= 2 else 1
    lanes = shape[-1]
    lead = 1
    for d in shape[:-2]:
        lead *= d
    rows_p = -(-rows // 8) * 8
    lanes_p = -(-lanes // 128) * 128
    return lead * rows_p * lanes_p * jnp.dtype(dtype).itemsize


def fused_green_block(x_u, mask, g0, b0, w0, c0b, g1, b1, w2, c2b,
                      *, h, w, eps=1e-5, slope=0.01):
    """Fused GreenBlock on the guarded-flat layout.

    x_u:  (N, Lbuf, C) f32 guarded-flat input (zero halo / guards)
    mask: (1, Lbuf, 1) f32 real-pixel mask
    w0/w2: (9*C, C) bf16 conv weights, tap-major ((dy*3+dx)*C + cin)
    Returns (N, Lc, C) f32 — the flattened padded output plane per sample.
    """
    n, lbuf, c = x_u.shape
    cout = w0.shape[-1]
    assert cout == c, "residual add requires in_channels == out_channels"
    wp = w + 2
    lc = (h + 2) * wp
    guard = wp + 1
    assert lbuf == lc + 2 * guard
    inv_count = 1.0 / float(h * w * c)

    # VMEM budget (double-buffered I/O blocks + scratch).  Whole-sample
    # residency; large H*W needs a row-tiled variant.
    # TODO(synk): row-band tiling with halo for samples exceeding VMEM.
    vmem_est = (
        2 * _padded_bytes((1, lbuf, c), jnp.float32)        # x blocks
        + 2 * _padded_bytes((1, lc, c), jnp.float32)        # out blocks
        + 4 * _padded_bytes((9 * c, c), jnp.bfloat16)       # w0, w2 blocks
        + _padded_bytes((lbuf, c), jnp.float32)             # act scratch
        + _padded_bytes((lc, 9 * c), jnp.bfloat16)          # im2col slab
        + _padded_bytes((lc, c), jnp.float32)               # accumulator
        + (1 << 20))                                        # small operands
    assert vmem_est < 12 * 1024 * 1024, f"sample too large for VMEM: {vmem_est}"

    kernel = functools.partial(_green_block_kernel, wp=wp, lc=lc, guard=guard,
                               inv_count=inv_count, eps=eps, slope=slope)

    in_specs = [
        pl.BlockSpec((1, lbuf, c), lambda i: (i, 0, 0)),     # x (guarded flat)
        pl.BlockSpec((1, lbuf, 1), lambda i: (0, 0, 0)),     # pixel mask
        pl.BlockSpec((1, c), lambda i: (0, 0)),              # gn0 gamma
        pl.BlockSpec((1, c), lambda i: (0, 0)),              # gn0 beta
        pl.BlockSpec((9 * c, c), lambda i: (0, 0)),          # conv0 weight
        pl.BlockSpec((1, c), lambda i: (0, 0)),              # conv0 bias
        pl.BlockSpec((1, c), lambda i: (0, 0)),              # gn1 gamma
        pl.BlockSpec((1, c), lambda i: (0, 0)),              # gn1 beta
        pl.BlockSpec((9 * c, c), lambda i: (0, 0)),          # conv2 weight
        pl.BlockSpec((1, c), lambda i: (0, 0)),              # conv2 bias
    ]

    return pl.pallas_call(
        kernel,
        out_shape=jax.ShapeDtypeStruct((n, lc, c), jnp.float32),
        grid_spec=pltpu.PrefetchScalarGridSpec(
            num_scalar_prefetch=0,
            grid=(n,),
            in_specs=in_specs,
            out_specs=pl.BlockSpec((1, lc, c), lambda i: (i, 0, 0)),
            scratch_shapes=[
                pltpu.VMEM((lbuf, c), jnp.float32),      # activation (guarded)
                pltpu.VMEM((lc, 9 * c), jnp.bfloat16),   # K-folded im2col slab
                pltpu.VMEM((lc, c), jnp.float32),        # conv accumulator
            ]),
        compiler_params=pltpu.CompilerParams(
            dimension_semantics=("parallel",),           # shard batch over TCs
            vmem_limit_bytes=32 * 1024 * 1024),
    )(x_u, mask, g0, b0, w0, c0b, g1, b1, w2, c2b)


# ----------------------------------------------------------------------------
# Layout helpers (plain-JAX glue, done once per forward)
# ----------------------------------------------------------------------------
def _to_guarded_flat(x_nhwc, guard):
    n, h, w, c = x_nhwc.shape
    xp = jnp.pad(x_nhwc, ((0, 0), (1, 1), (1, 1), (0, 0)))
    xf = xp.reshape(n, (h + 2) * (w + 2), c)
    return jnp.pad(xf, ((0, 0), (guard, guard), (0, 0)))


def _pixel_mask(h, w, guard):
    m = jnp.zeros((h + 2, w + 2), jnp.float32).at[1:h + 1, 1:w + 1].set(1.0)
    m = jnp.pad(m.reshape(-1), (guard, guard))
    return m.reshape(1, -1, 1)


# ----------------------------------------------------------------------------
# GreenBlock forward
# ----------------------------------------------------------------------------
def green_block_forward(params, x_nchw):
    """x_nchw: (N, Cin, H, W) float32 (PyTorch layout). Returns same shape."""
    n, cin, h, w = x_nchw.shape
    cout = params["conv0_w"].shape[-1]
    assert cin == cout, "residual add requires in_channels == out_channels"
    guard = (w + 2) + 1

    x = jnp.transpose(x_nchw, (0, 2, 3, 1))                 # NHWC
    x_u = _to_guarded_flat(x, guard)                        # (N, Lbuf, C)
    mask = _pixel_mask(h, w, guard)                         # (1, Lbuf, 1)

    w0 = params["conv0_w"].reshape(9 * cin, cout).astype(jnp.bfloat16)
    w2 = params["conv2_w"].reshape(9 * cout, cout).astype(jnp.bfloat16)
    g0 = params["gn0_w"].reshape(1, cin)
    b0 = params["gn0_b"].reshape(1, cin)
    g1 = params["gn1_w"].reshape(1, cout)
    b1 = params["gn1_b"].reshape(1, cout)
    c0b = params["conv0_b"].reshape(1, cout)
    c2b = params["conv2_b"].reshape(1, cout)

    y = fused_green_block(x_u, mask, g0, b0, w0, c0b, g1, b1, w2, c2b,
                          h=h, w=w)                         # (N, Lc, C)
    core = y.reshape(n, h + 2, w + 2, cout)[:, 1:h + 1, 1:w + 1, :]
    return jnp.transpose(core, (0, 3, 1, 2))                # back to NCHW


# ----------------------------------------------------------------------------
# Deterministic parameter init (PyTorch-style defaults)
# ----------------------------------------------------------------------------
def init_params(key, in_channels, out_channels):
    k0, k1, k2, k3 = jax.random.split(key, 4)
    b0 = 1.0 / float(9 * in_channels) ** 0.5
    b1 = 1.0 / float(9 * out_channels) ** 0.5
    return {
        "gn0_w": jnp.ones((in_channels,), jnp.float32),
        "gn0_b": jnp.zeros((in_channels,), jnp.float32),
        "conv0_w": jax.random.uniform(k0, (3, 3, in_channels, out_channels),
                                      jnp.float32, -b0, b0),
        "conv0_b": jax.random.uniform(k1, (out_channels,), jnp.float32, -b0, b0),
        "gn1_w": jnp.ones((out_channels,), jnp.float32),
        "gn1_b": jnp.zeros((out_channels,), jnp.float32),
        "conv2_w": jax.random.uniform(k2, (3, 3, out_channels, out_channels),
                                      jnp.float32, -b1, b1),
        "conv2_b": jax.random.uniform(k3, (out_channels,), jnp.float32, -b1, b1),
    }


# ----------------------------------------------------------------------------
# Pure-JAX float32 reference (numerical sanity check)
# ----------------------------------------------------------------------------
def reference_forward(params, x_nchw, eps=1e-5, slope=0.01):
    def gn(x, g, b):
        mean = jnp.mean(x, axis=(1, 2, 3), keepdims=True)
        var = jnp.mean(jnp.square(x - mean), axis=(1, 2, 3), keepdims=True)
        xn = (x - mean) * jax.lax.rsqrt(var + eps)
        return xn * g.reshape(1, -1, 1, 1) + b.reshape(1, -1, 1, 1)

    def lrelu(x):
        return jnp.where(x > 0, x, slope * x)

    def conv(x, wt, b):  # wt: (3, 3, Cin, Cout)
        w_oihw = jnp.transpose(wt, (3, 2, 0, 1))
        y = jax.lax.conv_general_dilated(
            x, w_oihw, window_strides=(1, 1), padding="SAME",
            dimension_numbers=("NCHW", "OIHW", "NCHW"))
        return y + b.reshape(1, -1, 1, 1)

    h1 = conv(lrelu(gn(x_nchw, params["gn0_w"], params["gn0_b"])),
              params["conv0_w"], params["conv0_b"])
    h2 = conv(lrelu(gn(h1, params["gn1_w"], params["gn1_b"])),
              params["conv2_w"], params["conv2_b"])
    return h2 + x_nchw


if __name__ == "__main__":
    key = jax.random.PRNGKey(0)
    kx, kp = jax.random.split(key)

    # Small demo shapes; in_channels == out_channels so the residual is valid.
    N, C, H, W = 4, 32, 16, 16
    x = jax.random.normal(kx, (N, C, H, W), jnp.float32)
    params = init_params(kp, C, C)

    fwd = jax.jit(green_block_forward)
    out = jax.block_until_ready(fwd(params, x))

    assert out.shape == (N, C, H, W), out.shape
    assert bool(jnp.all(jnp.isfinite(out)))

    ref = reference_forward(params, x)
    max_err = float(jnp.max(jnp.abs(out - ref)))
    rel_err = max_err / (float(jnp.max(jnp.abs(ref))) + 1e-6)
    # bf16 MXU operands vs. a pure-f32 XLA reference -> relative-error check.
    assert rel_err < 0.05, f"max abs err {max_err}, rel err {rel_err}"

    print("KERNEL_OK")
</pallas_src>

<mosaic_0001>
module attributes {stable_mosaic.version = 11 : i64} {
  func.func @_green_block_kernel(%arg0: i32, %arg1: memref<1x362x32xf32, #tpu.memory_space<vmem>>, %arg2: memref<1x362x1xf32, #tpu.memory_space<vmem>>, %arg3: memref<1x32xf32, #tpu.memory_space<vmem>>, %arg4: memref<1x32xf32, #tpu.memory_space<vmem>>, %arg5: memref<288x32xbf16, #tpu.memory_space<vmem>>, %arg6: memref<1x32xf32, #tpu.memory_space<vmem>>, %arg7: memref<1x32xf32, #tpu.memory_space<vmem>>, %arg8: memref<1x32xf32, #tpu.memory_space<vmem>>, %arg9: memref<288x32xbf16, #tpu.memory_space<vmem>>, %arg10: memref<1x32xf32, #tpu.memory_space<vmem>>, %arg11: memref<1x324x32xf32, #tpu.memory_space<vmem>>, %arg12: memref<362x32xf32, #tpu.memory_space<vmem>>, %arg13: memref<324x288xbf16, #tpu.memory_space<vmem>>, %arg14: memref<324x32xf32, #tpu.memory_space<vmem>>) attributes {dimension_semantics = [#tpu.dimension_semantics<parallel>], iteration_bounds = array<i64: 4>, scalar_prefetch = 0 : i64, scratch_operands = 3 : i64, tpu.core_type = #tpu.core_type<tc>, window_params = [{transform_indices = @transform_0, window_bounds = array<i64: 1, 362, 32>}, {pipeline_mode = #tpu.pipeline_mode<synchronous>, transform_indices = @transform_1, window_bounds = array<i64: 1, 362, 1>}, {pipeline_mode = #tpu.pipeline_mode<synchronous>, transform_indices = @transform_2, window_bounds = array<i64: 1, 32>}, {pipeline_mode = #tpu.pipeline_mode<synchronous>, transform_indices = @transform_3, window_bounds = array<i64: 1, 32>}, {pipeline_mode = #tpu.pipeline_mode<synchronous>, transform_indices = @transform_4, window_bounds = array<i64: 288, 32>}, {pipeline_mode = #tpu.pipeline_mode<synchronous>, transform_indices = @transform_5, window_bounds = array<i64: 1, 32>}, {pipeline_mode = #tpu.pipeline_mode<synchronous>, transform_indices = @transform_6, window_bounds = array<i64: 1, 32>}, {pipeline_mode = #tpu.pipeline_mode<synchronous>, transform_indices = @transform_7, window_bounds = array<i64: 1, 32>}, {pipeline_mode = #tpu.pipeline_mode<synchronous>, transform_indices = @transform_8, window_bounds = array<i64: 288, 32>}, {pipeline_mode = #tpu.pipeline_mode<synchronous>, transform_indices = @transform_9, window_bounds = array<i64: 1, 32>}, {transform_indices = @transform_10, window_bounds = array<i64: 1, 324, 32>}]} {
    %c0 = arith.constant 0 : index
    %c0_0 = arith.constant 0 : index
    %c0_1 = arith.constant 0 : index
    %0 = vector.load %arg2[%c0, %c0_0, %c0_1] : memref<1x362x1xf32, #tpu.memory_space<vmem>>, vector<1x362x1xf32>
    %1 = vector.shape_cast %0 : vector<1x362x1xf32> to vector<362x1xf32>
    %c0_2 = arith.constant 0 : index
    %c19 = arith.constant 19 : index
    %c0_3 = arith.constant 0 : index
    %2 = vector.load %arg2[%c0_2, %c19, %c0_3] : memref<1x362x1xf32, #tpu.memory_space<vmem>>, vector<1x324x1xf32>
    %3 = vector.shape_cast %2 : vector<1x324x1xf32> to vector<324x1xf32>
    %c0_4 = arith.constant 0 : index
    %c0_5 = arith.constant 0 : index
    %c0_6 = arith.constant 0 : index
    %4 = vector.load %arg1[%c0_4, %c0_5, %c0_6] : memref<1x362x32xf32, #tpu.memory_space<vmem>>, vector<1x362x32xf32>
    %5 = vector.shape_cast %4 : vector<1x362x32xf32> to vector<362x32xf32>
    %c0_7 = arith.constant 0 : index
    %c0_8 = arith.constant 0 : index
    %6 = vector.load %arg3[%c0_7, %c0_8] : memref<1x32xf32, #tpu.memory_space<vmem>>, vector<1x32xf32>
    %c0_9 = arith.constant 0 : index
    %c0_10 = arith.constant 0 : index
    %7 = vector.load %arg4[%c0_9, %c0_10] : memref<1x32xf32, #tpu.memory_space<vmem>>, vector<1x32xf32>
    %cst = arith.constant dense<0.000000e+00> : vector<362xf32>
    %8 = vector.multi_reduction <add>, %5, %cst [1] : vector<362x32xf32> to vector<362xf32>
    %9 = vector.shape_cast %8 : vector<362xf32> to vector<362x1xf32>
    %cst_11 = arith.constant dense<0.000000e+00> : vector<1xf32>
    %10 = vector.multi_reduction <add>, %9, %cst_11 [0] : vector<362x1xf32> to vector<1xf32>
    %11 = vector.shape_cast %10 : vector<1xf32> to vector<1x1xf32>
    %12 = arith.mulf %5, %5 : vector<362x32xf32>
    %cst_12 = arith.constant dense<0.000000e+00> : vector<362xf32>
    %13 = vector.multi_reduction <add>, %12, %cst_12 [1] : vector<362x32xf32> to vector<362xf32>
    %14 = vector.shape_cast %13 : vector<362xf32> to vector<362x1xf32>
    %cst_13 = arith.constant dense<0.000000e+00> : vector<1xf32>
    %15 = vector.multi_reduction <add>, %14, %cst_13 [0] : vector<362x1xf32> to vector<1xf32>
    %16 = vector.shape_cast %15 : vector<1xf32> to vector<1x1xf32>
    %cst_14 = arith.constant 1.22070313E-4 : f32
    %17 = vector.broadcast %cst_14 : f32 to vector<1x1xf32>
    %18 = arith.mulf %11, %17 : vector<1x1xf32>
    %cst_15 = arith.constant 1.22070313E-4 : f32
    %19 = vector.broadcast %cst_15 : f32 to vector<1x1xf32>
    %20 = arith.mulf %16, %19 : vector<1x1xf32>
    %21 = arith.mulf %18, %18 : vector<1x1xf32>
    %22 = arith.subf %20, %21 : vector<1x1xf32>
    %cst_16 = arith.constant 9.99999974E-6 : f32
    %23 = vector.broadcast %cst_16 : f32 to vector<1x1xf32>
    %24 = arith.addf %22, %23 : vector<1x1xf32>
    %25 = math.rsqrt %24 : vector<1x1xf32>
    %26 = vector.broadcast %25 : vector<1x1xf32> to vector<1x32xf32>
    %27 = arith.mulf %26, %6 : vector<1x32xf32>
    %28 = vector.broadcast %18 : vector<1x1xf32> to vector<1x32xf32>
    %29 = arith.mulf %28, %27 : vector<1x32xf32>
    %30 = arith.subf %7, %29 : vector<1x32xf32>
    %31 = vector.broadcast %27 : vector<1x32xf32> to vector<362x32xf32>
    %32 = arith.mulf %5, %31 : vector<362x32xf32>
    %33 = vector.broadcast %30 : vector<1x32xf32> to vector<362x32xf32>
    %34 = arith.addf %32, %33 : vector<362x32xf32>
    %cst_17 = arith.constant 0.000000e+00 : f32
    %35 = vector.broadcast %cst_17 : f32 to vector<362x32xf32>
    %36 = arith.cmpf ogt, %34, %35 : vector<362x32xf32>
    %cst_18 = arith.constant 0.00999999977 : f32
    %37 = vector.broadcast %cst_18 : f32 to vector<362x32xf32>
    %38 = arith.mulf %37, %34 : vector<362x32xf32>
    %39 = arith.select %36, %34, %38 : vector<362x32xi1>, vector<362x32xf32>
    %40 = vector.broadcast %1 : vector<362x1xf32> to vector<362x32xf32>
    %41 = arith.mulf %39, %40 : vector<362x32xf32>
    %c0_19 = arith.constant 0 : index
    %c0_20 = arith.constant 0 : index
    %42 = vector.load %arg12[%c0_19, %c0_20] : memref<362x32xf32, #tpu.memory_space<vmem>>, vector<362x32xf32>
    tpu.vector_store %arg12[%c0_19, %c0_20], %41 {strides = array<i32>} : memref<362x32xf32, #tpu.memory_space<vmem>>, vector<362x32xf32>,
    %c0_21 = arith.constant 0 : index
    %c0_22 = arith.constant 0 : index
    %43 = vector.load %arg12[%c0_21, %c0_22] : memref<362x32xf32, #tpu.memory_space<vmem>>, vector<324x32xf32>
    %44 = arith.truncf %43 : vector<324x32xf32> to vector<324x32xbf16>
    %c0_23 = arith.constant 0 : index
    %c0_24 = arith.constant 0 : index
    %45 = vector.load %arg13[%c0_23, %c0_24] : memref<324x288xbf16, #tpu.memory_space<vmem>>, vector<324x32xbf16>
    tpu.vector_store %arg13[%c0_23, %c0_24], %44 {strides = array<i32>} : memref<324x288xbf16, #tpu.memory_space<vmem>>, vector<324x32xbf16>,
    %c1 = arith.constant 1 : index
    %c0_25 = arith.constant 0 : index
    %46 = vector.load %arg12[%c1, %c0_25] : memref<362x32xf32, #tpu.memory_space<vmem>>, vector<324x32xf32>
    %47 = arith.truncf %46 : vector<324x32xf32> to vector<324x32xbf16>
    %c0_26 = arith.constant 0 : index
    %c32 = arith.constant 32 : index
    %48 = vector.load %arg13[%c0_26, %c32] : memref<324x288xbf16, #tpu.memory_space<vmem>>, vector<324x32xbf16>
    tpu.vector_store %arg13[%c0_26, %c32], %47 {strides = array<i32>} : memref<324x288xbf16, #tpu.memory_space<vmem>>, vector<324x32xbf16>,
    %c2 = arith.constant 2 : index
    %c0_27 = arith.constant 0 : index
    %49 = vector.load %arg12[%c2, %c0_27] : memref<362x32xf32, #tpu.memory_space<vmem>>, vector<324x32xf32>
    %50 = arith.truncf %49 : vector<324x32xf32> to vector<324x32xbf16>
    %c0_28 = arith.constant 0 : index
    %c64 = arith.constant 64 : index
    %51 = vector.load %arg13[%c0_28, %c64] : memref<324x288xbf16, #tpu.memory_space<vmem>>, vector<324x32xbf16>
    tpu.vector_store %arg13[%c0_28, %c64], %50 {strides = array<i32>} : memref<324x288xbf16, #tpu.memory_space<vmem>>, vector<324x32xbf16>,
    %c18 = arith.constant 18 : index
    %c0_29 = arith.constant 0 : index
    %52 = vector.load %arg12[%c18, %c0_29] : memref<362x32xf32, #tpu.memory_space<vmem>>, vector<324x32xf32>
    %53 = arith.truncf %52 : vector<324x32xf32> to vector<324x32xbf16>
    %c0_30 = arith.constant 0 : index
    %c96 = arith.constant 96 : index
    %54 = vector.load %arg13[%c0_30, %c96] : memref<324x288xbf16, #tpu.memory_space<vmem>>, vector<324x32xbf16>
    tpu.vector_store %arg13[%c0_30, %c96], %53 {strides = array<i32>} : memref<324x288xbf16, #tpu.memory_space<vmem>>, vector<324x32xbf16>,
    %c19_31 = arith.constant 19 : index
    %c0_32 = arith.constant 0 : index
    %55 = vector.load %arg12[%c19_31, %c0_32] : memref<362x32xf32, #tpu.memory_space<vmem>>, vector<324x32xf32>
    %56 = arith.truncf %55 : vector<324x32xf32> to vector<324x32xbf16>
    %c0_33 = arith.constant 0 : index
    %c128 = arith.constant 128 : index
    %57 = vector.load %arg13[%c0_33, %c128] : memref<324x288xbf16, #tpu.memory_space<vmem>>, vector<324x32xbf16>
    tpu.vector_store %arg13[%c0_33, %c128], %56 {strides = array<i32>} : memref<324x288xbf16, #tpu.memory_space<vmem>>, vector<324x32xbf16>,
    %c20 = arith.constant 20 : index
    %c0_34 = arith.constant 0 : index
    %58 = vector.load %arg12[%c20, %c0_34] : memref<362x32xf32, #tpu.memory_space<vmem>>, vector<324x32xf32>
    %59 = arith.truncf %58 : vector<324x32xf32> to vector<324x32xbf16>
    %c0_35 = arith.constant 0 : index
    %c160 = arith.constant 160 : index
    %60 = vector.load %arg13[%c0_35, %c160] : memref<324x288xbf16, #tpu.memory_space<vmem>>, vector<324x32xbf16>
    tpu.vector_store %arg13[%c0_35, %c160], %59 {strides = array<i32>} : memref<324x288xbf16, #tpu.memory_space<vmem>>, vector<324x32xbf16>,
    %c36 = arith.constant 36 : index
    %c0_36 = arith.constant 0 : index
    %61 = vector.load %arg12[%c36, %c0_36] : memref<362x32xf32, #tpu.memory_space<vmem>>, vector<324x32xf32>
    %62 = arith.truncf %61 : vector<324x32xf32> to vector<324x32xbf16>
    %c0_37 = arith.constant 0 : index
    %c192 = arith.constant 192 : index
    %63 = vector.load %arg13[%c0_37, %c192] : memref<324x288xbf16, #tpu.memory_space<vmem>>, vector<324x32xbf16>
    tpu.vector_store %arg13[%c0_37, %c192], %62 {strides = array<i32>} : memref<324x288xbf16, #tpu.memory_space<vmem>>, vector<324x32xbf16>,
    %c37 = arith.constant 37 : index
    %c0_38 = arith.constant 0 : index
    %64 = vector.load %arg12[%c37, %c0_38] : memref<362x32xf32, #tpu.memory_space<vmem>>, vector<324x32xf32>
    %65 = arith.truncf %64 : vector<324x32xf32> to vector<324x32xbf16>
    %c0_39 = arith.constant 0 : index
    %c224 = arith.constant 224 : index
    %66 = vector.load %arg13[%c0_39, %c224] : memref<324x288xbf16, #tpu.memory_space<vmem>>, vector<324x32xbf16>
    tpu.vector_store %arg13[%c0_39, %c224], %65 {strides = array<i32>} : memref<324x288xbf16, #tpu.memory_space<vmem>>, vector<324x32xbf16>,
    %c38 = arith.constant 38 : index
    %c0_40 = arith.constant 0 : index
    %67 = vector.load %arg12[%c38, %c0_40] : memref<362x32xf32, #tpu.memory_space<vmem>>, vector<324x32xf32>
    %68 = arith.truncf %67 : vector<324x32xf32> to vector<324x32xbf16>
    %c0_41 = arith.constant 0 : index
    %c256 = arith.constant 256 : index
    %69 = vector.load %arg13[%c0_41, %c256] : memref<324x288xbf16, #tpu.memory_space<vmem>>, vector<324x32xbf16>
    tpu.vector_store %arg13[%c0_41, %c256], %68 {strides = array<i32>} : memref<324x288xbf16, #tpu.memory_space<vmem>>, vector<324x32xbf16>,
    %c0_42 = arith.constant 0 : index
    %c0_43 = arith.constant 0 : index
    %70 = vector.load %arg13[%c0_42, %c0_43] : memref<324x288xbf16, #tpu.memory_space<vmem>>, vector<324x288xbf16>
    %c0_44 = arith.constant 0 : index
    %c0_45 = arith.constant 0 : index
    %71 = vector.load %arg5[%c0_44, %c0_45] : memref<288x32xbf16, #tpu.memory_space<vmem>>, vector<288x32xbf16>
    %cst_46 = arith.constant dense<0.000000e+00> : vector<324x32xf32>
    %72 = tpu.matmul %70, %71, %cst_46 {dimension_numbers = #tpu.dot_dimension_numbers<[1], [0], [0], [1], [0, 0, 1, 1], [], []>} : vector<324x288xbf16>, vector<288x32xbf16>, vector<324x32xf32> -> vector<324x32xf32>
    %c0_47 = arith.constant 0 : index
    %c0_48 = arith.constant 0 : index
    %73 = vector.load %arg14[%c0_47, %c0_48] : memref<324x32xf32, #tpu.memory_space<vmem>>, vector<324x32xf32>
    tpu.vector_store %arg14[%c0_47, %c0_48], %72 {strides = array<i32>} : memref<324x32xf32, #tpu.memory_space<vmem>>, vector<324x32xf32>,
    %c0_49 = arith.constant 0 : index
    %c0_50 = arith.constant 0 : index
    %74 = vector.load %arg14[%c0_49, %c0_50] : memref<324x32xf32, #tpu.memory_space<vmem>>, vector<324x32xf32>
    %c0_51 = arith.constant 0 : index
    %c0_52 = arith.constant 0 : index
    %75 = vector.load %arg6[%c0_51, %c0_52] : memref<1x32xf32, #tpu.memory_space<vmem>>, vector<1x32xf32>
    %76 = vector.broadcast %75 : vector<1x32xf32> to vector<324x32xf32>
    %77 = arith.addf %74, %76 : vector<324x32xf32>
    %78 = vector.broadcast %3 : vector<324x1xf32> to vector<324x32xf32>
    %79 = arith.mulf %77, %78 : vector<324x32xf32>
    %c0_53 = arith.constant 0 : index
    %c0_54 = arith.constant 0 : index
    %80 = vector.load %arg7[%c0_53, %c0_54] : memref<1x32xf32, #tpu.memory_space<vmem>>, vector<1x32xf32>
    %c0_55 = arith.constant 0 : index
    %c0_56 = arith.constant 0 : index
    %81 = vector.load %arg8[%c0_55, %c0_56] : memref<1x32xf32, #tpu.memory_space<vmem>>, vector<1x32xf32>
    %cst_57 = arith.constant dense<0.000000e+00> : vector<324xf32>
    %82 = vector.multi_reduction <add>, %79, %cst_57 [1] : vector<324x32xf32> to vector<324xf32>
    %83 = vector.shape_cast %82 : vector<324xf32> to vector<324x1xf32>
    %cst_58 = arith.constant dense<0.000000e+00> : vector<1xf32>
    %84 = vector.multi_reduction <add>, %83, %cst_58 [0] : vector<324x1xf32> to vector<1xf32>
    %85 = vector.shape_cast %84 : vector<1xf32> to vector<1x1xf32>
    %86 = arith.mulf %79, %79 : vector<324x32xf32>
    %cst_59 = arith.constant dense<0.000000e+00> : vector<324xf32>
    %87 = vector.multi_reduction <add>, %86, %cst_59 [1] : vector<324x32xf32> to vector<324xf32>
    %88 = vector.shape_cast %87 : vector<324xf32> to vector<324x1xf32>
    %cst_60 = arith.constant dense<0.000000e+00> : vector<1xf32>
    %89 = vector.multi_reduction <add>, %88, %cst_60 [0] : vector<324x1xf32> to vector<1xf32>
    %90 = vector.shape_cast %89 : vector<1xf32> to vector<1x1xf32>
    %cst_61 = arith.constant 1.22070313E-4 : f32
    %91 = vector.broadcast %cst_61 : f32 to vector<1x1xf32>
    %92 = arith.mulf %85, %91 : vector<1x1xf32>
    %cst_62 = arith.constant 1.22070313E-4 : f32
    %93 = vector.broadcast %cst_62 : f32 to vector<1x1xf32>
    %94 = arith.mulf %90, %93 : vector<1x1xf32>
    %95 = arith.mulf %92, %92 : vector<1x1xf32>
    %96 = arith.subf %94, %95 : vector<1x1xf32>
    %cst_63 = arith.constant 9.99999974E-6 : f32
    %97 = vector.broadcast %cst_63 : f32 to vector<1x1xf32>
    %98 = arith.addf %96, %97 : vector<1x1xf32>
    %99 = math.rsqrt %98 : vector<1x1xf32>
    %100 = vector.broadcast %99 : vector<1x1xf32> to vector<1x32xf32>
    %101 = arith.mulf %100, %80 : vector<1x32xf32>
    %102 = vector.broadcast %92 : vector<1x1xf32> to vector<1x32xf32>
    %103 = arith.mulf %102, %101 : vector<1x32xf32>
    %104 = arith.subf %81, %103 : vector<1x32xf32>
    %105 = vector.broadcast %101 : vector<1x32xf32> to vector<324x32xf32>
    %106 = arith.mulf %79, %105 : vector<324x32xf32>
    %107 = vector.broadcast %104 : vector<1x32xf32> to vector<324x32xf32>
    %108 = arith.addf %106, %107 : vector<324x32xf32>
    %cst_64 = arith.constant 0.000000e+00 : f32
    %109 = vector.broadcast %cst_64 : f32 to vector<324x32xf32>
    %110 = arith.cmpf ogt, %108, %109 : vector<324x32xf32>
    %cst_65 = arith.constant 0.00999999977 : f32
    %111 = vector.broadcast %cst_65 : f32 to vector<324x32xf32>
    %112 = arith.mulf %111, %108 : vector<324x32xf32>
    %113 = arith.select %110, %108, %112 : vector<324x32xi1>, vector<324x32xf32>
    %114 = vector.broadcast %3 : vector<324x1xf32> to vector<324x32xf32>
    %115 = arith.mulf %113, %114 : vector<324x32xf32>
    %c19_66 = arith.constant 19 : index
    %c0_67 = arith.constant 0 : index
    %116 = vector.load %arg12[%c19_66, %c0_67] : memref<362x32xf32, #tpu.memory_space<vmem>>, vector<324x32xf32>
    tpu.vector_store %arg12[%c19_66, %c0_67], %115 {strides = array<i32>} : memref<362x32xf32, #tpu.memory_space<vmem>>, vector<324x32xf32>,
    %c0_68 = arith.constant 0 : index
    %c0_69 = arith.constant 0 : index
    %117 = vector.load %arg12[%c0_68, %c0_69] : memref<362x32xf32, #tpu.memory_space<vmem>>, vector<324x32xf32>
    %118 = arith.truncf %117 : vector<324x32xf32> to vector<324x32xbf16>
    %c0_70 = arith.constant 0 : index
    %c0_71 = arith.constant 0 : index
    %119 = vector.load %arg13[%c0_70, %c0_71] : memref<324x288xbf16, #tpu.memory_space<vmem>>, vector<324x32xbf16>
    tpu.vector_store %arg13[%c0_70, %c0_71], %118 {strides = array<i32>} : memref<324x288xbf16, #tpu.memory_space<vmem>>, vector<324x32xbf16>,
    %c1_72 = arith.constant 1 : index
    %c0_73 = arith.constant 0 : index
    %120 = vector.load %arg12[%c1_72, %c0_73] : memref<362x32xf32, #tpu.memory_space<vmem>>, vector<324x32xf32>
    %121 = arith.truncf %120 : vector<324x32xf32> to vector<324x32xbf16>
    %c0_74 = arith.constant 0 : index
    %c32_75 = arith.constant 32 : index
    %122 = vector.load %arg13[%c0_74, %c32_75] : memref<324x288xbf16, #tpu.memory_space<vmem>>, vector<324x32xbf16>
    tpu.vector_store %arg13[%c0_74, %c32_75], %121 {strides = array<i32>} : memref<324x288xbf16, #tpu.memory_space<vmem>>, vector<324x32xbf16>,
    %c2_76 = arith.constant 2 : index
    %c0_77 = arith.constant 0 : index
    %123 = vector.load %arg12[%c2_76, %c0_77] : memref<362x32xf32, #tpu.memory_space<vmem>>, vector<324x32xf32>
    %124 = arith.truncf %123 : vector<324x32xf32> to vector<324x32xbf16>
    %c0_78 = arith.constant 0 : index
    %c64_79 = arith.constant 64 : index
    %125 = vector.load %arg13[%c0_78, %c64_79] : memref<324x288xbf16, #tpu.memory_space<vmem>>, vector<324x32xbf16>
    tpu.vector_store %arg13[%c0_78, %c64_79], %124 {strides = array<i32>} : memref<324x288xbf16, #tpu.memory_space<vmem>>, vector<324x32xbf16>,
    %c18_80 = arith.constant 18 : index
    %c0_81 = arith.constant 0 : index
    %126 = vector.load %arg12[%c18_80, %c0_81] : memref<362x32xf32, #tpu.memory_space<vmem>>, vector<324x32xf32>
    %127 = arith.truncf %126 : vector<324x32xf32> to vector<324x32xbf16>
    %c0_82 = arith.constant 0 : index
    %c96_83 = arith.constant 96 : index
    %128 = vector.load %arg13[%c0_82, %c96_83] : memref<324x288xbf16, #tpu.memory_space<vmem>>, vector<324x32xbf16>
    tpu.vector_store %arg13[%c0_82, %c96_83], %127 {strides = array<i32>} : memref<324x288xbf16, #tpu.memory_space<vmem>>, vector<324x32xbf16>,
    %c19_84 = arith.constant 19 : index
    %c0_85 = arith.constant 0 : index
    %129 = vector.load %arg12[%c19_84, %c0_85] : memref<362x32xf32, #tpu.memory_space<vmem>>, vector<324x32xf32>
    %130 = arith.truncf %129 : vector<324x32xf32> to vector<324x32xbf16>
    %c0_86 = arith.constant 0 : index
    %c128_87 = arith.constant 128 : index
    %131 = vector.load %arg13[%c0_86, %c128_87] : memref<324x288xbf16, #tpu.memory_space<vmem>>, vector<324x32xbf16>
    tpu.vector_store %arg13[%c0_86, %c128_87], %130 {strides = array<i32>} : memref<324x288xbf16, #tpu.memory_space<vmem>>, vector<324x32xbf16>,
    %c20_88 = arith.constant 20 : index
    %c0_89 = arith.constant 0 : index
    %132 = vector.load %arg12[%c20_88, %c0_89] : memref<362x32xf32, #tpu.memory_space<vmem>>, vector<324x32xf32>
    %133 = arith.truncf %132 : vector<324x32xf32> to vector<324x32xbf16>
    %c0_90 = arith.constant 0 : index
    %c160_91 = arith.constant 160 : index
    %134 = vector.load %arg13[%c0_90, %c160_91] : memref<324x288xbf16, #tpu.memory_space<vmem>>, vector<324x32xbf16>
    tpu.vector_store %arg13[%c0_90, %c160_91], %133 {strides = array<i32>} : memref<324x288xbf16, #tpu.memory_space<vmem>>, vector<324x32xbf16>,
    %c36_92 = arith.constant 36 : index
    %c0_93 = arith.constant 0 : index
    %135 = vector.load %arg12[%c36_92, %c0_93] : memref<362x32xf32, #tpu.memory_space<vmem>>, vector<324x32xf32>
    %136 = arith.truncf %135 : vector<324x32xf32> to vector<324x32xbf16>
    %c0_94 = arith.constant 0 : index
    %c192_95 = arith.constant 192 : index
    %137 = vector.load %arg13[%c0_94, %c192_95] : memref<324x288xbf16, #tpu.memory_space<vmem>>, vector<324x32xbf16>
    tpu.vector_store %arg13[%c0_94, %c192_95], %136 {strides = array<i32>} : memref<324x288xbf16, #tpu.memory_space<vmem>>, vector<324x32xbf16>,
    %c37_96 = arith.constant 37 : index
    %c0_97 = arith.constant 0 : index
    %138 = vector.load %arg12[%c37_96, %c0_97] : memref<362x32xf32, #tpu.memory_space<vmem>>, vector<324x32xf32>
    %139 = arith.truncf %138 : vector<324x32xf32> to vector<324x32xbf16>
    %c0_98 = arith.constant 0 : index
    %c224_99 = arith.constant 224 : index
    %140 = vector.load %arg13[%c0_98, %c224_99] : memref<324x288xbf16, #tpu.memory_space<vmem>>, vector<324x32xbf16>
    tpu.vector_store %arg13[%c0_98, %c224_99], %139 {strides = array<i32>} : memref<324x288xbf16, #tpu.memory_space<vmem>>, vector<324x32xbf16>,
    %c38_100 = arith.constant 38 : index
    %c0_101 = arith.constant 0 : index
    %141 = vector.load %arg12[%c38_100, %c0_101] : memref<362x32xf32, #tpu.memory_space<vmem>>, vector<324x32xf32>
    %142 = arith.truncf %141 : vector<324x32xf32> to vector<324x32xbf16>
    %c0_102 = arith.constant 0 : index
    %c256_103 = arith.constant 256 : index
    %143 = vector.load %arg13[%c0_102, %c256_103] : memref<324x288xbf16, #tpu.memory_space<vmem>>, vector<324x32xbf16>
    tpu.vector_store %arg13[%c0_102, %c256_103], %142 {strides = array<i32>} : memref<324x288xbf16, #tpu.memory_space<vmem>>, vector<324x32xbf16>,
    %c0_104 = arith.constant 0 : index
    %c0_105 = arith.constant 0 : index
    %144 = vector.load %arg13[%c0_104, %c0_105] : memref<324x288xbf16, #tpu.memory_space<vmem>>, vector<324x288xbf16>
    %c0_106 = arith.constant 0 : index
    %c0_107 = arith.constant 0 : index
    %145 = vector.load %arg9[%c0_106, %c0_107] : memref<288x32xbf16, #tpu.memory_space<vmem>>, vector<288x32xbf16>
    %cst_108 = arith.constant dense<0.000000e+00> : vector<324x32xf32>
    %146 = tpu.matmul %144, %145, %cst_108 {dimension_numbers = #tpu.dot_dimension_numbers<[1], [0], [0], [1], [0, 0, 1, 1], [], []>} : vector<324x288xbf16>, vector<288x32xbf16>, vector<324x32xf32> -> vector<324x32xf32>
    %c0_109 = arith.constant 0 : index
    %c0_110 = arith.constant 0 : index
    %147 = vector.load %arg14[%c0_109, %c0_110] : memref<324x32xf32, #tpu.memory_space<vmem>>, vector<324x32xf32>
    tpu.vector_store %arg14[%c0_109, %c0_110], %146 {strides = array<i32>} : memref<324x32xf32, #tpu.memory_space<vmem>>, vector<324x32xf32>,
    %c0_111 = arith.constant 0 : index
    %c0_112 = arith.constant 0 : index
    %148 = vector.load %arg14[%c0_111, %c0_112] : memref<324x32xf32, #tpu.memory_space<vmem>>, vector<324x32xf32>
    %c0_113 = arith.constant 0 : index
    %c0_114 = arith.constant 0 : index
    %149 = vector.load %arg10[%c0_113, %c0_114] : memref<1x32xf32, #tpu.memory_space<vmem>>, vector<1x32xf32>
    %150 = vector.broadcast %149 : vector<1x32xf32> to vector<324x32xf32>
    %151 = arith.addf %148, %150 : vector<324x32xf32>
    %c0_115 = arith.constant 0 : index
    %c19_116 = arith.constant 19 : index
    %c0_117 = arith.constant 0 : index
    %152 = vector.load %arg1[%c0_115, %c19_116, %c0_117] : memref<1x362x32xf32, #tpu.memory_space<vmem>>, vector<1x324x32xf32>
    %153 = vector.shape_cast %152 : vector<1x324x32xf32> to vector<324x32xf32>
    %154 = arith.addf %151, %153 : vector<324x32xf32>
    %c0_118 = arith.constant 0 : index
    %c0_119 = arith.constant 0 : index
    %c0_120 = arith.constant 0 : index
    %155 = vector.load %arg11[%c0_118, %c0_119, %c0_120] : memref<1x324x32xf32, #tpu.memory_space<vmem>>, vector<1x324x32xf32>
    %156 = vector.shape_cast %155 : vector<1x324x32xf32> to vector<324x32xf32>
    %157 = vector.shape_cast %154 : vector<324x32xf32> to vector<1x324x32xf32>
    tpu.vector_store %arg11[%c0_118, %c0_119, %c0_120], %157 {strides = array<i32>} : memref<1x324x32xf32, #tpu.memory_space<vmem>>, vector<1x324x32xf32>,
    return
  }
  func.func @transform_0(%arg0: i32) -> (i32, i32, i32) {
    %c0_i32 = arith.constant 0 : i32
    %c0_i32_0 = arith.constant 0 : i32
    %c0_i32_1 = arith.constant 0 : i32
    return %arg0, %c0_i32, %c0_i32_0 : i32, i32, i32
  }
  func.func @transform_1(%arg0: i32) -> (i32, i32, i32) {
    %c0_i32 = arith.constant 0 : i32
    %c0_i32_0 = arith.constant 0 : i32
    %c0_i32_1 = arith.constant 0 : i32
    %c0_i32_2 = arith.constant 0 : i32
    return %c0_i32, %c0_i32_0, %c0_i32_1 : i32, i32, i32
  }
  func.func @transform_2(%arg0: i32) -> (i32, i32) {
    %c0_i32 = arith.constant 0 : i32
    %c0_i32_0 = arith.constant 0 : i32
    %c0_i32_1 = arith.constant 0 : i32
    return %c0_i32, %c0_i32_0 : i32, i32
  }
  func.func @transform_3(%arg0: i32) -> (i32, i32) {
    %c0_i32 = arith.constant 0 : i32
    %c0_i32_0 = arith.constant 0 : i32
    %c0_i32_1 = arith.constant 0 : i32
    return %c0_i32, %c0_i32_0 : i32, i32
  }
  func.func @transform_4(%arg0: i32) -> (i32, i32) {
    %c0_i32 = arith.constant 0 : i32
    %c0_i32_0 = arith.constant 0 : i32
    %c0_i32_1 = arith.constant 0 : i32
    return %c0_i32, %c0_i32_0 : i32, i32
  }
  func.func @transform_5(%arg0: i32) -> (i32, i32) {
    %c0_i32 = arith.constant 0 : i32
    %c0_i32_0 = arith.constant 0 : i32
    %c0_i32_1 = arith.constant 0 : i32
    return %c0_i32, %c0_i32_0 : i32, i32
  }
  func.func @transform_6(%arg0: i32) -> (i32, i32) {
    %c0_i32 = arith.constant 0 : i32
    %c0_i32_0 = arith.constant 0 : i32
    %c0_i32_1 = arith.constant 0 : i32
    return %c0_i32, %c0_i32_0 : i32, i32
  }
  func.func @transform_7(%arg0: i32) -> (i32, i32) {
    %c0_i32 = arith.constant 0 : i32
    %c0_i32_0 = arith.constant 0 : i32
    %c0_i32_1 = arith.constant 0 : i32
    return %c0_i32, %c0_i32_0 : i32, i32
  }
  func.func @transform_8(%arg0: i32) -> (i32, i32) {
    %c0_i32 = arith.constant 0 : i32
    %c0_i32_0 = arith.constant 0 : i32
    %c0_i32_1 = arith.constant 0 : i32
    return %c0_i32, %c0_i32_0 : i32, i32
  }
  func.func @transform_9(%arg0: i32) -> (i32, i32) {
    %c0_i32 = arith.constant 0 : i32
    %c0_i32_0 = arith.constant 0 : i32
    %c0_i32_1 = arith.constant 0 : i32
    return %c0_i32, %c0_i32_0 : i32, i32
  }
  func.func @transform_10(%arg0: i32) -> (i32, i32, i32) {
    %c0_i32 = arith.constant 0 : i32
    %c0_i32_0 = arith.constant 0 : i32
    %c0_i32_1 = arith.constant 0 : i32
    return %arg0, %c0_i32, %c0_i32_0 : i32, i32, i32
  }
}

</mosaic_0001>

<llo_original>
// kernel: green_block_forward.1
$region0: #{green_block_forward.1}
  #allocation0 [shape = 'u32[]', space=smem, size = 0x4, offset = 0x4, fixed_abs, tag = 'smem constant byte address 0x4 - core index']
  #allocation1 [shape = 'u32[72,128]{1,0:T(1,128)}', space=vmem, size = 0x9000, scoped, tag = 'internal scratch']
  #allocation2 [shape = 'f32[362,32]{1,0:T(8,128)}', space=vmem, size = 0x2e000, scoped, tag = 'scratch operand']
  #allocation3 [shape = 'bf16[324,288]{1,0:T(8,128)(2,1)}', space=vmem, size = 0x3d800, scoped, tag = 'scratch operand']
  #allocation4 [shape = 'f32[324,32]{1,0:T(8,128)}', space=vmem, size = 0x29000, scoped, tag = 'scratch operand']
  %s0 = inlined_call_operand.vmem [shape: f32[4,362,32], index: 0, kind: input, shape index: {}]
  %s1 = inlined_call_operand.vmem [shape: f32[1,362,1], index: 1, kind: input, shape index: {}]
  %s2 = inlined_call_operand.vmem [shape: f32[1,32], index: 2, kind: input, shape index: {}]
  %s3 = inlined_call_operand.vmem [shape: f32[1,32], index: 3, kind: input, shape index: {}]
  %s4 = inlined_call_operand.vmem [shape: bf16[288,32], index: 4, kind: input, shape index: {}]
  %s5 = inlined_call_operand.vmem [shape: f32[1,32], index: 5, kind: input, shape index: {}]
  %s6 = inlined_call_operand.vmem [shape: f32[1,32], index: 6, kind: input, shape index: {}]
  %s7 = inlined_call_operand.vmem [shape: f32[1,32], index: 7, kind: input, shape index: {}]
  %s8 = inlined_call_operand.vmem [shape: bf16[288,32], index: 8, kind: input, shape index: {}]
  %s9 = inlined_call_operand.vmem [shape: f32[1,32], index: 9, kind: input, shape index: {}]
  %s10 = inlined_call_operand.vmem [shape: f32[4,324,32], index: 10, kind: output, shape index: {}]
  %s11 = sld [smem:[#allocation0]]
  $region73: #{green_block_forward.1} parent=0
    _
  %s13 = ssub.s32 1, %s11
  %s14 = scalar_select 0, %s13, %s11
  loop: start=0, step=1, limit=6
  $region2: #{green_block_forward.1} parent=0 // loop_pre_header
    _
  $region3: #{green_block_forward.1} parent=0 // loop_header
    %s16 = sphi 0, %s20
    %p17 = scmp.ge.s32.totalorder %s16, 6
    %s26 = sphi 0, %s28
    %s29 = sphi 0, %s26
    %s30 = sphi 0, %s29
    %s46 = sphi 0, %s30
    %s50 = sphi 0, %s50
    %s52 = sphi 0, %s50
    %s53 = sphi 0, %s52
    %s67 = sphi 0, %s53
    %s71 = sphi 0, %s71
    %s73 = sphi 0, %s71
    %s74 = sphi 0, %s73
    %s88 = sphi 0, %s74
    %s92 = sphi 0, %s92
    %s94 = sphi 0, %s92
    %s95 = sphi 0, %s94
    %s109 = sphi 0, %s95
    %s113 = sphi 0, %s113
    %s115 = sphi 0, %s113
    %s116 = sphi 0, %s115
    %s130 = sphi 0, %s116
    %s134 = sphi 0, %s134
    %s136 = sphi 0, %s134
    %s137 = sphi 0, %s136
    %s151 = sphi 0, %s137
    %s155 = sphi 0, %s155
    %s157 = sphi 0, %s155
    %s158 = sphi 0, %s157
    %s172 = sphi 0, %s158
    %s176 = sphi 0, %s176
    %s178 = sphi 0, %s176
    %s179 = sphi 0, %s178
    %s193 = sphi 0, %s179
    %s197 = sphi 0, %s197
    %s199 = sphi 0, %s197
    %s200 = sphi 0, %s199
    %s214 = sphi 0, %s200
    %s218 = sphi 0, %s218
    %s220 = sphi 0, %s218
    %s221 = sphi 0, %s220
    %s235 = sphi 0, %s221
    %s241 = sphi 0, %s243
    %s244 = sphi 0, %s241
    %s245 = sphi 0, %s244
    %s261 = sphi 0, %s245
  $region4: #{green_block_forward.1} parent=0 // loop_header_branch
    %19 = sbr.rel (%p17) target = $region8
  $region5: #{green_block_forward.1} parent=0 // loop_body
    %s21 = ssub.s32 %s16, 1
    %s22 = ssub.s32 %s16, 2
    %s23 = sadd.s32 %s16, 1
    %s24 = ssub.s32 %s16, %s23
    %p25 = scmp.eq.s32.totalorder %s24, 0
    %s27 = sadd.s32 %s26, 1
    %s28 = scalar_select %p25, %s26, %s27
    %p31 = pneg %p25
    %p32 = scmp.eq.s32.totalorder %s16, 3
    %p33 = por %p31, %p32
    %p34 = scmp.ne.s32.totalorder %s26, %s29
    %p35 = scmp.eq.s32.totalorder %s16, 0
    %p36 = por %p34, %p35
    %p37 = scmp.ne.s32.totalorder %s26, %s29
    %p38 = scmp.eq.s32.totalorder %s21, 3
    %p39 = por %p37, %p38
    %p40 = scmp.ne.s32.totalorder %s29, %s30
    %p41 = scmp.eq.s32.totalorder %s21, 0
    %p42 = por %p40, %p41
    %p43 = scmp.ne.s32.totalorder %s29, %s30
    %p44 = scmp.eq.s32.totalorder %s22, 3
    %p45 = por %p43, %p44
    %p47 = scmp.ne.s32.totalorder %s30, %s46
    %p48 = scmp.eq.s32.totalorder %s22, 0
    %p49 = por %p47, %p48
    %s51 = sadd.s32 %s50, 1
    %p54 = scmp.eq.s32.totalorder %s16, 3
    %p55 = scmp.ne.s32.totalorder %s50, %s52
    %p56 = scmp.eq.s32.totalorder %s16, 0
    %p57 = por %p55, %p56
    %p58 = scmp.ne.s32.totalorder %s50, %s52
    %p59 = scmp.eq.s32.totalorder %s21, 3
    %p60 = por %p58, %p59
    %p61 = scmp.ne.s32.totalorder %s52, %s53
    %p62 = scmp.eq.s32.totalorder %s21, 0
    %p63 = por %p61, %p62
    %p64 = scmp.ne.s32.totalorder %s52, %s53
    %p65 = scmp.eq.s32.totalorder %s22, 3
    %p66 = por %p64, %p65
    %p68 = scmp.ne.s32.totalorder %s53, %s67
    %p69 = scmp.eq.s32.totalorder %s22, 0
    %p70 = por %p68, %p69
    %s72 = sadd.s32 %s71, 1
    %p75 = scmp.eq.s32.totalorder %s16, 3
    %p76 = scmp.ne.s32.totalorder %s71, %s73
    %p77 = scmp.eq.s32.totalorder %s16, 0
    %p78 = por %p76, %p77
    %p79 = scmp.ne.s32.totalorder %s71, %s73
    %p80 = scmp.eq.s32.totalorder %s21, 3
    %p81 = por %p79, %p80
    %p82 = scmp.ne.s32.totalorder %s73, %s74
    %p83 = scmp.eq.s32.totalorder %s21, 0
    %p84 = por %p82, %p83
    %p85 = scmp.ne.s32.totalorder %s73, %s74
    %p86 = scmp.eq.s32.totalorder %s22, 3
    %p87 = por %p85, %p86
    %p89 = scmp.ne.s32.totalorder %s74, %s88
    %p90 = scmp.eq.s32.totalorder %s22, 0
    %p91 = por %p89, %p90
    %s93 = sadd.s32 %s92, 1
    %p96 = scmp.eq.s32.totalorder %s16, 3
    %p97 = scmp.ne.s32.totalorder %s92, %s94
    %p98 = scmp.eq.s32.totalorder %s16, 0
    %p99 = por %p97, %p98
    %p100 = scmp.ne.s32.totalorder %s92, %s94
    %p101 = scmp.eq.s32.totalorder %s21, 3
    %p102 = por %p100, %p101
    %p103 = scmp.ne.s32.totalorder %s94, %s95
    %p104 = scmp.eq.s32.totalorder %s21, 0
    %p105 = por %p103, %p104
    %p106 = scmp.ne.s32.totalorder %s94, %s95
    %p107 = scmp.eq.s32.totalorder %s22, 3
    %p108 = por %p106, %p107
    %p110 = scmp.ne.s32.totalorder %s95, %s109
    %p111 = scmp.eq.s32.totalorder %s22, 0
    %p112 = por %p110, %p111
    %s114 = sadd.s32 %s113, 1
    %p117 = scmp.eq.s32.totalorder %s16, 3
    %p118 = scmp.ne.s32.totalorder %s113, %s115
    %p119 = scmp.eq.s32.totalorder %s16, 0
    %p120 = por %p118, %p119
    %p121 = scmp.ne.s32.totalorder %s113, %s115
    %p122 = scmp.eq.s32.totalorder %s21, 3
    %p123 = por %p121, %p122
    %p124 = scmp.ne.s32.totalorder %s115, %s116
    %p125 = scmp.eq.s32.totalorder %s21, 0
    %p126 = por %p124, %p125
    %p127 = scmp.ne.s32.totalorder %s115, %s116
    %p128 = scmp.eq.s32.totalorder %s22, 3
    %p129 = por %p127, %p128
    %p131 = scmp.ne.s32.totalorder %s116, %s130
    %p132 = scmp.eq.s32.totalorder %s22, 0
    %p133 = por %p131, %p132
    %s135 = sadd.s32 %s134, 1
    %p138 = scmp.eq.s32.totalorder %s16, 3
    %p139 = scmp.ne.s32.totalorder %s134, %s136
    %p140 = scmp.eq.s32.totalorder %s16, 0
    %p141 = por %p139, %p140
    %p142 = scmp.ne.s32.totalorder %s134, %s136
    %p143 = scmp.eq.s32.totalorder %s21, 3
    %p144 = por %p142, %p143
    %p145 = scmp.ne.s32.totalorder %s136, %s137
    %p146 = scmp.eq.s32.totalorder %s21, 0
    %p147 = por %p145, %p146
    %p148 = scmp.ne.s32.totalorder %s136, %s137
    %p149 = scmp.eq.s32.totalorder %s22, 3
    %p150 = por %p148, %p149
    %p152 = scmp.ne.s32.totalorder %s137, %s151
    %p153 = scmp.eq.s32.totalorder %s22, 0
    %p154 = por %p152, %p153
    %s156 = sadd.s32 %s155, 1
    %p159 = scmp.eq.s32.totalorder %s16, 3
    %p160 = scmp.ne.s32.totalorder %s155, %s157
    %p161 = scmp.eq.s32.totalorder %s16, 0
    %p162 = por %p160, %p161
    %p163 = scmp.ne.s32.totalorder %s155, %s157
    %p164 = scmp.eq.s32.totalorder %s21, 3
    %p165 = por %p163, %p164
    %p166 = scmp.ne.s32.totalorder %s157, %s158
    %p167 = scmp.eq.s32.totalorder %s21, 0
    %p168 = por %p166, %p167
    %p169 = scmp.ne.s32.totalorder %s157, %s158
    %p170 = scmp.eq.s32.totalorder %s22, 3
    %p171 = por %p169, %p170
    %p173 = scmp.ne.s32.totalorder %s158, %s172
    %p174 = scmp.eq.s32.totalorder %s22, 0
    %p175 = por %p173, %p174
    %s177 = sadd.s32 %s176, 1
    %p180 = scmp.eq.s32.totalorder %s16, 3
    %p181 = scmp.ne.s32.totalorder %s176, %s178
    %p182 = scmp.eq.s32.totalorder %s16, 0
    %p183 = por %p181, %p182
    %p184 = scmp.ne.s32.totalorder %s176, %s178
    %p185 = scmp.eq.s32.totalorder %s21, 3
    %p186 = por %p184, %p185
    %p187 = scmp.ne.s32.totalorder %s178, %s179
    %p188 = scmp.eq.s32.totalorder %s21, 0
    %p189 = por %p187, %p188
    %p190 = scmp.ne.s32.totalorder %s178, %s179
    %p191 = scmp.eq.s32.totalorder %s22, 3
    %p192 = por %p190, %p191
    %p194 = scmp.ne.s32.totalorder %s179, %s193
    %p195 = scmp.eq.s32.totalorder %s22, 0
    %p196 = por %p194, %p195
    %s198 = sadd.s32 %s197, 1
    %p201 = scmp.eq.s32.totalorder %s16, 3
    %p202 = scmp.ne.s32.totalorder %s197, %s199
    %p203 = scmp.eq.s32.totalorder %s16, 0
    %p204 = por %p202, %p203
    %p205 = scmp.ne.s32.totalorder %s197, %s199
    %p206 = scmp.eq.s32.totalorder %s21, 3
    %p207 = por %p205, %p206
    %p208 = scmp.ne.s32.totalorder %s199, %s200
    %p209 = scmp.eq.s32.totalorder %s21, 0
    %p210 = por %p208, %p209
    %p211 = scmp.ne.s32.totalorder %s199, %s200
    %p212 = scmp.eq.s32.totalorder %s22, 3
    %p213 = por %p211, %p212
    %p215 = scmp.ne.s32.totalorder %s200, %s214
    %p216 = scmp.eq.s32.totalorder %s22, 0
    %p217 = por %p215, %p216
    %s219 = sadd.s32 %s218, 1
    %p222 = scmp.eq.s32.totalorder %s16, 3
    %p223 = scmp.ne.s32.totalorder %s218, %s220
    %p224 = scmp.eq.s32.totalorder %s16, 0
    %p225 = por %p223, %p224
    %p226 = scmp.ne.s32.totalorder %s218, %s220
    %p227 = scmp.eq.s32.totalorder %s21, 3
    %p228 = por %p226, %p227
    %p229 = scmp.ne.s32.totalorder %s220, %s221
    %p230 = scmp.eq.s32.totalorder %s21, 0
    %p231 = por %p229, %p230
    %p232 = scmp.ne.s32.totalorder %s220, %s221
    %p233 = scmp.eq.s32.totalorder %s22, 3
    %p234 = por %p232, %p233
    %p236 = scmp.ne.s32.totalorder %s221, %s235
    %p237 = scmp.eq.s32.totalorder %s22, 0
    %p238 = por %p236, %p237
    %s239 = ssub.s32 %s16, %s23
    %p240 = scmp.eq.s32.totalorder %s239, 0
    %s242 = sadd.s32 %s241, 1
    %s243 = scalar_select %p240, %s241, %s242
    %p246 = pneg %p240
    %p247 = scmp.eq.s32.totalorder %s16, 3
    %p248 = por %p246, %p247
    %p249 = scmp.ne.s32.totalorder %s241, %s244
    %p250 = scmp.eq.s32.totalorder %s16, 0
    %p251 = por %p249, %p250
    %p252 = scmp.ne.s32.totalorder %s241, %s244
    %p253 = scmp.eq.s32.totalorder %s21, 3
    %p254 = por %p252, %p253
    %p255 = scmp.ne.s32.totalorder %s244, %s245
    %p256 = scmp.eq.s32.totalorder %s21, 0
    %p257 = por %p255, %p256
    %p258 = scmp.ne.s32.totalorder %s244, %s245
    %p259 = scmp.eq.s32.totalorder %s22, 3
    %p260 = por %p258, %p259
    %p262 = scmp.ne.s32.totalorder %s245, %s261
    %p263 = scmp.eq.s32.totalorder %s22, 0
    %p264 = por %p262, %p263
    %p265 = scmp.le.s32.totalorder 1, %s16
    %p266 = scmp.lt.s32.totalorder %s16, 5
    %p267 = pnand %p265, %p266
    %p268 = pneg %p267
    // Predicated region
    $region9: #{green_block_forward.1} parent=5 // pred_check
      _
    $region10: #{green_block_forward.1} parent=5 // pred_check_branch
      %270 = sbr.rel (%p267) target = $region12
    $region11: #{green_block_forward.1} parent=5 // pred_region
      %s271 = ssub.s32 %s16, 1
      // Predicated region
      $region13: #{green_block_forward.1} parent=11 // pred_check
        %p272 = pneg %p63
      $region14: #{green_block_forward.1} parent=11 // pred_check_branch
        %274 = sbr.rel (%p272) target = $region16
      $region15: #{green_block_forward.1} parent=11 // pred_region
        _
      $region16: #{green_block_forward.1} parent=11 // pred_fallthru
        _
      // Predicated region
      $region17: #{green_block_forward.1} parent=11 // pred_check
        %p275 = pneg %p84
      $region18: #{green_block_forward.1} parent=11 // pred_check_branch
        %277 = sbr.rel (%p275) target = $region20
      $region19: #{green_block_forward.1} parent=11 // pred_region
        _
      $region20: #{green_block_forward.1} parent=11 // pred_fallthru
        _
      // Predicated region
      $region21: #{green_block_forward.1} parent=11 // pred_check
        %p278 = pneg %p105
      $region22: #{green_block_forward.1} parent=11 // pred_check_branch
        %280 = sbr.rel (%p278) target = $region24
      $region23: #{green_block_forward.1} parent=11 // pred_region
        _
      $region24: #{green_block_forward.1} parent=11 // pred_fallthru
        _
      // Predicated region
      $region25: #{green_block_forward.1} parent=11 // pred_check
        %p281 = pneg %p126
      $region26: #{green_block_forward.1} parent=11 // pred_check_branch
        %283 = sbr.rel (%p281) target = $region28
      $region27: #{green_block_forward.1} parent=11 // pred_region
        _
      $region28: #{green_block_forward.1} parent=11 // pred_fallthru
        _
      // Predicated region
      $region29: #{green_block_forward.1} parent=11 // pred_check
        %p284 = pneg %p147
      $region30: #{green_block_forward.1} parent=11 // pred_check_branch
        %286 = sbr.rel (%p284) target = $region32
      $region31: #{green_block_forward.1} parent=11 // pred_region
        _
      $region32: #{green_block_forward.1} parent=11 // pred_fallthru
        _
      // Predicated region
      $region33: #{green_block_forward.1} parent=11 // pred_check
        %p287 = pneg %p168
      $region34: #{green_block_forward.1} parent=11 // pred_check_branch
        %289 = sbr.rel (%p287) target = $region36
      $region35: #{green_block_forward.1} parent=11 // pred_region
        _
      $region36: #{green_block_forward.1} parent=11 // pred_fallthru
        _
      // Predicated region
      $region37: #{green_block_forward.1} parent=11 // pred_check
        %p290 = pneg %p189
      $region38: #{green_block_forward.1} parent=11 // pred_check_branch
        %292 = sbr.rel (%p290) target = $region40
      $region39: #{green_block_forward.1} parent=11 // pred_region
        _
      $region40: #{green_block_forward.1} parent=11 // pred_fallthru
        _
      // Predicated region
      $region41: #{green_block_forward.1} parent=11 // pred_check
        %p293 = pneg %p210
      $region42: #{green_block_forward.1} parent=11 // pred_check_branch
        %295 = sbr.rel (%p293) target = $region44
      $region43: #{green_block_forward.1} parent=11 // pred_region
        _
      $region44: #{green_block_forward.1} parent=11 // pred_fallthru
        _
      // Predicated region
      $region45: #{green_block_forward.1} parent=11 // pred_check
        %p296 = pneg %p231
      $region46: #{green_block_forward.1} parent=11 // pred_check_branch
        %298 = sbr.rel (%p296) target = $region48
      $region47: #{green_block_forward.1} parent=11 // pred_region
        _
      $region48: #{green_block_forward.1} parent=11 // pred_fallthru
        _
    $region12: #{green_block_forward.1} parent=5 // pred_fallthru
      _
    %p299 = scmp.lt.s32.totalorder %s16, 4
    // Predicated region
    $region49: #{green_block_forward.1} parent=5 // pred_check
      %p300 = pneg %p299
    $region50: #{green_block_forward.1} parent=5 // pred_check_branch
      %302 = sbr.rel (%p300) target = $region52
    $region51: #{green_block_forward.1} parent=5 // pred_region
      // Predicated region
      $region53: #{green_block_forward.1} parent=51 // pred_check
        %p303 = pneg %p36
      $region54: #{green_block_forward.1} parent=51 // pred_check_branch
        %305 = sbr.rel (%p303) target = $region56
      $region55: #{green_block_forward.1} parent=51 // pred_region
        %p306 = scmp.lt.s32.totalorder %s16, 3
        %s307 = scalar_select %p306, %s16, 3
        %s308 = smul.addr %s307, 46
        %s309 = smul.addr %s308, 8
        %s310 = scalar_lea.vmem %s0, %s309
      $region56: #{green_block_forward.1} parent=51 // pred_fallthru
        _
    $region52: #{green_block_forward.1} parent=5 // pred_fallthru
      _
    %p311 = scmp.le.s32.totalorder 1, %s16
    %p312 = scmp.lt.s32.totalorder %s16, 5
    %p313 = pnand %p311, %p312
    %p314 = pneg %p313
    // Predicated region
    $region57: #{green_block_forward.1} parent=5 // pred_check
      _
    $region58: #{green_block_forward.1} parent=5 // pred_check_branch
      %316 = sbr.rel (%p313) target = $region60
    $region59: #{green_block_forward.1} parent=5 // pred_region
      %s317 = ssub.s32 %s16, 1
      %p318 = scmp.lt.s32.totalorder %s21, 3
      %s319 = scalar_select %p318, %s21, 3
      %s320 = smul.addr %s319, 46
      %s321 = smul.addr %s320, 8
      %s322 = scalar_lea.vmem %s0, %s321
      %p323 = pneg %p42
      %p324 = pneg %p39
      %p325 = pneg %p63
      %p326 = pneg %p60
      %p327 = pneg %p84
      %p328 = pneg %p81
      %p329 = pneg %p105
      %p330 = pneg %p102
      %p331 = pneg %p126
      %p332 = pneg %p123
      %p333 = pneg %p147
      %p334 = pneg %p144
      %p335 = pneg %p168
      %p336 = pneg %p165
      %p337 = pneg %p189
      %p338 = pneg %p186
      %p339 = pneg %p210
      %p340 = pneg %p207
      %p341 = pneg %p231
      %p342 = pneg %p228
      %p343 = pneg %p257
      %p344 = pneg %p254
      %p345 = scmp.lt.s32.totalorder %s21, 3
      %s346 = scalar_select %p345, %s21, 3
      %s347 = smul.addr %s346, 41
      %s348 = smul.addr %s347, 8
      %s349 = scalar_lea.vmem %s10, %s348
      %p350 = scmp.lt.s32.totalorder %s21, 3
      %s351 = scalar_select %p350, %s21, 3
      %s352 = smul.addr %s351, 46
      %s353 = smul.addr %s352, 8
      %s354 = scalar_lea.vmem %s0, %s353
      %p355 = scmp.lt.s32.totalorder %s21, 3
      %s356 = scalar_select %p355, %s21, 3
      %s357 = smul.addr %s356, 41
      %s358 = smul.addr %s357, 8
      %s359 = scalar_lea.vmem %s10, %s358
      %v361 = vld [vmem:[%s1] sm:$0xff]
      %v362 = vld [vmem:[%s1 + $0x8] sm:$0xff]
      %v363 = vld [vmem:[%s1 + $0x10] sm:$0xff]
      %v364 = vld [vmem:[%s1 + $0x18] sm:$0xff]
      %v365 = vld [vmem:[%s1 + $0x20] sm:$0xff]
      %v366 = vld [vmem:[%s1 + $0x28] sm:$0xff]
      %v367 = vld [vmem:[%s1 + $0x30] sm:$0xff]
      %v368 = vld [vmem:[%s1 + $0x38] sm:$0xff]
      %v369 = vld [vmem:[%s1 + $0x40] sm:$0xff]
      %v370 = vld [vmem:[%s1 + $0x48] sm:$0xff]
      %v371 = vld [vmem:[%s1 + $0x50] sm:$0xff]
      %v372 = vld [vmem:[%s1 + $0x58] sm:$0xff]
      %v373 = vld [vmem:[%s1 + $0x60] sm:$0xff]
      %v374 = vld [vmem:[%s1 + $0x68] sm:$0xff]
      %v375 = vld [vmem:[%s1 + $0x70] sm:$0xff]
      %v376 = vld [vmem:[%s1 + $0x78] sm:$0xff]
      %v377 = vld [vmem:[%s1 + $0x80] sm:$0xff]
      %v378 = vld [vmem:[%s1 + $0x88] sm:$0xff]
      %v379 = vld [vmem:[%s1 + $0x90] sm:$0xff]
      %v380 = vld [vmem:[%s1 + $0x98] sm:$0xff]
      %v381 = vld [vmem:[%s1 + $0xa0] sm:$0xff]
      %v382 = vld [vmem:[%s1 + $0xa8] sm:$0xff]
      %v383 = vld [vmem:[%s1 + $0xb0] sm:$0xff]
      %v384 = vld [vmem:[%s1 + $0xb8] sm:$0xff]
      %v385 = vld [vmem:[%s1 + $0xc0] sm:$0xff]
      %v386 = vld [vmem:[%s1 + $0xc8] sm:$0xff]
      %v387 = vld [vmem:[%s1 + $0xd0] sm:$0xff]
      %v388 = vld [vmem:[%s1 + $0xd8] sm:$0xff]
      %v389 = vld [vmem:[%s1 + $0xe0] sm:$0xff]
      %v390 = vld [vmem:[%s1 + $0xe8] sm:$0xff]
      %v391 = vld [vmem:[%s1 + $0xf0] sm:$0xff]
      %v392 = vld [vmem:[%s1 + $0xf8] sm:$0xff]
      %v393 = vld [vmem:[%s1 + $0x100] sm:$0xff]
      %v394 = vld [vmem:[%s1 + $0x108] sm:$0xff]
      %v395 = vld [vmem:[%s1 + $0x110] sm:$0xff]
      %v396 = vld [vmem:[%s1 + $0x118] sm:$0xff]
      %v397 = vld [vmem:[%s1 + $0x120] sm:$0xff]
      %v398 = vld [vmem:[%s1 + $0x128] sm:$0xff]
      %v399 = vld [vmem:[%s1 + $0x130] sm:$0xff]
      %v400 = vld [vmem:[%s1 + $0x138] sm:$0xff]
      %v401 = vld [vmem:[%s1 + $0x140] sm:$0xff]
      %v402 = vld [vmem:[%s1 + $0x148] sm:$0xff]
      %v403 = vld [vmem:[%s1 + $0x150] sm:$0xff]
      %v404 = vld [vmem:[%s1 + $0x158] sm:$0xff]
      %v405 = vld [vmem:[%s1 + $0x160] sm:$0xff]
      %v406 = vld [vmem:[%s1 + $0x168] sm:$0x3]
      %v407 = vld [vmem:[%s1 + $0x13] sm:$0xff]
      %v408 = vld [vmem:[%s1 + $0x1b] sm:$0xff]
      %v409 = vld [vmem:[%s1 + $0x23] sm:$0xff]
      %v410 = vld [vmem:[%s1 + $0x2b] sm:$0xff]
      %v411 = vld [vmem:[%s1 + $0x33] sm:$0xff]
      %v412 = vld [vmem:[%s1 + $0x3b] sm:$0xff]
      %v413 = vld [vmem:[%s1 + $0x43] sm:$0xff]
      %v414 = vld [vmem:[%s1 + $0x4b] sm:$0xff]
      %v415 = vld [vmem:[%s1 + $0x53] sm:$0xff]
      %v416 = vld [vmem:[%s1 + $0x5b] sm:$0xff]
      %v417 = vld [vmem:[%s1 + $0x63] sm:$0xff]
      %v418 = vld [vmem:[%s1 + $0x6b] sm:$0xff]
      %v419 = vld [vmem:[%s1 + $0x73] sm:$0xff]
      %v420 = vld [vmem:[%s1 + $0x7b] sm:$0xff]
      %v421 = vld [vmem:[%s1 + $0x83] sm:$0xff]
      %v422 = vld [vmem:[%s1 + $0x8b] sm:$0xff]
      %v423 = vld [vmem:[%s1 + $0x93] sm:$0xff]
      %v424 = vld [vmem:[%s1 + $0x9b] sm:$0xff]
      %v425 = vld [vmem:[%s1 + $0xa3] sm:$0xff]
      %v426 = vld [vmem:[%s1 + $0xab] sm:$0xff]
      %v427 = vld [vmem:[%s1 + $0xb3] sm:$0xff]
      %v428 = vld [vmem:[%s1 + $0xbb] sm:$0xff]
      %v429 = vld [vmem:[%s1 + $0xc3] sm:$0xff]
      %v430 = vld [vmem:[%s1 + $0xcb] sm:$0xff]
      %v431 = vld [vmem:[%s1 + $0xd3] sm:$0xff]
      %v432 = vld [vmem:[%s1 + $0xdb] sm:$0xff]
      %v433 = vld [vmem:[%s1 + $0xe3] sm:$0xff]
      %v434 = vld [vmem:[%s1 + $0xeb] sm:$0xff]
      %v435 = vld [vmem:[%s1 + $0xf3] sm:$0xff]
      %v436 = vld [vmem:[%s1 + $0xfb] sm:$0xff]
      %v437 = vld [vmem:[%s1 + $0x103] sm:$0xff]
      %v438 = vld [vmem:[%s1 + $0x10b] sm:$0xff]
      %v439 = vld [vmem:[%s1 + $0x113] sm:$0xff]
      %v440 = vld [vmem:[%s1 + $0x11b] sm:$0xff]
      %v441 = vld [vmem:[%s1 + $0x123] sm:$0xff]
      %v442 = vld [vmem:[%s1 + $0x12b] sm:$0xff]
      %v443 = vld [vmem:[%s1 + $0x133] sm:$0xff]
      %v444 = vld [vmem:[%s1 + $0x13b] sm:$0xff]
      %v445 = vld [vmem:[%s1 + $0x143] sm:$0xff]
      %v446 = vld [vmem:[%s1 + $0x14b] sm:$0xff]
      %v447 = vld [vmem:[%s1 + $0x153] sm:$0xf]
      %v448 = vld [vmem:[%s354] sm:$0xff]
      %v449 = vld [vmem:[%s354 + $0x8] sm:$0xff]
      %v450 = vld [vmem:[%s354 + $0x10] sm:$0xff]
      %v451 = vld [vmem:[%s354 + $0x18] sm:$0xff]
      %v452 = vld [vmem:[%s354 + $0x20] sm:$0xff]
      %v453 = vld [vmem:[%s354 + $0x28] sm:$0xff]
      %v454 = vld [vmem:[%s354 + $0x30] sm:$0xff]
      %v455 = vld [vmem:[%s354 + $0x38] sm:$0xff]
      %v456 = vld [vmem:[%s354 + $0x40] sm:$0xff]
      %v457 = vld [vmem:[%s354 + $0x48] sm:$0xff]
      %v458 = vld [vmem:[%s354 + $0x50] sm:$0xff]
      %v459 = vld [vmem:[%s354 + $0x58] sm:$0xff]
      %v460 = vld [vmem:[%s354 + $0x60] sm:$0xff]
      %v461 = vld [vmem:[%s354 + $0x68] sm:$0xff]
      %v462 = vld [vmem:[%s354 + $0x70] sm:$0xff]
      %v463 = vld [vmem:[%s354 + $0x78] sm:$0xff]
      %v464 = vld [vmem:[%s354 + $0x80] sm:$0xff]
      %v465 = vld [vmem:[%s354 + $0x88] sm:$0xff]
      %v466 = vld [vmem:[%s354 + $0x90] sm:$0xff]
      %v467 = vld [vmem:[%s354 + $0x98] sm:$0xff]
      %v468 = vld [vmem:[%s354 + $0xa0] sm:$0xff]
      %v469 = vld [vmem:[%s354 + $0xa8] sm:$0xff]
      %v470 = vld [vmem:[%s354 + $0xb0] sm:$0xff]
      %v471 = vld [vmem:[%s354 + $0xb8] sm:$0xff]
      %v472 = vld [vmem:[%s354 + $0xc0] sm:$0xff]
      %v473 = vld [vmem:[%s354 + $0xc8] sm:$0xff]
      %v474 = vld [vmem:[%s354 + $0xd0] sm:$0xff]
      %v475 = vld [vmem:[%s354 + $0xd8] sm:$0xff]
      %v476 = vld [vmem:[%s354 + $0xe0] sm:$0xff]
      %v477 = vld [vmem:[%s354 + $0xe8] sm:$0xff]
      %v478 = vld [vmem:[%s354 + $0xf0] sm:$0xff]
      %v479 = vld [vmem:[%s354 + $0xf8] sm:$0xff]
      %v480 = vld [vmem:[%s354 + $0x100] sm:$0xff]
      %v481 = vld [vmem:[%s354 + $0x108] sm:$0xff]
      %v482 = vld [vmem:[%s354 + $0x110] sm:$0xff]
      %v483 = vld [vmem:[%s354 + $0x118] sm:$0xff]
      %v484 = vld [vmem:[%s354 + $0x120] sm:$0xff]
      %v485 = vld [vmem:[%s354 + $0x128] sm:$0xff]
      %v486 = vld [vmem:[%s354 + $0x130] sm:$0xff]
      %v487 = vld [vmem:[%s354 + $0x138] sm:$0xff]
      %v488 = vld [vmem:[%s354 + $0x140] sm:$0xff]
      %v489 = vld [vmem:[%s354 + $0x148] sm:$0xff]
      %v490 = vld [vmem:[%s354 + $0x150] sm:$0xff]
      %v491 = vld [vmem:[%s354 + $0x158] sm:$0xff]
      %v492 = vld [vmem:[%s354 + $0x160] sm:$0xff]
      %v493 = vld [vmem:[%s354 + $0x168] sm:$0x3]
      %v494 = vld [vmem:[%s2] sm:$0x1]
      %v495 = vld [vmem:[%s3] sm:$0x1]
      %vm496 = vcmask 261120
      %v497 = vsel %vm496, %v448, 0.0
      %498 = vadd.xlane.f32.xlu0 %v497
      %v499 = vpop.xlane.xlu0 %498
      %v500 = vsel %vm496, %v449, 0.0
      %501 = vadd.xlane.f32.xlu0 %v500
      %v502 = vpop.xlane.xlu0 %501
      %v503 = vsel %vm496, %v450, 0.0
      %504 = vadd.xlane.f32.xlu0 %v503
      %v505 = vpop.xlane.xlu0 %504
      %v506 = vsel %vm496, %v451, 0.0
      %507 = vadd.xlane.f32.xlu0 %v506
      %v508 = vpop.xlane.xlu0 %507
      %v509 = vsel %vm496, %v452, 0.0
      %510 = vadd.xlane.f32.xlu0 %v509
      %v511 = vpop.xlane.xlu0 %510
      %v512 = vsel %vm496, %v453, 0.0
      %513 = vadd.xlane.f32.xlu0 %v512
      %v514 = vpop.xlane.xlu0 %513
      %v515 = vsel %vm496, %v454, 0.0
      %516 = vadd.xlane.f32.xlu0 %v515
      %v517 = vpop.xlane.xlu0 %516
      %v518 = vsel %vm496, %v455, 0.0
      %519 = vadd.xlane.f32.xlu0 %v518
      %v520 = vpop.xlane.xlu0 %519
      %v521 = vsel %vm496, %v456, 0.0
      %522 = vadd.xlane.f32.xlu0 %v521
      %v523 = vpop.xlane.xlu0 %522
      %v524 = vsel %vm496, %v457, 0.0
      %525 = vadd.xlane.f32.xlu0 %v524
      %v526 = vpop.xlane.xlu0 %525
      %v527 = vsel %vm496, %v458, 0.0
      %528 = vadd.xlane.f32.xlu0 %v527
      %v529 = vpop.xlane.xlu0 %528
      %v530 = vsel %vm496, %v459, 0.0
      %531 = vadd.xlane.f32.xlu0 %v530
      %v532 = vpop.xlane.xlu0 %531
      %v533 = vsel %vm496, %v460, 0.0
      %534 = vadd.xlane.f32.xlu0 %v533
      %v535 = vpop.xlane.xlu0 %534
      %v536 = vsel %vm496, %v461, 0.0
      %537 = vadd.xlane.f32.xlu0 %v536
      %v538 = vpop.xlane.xlu0 %537
      %v539 = vsel %vm496, %v462, 0.0
      %540 = vadd.xlane.f32.xlu0 %v539
      %v541 = vpop.xlane.xlu0 %540
      %v542 = vsel %vm496, %v463, 0.0
      %543 = vadd.xlane.f32.xlu0 %v542
      %v544 = vpop.xlane.xlu0 %543
      %v545 = vsel %vm496, %v464, 0.0
      %546 = vadd.xlane.f32.xlu0 %v545
      %v547 = vpop.xlane.xlu0 %546
      %v548 = vsel %vm496, %v465, 0.0
      %549 = vadd.xlane.f32.xlu0 %v548
      %v550 = vpop.xlane.xlu0 %549
      %v551 = vsel %vm496, %v466, 0.0
      %552 = vadd.xlane.f32.xlu0 %v551
      %v553 = vpop.xlane.xlu0 %552
      %v554 = vsel %vm496, %v467, 0.0
      %555 = vadd.xlane.f32.xlu0 %v554
      %v556 = vpop.xlane.xlu0 %555
      %v557 = vsel %vm496, %v468, 0.0
      %558 = vadd.xlane.f32.xlu0 %v557
      %v559 = vpop.xlane.xlu0 %558
      %v560 = vsel %vm496, %v469, 0.0
      %561 = vadd.xlane.f32.xlu0 %v560
      %v562 = vpop.xlane.xlu0 %561
      %v563 = vsel %vm496, %v470, 0.0
      %564 = vadd.xlane.f32.xlu0 %v563
      %v565 = vpop.xlane.xlu0 %564
      %v566 = vsel %vm496, %v471, 0.0
      %567 = vadd.xlane.f32.xlu0 %v566
      %v568 = vpop.xlane.xlu0 %567
      %v569 = vsel %vm496, %v472, 0.0
      %570 = vadd.xlane.f32.xlu0 %v569
      %v571 = vpop.xlane.xlu0 %570
      %v572 = vsel %vm496, %v473, 0.0
      %573 = vadd.xlane.f32.xlu0 %v572
      %v574 = vpop.xlane.xlu0 %573
      %v575 = vsel %vm496, %v474, 0.0
      %576 = vadd.xlane.f32.xlu0 %v575
      %v577 = vpop.xlane.xlu0 %576
      %v578 = vsel %vm496, %v475, 0.0
      %579 = vadd.xlane.f32.xlu0 %v578
      %v580 = vpop.xlane.xlu0 %579
      %v581 = vsel %vm496, %v476, 0.0
      %582 = vadd.xlane.f32.xlu0 %v581
      %v583 = vpop.xlane.xlu0 %582
      %v584 = vsel %vm496, %v477, 0.0
      %585 = vadd.xlane.f32.xlu0 %v584
      %v586 = vpop.xlane.xlu0 %585
      %v587 = vsel %vm496, %v478, 0.0
      %588 = vadd.xlane.f32.xlu0 %v587
      %v589 = vpop.xlane.xlu0 %588
      %v590 = vsel %vm496, %v479, 0.0
      %591 = vadd.xlane.f32.xlu0 %v590
      %v592 = vpop.xlane.xlu0 %591
      %v593 = vsel %vm496, %v480, 0.0
      %594 = vadd.xlane.f32.xlu0 %v593
      %v595 = vpop.xlane.xlu0 %594
      %v596 = vsel %vm496, %v481, 0.0
      %597 = vadd.xlane.f32.xlu0 %v596
      %v598 = vpop.xlane.xlu0 %597
      %v599 = vsel %vm496, %v482, 0.0
      %600 = vadd.xlane.f32.xlu0 %v599
      %v601 = vpop.xlane.xlu0 %600
      %v602 = vsel %vm496, %v483, 0.0
      %603 = vadd.xlane.f32.xlu0 %v602
      %v604 = vpop.xlane.xlu0 %603
      %v605 = vsel %vm496, %v484, 0.0
      %606 = vadd.xlane.f32.xlu0 %v605
      %v607 = vpop.xlane.xlu0 %606
      %v608 = vsel %vm496, %v485, 0.0
      %609 = vadd.xlane.f32.xlu0 %v608
      %v610 = vpop.xlane.xlu0 %609
      %v611 = vsel %vm496, %v486, 0.0
      %612 = vadd.xlane.f32.xlu0 %v611
      %v613 = vpop.xlane.xlu0 %612
      %v614 = vsel %vm496, %v487, 0.0
      %615 = vadd.xlane.f32.xlu0 %v614
      %v616 = vpop.xlane.xlu0 %615
      %v617 = vsel %vm496, %v488, 0.0
      %618 = vadd.xlane.f32.xlu0 %v617
      %v619 = vpop.xlane.xlu0 %618
      %v620 = vsel %vm496, %v489, 0.0
      %621 = vadd.xlane.f32.xlu0 %v620
      %v622 = vpop.xlane.xlu0 %621
      %v623 = vsel %vm496, %v490, 0.0
      %624 = vadd.xlane.f32.xlu0 %v623
      %v625 = vpop.xlane.xlu0 %624
      %v626 = vsel %vm496, %v491, 0.0
      %627 = vadd.xlane.f32.xlu0 %v626
      %v628 = vpop.xlane.xlu0 %627
      %v629 = vsel %vm496, %v492, 0.0
      %630 = vadd.xlane.f32.xlu0 %v629
      %v631 = vpop.xlane.xlu0 %630
      %vm632 = vcmask 254976
      %v633 = vsel %vm632, %v493, 0.0
      %634 = vadd.xlane.f32.xlu0 %v633
      %v635 = vpop.xlane.xlu0 %634
      %v636 = vadd.f32 %v499, %v502
      %v637 = vadd.f32 %v636, %v505
      %v638 = vadd.f32 %v637, %v508
      %v639 = vadd.f32 %v638, %v511
      %v640 = vadd.f32 %v639, %v514
      %v641 = vadd.f32 %v640, %v517
      %v642 = vadd.f32 %v641, %v520
      %v643 = vadd.f32 %v642, %v523
      %v644 = vadd.f32 %v643, %v526
      %v645 = vadd.f32 %v644, %v529
      %v646 = vadd.f32 %v645, %v532
      %v647 = vadd.f32 %v646, %v535
      %v648 = vadd.f32 %v647, %v538
      %v649 = vadd.f32 %v648, %v541
      %v650 = vadd.f32 %v649, %v544
      %v651 = vadd.f32 %v650, %v547
      %v652 = vadd.f32 %v651, %v550
      %v653 = vadd.f32 %v652, %v553
      %v654 = vadd.f32 %v653, %v556
      %v655 = vadd.f32 %v654, %v559
      %v656 = vadd.f32 %v655, %v562
      %v657 = vadd.f32 %v656, %v565
      %v658 = vadd.f32 %v657, %v568
      %v659 = vadd.f32 %v658, %v571
      %v660 = vadd.f32 %v659, %v574
      %v661 = vadd.f32 %v660, %v577
      %v662 = vadd.f32 %v661, %v580
      %v663 = vadd.f32 %v662, %v583
      %v664 = vadd.f32 %v663, %v586
      %v665 = vadd.f32 %v664, %v589
      %v666 = vadd.f32 %v665, %v592
      %v667 = vadd.f32 %v666, %v595
      %v668 = vadd.f32 %v667, %v598
      %v669 = vadd.f32 %v668, %v601
      %v670 = vadd.f32 %v669, %v604
      %v671 = vadd.f32 %v670, %v607
      %v672 = vadd.f32 %v671, %v610
      %v673 = vadd.f32 %v672, %v613
      %v674 = vadd.f32 %v673, %v616
      %v675 = vadd.f32 %v674, %v619
      %v676 = vadd.f32 %v675, %v622
      %v677 = vadd.f32 %v676, %v625
      %v678 = vadd.f32 %v677, %v628
      %v679 = vadd.f32 %v678, %v631
      %vm680 = vcmask 1041408
      %v681 = vsel %vm680, %v635, 0.0
      %v682 = vadd.f32 %v679, %v681
      %v683 = vrot.slane %v682, 4
      %v684 = vadd.f32 %v682, %v683
      %v685 = vrot.slane %v684, 2
      %v686 = vadd.f32 %v684, %v685
      %v687 = vrot.slane %v686, 1
      %v688 = vadd.f32 %v686, %v687
      %v689 = vmul.f32 %v448, %v448
      %v690 = vmul.f32 %v449, %v449
      %v691 = vmul.f32 %v450, %v450
      %v692 = vmul.f32 %v451, %v451
      %v693 = vmul.f32 %v452, %v452
      %v694 = vmul.f32 %v453, %v453
      %v695 = vmul.f32 %v454, %v454
      %v696 = vmul.f32 %v455, %v455
      %v697 = vmul.f32 %v456, %v456
      %v698 = vmul.f32 %v457, %v457
      %v699 = vmul.f32 %v458, %v458
      %v700 = vmul.f32 %v459, %v459
      %v701 = vmul.f32 %v460, %v460
      %v702 = vmul.f32 %v461, %v461
      %v703 = vmul.f32 %v462, %v462
      %v704 = vmul.f32 %v463, %v463
      %v705 = vmul.f32 %v464, %v464
      %v706 = vmul.f32 %v465, %v465
      %v707 = vmul.f32 %v466, %v466
      %v708 = vmul.f32 %v467, %v467
      %v709 = vmul.f32 %v468, %v468
      %v710 = vmul.f32 %v469, %v469
      %v711 = vmul.f32 %v470, %v470
      %v712 = vmul.f32 %v471, %v471
      %v713 = vmul.f32 %v472, %v472
      %v714 = vmul.f32 %v473, %v473
      %v715 = vmul.f32 %v474, %v474
      %v716 = vmul.f32 %v475, %v475
      %v717 = vmul.f32 %v476, %v476
      %v718 = vmul.f32 %v477, %v477
      %v719 = vmul.f32 %v478, %v478
      %v720 = vmul.f32 %v479, %v479
      %v721 = vmul.f32 %v480, %v480
      %v722 = vmul.f32 %v481, %v481
      %v723 = vmul.f32 %v482, %v482
      %v724 = vmul.f32 %v483, %v483
      %v725 = vmul.f32 %v484, %v484
      %v726 = vmul.f32 %v485, %v485
      %v727 = vmul.f32 %v486, %v486
      %v728 = vmul.f32 %v487, %v487
      %v729 = vmul.f32 %v488, %v488
      %v730 = vmul.f32 %v489, %v489
      %v731 = vmul.f32 %v490, %v490
      %v732 = vmul.f32 %v491, %v491
      %v733 = vmul.f32 %v492, %v492
      %v734 = vmul.f32 %v493, %v493
      %v735 = vsel %vm496, %v689, 0.0
      %736 = vadd.xlane.f32.xlu0 %v735
      %v737 = vpop.xlane.xlu0 %736
      %v738 = vsel %vm496, %v690, 0.0
      %739 = vadd.xlane.f32.xlu0 %v738
      %v740 = vpop.xlane.xlu0 %739
      %v741 = vsel %vm496, %v691, 0.0
      %742 = vadd.xlane.f32.xlu0 %v741
      %v743 = vpop.xlane.xlu0 %742
      %v744 = vsel %vm496, %v692, 0.0
      %745 = vadd.xlane.f32.xlu0 %v744
      %v746 = vpop.xlane.xlu0 %745
      %v747 = vsel %vm496, %v693, 0.0
      %748 = vadd.xlane.f32.xlu0 %v747
      %v749 = vpop.xlane.xlu0 %748
      %v750 = vsel %vm496, %v694, 0.0
      %751 = vadd.xlane.f32.xlu0 %v750
      %v752 = vpop.xlane.xlu0 %751
      %v753 = vsel %vm496, %v695, 0.0
      %754 = vadd.xlane.f32.xlu0 %v753
      %v755 = vpop.xlane.xlu0 %754
      %v756 = vsel %vm496, %v696, 0.0
      %757 = vadd.xlane.f32.xlu0 %v756
      %v758 = vpop.xlane.xlu0 %757
      %v759 = vsel %vm496, %v697, 0.0
      %760 = vadd.xlane.f32.xlu0 %v759
      %v761 = vpop.xlane.xlu0 %760
      %v762 = vsel %vm496, %v698, 0.0
      %763 = vadd.xlane.f32.xlu0 %v762
      %v764 = vpop.xlane.xlu0 %763
      %v765 = vsel %vm496, %v699, 0.0
      %766 = vadd.xlane.f32.xlu0 %v765
      %v767 = vpop.xlane.xlu0 %766
      %v768 = vsel %vm496, %v700, 0.0
      %769 = vadd.xlane.f32.xlu0 %v768
      %v770 = vpop.xlane.xlu0 %769
      %v771 = vsel %vm496, %v701, 0.0
      %772 = vadd.xlane.f32.xlu0 %v771
      %v773 = vpop.xlane.xlu0 %772
      %v774 = vsel %vm496, %v702, 0.0
      %775 = vadd.xlane.f32.xlu0 %v774
      %v776 = vpop.xlane.xlu0 %775
      %v777 = vsel %vm496, %v703, 0.0
      %778 = vadd.xlane.f32.xlu0 %v777
      %v779 = vpop.xlane.xlu0 %778
      %v780 = vsel %vm496, %v704, 0.0
      %781 = vadd.xlane.f32.xlu0 %v780
      %v782 = vpop.xlane.xlu0 %781
      %v783 = vsel %vm496, %v705, 0.0
      %784 = vadd.xlane.f32.xlu0 %v783
      %v785 = vpop.xlane.xlu0 %784
      %v786 = vsel %vm496, %v706, 0.0
      %787 = vadd.xlane.f32.xlu0 %v786
      %v788 = vpop.xlane.xlu0 %787
      %v789 = vsel %vm496, %v707, 0.0
      %790 = vadd.xlane.f32.xlu0 %v789
      %v791 = vpop.xlane.xlu0 %790
      %v792 = vsel %vm496, %v708, 0.0
      %793 = vadd.xlane.f32.xlu0 %v792
      %v794 = vpop.xlane.xlu0 %793
      %v795 = vsel %vm496, %v709, 0.0
      %796 = vadd.xlane.f32.xlu0 %v795
      %v797 = vpop.xlane.xlu0 %796
      %v798 = vsel %vm496, %v710, 0.0
      %799 = vadd.xlane.f32.xlu0 %v798
      %v800 = vpop.xlane.xlu0 %799
      %v801 = vsel %vm496, %v711, 0.0
      %802 = vadd.xlane.f32.xlu0 %v801
      %v803 = vpop.xlane.xlu0 %802
      %v804 = vsel %vm496, %v712, 0.0
      %805 = vadd.xlane.f32.xlu0 %v804
      %v806 = vpop.xlane.xlu0 %805
      %v807 = vsel %vm496, %v713, 0.0
      %808 = vadd.xlane.f32.xlu0 %v807
      %v809 = vpop.xlane.xlu0 %808
      %v810 = vsel %vm496, %v714, 0.0
      %811 = vadd.xlane.f32.xlu0 %v810
      %v812 = vpop.xlane.xlu0 %811
      %v813 = vsel %vm496, %v715, 0.0
      %814 = vadd.xlane.f32.xlu0 %v813
      %v815 = vpop.xlane.xlu0 %814
      %v816 = vsel %vm496, %v716, 0.0
      %817 = vadd.xlane.f32.xlu0 %v816
      %v818 = vpop.xlane.xlu0 %817
      %v819 = vsel %vm496, %v717, 0.0
      %820 = vadd.xlane.f32.xlu0 %v819
      %v821 = vpop.xlane.xlu0 %820
      %v822 = vsel %vm496, %v718, 0.0
      %823 = vadd.xlane.f32.xlu0 %v822
      %v824 = vpop.xlane.xlu0 %823
      %v825 = vsel %vm496, %v719, 0.0
      %826 = vadd.xlane.f32.xlu0 %v825
      %v827 = vpop.xlane.xlu0 %826
      %v828 = vsel %vm496, %v720, 0.0
      %829 = vadd.xlane.f32.xlu0 %v828
      %v830 = vpop.xlane.xlu0 %829
      %v831 = vsel %vm496, %v721, 0.0
      %832 = vadd.xlane.f32.xlu0 %v831
      %v833 = vpop.xlane.xlu0 %832
      %v834 = vsel %vm496, %v722, 0.0
      %835 = vadd.xlane.f32.xlu0 %v834
      %v836 = vpop.xlane.xlu0 %835
      %v837 = vsel %vm496, %v723, 0.0
      %838 = vadd.xlane.f32.xlu0 %v837
      %v839 = vpop.xlane.xlu0 %838
      %v840 = vsel %vm496, %v724, 0.0
      %841 = vadd.xlane.f32.xlu0 %v840
      %v842 = vpop.xlane.xlu0 %841
      %v843 = vsel %vm496, %v725, 0.0
      %844 = vadd.xlane.f32.xlu0 %v843
      %v845 = vpop.xlane.xlu0 %844
      %v846 = vsel %vm496, %v726, 0.0
      %847 = vadd.xlane.f32.xlu0 %v846
      %v848 = vpop.xlane.xlu0 %847
      %v849 = vsel %vm496, %v727, 0.0
      %850 = vadd.xlane.f32.xlu0 %v849
      %v851 = vpop.xlane.xlu0 %850
      %v852 = vsel %vm496, %v728, 0.0
      %853 = vadd.xlane.f32.xlu0 %v852
      %v854 = vpop.xlane.xlu0 %853
      %v855 = vsel %vm496, %v729, 0.0
      %856 = vadd.xlane.f32.xlu0 %v855
      %v857 = vpop.xlane.xlu0 %856
      %v858 = vsel %vm496, %v730, 0.0
      %859 = vadd.xlane.f32.xlu0 %v858
      %v860 = vpop.xlane.xlu0 %859
      %v861 = vsel %vm496, %v731, 0.0
      %862 = vadd.xlane.f32.xlu0 %v861
      %v863 = vpop.xlane.xlu0 %862
      %v864 = vsel %vm496, %v732, 0.0
      %865 = vadd.xlane.f32.xlu0 %v864
      %v866 = vpop.xlane.xlu0 %865
      %v867 = vsel %vm496, %v733, 0.0
      %868 = vadd.xlane.f32.xlu0 %v867
      %v869 = vpop.xlane.xlu0 %868
      %v870 = vsel %vm632, %v734, 0.0
      %871 = vadd.xlane.f32.xlu0 %v870
      %v872 = vpop.xlane.xlu0 %871
      %v873 = vadd.f32 %v737, %v740
      %v874 = vadd.f32 %v873, %v743
      %v875 = vadd.f32 %v874, %v746
      %v876 = vadd.f32 %v875, %v749
      %v877 = vadd.f32 %v876, %v752
      %v878 = vadd.f32 %v877, %v755
      %v879 = vadd.f32 %v878, %v758
      %v880 = vadd.f32 %v879, %v761
      %v881 = vadd.f32 %v880, %v764
      %v882 = vadd.f32 %v881, %v767
      %v883 = vadd.f32 %v882, %v770
      %v884 = vadd.f32 %v883, %v773
      %v885 = vadd.f32 %v884, %v776
      %v886 = vadd.f32 %v885, %v779
      %v887 = vadd.f32 %v886, %v782
      %v888 = vadd.f32 %v887, %v785
      %v889 = vadd.f32 %v888, %v788
      %v890 = vadd.f32 %v889, %v791
      %v891 = vadd.f32 %v890, %v794
      %v892 = vadd.f32 %v891, %v797
      %v893 = vadd.f32 %v892, %v800
      %v894 = vadd.f32 %v893, %v803
      %v895 = vadd.f32 %v894, %v806
      %v896 = vadd.f32 %v895, %v809
      %v897 = vadd.f32 %v896, %v812
      %v898 = vadd.f32 %v897, %v815
      %v899 = vadd.f32 %v898, %v818
      %v900 = vadd.f32 %v899, %v821
      %v901 = vadd.f32 %v900, %v824
      %v902 = vadd.f32 %v901, %v827
      %v903 = vadd.f32 %v902, %v830
      %v904 = vadd.f32 %v903, %v833
      %v905 = vadd.f32 %v904, %v836
      %v906 = vadd.f32 %v905, %v839
      %v907 = vadd.f32 %v906, %v842
      %v908 = vadd.f32 %v907, %v845
      %v909 = vadd.f32 %v908, %v848
      %v910 = vadd.f32 %v909, %v851
      %v911 = vadd.f32 %v910, %v854
      %v912 = vadd.f32 %v911, %v857
      %v913 = vadd.f32 %v912, %v860
      %v914 = vadd.f32 %v913, %v863
      %v915 = vadd.f32 %v914, %v866
      %v916 = vadd.f32 %v915, %v869
      %v917 = vsel %vm680, %v872, 0.0
      %v918 = vadd.f32 %v916, %v917
      %v919 = vrot.slane %v918, 4
      %v920 = vadd.f32 %v918, %v919
      %v921 = vrot.slane %v920, 2
      %v922 = vadd.f32 %v920, %v921
      %v923 = vrot.slane %v922, 1
      %v924 = vadd.f32 %v922, %v923
      %v925 = vmul.f32 %v688, 0.00012207031
      %v926 = vmul.f32 %v924, 0.00012207031
      %v927 = vmul.f32 %v925, %v925
      %v928 = vsub.f32 %v926, %v927
      %v929 = vadd.f32 %v928, 1e-05
      %v930 = vrsqrt.pop %v929
      %v931 = vmul.f32 %v930, %v929
      %v932 = vmul.f32 %v931, %v930
      %v933 = vmul.f32 0.5, %v932
      %v934 = vsub.f32 1.5, %v933
      %v935 = vmul.f32 %v930, %v934
      %vm936 = vweird.f32 %v929
      %vm937 = vweird.f32 %v930
      %vm938 = vmor %vm936, %vm937
      %v939 = vsel %vm938, %v930, %v935
      %v940 = vmul.f32 %v939, %v494
      %v941 = vmul.f32 %v925, %v940
      %v942 = vsub.f32 %v495, %v941
      %v944 = vperm.slane %v940, 0
      %v946 = vmul.f32 %v448, %v944
      %v947 = vmul.f32 %v449, %v944
      %v948 = vmul.f32 %v450, %v944
      %v949 = vmul.f32 %v451, %v944
      %v950 = vmul.f32 %v452, %v944
      %v951 = vmul.f32 %v453, %v944
      %v952 = vmul.f32 %v454, %v944
      %v953 = vmul.f32 %v455, %v944
      %v954 = vmul.f32 %v456, %v944
      %v955 = vmul.f32 %v457, %v944
      %v956 = vmul.f32 %v458, %v944
      %v957 = vmul.f32 %v459, %v944
      %v958 = vmul.f32 %v460, %v944
      %v959 = vmul.f32 %v461, %v944
      %v960 = vmul.f32 %v462, %v944
      %v961 = vmul.f32 %v463, %v944
      %v962 = vmul.f32 %v464, %v944
      %v963 = vmul.f32 %v465, %v944
      %v964 = vmul.f32 %v466, %v944
      %v965 = vmul.f32 %v467, %v944
      %v966 = vmul.f32 %v468, %v944
      %v967 = vmul.f32 %v469, %v944
      %v968 = vmul.f32 %v470, %v944
      %v969 = vmul.f32 %v471, %v944
      %v970 = vmul.f32 %v472, %v944
      %v971 = vmul.f32 %v473, %v944
      %v972 = vmul.f32 %v474, %v944
      %v973 = vmul.f32 %v475, %v944
      %v974 = vmul.f32 %v476, %v944
      %v975 = vmul.f32 %v477, %v944
      %v976 = vmul.f32 %v478, %v944
      %v977 = vmul.f32 %v479, %v944
      %v978 = vmul.f32 %v480, %v944
      %v979 = vmul.f32 %v481, %v944
      %v980 = vmul.f32 %v482, %v944
      %v981 = vmul.f32 %v483, %v944
      %v982 = vmul.f32 %v484, %v944
      %v983 = vmul.f32 %v485, %v944
      %v984 = vmul.f32 %v486, %v944
      %v985 = vmul.f32 %v487, %v944
      %v986 = vmul.f32 %v488, %v944
      %v987 = vmul.f32 %v489, %v944
      %v988 = vmul.f32 %v490, %v944
      %v989 = vmul.f32 %v491, %v944
      %v990 = vmul.f32 %v492, %v944
      %v991 = vmul.f32 %v493, %v944
      %v993 = vperm.slane %v942, 0
      %v995 = vadd.f32 %v946, %v993
      %v996 = vadd.f32 %v947, %v993
      %v997 = vadd.f32 %v948, %v993
      %v998 = vadd.f32 %v949, %v993
      %v999 = vadd.f32 %v950, %v993
      %v1000 = vadd.f32 %v951, %v993
      %v1001 = vadd.f32 %v952, %v993
      %v1002 = vadd.f32 %v953, %v993
      %v1003 = vadd.f32 %v954, %v993
      %v1004 = vadd.f32 %v955, %v993
      %v1005 = vadd.f32 %v956, %v993
      %v1006 = vadd.f32 %v957, %v993
      %v1007 = vadd.f32 %v958, %v993
      %v1008 = vadd.f32 %v959, %v993
      %v1009 = vadd.f32 %v960, %v993
      %v1010 = vadd.f32 %v961, %v993
      %v1011 = vadd.f32 %v962, %v993
      %v1012 = vadd.f32 %v963, %v993
      %v1013 = vadd.f32 %v964, %v993
      %v1014 = vadd.f32 %v965, %v993
      %v1015 = vadd.f32 %v966, %v993
      %v1016 = vadd.f32 %v967, %v993
      %v1017 = vadd.f32 %v968, %v993
      %v1018 = vadd.f32 %v969, %v993
      %v1019 = vadd.f32 %v970, %v993
      %v1020 = vadd.f32 %v971, %v993
      %v1021 = vadd.f32 %v972, %v993
      %v1022 = vadd.f32 %v973, %v993
      %v1023 = vadd.f32 %v974, %v993
      %v1024 = vadd.f32 %v975, %v993
      %v1025 = vadd.f32 %v976, %v993
      %v1026 = vadd.f32 %v977, %v993
      %v1027 = vadd.f32 %v978, %v993
      %v1028 = vadd.f32 %v979, %v993
      %v1029 = vadd.f32 %v980, %v993
      %v1030 = vadd.f32 %v981, %v993
      %v1031 = vadd.f32 %v982, %v993
      %v1032 = vadd.f32 %v983, %v993
      %v1033 = vadd.f32 %v984, %v993
      %v1034 = vadd.f32 %v985, %v993
      %v1035 = vadd.f32 %v986, %v993
      %v1036 = vadd.f32 %v987, %v993
      %v1037 = vadd.f32 %v988, %v993
      %v1038 = vadd.f32 %v989, %v993
      %v1039 = vadd.f32 %v990, %v993
      %v1040 = vadd.f32 %v991, %v993
      %vm1041 = vcmp.gt.f32.partialorder %v995, 0.0
      %vm1042 = vcmp.gt.f32.partialorder %v996, 0.0
      %vm1043 = vcmp.gt.f32.partialorder %v997, 0.0
      %vm1044 = vcmp.gt.f32.partialorder %v998, 0.0
      %vm1045 = vcmp.gt.f32.partialorder %v999, 0.0
      %vm1046 = vcmp.gt.f32.partialorder %v1000, 0.0
      %vm1047 = vcmp.gt.f32.partialorder %v1001, 0.0
      %vm1048 = vcmp.gt.f32.partialorder %v1002, 0.0
      %vm1049 = vcmp.gt.f32.partialorder %v1003, 0.0
      %vm1050 = vcmp.gt.f32.partialorder %v1004, 0.0
      %vm1051 = vcmp.gt.f32.partialorder %v1005, 0.0
      %vm1052 = vcmp.gt.f32.partialorder %v1006, 0.0
      %vm1053 = vcmp.gt.f32.partialorder %v1007, 0.0
      %vm1054 = vcmp.gt.f32.partialorder %v1008, 0.0
      %vm1055 = vcmp.gt.f32.partialorder %v1009, 0.0
      %vm1056 = vcmp.gt.f32.partialorder %v1010, 0.0
      %vm1057 = vcmp.gt.f32.partialorder %v1011, 0.0
      %vm1058 = vcmp.gt.f32.partialorder %v1012, 0.0
      %vm1059 = vcmp.gt.f32.partialorder %v1013, 0.0
      %vm1060 = vcmp.gt.f32.partialorder %v1014, 0.0
      %vm1061 = vcmp.gt.f32.partialorder %v1015, 0.0
      %vm1062 = vcmp.gt.f32.partialorder %v1016, 0.0
      %vm1063 = vcmp.gt.f32.partialorder %v1017, 0.0
      %vm1064 = vcmp.gt.f32.partialorder %v1018, 0.0
      %vm1065 = vcmp.gt.f32.partialorder %v1019, 0.0
      %vm1066 = vcmp.gt.f32.partialorder %v1020, 0.0
      %vm1067 = vcmp.gt.f32.partialorder %v1021, 0.0
      %vm1068 = vcmp.gt.f32.partialorder %v1022, 0.0
      %vm1069 = vcmp.gt.f32.partialorder %v1023, 0.0
      %vm1070 = vcmp.gt.f32.partialorder %v1024, 0.0
      %vm1071 = vcmp.gt.f32.partialorder %v1025, 0.0
      %vm1072 = vcmp.gt.f32.partialorder %v1026, 0.0
      %vm1073 = vcmp.gt.f32.partialorder %v1027, 0.0
      %vm1074 = vcmp.gt.f32.partialorder %v1028, 0.0
      %vm1075 = vcmp.gt.f32.partialorder %v1029, 0.0
      %vm1076 = vcmp.gt.f32.partialorder %v1030, 0.0
      %vm1077 = vcmp.gt.f32.partialorder %v1031, 0.0
      %vm1078 = vcmp.gt.f32.partialorder %v1032, 0.0
      %vm1079 = vcmp.gt.f32.partialorder %v1033, 0.0
      %vm1080 = vcmp.gt.f32.partialorder %v1034, 0.0
      %vm1081 = vcmp.gt.f32.partialorder %v1035, 0.0
      %vm1082 = vcmp.gt.f32.partialorder %v1036, 0.0
      %vm1083 = vcmp.gt.f32.partialorder %v1037, 0.0
      %vm1084 = vcmp.gt.f32.partialorder %v1038, 0.0
      %vm1085 = vcmp.gt.f32.partialorder %v1039, 0.0
      %vm1086 = vcmp.gt.f32.partialorder %v1040, 0.0
      %v1087 = vmul.f32 %v995, 0.01
      %v1088 = vmul.f32 %v996, 0.01
      %v1089 = vmul.f32 %v997, 0.01
      %v1090 = vmul.f32 %v998, 0.01
      %v1091 = vmul.f32 %v999, 0.01
      %v1092 = vmul.f32 %v1000, 0.01
      %v1093 = vmul.f32 %v1001, 0.01
      %v1094 = vmul.f32 %v1002, 0.01
      %v1095 = vmul.f32 %v1003, 0.01
      %v1096 = vmul.f32 %v1004, 0.01
      %v1097 = vmul.f32 %v1005, 0.01
      %v1098 = vmul.f32 %v1006, 0.01
      %v1099 = vmul.f32 %v1007, 0.01
      %v1100 = vmul.f32 %v1008, 0.01
      %v1101 = vmul.f32 %v1009, 0.01
      %v1102 = vmul.f32 %v1010, 0.01
      %v1103 = vmul.f32 %v1011, 0.01
      %v1104 = vmul.f32 %v1012, 0.01
      %v1105 = vmul.f32 %v1013, 0.01
      %v1106 = vmul.f32 %v1014, 0.01
      %v1107 = vmul.f32 %v1015, 0.01
      %v1108 = vmul.f32 %v1016, 0.01
      %v1109 = vmul.f32 %v1017, 0.01
      %v1110 = vmul.f32 %v1018, 0.01
      %v1111 = vmul.f32 %v1019, 0.01
      %v1112 = vmul.f32 %v1020, 0.01
      %v1113 = vmul.f32 %v1021, 0.01
      %v1114 = vmul.f32 %v1022, 0.01
      %v1115 = vmul.f32 %v1023, 0.01
      %v1116 = vmul.f32 %v1024, 0.01
      %v1117 = vmul.f32 %v1025, 0.01
      %v1118 = vmul.f32 %v1026, 0.01
      %v1119 = vmul.f32 %v1027, 0.01
      %v1120 = vmul.f32 %v1028, 0.01
      %v1121 = vmul.f32 %v1029, 0.01
      %v1122 = vmul.f32 %v1030, 0.01
      %v1123 = vmul.f32 %v1031, 0.01
      %v1124 = vmul.f32 %v1032, 0.01
      %v1125 = vmul.f32 %v1033, 0.01
      %v1126 = vmul.f32 %v1034, 0.01
      %v1127 = vmul.f32 %v1035, 0.01
      %v1128 = vmul.f32 %v1036, 0.01
      %v1129 = vmul.f32 %v1037, 0.01
      %v1130 = vmul.f32 %v1038, 0.01
      %v1131 = vmul.f32 %v1039, 0.01
      %v1132 = vmul.f32 %v1040, 0.01
      %v1133 = vsel %vm1041, %v995, %v1087
      %v1134 = vsel %vm1042, %v996, %v1088
      %v1135 = vsel %vm1043, %v997, %v1089
      %v1136 = vsel %vm1044, %v998, %v1090
      %v1137 = vsel %vm1045, %v999, %v1091
      %v1138 = vsel %vm1046, %v1000, %v1092
      %v1139 = vsel %vm1047, %v1001, %v1093
      %v1140 = vsel %vm1048, %v1002, %v1094
      %v1141 = vsel %vm1049, %v1003, %v1095
      %v1142 = vsel %vm1050, %v1004, %v1096
      %v1143 = vsel %vm1051, %v1005, %v1097
      %v1144 = vsel %vm1052, %v1006, %v1098
      %v1145 = vsel %vm1053, %v1007, %v1099
      %v1146 = vsel %vm1054, %v1008, %v1100
      %v1147 = vsel %vm1055, %v1009, %v1101
      %v1148 = vsel %vm1056, %v1010, %v1102
      %v1149 = vsel %vm1057, %v1011, %v1103
      %v1150 = vsel %vm1058, %v1012, %v1104
      %v1151 = vsel %vm1059, %v1013, %v1105
      %v1152 = vsel %vm1060, %v1014, %v1106
      %v1153 = vsel %vm1061, %v1015, %v1107
      %v1154 = vsel %vm1062, %v1016, %v1108
      %v1155 = vsel %vm1063, %v1017, %v1109
      %v1156 = vsel %vm1064, %v1018, %v1110
      %v1157 = vsel %vm1065, %v1019, %v1111
      %v1158 = vsel %vm1066, %v1020, %v1112
      %v1159 = vsel %vm1067, %v1021, %v1113
      %v1160 = vsel %vm1068, %v1022, %v1114
      %v1161 = vsel %vm1069, %v1023, %v1115
      %v1162 = vsel %vm1070, %v1024, %v1116
      %v1163 = vsel %vm1071, %v1025, %v1117
      %v1164 = vsel %vm1072, %v1026, %v1118
      %v1165 = vsel %vm1073, %v1027, %v1119
      %v1166 = vsel %vm1074, %v1028, %v1120
      %v1167 = vsel %vm1075, %v1029, %v1121
      %v1168 = vsel %vm1076, %v1030, %v1122
      %v1169 = vsel %vm1077, %v1031, %v1123
      %v1170 = vsel %vm1078, %v1032, %v1124
      %v1171 = vsel %vm1079, %v1033, %v1125
      %v1172 = vsel %vm1080, %v1034, %v1126
      %v1173 = vsel %vm1081, %v1035, %v1127
      %v1174 = vsel %vm1082, %v1036, %v1128
      %v1175 = vsel %vm1083, %v1037, %v1129
      %v1176 = vsel %vm1084, %v1038, %v1130
      %v1177 = vsel %vm1085, %v1039, %v1131
      %v1178 = vsel %vm1086, %v1040, %v1132
      %1180 = vset.pattern.permute.xlu0 0
      %1181 = vperm.xlu0 %1180, %v361
      %v1182 = vpop.permute.xlu0 %1181
      %1185 = vset.pattern.permute.xlu0 0
      %1186 = vperm.xlu0 %1185, %v362
      %v1187 = vpop.permute.xlu0 %1186
      %1190 = vset.pattern.permute.xlu0 0
      %1191 = vperm.xlu0 %1190, %v363
      %v1192 = vpop.permute.xlu0 %1191
      %1195 = vset.pattern.permute.xlu0 0
      %1196 = vperm.xlu0 %1195, %v364
      %v1197 = vpop.permute.xlu0 %1196
      %1200 = vset.pattern.permute.xlu0 0
      %1201 = vperm.xlu0 %1200, %v365
      %v1202 = vpop.permute.xlu0 %1201
      %1205 = vset.pattern.permute.xlu0 0
      %1206 = vperm.xlu0 %1205, %v366
      %v1207 = vpop.permute.xlu0 %1206
      %1210 = vset.pattern.permute.xlu0 0
      %1211 = vperm.xlu0 %1210, %v367
      %v1212 = vpop.permute.xlu0 %1211
      %1215 = vset.pattern.permute.xlu0 0
      %1216 = vperm.xlu0 %1215, %v368
      %v1217 = vpop.permute.xlu0 %1216
      %1220 = vset.pattern.permute.xlu0 0
      %1221 = vperm.xlu0 %1220, %v369
      %v1222 = vpop.permute.xlu0 %1221
      %1225 = vset.pattern.permute.xlu0 0
      %1226 = vperm.xlu0 %1225, %v370
      %v1227 = vpop.permute.xlu0 %1226
      %1230 = vset.pattern.permute.xlu0 0
      %1231 = vperm.xlu0 %1230, %v371
      %v1232 = vpop.permute.xlu0 %1231
      %1235 = vset.pattern.permute.xlu0 0
      %1236 = vperm.xlu0 %1235, %v372
      %v1237 = vpop.permute.xlu0 %1236
      %1240 = vset.pattern.permute.xlu0 0
      %1241 = vperm.xlu0 %1240, %v373
      %v1242 = vpop.permute.xlu0 %1241
      %1245 = vset.pattern.permute.xlu0 0
      %1246 = vperm.xlu0 %1245, %v374
      %v1247 = vpop.permute.xlu0 %1246
      %1250 = vset.pattern.permute.xlu0 0
      %1251 = vperm.xlu0 %1250, %v375
      %v1252 = vpop.permute.xlu0 %1251
      %1255 = vset.pattern.permute.xlu0 0
      %1256 = vperm.xlu0 %1255, %v376
      %v1257 = vpop.permute.xlu0 %1256
      %1260 = vset.pattern.permute.xlu0 0
      %1261 = vperm.xlu0 %1260, %v377
      %v1262 = vpop.permute.xlu0 %1261
      %1265 = vset.pattern.permute.xlu0 0
      %1266 = vperm.xlu0 %1265, %v378
      %v1267 = vpop.permute.xlu0 %1266
      %1270 = vset.pattern.permute.xlu0 0
      %1271 = vperm.xlu0 %1270, %v379
      %v1272 = vpop.permute.xlu0 %1271
      %1275 = vset.pattern.permute.xlu0 0
      %1276 = vperm.xlu0 %1275, %v380
      %v1277 = vpop.permute.xlu0 %1276
      %1280 = vset.pattern.permute.xlu0 0
      %1281 = vperm.xlu0 %1280, %v381
      %v1282 = vpop.permute.xlu0 %1281
      %1285 = vset.pattern.permute.xlu0 0
      %1286 = vperm.xlu0 %1285, %v382
      %v1287 = vpop.permute.xlu0 %1286
      %1290 = vset.pattern.permute.xlu0 0
      %1291 = vperm.xlu0 %1290, %v383
      %v1292 = vpop.permute.xlu0 %1291
      %1295 = vset.pattern.permute.xlu0 0
      %1296 = vperm.xlu0 %1295, %v384
      %v1297 = vpop.permute.xlu0 %1296
      %1300 = vset.pattern.permute.xlu0 0
      %1301 = vperm.xlu0 %1300, %v385
      %v1302 = vpop.permute.xlu0 %1301
      %1305 = vset.pattern.permute.xlu0 0
      %1306 = vperm.xlu0 %1305, %v386
      %v1307 = vpop.permute.xlu0 %1306
      %1310 = vset.pattern.permute.xlu0 0
      %1311 = vperm.xlu0 %1310, %v387
      %v1312 = vpop.permute.xlu0 %1311
      %1315 = vset.pattern.permute.xlu0 0
      %1316 = vperm.xlu0 %1315, %v388
      %v1317 = vpop.permute.xlu0 %1316
      %1320 = vset.pattern.permute.xlu0 0
      %1321 = vperm.xlu0 %1320, %v389
      %v1322 = vpop.permute.xlu0 %1321
      %1325 = vset.pattern.permute.xlu0 0
      %1326 = vperm.xlu0 %1325, %v390
      %v1327 = vpop.permute.xlu0 %1326
      %1330 = vset.pattern.permute.xlu0 0
      %1331 = vperm.xlu0 %1330, %v391
      %v1332 = vpop.permute.xlu0 %1331
      %1335 = vset.pattern.permute.xlu0 0
      %1336 = vperm.xlu0 %1335, %v392
      %v1337 = vpop.permute.xlu0 %1336
      %1340 = vset.pattern.permute.xlu0 0
      %1341 = vperm.xlu0 %1340, %v393
      %v1342 = vpop.permute.xlu0 %1341
      %1345 = vset.pattern.permute.xlu0 0
      %1346 = vperm.xlu0 %1345, %v394
      %v1347 = vpop.permute.xlu0 %1346
      %1350 = vset.pattern.permute.xlu0 0
      %1351 = vperm.xlu0 %1350, %v395
      %v1352 = vpop.permute.xlu0 %1351
      %1355 = vset.pattern.permute.xlu0 0
      %1356 = vperm.xlu0 %1355, %v396
      %v1357 = vpop.permute.xlu0 %1356
      %1360 = vset.pattern.permute.xlu0 0
      %1361 = vperm.xlu0 %1360, %v397
      %v1362 = vpop.permute.xlu0 %1361
      %1365 = vset.pattern.permute.xlu0 0
      %1366 = vperm.xlu0 %1365, %v398
      %v1367 = vpop.permute.xlu0 %1366
      %1370 = vset.pattern.permute.xlu0 0
      %1371 = vperm.xlu0 %1370, %v399
      %v1372 = vpop.permute.xlu0 %1371
      %1375 = vset.pattern.permute.xlu0 0
      %1376 = vperm.xlu0 %1375, %v400
      %v1377 = vpop.permute.xlu0 %1376
      %1380 = vset.pattern.permute.xlu0 0
      %1381 = vperm.xlu0 %1380, %v401
      %v1382 = vpop.permute.xlu0 %1381
      %1385 = vset.pattern.permute.xlu0 0
      %1386 = vperm.xlu0 %1385, %v402
      %v1387 = vpop.permute.xlu0 %1386
      %1390 = vset.pattern.permute.xlu0 0
      %1391 = vperm.xlu0 %1390, %v403
      %v1392 = vpop.permute.xlu0 %1391
      %1395 = vset.pattern.permute.xlu0 0
      %1396 = vperm.xlu0 %1395, %v404
      %v1397 = vpop.permute.xlu0 %1396
      %1400 = vset.pattern.permute.xlu0 0
      %1401 = vperm.xlu0 %1400, %v405
      %v1402 = vpop.permute.xlu0 %1401
      %1405 = vset.pattern.permute.xlu0 0
      %1406 = vperm.xlu0 %1405, %v406
      %v1407 = vpop.permute.xlu0 %1406
      %v1409 = vmul.f32 %v1133, %v1182
      %v1410 = vmul.f32 %v1134, %v1187
      %v1411 = vmul.f32 %v1135, %v1192
      %v1412 = vmul.f32 %v1136, %v1197
      %v1413 = vmul.f32 %v1137, %v1202
      %v1414 = vmul.f32 %v1138, %v1207
      %v1415 = vmul.f32 %v1139, %v1212
      %v1416 = vmul.f32 %v1140, %v1217
      %v1417 = vmul.f32 %v1141, %v1222
      %v1418 = vmul.f32 %v1142, %v1227
      %v1419 = vmul.f32 %v1143, %v1232
      %v1420 = vmul.f32 %v1144, %v1237
      %v1421 = vmul.f32 %v1145, %v1242
      %v1422 = vmul.f32 %v1146, %v1247
      %v1423 = vmul.f32 %v1147, %v1252
      %v1424 = vmul.f32 %v1148, %v1257
      %v1425 = vmul.f32 %v1149, %v1262
      %v1426 = vmul.f32 %v1150, %v1267
      %v1427 = vmul.f32 %v1151, %v1272
      %v1428 = vmul.f32 %v1152, %v1277
      %v1429 = vmul.f32 %v1153, %v1282
      %v1430 = vmul.f32 %v1154, %v1287
      %v1431 = vmul.f32 %v1155, %v1292
      %v1432 = vmul.f32 %v1156, %v1297
      %v1433 = vmul.f32 %v1157, %v1302
      %v1434 = vmul.f32 %v1158, %v1307
      %v1435 = vmul.f32 %v1159, %v1312
      %v1436 = vmul.f32 %v1160, %v1317
      %v1437 = vmul.f32 %v1161, %v1322
      %v1438 = vmul.f32 %v1162, %v1327
      %v1439 = vmul.f32 %v1163, %v1332
      %v1440 = vmul.f32 %v1164, %v1337
      %v1441 = vmul.f32 %v1165, %v1342
      %v1442 = vmul.f32 %v1166, %v1347
      %v1443 = vmul.f32 %v1167, %v1352
      %v1444 = vmul.f32 %v1168, %v1357
      %v1445 = vmul.f32 %v1169, %v1362
      %v1446 = vmul.f32 %v1170, %v1367
      %v1447 = vmul.f32 %v1171, %v1372
      %v1448 = vmul.f32 %v1172, %v1377
      %v1449 = vmul.f32 %v1173, %v1382
      %v1450 = vmul.f32 %v1174, %v1387
      %v1451 = vmul.f32 %v1175, %v1392
      %v1452 = vmul.f32 %v1176, %v1397
      %v1453 = vmul.f32 %v1177, %v1402
      %v1454 = vmul.f32 %v1178, %v1407
      %1455 = vst.msk [vmem:[#allocation2] sm:$0xff] %vm496, %v1409
      %1456 = vst.msk [vmem:[#allocation2 + $0x8] sm:$0xff] %vm496, %v1410
      %1457 = vst.msk [vmem:[#allocation2 + $0x10] sm:$0xff] %vm496, %v1411
      %1458 = vst.msk [vmem:[#allocation2 + $0x18] sm:$0xff] %vm496, %v1412
      %1459 = vst.msk [vmem:[#allocation2 + $0x20] sm:$0xff] %vm496, %v1413
      %1460 = vst.msk [vmem:[#allocation2 + $0x28] sm:$0xff] %vm496, %v1414
      %1461 = vst.msk [vmem:[#allocation2 + $0x30] sm:$0xff] %vm496, %v1415
      %1462 = vst.msk [vmem:[#allocation2 + $0x38] sm:$0xff] %vm496, %v1416
      %1463 = vst.msk [vmem:[#allocation2 + $0x40] sm:$0xff] %vm496, %v1417
      %1464 = vst.msk [vmem:[#allocation2 + $0x48] sm:$0xff] %vm496, %v1418
      %1465 = vst.msk [vmem:[#allocation2 + $0x50] sm:$0xff] %vm496, %v1419
      %1466 = vst.msk [vmem:[#allocation2 + $0x58] sm:$0xff] %vm496, %v1420
      %1467 = vst.msk [vmem:[#allocation2 + $0x60] sm:$0xff] %vm496, %v1421
      %1468 = vst.msk [vmem:[#allocation2 + $0x68] sm:$0xff] %vm496, %v1422
      %1469 = vst.msk [vmem:[#allocation2 + $0x70] sm:$0xff] %vm496, %v1423
      %1470 = vst.msk [vmem:[#allocation2 + $0x78] sm:$0xff] %vm496, %v1424
      %1471 = vst.msk [vmem:[#allocation2 + $0x80] sm:$0xff] %vm496, %v1425
      %1472 = vst.msk [vmem:[#allocation2 + $0x88] sm:$0xff] %vm496, %v1426
      %1473 = vst.msk [vmem:[#allocation2 + $0x90] sm:$0xff] %vm496, %v1427
      %1474 = vst.msk [vmem:[#allocation2 + $0x98] sm:$0xff] %vm496, %v1428
      %1475 = vst.msk [vmem:[#allocation2 + $0xa0] sm:$0xff] %vm496, %v1429
      %1476 = vst.msk [vmem:[#allocation2 + $0xa8] sm:$0xff] %vm496, %v1430
      %1477 = vst.msk [vmem:[#allocation2 + $0xb0] sm:$0xff] %vm496, %v1431
      %1478 = vst.msk [vmem:[#allocation2 + $0xb8] sm:$0xff] %vm496, %v1432
      %1479 = vst.msk [vmem:[#allocation2 + $0xc0] sm:$0xff] %vm496, %v1433
      %1480 = vst.msk [vmem:[#allocation2 + $0xc8] sm:$0xff] %vm496, %v1434
      %1481 = vst.msk [vmem:[#allocation2 + $0xd0] sm:$0xff] %vm496, %v1435
      %1482 = vst.msk [vmem:[#allocation2 + $0xd8] sm:$0xff] %vm496, %v1436
      %1483 = vst.msk [vmem:[#allocation2 + $0xe0] sm:$0xff] %vm496, %v1437
      %1484 = vst.msk [vmem:[#allocation2 + $0xe8] sm:$0xff] %vm496, %v1438
      %1485 = vst.msk [vmem:[#allocation2 + $0xf0] sm:$0xff] %vm496, %v1439
      %1486 = vst.msk [vmem:[#allocation2 + $0xf8] sm:$0xff] %vm496, %v1440
      %1487 = vst.msk [vmem:[#allocation2 + $0x100] sm:$0xff] %vm496, %v1441
      %1488 = vst.msk [vmem:[#allocation2 + $0x108] sm:$0xff] %vm496, %v1442
      %1489 = vst.msk [vmem:[#allocation2 + $0x110] sm:$0xff] %vm496, %v1443
      %1490 = vst.msk [vmem:[#allocation2 + $0x118] sm:$0xff] %vm496, %v1444
      %1491 = vst.msk [vmem:[#allocation2 + $0x120] sm:$0xff] %vm496, %v1445
      %1492 = vst.msk [vmem:[#allocation2 + $0x128] sm:$0xff] %vm496, %v1446
      %1493 = vst.msk [vmem:[#allocation2 + $0x130] sm:$0xff] %vm496, %v1447
      %1494 = vst.msk [vmem:[#allocation2 + $0x138] sm:$0xff] %vm496, %v1448
      %1495 = vst.msk [vmem:[#allocation2 + $0x140] sm:$0xff] %vm496, %v1449
      %1496 = vst.msk [vmem:[#allocation2 + $0x148] sm:$0xff] %vm496, %v1450
      %1497 = vst.msk [vmem:[#allocation2 + $0x150] sm:$0xff] %vm496, %v1451
      %1498 = vst.msk [vmem:[#allocation2 + $0x158] sm:$0xff] %vm496, %v1452
      %1499 = vst.msk [vmem:[#allocation2 + $0x160] sm:$0xff] %vm496, %v1453
      %1500 = vst.msk [vmem:[#allocation2 + $0x168] sm:$0x3] %vm632, %v1454
      %v1501 = vld [vmem:[#allocation2] sm:$0xff]
      %v1502 = vld [vmem:[#allocation2 + $0x8] sm:$0xff]
      %v1503 = vld [vmem:[#allocation2 + $0x10] sm:$0xff]
      %v1504 = vld [vmem:[#allocation2 + $0x18] sm:$0xff]
      %v1505 = vld [vmem:[#allocation2 + $0x20] sm:$0xff]
      %v1506 = vld [vmem:[#allocation2 + $0x28] sm:$0xff]
      %v1507 = vld [vmem:[#allocation2 + $0x30] sm:$0xff]
      %v1508 = vld [vmem:[#allocation2 + $0x38] sm:$0xff]
      %v1509 = vld [vmem:[#allocation2 + $0x40] sm:$0xff]
      %v1510 = vld [vmem:[#allocation2 + $0x48] sm:$0xff]
      %v1511 = vld [vmem:[#allocation2 + $0x50] sm:$0xff]
      %v1512 = vld [vmem:[#allocation2 + $0x58] sm:$0xff]
      %v1513 = vld [vmem:[#allocation2 + $0x60] sm:$0xff]
      %v1514 = vld [vmem:[#allocation2 + $0x68] sm:$0xff]
      %v1515 = vld [vmem:[#allocation2 + $0x70] sm:$0xff]
      %v1516 = vld [vmem:[#allocation2 + $0x78] sm:$0xff]
      %v1517 = vld [vmem:[#allocation2 + $0x80] sm:$0xff]
      %v1518 = vld [vmem:[#allocation2 + $0x88] sm:$0xff]
      %v1519 = vld [vmem:[#allocation2 + $0x90] sm:$0xff]
      %v1520 = vld [vmem:[#allocation2 + $0x98] sm:$0xff]
      %v1521 = vld [vmem:[#allocation2 + $0xa0] sm:$0xff]
      %v1522 = vld [vmem:[#allocation2 + $0xa8] sm:$0xff]
      %v1523 = vld [vmem:[#allocation2 + $0xb0] sm:$0xff]
      %v1524 = vld [vmem:[#allocation2 + $0xb8] sm:$0xff]
      %v1525 = vld [vmem:[#allocation2 + $0xc0] sm:$0xff]
      %v1526 = vld [vmem:[#allocation2 + $0xc8] sm:$0xff]
      %v1527 = vld [vmem:[#allocation2 + $0xd0] sm:$0xff]
      %v1528 = vld [vmem:[#allocation2 + $0xd8] sm:$0xff]
      %v1529 = vld [vmem:[#allocation2 + $0xe0] sm:$0xff]
      %v1530 = vld [vmem:[#allocation2 + $0xe8] sm:$0xff]
      %v1531 = vld [vmem:[#allocation2 + $0xf0] sm:$0xff]
      %v1532 = vld [vmem:[#allocation2 + $0xf8] sm:$0xff]
      %v1533 = vld [vmem:[#allocation2 + $0x100] sm:$0xff]
      %v1534 = vld [vmem:[#allocation2 + $0x108] sm:$0xff]
      %v1535 = vld [vmem:[#allocation2 + $0x110] sm:$0xff]
      %v1536 = vld [vmem:[#allocation2 + $0x118] sm:$0xff]
      %v1537 = vld [vmem:[#allocation2 + $0x120] sm:$0xff]
      %v1538 = vld [vmem:[#allocation2 + $0x128] sm:$0xff]
      %v1539 = vld [vmem:[#allocation2 + $0x130] sm:$0xff]
      %v1540 = vld [vmem:[#allocation2 + $0x138] sm:$0xff]
      %v1541 = vld [vmem:[#allocation2 + $0x140] sm:$0xf]
      %v1542 = vpack.c.bf16 %v1501, %v1501
      %v1543 = vpack.c.bf16 %v1502, %v1502
      %v1544 = vpack.c.bf16 %v1503, %v1503
      %v1545 = vpack.c.bf16 %v1504, %v1504
      %v1546 = vpack.c.bf16 %v1505, %v1505
      %v1547 = vpack.c.bf16 %v1506, %v1506
      %v1548 = vpack.c.bf16 %v1507, %v1507
      %v1549 = vpack.c.bf16 %v1508, %v1508
      %v1550 = vpack.c.bf16 %v1509, %v1509
      %v1551 = vpack.c.bf16 %v1510, %v1510
      %v1552 = vpack.c.bf16 %v1511, %v1511
      %v1553 = vpack.c.bf16 %v1512, %v1512
      %v1554 = vpack.c.bf16 %v1513, %v1513
      %v1555 = vpack.c.bf16 %v1514, %v1514
      %v1556 = vpack.c.bf16 %v1515, %v1515
      %v1557 = vpack.c.bf16 %v1516, %v1516
      %v1558 = vpack.c.bf16 %v1517, %v1517
      %v1559 = vpack.c.bf16 %v1518, %v1518
      %v1560 = vpack.c.bf16 %v1519, %v1519
      %v1561 = vpack.c.bf16 %v1520, %v1520
      %v1562 = vpack.c.bf16 %v1521, %v1521
      %v1563 = vpack.c.bf16 %v1522, %v1522
      %v1564 = vpack.c.bf16 %v1523, %v1523
      %v1565 = vpack.c.bf16 %v1524, %v1524
      %v1566 = vpack.c.bf16 %v1525, %v1525
      %v1567 = vpack.c.bf16 %v1526, %v1526
      %v1568 = vpack.c.bf16 %v1527, %v1527
      %v1569 = vpack.c.bf16 %v1528, %v1528
      %v1570 = vpack.c.bf16 %v1529, %v1529
      %v1571 = vpack.c.bf16 %v1530, %v1530
      %v1572 = vpack.c.bf16 %v1531, %v1531
      %v1573 = vpack.c.bf16 %v1532, %v1532
      %v1574 = vpack.c.bf16 %v1533, %v1533
      %v1575 = vpack.c.bf16 %v1534, %v1534
      %v1576 = vpack.c.bf16 %v1535, %v1535
      %v1577 = vpack.c.bf16 %v1536, %v1536
      %v1578 = vpack.c.bf16 %v1537, %v1537
      %v1579 = vpack.c.bf16 %v1538, %v1538
      %v1580 = vpack.c.bf16 %v1539, %v1539
      %v1581 = vpack.c.bf16 %v1540, %v1540
      %v1582 = vpack.c.bf16 %v1541, %v1541
      %vm1583 = vcmask 257024
      %1584 = vst.msk [vmem:[#allocation3] sm:$0xf] %vm1583, %v1542
      %1585 = vst.msk [vmem:[#allocation3 + $0xc] sm:$0xf] %vm1583, %v1543
      %1586 = vst.msk [vmem:[#allocation3 + $0x18] sm:$0xf] %vm1583, %v1544
      %1587 = vst.msk [vmem:[#allocation3 + $0x24] sm:$0xf] %vm1583, %v1545
      %1588 = vst.msk [vmem:[#allocation3 + $0x30] sm:$0xf] %vm1583, %v1546
      %1589 = vst.msk [vmem:[#allocation3 + $0x3c] sm:$0xf] %vm1583, %v1547
      %1590 = vst.msk [vmem:[#allocation3 + $0x48] sm:$0xf] %vm1583, %v1548
      %1591 = vst.msk [vmem:[#allocation3 + $0x54] sm:$0xf] %vm1583, %v1549
      %1592 = vst.msk [vmem:[#allocation3 + $0x60] sm:$0xf] %vm1583, %v1550
      %1593 = vst.msk [vmem:[#allocation3 + $0x6c] sm:$0xf] %vm1583, %v1551
      %1594 = vst.msk [vmem:[#allocation3 + $0x78] sm:$0xf] %vm1583, %v1552
      %1595 = vst.msk [vmem:[#allocation3 + $0x84] sm:$0xf] %vm1583, %v1553
      %1596 = vst.msk [vmem:[#allocation3 + $0x90] sm:$0xf] %vm1583, %v1554
      %1597 = vst.msk [vmem:[#allocation3 + $0x9c] sm:$0xf] %vm1583, %v1555
      %1598 = vst.msk [vmem:[#allocation3 + $0xa8] sm:$0xf] %vm1583, %v1556
      %1599 = vst.msk [vmem:[#allocation3 + $0xb4] sm:$0xf] %vm1583, %v1557
      %1600 = vst.msk [vmem:[#allocation3 + $0xc0] sm:$0xf] %vm1583, %v1558
      %1601 = vst.msk [vmem:[#allocation3 + $0xcc] sm:$0xf] %vm1583, %v1559
      %1602 = vst.msk [vmem:[#allocation3 + $0xd8] sm:$0xf] %vm1583, %v1560
      %1603 = vst.msk [vmem:[#allocation3 + $0xe4] sm:$0xf] %vm1583, %v1561
      %1604 = vst.msk [vmem:[#allocation3 + $0xf0] sm:$0xf] %vm1583, %v1562
      %1605 = vst.msk [vmem:[#allocation3 + $0xfc] sm:$0xf] %vm1583, %v1563
      %1606 = vst.msk [vmem:[#allocation3 + $0x108] sm:$0xf] %vm1583, %v1564
      %1607 = vst.msk [vmem:[#allocation3 + $0x114] sm:$0xf] %vm1583, %v1565
      %1608 = vst.msk [vmem:[#allocation3 + $0x120] sm:$0xf] %vm1583, %v1566
      %1609 = vst.msk [vmem:[#allocation3 + $0x12c] sm:$0xf] %vm1583, %v1567
      %1610 = vst.msk [vmem:[#allocation3 + $0x138] sm:$0xf] %vm1583, %v1568
      %1611 = vst.msk [vmem:[#allocation3 + $0x144] sm:$0xf] %vm1583, %v1569
      %1612 = vst.msk [vmem:[#allocation3 + $0x150] sm:$0xf] %vm1583, %v1570
      %1613 = vst.msk [vmem:[#allocation3 + $0x15c] sm:$0xf] %vm1583, %v1571
      %1614 = vst.msk [vmem:[#allocation3 + $0x168] sm:$0xf] %vm1583, %v1572
      %1615 = vst.msk [vmem:[#allocation3 + $0x174] sm:$0xf] %vm1583, %v1573
      %1616 = vst.msk [vmem:[#allocation3 + $0x180] sm:$0xf] %vm1583, %v1574
      %1617 = vst.msk [vmem:[#allocation3 + $0x18c] sm:$0xf] %vm1583, %v1575
      %1618 = vst.msk [vmem:[#allocation3 + $0x198] sm:$0xf] %vm1583, %v1576
      %1619 = vst.msk [vmem:[#allocation3 + $0x1a4] sm:$0xf] %vm1583, %v1577
      %1620 = vst.msk [vmem:[#allocation3 + $0x1b0] sm:$0xf] %vm1583, %v1578
      %1621 = vst.msk [vmem:[#allocation3 + $0x1bc] sm:$0xf] %vm1583, %v1579
      %1622 = vst.msk [vmem:[#allocation3 + $0x1c8] sm:$0xf] %vm1583, %v1580
      %1623 = vst.msk [vmem:[#allocation3 + $0x1d4] sm:$0xf] %vm1583, %v1581
      %1624 = vst.msk [vmem:[#allocation3 + $0x1e0] sm:$0x3] %vm632, %v1582
      %v1625 = vld [vmem:[#allocation2 + $0x1] sm:$0xff]
      %v1626 = vld [vmem:[#allocation2 + $0x9] sm:$0xff]
      %v1627 = vld [vmem:[#allocation2 + $0x11] sm:$0xff]
      %v1628 = vld [vmem:[#allocation2 + $0x19] sm:$0xff]
      %v1629 = vld [vmem:[#allocation2 + $0x21] sm:$0xff]
      %v1630 = vld [vmem:[#allocation2 + $0x29] sm:$0xff]
      %v1631 = vld [vmem:[#allocation2 + $0x31] sm:$0xff]
      %v1632 = vld [vmem:[#allocation2 + $0x39] sm:$0xff]
      %v1633 = vld [vmem:[#allocation2 + $0x41] sm:$0xff]
      %v1634 = vld [vmem:[#allocation2 + $0x49] sm:$0xff]
      %v1635 = vld [vmem:[#allocation2 + $0x51] sm:$0xff]
      %v1636 = vld [vmem:[#allocation2 + $0x59] sm:$0xff]
      %v1637 = vld [vmem:[#allocation2 + $0x61] sm:$0xff]
      %v1638 = vld [vmem:[#allocation2 + $0x69] sm:$0xff]
      %v1639 = vld [vmem:[#allocation2 + $0x71] sm:$0xff]
      %v1640 = vld [vmem:[#allocation2 + $0x79] sm:$0xff]
      %v1641 = vld [vmem:[#allocation2 + $0x81] sm:$0xff]
      %v1642 = vld [vmem:[#allocation2 + $0x89] sm:$0xff]
      %v1643 = vld [vmem:[#allocation2 + $0x91] sm:$0xff]
      %v1644 = vld [vmem:[#allocation2 + $0x99] sm:$0xff]
      %v1645 = vld [vmem:[#allocation2 + $0xa1] sm:$0xff]
      %v1646 = vld [vmem:[#allocation2 + $0xa9] sm:$0xff]
      %v1647 = vld [vmem:[#allocation2 + $0xb1] sm:$0xff]
      %v1648 = vld [vmem:[#allocation2 + $0xb9] sm:$0xff]
      %v1649 = vld [vmem:[#allocation2 + $0xc1] sm:$0xff]
      %v1650 = vld [vmem:[#allocation2 + $0xc9] sm:$0xff]
      %v1651 = vld [vmem:[#allocation2 + $0xd1] sm:$0xff]
      %v1652 = vld [vmem:[#allocation2 + $0xd9] sm:$0xff]
      %v1653 = vld [vmem:[#allocation2 + $0xe1] sm:$0xff]
      %v1654 = vld [vmem:[#allocation2 + $0xe9] sm:$0xff]
      %v1655 = vld [vmem:[#allocation2 + $0xf1] sm:$0xff]
      %v1656 = vld [vmem:[#allocation2 + $0xf9] sm:$0xff]
      %v1657 = vld [vmem:[#allocation2 + $0x101] sm:$0xff]
      %v1658 = vld [vmem:[#allocation2 + $0x109] sm:$0xff]
      %v1659 = vld [vmem:[#allocation2 + $0x111] sm:$0xff]
      %v1660 = vld [vmem:[#allocation2 + $0x119] sm:$0xff]
      %v1661 = vld [vmem:[#allocation2 + $0x121] sm:$0xff]
      %v1662 = vld [vmem:[#allocation2 + $0x129] sm:$0xff]
      %v1663 = vld [vmem:[#allocation2 + $0x131] sm:$0xff]
      %v1664 = vld [vmem:[#allocation2 + $0x139] sm:$0xff]
      %v1665 = vld [vmem:[#allocation2 + $0x141] sm:$0xf]
      %v1666 = vpack.c.bf16 %v1625, %v1625
      %v1667 = vpack.c.bf16 %v1626, %v1626
      %v1668 = vpack.c.bf16 %v1627, %v1627
      %v1669 = vpack.c.bf16 %v1628, %v1628
      %v1670 = vpack.c.bf16 %v1629, %v1629
      %v1671 = vpack.c.bf16 %v1630, %v1630
      %v1672 = vpack.c.bf16 %v1631, %v1631
      %v1673 = vpack.c.bf16 %v1632, %v1632
      %v1674 = vpack.c.bf16 %v1633, %v1633
      %v1675 = vpack.c.bf16 %v1634, %v1634
      %v1676 = vpack.c.bf16 %v1635, %v1635
      %v1677 = vpack.c.bf16 %v1636, %v1636
      %v1678 = vpack.c.bf16 %v1637, %v1637
      %v1679 = vpack.c.bf16 %v1638, %v1638
      %v1680 = vpack.c.bf16 %v1639, %v1639
      %v1681 = vpack.c.bf16 %v1640, %v1640
      %v1682 = vpack.c.bf16 %v1641, %v1641
      %v1683 = vpack.c.bf16 %v1642, %v1642
      %v1684 = vpack.c.bf16 %v1643, %v1643
      %v1685 = vpack.c.bf16 %v1644, %v1644
      %v1686 = vpack.c.bf16 %v1645, %v1645
      %v1687 = vpack.c.bf16 %v1646, %v1646
      %v1688 = vpack.c.bf16 %v1647, %v1647
      %v1689 = vpack.c.bf16 %v1648, %v1648
      %v1690 = vpack.c.bf16 %v1649, %v1649
      %v1691 = vpack.c.bf16 %v1650, %v1650
      %v1692 = vpack.c.bf16 %v1651, %v1651
      %v1693 = vpack.c.bf16 %v1652, %v1652
      %v1694 = vpack.c.bf16 %v1653, %v1653
      %v1695 = vpack.c.bf16 %v1654, %v1654
      %v1696 = vpack.c.bf16 %v1655, %v1655
      %v1697 = vpack.c.bf16 %v1656, %v1656
      %v1698 = vpack.c.bf16 %v1657, %v1657
      %v1699 = vpack.c.bf16 %v1658, %v1658
      %v1700 = vpack.c.bf16 %v1659, %v1659
      %v1701 = vpack.c.bf16 %v1660, %v1660
      %v1702 = vpack.c.bf16 %v1661, %v1661
      %v1703 = vpack.c.bf16 %v1662, %v1662
      %v1704 = vpack.c.bf16 %v1663, %v1663
      %v1705 = vpack.c.bf16 %v1664, %v1664
      %v1706 = vpack.c.bf16 %v1665, %v1665
      %1748 = vrot.lane.b32.xlu0 %v1666, 32
      %v1749 = vpop.permute.xlu0 %1748
      %1750 = vrot.lane.b32.xlu0 %v1667, 32
      %v1751 = vpop.permute.xlu0 %1750
      %1752 = vrot.lane.b32.xlu0 %v1668, 32
      %v1753 = vpop.permute.xlu0 %1752
      %1754 = vrot.lane.b32.xlu0 %v1669, 32
      %v1755 = vpop.permute.xlu0 %1754
      %1756 = vrot.lane.b32.xlu0 %v1670, 32
      %v1757 = vpop.permute.xlu0 %1756
      %1758 = vrot.lane.b32.xlu0 %v1671, 32
      %v1759 = vpop.permute.xlu0 %1758
      %1760 = vrot.lane.b32.xlu0 %v1672, 32
      %v1761 = vpop.permute.xlu0 %1760
      %1762 = vrot.lane.b32.xlu0 %v1673, 32
      %v1763 = vpop.permute.xlu0 %1762
      %1764 = vrot.lane.b32.xlu0 %v1674, 32
      %v1765 = vpop.permute.xlu0 %1764
      %1766 = vrot.lane.b32.xlu0 %v1675, 32
      %v1767 = vpop.permute.xlu0 %1766
      %1768 = vrot.lane.b32.xlu0 %v1676, 32
      %v1769 = vpop.permute.xlu0 %1768
      %1770 = vrot.lane.b32.xlu0 %v1677, 32
      %v1771 = vpop.permute.xlu0 %1770
      %1772 = vrot.lane.b32.xlu0 %v1678, 32
      %v1773 = vpop.permute.xlu0 %1772
      %1774 = vrot.lane.b32.xlu0 %v1679, 32
      %v1775 = vpop.permute.xlu0 %1774
      %1776 = vrot.lane.b32.xlu0 %v1680, 32
      %v1777 = vpop.permute.xlu0 %1776
      %1778 = vrot.lane.b32.xlu0 %v1681, 32
      %v1779 = vpop.permute.xlu0 %1778
      %1780 = vrot.lane.b32.xlu0 %v1682, 32
      %v1781 = vpop.permute.xlu0 %1780
      %1782 = vrot.lane.b32.xlu0 %v1683, 32
      %v1783 = vpop.permute.xlu0 %1782
      %1784 = vrot.lane.b32.xlu0 %v1684, 32
      %v1785 = vpop.permute.xlu0 %1784
      %1786 = vrot.lane.b32.xlu0 %v1685, 32
      %v1787 = vpop.permute.xlu0 %1786
      %1788 = vrot.lane.b32.xlu0 %v1686, 32
      %v1789 = vpop.permute.xlu0 %1788
      %1790 = vrot.lane.b32.xlu0 %v1687, 32
      %v1791 = vpop.permute.xlu0 %1790
      %1792 = vrot.lane.b32.xlu0 %v1688, 32
      %v1793 = vpop.permute.xlu0 %1792
      %1794 = vrot.lane.b32.xlu0 %v1689, 32
      %v1795 = vpop.permute.xlu0 %1794
      %1796 = vrot.lane.b32.xlu0 %v1690, 32
      %v1797 = vpop.permute.xlu0 %1796
      %1798 = vrot.lane.b32.xlu0 %v1691, 32
      %v1799 = vpop.permute.xlu0 %1798
      %1800 = vrot.lane.b32.xlu0 %v1692, 32
      %v1801 = vpop.permute.xlu0 %1800
      %1802 = vrot.lane.b32.xlu0 %v1693, 32
      %v1803 = vpop.permute.xlu0 %1802
      %1804 = vrot.lane.b32.xlu0 %v1694, 32
      %v1805 = vpop.permute.xlu0 %1804
      %1806 = vrot.lane.b32.xlu0 %v1695, 32
      %v1807 = vpop.permute.xlu0 %1806
      %1808 = vrot.lane.b32.xlu0 %v1696, 32
      %v1809 = vpop.permute.xlu0 %1808
      %1810 = vrot.lane.b32.xlu0 %v1697, 32
      %v1811 = vpop.permute.xlu0 %1810
      %1812 = vrot.lane.b32.xlu0 %v1698, 32
      %v1813 = vpop.permute.xlu0 %1812
      %1814 = vrot.lane.b32.xlu0 %v1699, 32
      %v1815 = vpop.permute.xlu0 %1814
      %1816 = vrot.lane.b32.xlu0 %v1700, 32
      %v1817 = vpop.permute.xlu0 %1816
      %1818 = vrot.lane.b32.xlu0 %v1701, 32
      %v1819 = vpop.permute.xlu0 %1818
      %1820 = vrot.lane.b32.xlu0 %v1702, 32
      %v1821 = vpop.permute.xlu0 %1820
      %1822 = vrot.lane.b32.xlu0 %v1703, 32
      %v1823 = vpop.permute.xlu0 %1822
      %1824 = vrot.lane.b32.xlu0 %v1704, 32
      %v1825 = vpop.permute.xlu0 %1824
      %1826 = vrot.lane.b32.xlu0 %v1705, 32
      %v1827 = vpop.permute.xlu0 %1826
      %1828 = vrot.lane.b32.xlu0 %v1706, 32
      %v1829 = vpop.permute.xlu0 %1828
      %vm1871 = vcmask 519424
      %1872 = vst.msk [vmem:[#allocation3] sm:$0xf] %vm1871, %v1749
      %1873 = vst.msk [vmem:[#allocation3 + $0xc] sm:$0xf] %vm1871, %v1751
      %1874 = vst.msk [vmem:[#allocation3 + $0x18] sm:$0xf] %vm1871, %v1753
      %1875 = vst.msk [vmem:[#allocation3 + $0x24] sm:$0xf] %vm1871, %v1755
      %1876 = vst.msk [vmem:[#allocation3 + $0x30] sm:$0xf] %vm1871, %v1757
      %1877 = vst.msk [vmem:[#allocation3 + $0x3c] sm:$0xf] %vm1871, %v1759
      %1878 = vst.msk [vmem:[#allocation3 + $0x48] sm:$0xf] %vm1871, %v1761
      %1879 = vst.msk [vmem:[#allocation3 + $0x54] sm:$0xf] %vm1871, %v1763
      %1880 = vst.msk [vmem:[#allocation3 + $0x60] sm:$0xf] %vm1871, %v1765
      %1881 = vst.msk [vmem:[#allocation3 + $0x6c] sm:$0xf] %vm1871, %v1767
      %1882 = vst.msk [vmem:[#allocation3 + $0x78] sm:$0xf] %vm1871, %v1769
      %1883 = vst.msk [vmem:[#allocation3 + $0x84] sm:$0xf] %vm1871, %v1771
      %1884 = vst.msk [vmem:[#allocation3 + $0x90] sm:$0xf] %vm1871, %v1773
      %1885 = vst.msk [vmem:[#allocation3 + $0x9c] sm:$0xf] %vm1871, %v1775
      %1886 = vst.msk [vmem:[#allocation3 + $0xa8] sm:$0xf] %vm1871, %v1777
      %1887 = vst.msk [vmem:[#allocation3 + $0xb4] sm:$0xf] %vm1871, %v1779
      %1888 = vst.msk [vmem:[#allocation3 + $0xc0] sm:$0xf] %vm1871, %v1781
      %1889 = vst.msk [vmem:[#allocation3 + $0xcc] sm:$0xf] %vm1871, %v1783
      %1890 = vst.msk [vmem:[#allocation3 + $0xd8] sm:$0xf] %vm1871, %v1785
      %1891 = vst.msk [vmem:[#allocation3 + $0xe4] sm:$0xf] %vm1871, %v1787
      %1892 = vst.msk [vmem:[#allocation3 + $0xf0] sm:$0xf] %vm1871, %v1789
      %1893 = vst.msk [vmem:[#allocation3 + $0xfc] sm:$0xf] %vm1871, %v1791
      %1894 = vst.msk [vmem:[#allocation3 + $0x108] sm:$0xf] %vm1871, %v1793
      %1895 = vst.msk [vmem:[#allocation3 + $0x114] sm:$0xf] %vm1871, %v1795
      %1896 = vst.msk [vmem:[#allocation3 + $0x120] sm:$0xf] %vm1871, %v1797
      %1897 = vst.msk [vmem:[#allocation3 + $0x12c] sm:$0xf] %vm1871, %v1799
      %1898 = vst.msk [vmem:[#allocation3 + $0x138] sm:$0xf] %vm1871, %v1801
      %1899 = vst.msk [vmem:[#allocation3 + $0x144] sm:$0xf] %vm1871, %v1803
      %1900 = vst.msk [vmem:[#allocation3 + $0x150] sm:$0xf] %vm1871, %v1805
      %1901 = vst.msk [vmem:[#allocation3 + $0x15c] sm:$0xf] %vm1871, %v1807
      %1902 = vst.msk [vmem:[#allocation3 + $0x168] sm:$0xf] %vm1871, %v1809
      %1903 = vst.msk [vmem:[#allocation3 + $0x174] sm:$0xf] %vm1871, %v1811
      %1904 = vst.msk [vmem:[#allocation3 + $0x180] sm:$0xf] %vm1871, %v1813
      %1905 = vst.msk [vmem:[#allocation3 + $0x18c] sm:$0xf] %vm1871, %v1815
      %1906 = vst.msk [vmem:[#allocation3 + $0x198] sm:$0xf] %vm1871, %v1817
      %1907 = vst.msk [vmem:[#allocation3 + $0x1a4] sm:$0xf] %vm1871, %v1819
      %1908 = vst.msk [vmem:[#allocation3 + $0x1b0] sm:$0xf] %vm1871, %v1821
      %1909 = vst.msk [vmem:[#allocation3 + $0x1bc] sm:$0xf] %vm1871, %v1823
      %1910 = vst.msk [vmem:[#allocation3 + $0x1c8] sm:$0xf] %vm1871, %v1825
      %1911 = vst.msk [vmem:[#allocation3 + $0x1d4] sm:$0xf] %vm1871, %v1827
      %vm1912 = vcmask 517376
      %1913 = vst.msk [vmem:[#allocation3 + $0x1e0] sm:$0x3] %vm1912, %v1829
      %v1914 = vld [vmem:[#allocation2 + $0x2] sm:$0xff]
      %v1915 = vld [vmem:[#allocation2 + $0xa] sm:$0xff]
      %v1916 = vld [vmem:[#allocation2 + $0x12] sm:$0xff]
      %v1917 = vld [vmem:[#allocation2 + $0x1a] sm:$0xff]
      %v1918 = vld [vmem:[#allocation2 + $0x22] sm:$0xff]
      %v1919 = vld [vmem:[#allocation2 + $0x2a] sm:$0xff]
      %v1920 = vld [vmem:[#allocation2 + $0x32] sm:$0xff]
      %v1921 = vld [vmem:[#allocation2 + $0x3a] sm:$0xff]
      %v1922 = vld [vmem:[#allocation2 + $0x42] sm:$0xff]
      %v1923 = vld [vmem:[#allocation2 + $0x4a] sm:$0xff]
      %v1924 = vld [vmem:[#allocation2 + $0x52] sm:$0xff]
      %v1925 = vld [vmem:[#allocation2 + $0x5a] sm:$0xff]
      %v1926 = vld [vmem:[#allocation2 + $0x62] sm:$0xff]
      %v1927 = vld [vmem:[#allocation2 + $0x6a] sm:$0xff]
      %v1928 = vld [vmem:[#allocation2 + $0x72] sm:$0xff]
      %v1929 = vld [vmem:[#allocation2 + $0x7a] sm:$0xff]
      %v1930 = vld [vmem:[#allocation2 + $0x82] sm:$0xff]
      %v1931 = vld [vmem:[#allocation2 + $0x8a] sm:$0xff]
      %v1932 = vld [vmem:[#allocation2 + $0x92] sm:$0xff]
      %v1933 = vld [vmem:[#allocation2 + $0x9a] sm:$0xff]
      %v1934 = vld [vmem:[#allocation2 + $0xa2] sm:$0xff]
      %v1935 = vld [vmem:[#allocation2 + $0xaa] sm:$0xff]
      %v1936 = vld [vmem:[#allocation2 + $0xb2] sm:$0xff]
      %v1937 = vld [vmem:[#allocation2 + $0xba] sm:$0xff]
      %v1938 = vld [vmem:[#allocation2 + $0xc2] sm:$0xff]
      %v1939 = vld [vmem:[#allocation2 + $0xca] sm:$0xff]
      %v1940 = vld [vmem:[#allocation2 + $0xd2] sm:$0xff]
      %v1941 = vld [vmem:[#allocation2 + $0xda] sm:$0xff]
      %v1942 = vld [vmem:[#allocation2 + $0xe2] sm:$0xff]
      %v1943 = vld [vmem:[#allocation2 + $0xea] sm:$0xff]
      %v1944 = vld [vmem:[#allocation2 + $0xf2] sm:$0xff]
      %v1945 = vld [vmem:[#allocation2 + $0xfa] sm:$0xff]
      %v1946 = vld [vmem:[#allocation2 + $0x102] sm:$0xff]
      %v1947 = vld [vmem:[#allocation2 + $0x10a] sm:$0xff]
      %v1948 = vld [vmem:[#allocation2 + $0x112] sm:$0xff]
      %v1949 = vld [vmem:[#allocation2 + $0x11a] sm:$0xff]
      %v1950 = vld [vmem:[#allocation2 + $0x122] sm:$0xff]
      %v1951 = vld [vmem:[#allocation2 + $0x12a] sm:$0xff]
      %v1952 = vld [vmem:[#allocation2 + $0x132] sm:$0xff]
      %v1953 = vld [vmem:[#allocation2 + $0x13a] sm:$0xff]
      %v1954 = vld [vmem:[#allocation2 + $0x142] sm:$0xf]
      %v1955 = vpack.c.bf16 %v1914, %v1914
      %v1956 = vpack.c.bf16 %v1915, %v1915
      %v1957 = vpack.c.bf16 %v1916, %v1916
      %v1958 = vpack.c.bf16 %v1917, %v1917
      %v1959 = vpack.c.bf16 %v1918, %v1918
      %v1960 = vpack.c.bf16 %v1919, %v1919
      %v1961 = vpack.c.bf16 %v1920, %v1920
      %v1962 = vpack.c.bf16 %v1921, %v1921
      %v1963 = vpack.c.bf16 %v1922, %v1922
      %v1964 = vpack.c.bf16 %v1923, %v1923
      %v1965 = vpack.c.bf16 %v1924, %v1924
      %v1966 = vpack.c.bf16 %v1925, %v1925
      %v1967 = vpack.c.bf16 %v1926, %v1926
      %v1968 = vpack.c.bf16 %v1927, %v1927
      %v1969 = vpack.c.bf16 %v1928, %v1928
      %v1970 = vpack.c.bf16 %v1929, %v1929
      %v1971 = vpack.c.bf16 %v1930, %v1930
      %v1972 = vpack.c.bf16 %v1931, %v1931
      %v1973 = vpack.c.bf16 %v1932, %v1932
      %v1974 = vpack.c.bf16 %v1933, %v1933
      %v1975 = vpack.c.bf16 %v1934, %v1934
      %v1976 = vpack.c.bf16 %v1935, %v1935
      %v1977 = vpack.c.bf16 %v1936, %v1936
      %v1978 = vpack.c.bf16 %v1937, %v1937
      %v1979 = vpack.c.bf16 %v1938, %v1938
      %v1980 = vpack.c.bf16 %v1939, %v1939
      %v1981 = vpack.c.bf16 %v1940, %v1940
      %v1982 = vpack.c.bf16 %v1941, %v1941
      %v1983 = vpack.c.bf16 %v1942, %v1942
      %v1984 = vpack.c.bf16 %v1943, %v1943
      %v1985 = vpack.c.bf16 %v1944, %v1944
      %v1986 = vpack.c.bf16 %v1945, %v1945
      %v1987 = vpack.c.bf16 %v1946, %v1946
      %v1988 = vpack.c.bf16 %v1947, %v1947
      %v1989 = vpack.c.bf16 %v1948, %v1948
      %v1990 = vpack.c.bf16 %v1949, %v1949
      %v1991 = vpack.c.bf16 %v1950, %v1950
      %v1992 = vpack.c.bf16 %v1951, %v1951
      %v1993 = vpack.c.bf16 %v1952, %v1952
      %v1994 = vpack.c.bf16 %v1953, %v1953
      %v1995 = vpack.c.bf16 %v1954, %v1954
      %2037 = vrot.lane.b32.xlu0 %v1955, 64
      %v2038 = vpop.permute.xlu0 %2037
      %2039 = vrot.lane.b32.xlu0 %v1956, 64
      %v2040 = vpop.permute.xlu0 %2039
      %2041 = vrot.lane.b32.xlu0 %v1957, 64
      %v2042 = vpop.permute.xlu0 %2041
      %2043 = vrot.lane.b32.xlu0 %v1958, 64
      %v2044 = vpop.permute.xlu0 %2043
      %2045 = vrot.lane.b32.xlu0 %v1959, 64
      %v2046 = vpop.permute.xlu0 %2045
      %2047 = vrot.lane.b32.xlu0 %v1960, 64
      %v2048 = vpop.permute.xlu0 %2047
      %2049 = vrot.lane.b32.xlu0 %v1961, 64
      %v2050 = vpop.permute.xlu0 %2049
      %2051 = vrot.lane.b32.xlu0 %v1962, 64
      %v2052 = vpop.permute.xlu0 %2051
      %2053 = vrot.lane.b32.xlu0 %v1963, 64
      %v2054 = vpop.permute.xlu0 %2053
      %2055 = vrot.lane.b32.xlu0 %v1964, 64
      %v2056 = vpop.permute.xlu0 %2055
      %2057 = vrot.lane.b32.xlu0 %v1965, 64
      %v2058 = vpop.permute.xlu0 %2057
      %2059 = vrot.lane.b32.xlu0 %v1966, 64
      %v2060 = vpop.permute.xlu0 %2059
      %2061 = vrot.lane.b32.xlu0 %v1967, 64
      %v2062 = vpop.permute.xlu0 %2061
      %2063 = vrot.lane.b32.xlu0 %v1968, 64
      %v2064 = vpop.permute.xlu0 %2063
      %2065 = vrot.lane.b32.xlu0 %v1969, 64
      %v2066 = vpop.permute.xlu0 %2065
      %2067 = vrot.lane.b32.xlu0 %v1970, 64
      %v2068 = vpop.permute.xlu0 %2067
      %2069 = vrot.lane.b32.xlu0 %v1971, 64
      %v2070 = vpop.permute.xlu0 %2069
      %2071 = vrot.lane.b32.xlu0 %v1972, 64
      %v2072 = vpop.permute.xlu0 %2071
      %2073 = vrot.lane.b32.xlu0 %v1973, 64
      %v2074 = vpop.permute.xlu0 %2073
      %2075 = vrot.lane.b32.xlu0 %v1974, 64
      %v2076 = vpop.permute.xlu0 %2075
      %2077 = vrot.lane.b32.xlu0 %v1975, 64
      %v2078 = vpop.permute.xlu0 %2077
      %2079 = vrot.lane.b32.xlu0 %v1976, 64
      %v2080 = vpop.permute.xlu0 %2079
      %2081 = vrot.lane.b32.xlu0 %v1977, 64
      %v2082 = vpop.permute.xlu0 %2081
      %2083 = vrot.lane.b32.xlu0 %v1978, 64
      %v2084 = vpop.permute.xlu0 %2083
      %2085 = vrot.lane.b32.xlu0 %v1979, 64
      %v2086 = vpop.permute.xlu0 %2085
      %2087 = vrot.lane.b32.xlu0 %v1980, 64
      %v2088 = vpop.permute.xlu0 %2087
      %2089 = vrot.lane.b32.xlu0 %v1981, 64
      %v2090 = vpop.permute.xlu0 %2089
      %2091 = vrot.lane.b32.xlu0 %v1982, 64
      %v2092 = vpop.permute.xlu0 %2091
      %2093 = vrot.lane.b32.xlu0 %v1983, 64
      %v2094 = vpop.permute.xlu0 %2093
      %2095 = vrot.lane.b32.xlu0 %v1984, 64
      %v2096 = vpop.permute.xlu0 %2095
      %2097 = vrot.lane.b32.xlu0 %v1985, 64
      %v2098 = vpop.permute.xlu0 %2097
      %2099 = vrot.lane.b32.xlu0 %v1986, 64
      %v2100 = vpop.permute.xlu0 %2099
      %2101 = vrot.lane.b32.xlu0 %v1987, 64
      %v2102 = vpop.permute.xlu0 %2101
      %2103 = vrot.lane.b32.xlu0 %v1988, 64
      %v2104 = vpop.permute.xlu0 %2103
      %2105 = vrot.lane.b32.xlu0 %v1989, 64
      %v2106 = vpop.permute.xlu0 %2105
      %2107 = vrot.lane.b32.xlu0 %v1990, 64
      %v2108 = vpop.permute.xlu0 %2107
      %2109 = vrot.lane.b32.xlu0 %v1991, 64
      %v2110 = vpop.permute.xlu0 %2109
      %2111 = vrot.lane.b32.xlu0 %v1992, 64
      %v2112 = vpop.permute.xlu0 %2111
      %2113 = vrot.lane.b32.xlu0 %v1993, 64
      %v2114 = vpop.permute.xlu0 %2113
      %2115 = vrot.lane.b32.xlu0 %v1994, 64
      %v2116 = vpop.permute.xlu0 %2115
      %2117 = vrot.lane.b32.xlu0 %v1995, 64
      %v2118 = vpop.permute.xlu0 %2117
      %vm2160 = vcmask 781824
      %2161 = vst.msk [vmem:[#allocation3] sm:$0xf] %vm2160, %v2038
      %2162 = vst.msk [vmem:[#allocation3 + $0xc] sm:$0xf] %vm2160, %v2040
      %2163 = vst.msk [vmem:[#allocation3 + $0x18] sm:$0xf] %vm2160, %v2042
      %2164 = vst.msk [vmem:[#allocation3 + $0x24] sm:$0xf] %vm2160, %v2044
      %2165 = vst.msk [vmem:[#allocation3 + $0x30] sm:$0xf] %vm2160, %v2046
      %2166 = vst.msk [vmem:[#allocation3 + $0x3c] sm:$0xf] %vm2160, %v2048
      %2167 = vst.msk [vmem:[#allocation3 + $0x48] sm:$0xf] %vm2160, %v2050
      %2168 = vst.msk [vmem:[#allocation3 + $0x54] sm:$0xf] %vm2160, %v2052
      %2169 = vst.msk [vmem:[#allocation3 + $0x60] sm:$0xf] %vm2160, %v2054
      %2170 = vst.msk [vmem:[#allocation3 + $0x6c] sm:$0xf] %vm2160, %v2056
      %2171 = vst.msk [vmem:[#allocation3 + $0x78] sm:$0xf] %vm2160, %v2058
      %2172 = vst.msk [vmem:[#allocation3 + $0x84] sm:$0xf] %vm2160, %v2060
      %2173 = vst.msk [vmem:[#allocation3 + $0x90] sm:$0xf] %vm2160, %v2062
      %2174 = vst.msk [vmem:[#allocation3 + $0x9c] sm:$0xf] %vm2160, %v2064
      %2175 = vst.msk [vmem:[#allocation3 + $0xa8] sm:$0xf] %vm2160, %v2066
      %2176 = vst.msk [vmem:[#allocation3 + $0xb4] sm:$0xf] %vm2160, %v2068
      %2177 = vst.msk [vmem:[#allocation3 + $0xc0] sm:$0xf] %vm2160, %v2070
      %2178 = vst.msk [vmem:[#allocation3 + $0xcc] sm:$0xf] %vm2160, %v2072
      %2179 = vst.msk [vmem:[#allocation3 + $0xd8] sm:$0xf] %vm2160, %v2074
      %2180 = vst.msk [vmem:[#allocation3 + $0xe4] sm:$0xf] %vm2160, %v2076
      %2181 = vst.msk [vmem:[#allocation3 + $0xf0] sm:$0xf] %vm2160, %v2078
      %2182 = vst.msk [vmem:[#allocation3 + $0xfc] sm:$0xf] %vm2160, %v2080
      %2183 = vst.msk [vmem:[#allocation3 + $0x108] sm:$0xf] %vm2160, %v2082
      %2184 = vst.msk [vmem:[#allocation3 + $0x114] sm:$0xf] %vm2160, %v2084
      %2185 = vst.msk [vmem:[#allocation3 + $0x120] sm:$0xf] %vm2160, %v2086
      %2186 = vst.msk [vmem:[#allocation3 + $0x12c] sm:$0xf] %vm2160, %v2088
      %2187 = vst.msk [vmem:[#allocation3 + $0x138] sm:$0xf] %vm2160, %v2090
      %2188 = vst.msk [vmem:[#allocation3 + $0x144] sm:$0xf] %vm2160, %v2092
      %2189 = vst.msk [vmem:[#allocation3 + $0x150] sm:$0xf] %vm2160, %v2094
      %2190 = vst.msk [vmem:[#allocation3 + $0x15c] sm:$0xf] %vm2160, %v2096
      %2191 = vst.msk [vmem:[#allocation3 + $0x168] sm:$0xf] %vm2160, %v2098
      %2192 = vst.msk [vmem:[#allocation3 + $0x174] sm:$0xf] %vm2160, %v2100
      %2193 = vst.msk [vmem:[#allocation3 + $0x180] sm:$0xf] %vm2160, %v2102
      %2194 = vst.msk [vmem:[#allocation3 + $0x18c] sm:$0xf] %vm2160, %v2104
      %2195 = vst.msk [vmem:[#allocation3 + $0x198] sm:$0xf] %vm2160, %v2106
      %2196 = vst.msk [vmem:[#allocation3 + $0x1a4] sm:$0xf] %vm2160, %v2108
      %2197 = vst.msk [vmem:[#allocation3 + $0x1b0] sm:$0xf] %vm2160, %v2110
      %2198 = vst.msk [vmem:[#allocation3 + $0x1bc] sm:$0xf] %vm2160, %v2112
      %2199 = vst.msk [vmem:[#allocation3 + $0x1c8] sm:$0xf] %vm2160, %v2114
      %2200 = vst.msk [vmem:[#allocation3 + $0x1d4] sm:$0xf] %vm2160, %v2116
      %vm2201 = vcmask 779776
      %2202 = vst.msk [vmem:[#allocation3 + $0x1e0] sm:$0x3] %vm2201, %v2118
      %v2203 = vld [vmem:[#allocation2 + $0x12] sm:$0xff]
      %v2204 = vld [vmem:[#allocation2 + $0x1a] sm:$0xff]
      %v2205 = vld [vmem:[#allocation2 + $0x22] sm:$0xff]
      %v2206 = vld [vmem:[#allocation2 + $0x2a] sm:$0xff]
      %v2207 = vld [vmem:[#allocation2 + $0x32] sm:$0xff]
      %v2208 = vld [vmem:[#allocation2 + $0x3a] sm:$0xff]
      %v2209 = vld [vmem:[#allocation2 + $0x42] sm:$0xff]
      %v2210 = vld [vmem:[#allocation2 + $0x4a] sm:$0xff]
      %v2211 = vld [vmem:[#allocation2 + $0x52] sm:$0xff]
      %v2212 = vld [vmem:[#allocation2 + $0x5a] sm:$0xff]
      %v2213 = vld [vmem:[#allocation2 + $0x62] sm:$0xff]
      %v2214 = vld [vmem:[#allocation2 + $0x6a] sm:$0xff]
      %v2215 = vld [vmem:[#allocation2 + $0x72] sm:$0xff]
      %v2216 = vld [vmem:[#allocation2 + $0x7a] sm:$0xff]
      %v2217 = vld [vmem:[#allocation2 + $0x82] sm:$0xff]
      %v2218 = vld [vmem:[#allocation2 + $0x8a] sm:$0xff]
      %v2219 = vld [vmem:[#allocation2 + $0x92] sm:$0xff]
      %v2220 = vld [vmem:[#allocation2 + $0x9a] sm:$0xff]
      %v2221 = vld [vmem:[#allocation2 + $0xa2] sm:$0xff]
      %v2222 = vld [vmem:[#allocation2 + $0xaa] sm:$0xff]
      %v2223 = vld [vmem:[#allocation2 + $0xb2] sm:$0xff]
      %v2224 = vld [vmem:[#allocation2 + $0xba] sm:$0xff]
      %v2225 = vld [vmem:[#allocation2 + $0xc2] sm:$0xff]
      %v2226 = vld [vmem:[#allocation2 + $0xca] sm:$0xff]
      %v2227 = vld [vmem:[#allocation2 + $0xd2] sm:$0xff]
      %v2228 = vld [vmem:[#allocation2 + $0xda] sm:$0xff]
      %v2229 = vld [vmem:[#allocation2 + $0xe2] sm:$0xff]
      %v2230 = vld [vmem:[#allocation2 + $0xea] sm:$0xff]
      %v2231 = vld [vmem:[#allocation2 + $0xf2] sm:$0xff]
      %v2232 = vld [vmem:[#allocation2 + $0xfa] sm:$0xff]
      %v2233 = vld [vmem:[#allocation2 + $0x102] sm:$0xff]
      %v2234 = vld [vmem:[#allocation2 + $0x10a] sm:$0xff]
      %v2235 = vld [vmem:[#allocation2 + $0x112] sm:$0xff]
      %v2236 = vld [vmem:[#allocation2 + $0x11a] sm:$0xff]
      %v2237 = vld [vmem:[#allocation2 + $0x122] sm:$0xff]
      %v2238 = vld [vmem:[#allocation2 + $0x12a] sm:$0xff]
      %v2239 = vld [vmem:[#allocation2 + $0x132] sm:$0xff]
      %v2240 = vld [vmem:[#allocation2 + $0x13a] sm:$0xff]
      %v2241 = vld [vmem:[#allocation2 + $0x142] sm:$0xff]
      %v2242 = vld [vmem:[#allocation2 + $0x14a] sm:$0xff]
      %v2243 = vld [vmem:[#allocation2 + $0x152] sm:$0xf]
      %v2244 = vpack.c.bf16 %v2203, %v2203
      %v2245 = vpack.c.bf16 %v2204, %v2204
      %v2246 = vpack.c.bf16 %v2205, %v2205
      %v2247 = vpack.c.bf16 %v2206, %v2206
      %v2248 = vpack.c.bf16 %v2207, %v2207
      %v2249 = vpack.c.bf16 %v2208, %v2208
      %v2250 = vpack.c.bf16 %v2209, %v2209
      %v2251 = vpack.c.bf16 %v2210, %v2210
      %v2252 = vpack.c.bf16 %v2211, %v2211
      %v2253 = vpack.c.bf16 %v2212, %v2212
      %v2254 = vpack.c.bf16 %v2213, %v2213
      %v2255 = vpack.c.bf16 %v2214, %v2214
      %v2256 = vpack.c.bf16 %v2215, %v2215
      %v2257 = vpack.c.bf16 %v2216, %v2216
      %v2258 = vpack.c.bf16 %v2217, %v2217
      %v2259 = vpack.c.bf16 %v2218, %v2218
      %v2260 = vpack.c.bf16 %v2219, %v2219
      %v2261 = vpack.c.bf16 %v2220, %v2220
      %v2262 = vpack.c.bf16 %v2221, %v2221
      %v2263 = vpack.c.bf16 %v2222, %v2222
      %v2264 = vpack.c.bf16 %v2223, %v2223
      %v2265 = vpack.c.bf16 %v2224, %v2224
      %v2266 = vpack.c.bf16 %v2225, %v2225
      %v2267 = vpack.c.bf16 %v2226, %v2226
      %v2268 = vpack.c.bf16 %v2227, %v2227
      %v2269 = vpack.c.bf16 %v2228, %v2228
      %v2270 = vpack.c.bf16 %v2229, %v2229
      %v2271 = vpack.c.bf16 %v2230, %v2230
      %v2272 = vpack.c.bf16 %v2231, %v2231
      %v2273 = vpack.c.bf16 %v2232, %v2232
      %v2274 = vpack.c.bf16 %v2233, %v2233
      %v2275 = vpack.c.bf16 %v2234, %v2234
      %v2276 = vpack.c.bf16 %v2235, %v2235
      %v2277 = vpack.c.bf16 %v2236, %v2236
      %v2278 = vpack.c.bf16 %v2237, %v2237
      %v2279 = vpack.c.bf16 %v2238, %v2238
      %v2280 = vpack.c.bf16 %v2239, %v2239
      %v2281 = vpack.c.bf16 %v2240, %v2240
      %v2282 = vpack.c.bf16 %v2241, %v2241
      %v2283 = vpack.c.bf16 %v2242, %v2242
      %v2284 = vpack.c.bf16 %v2243, %v2243
      %2326 = vrot.lane.b32.xlu0 %v2244, 96
      %v2327 = vpop.permute.xlu0 %2326
      %2328 = vrot.lane.b32.xlu0 %v2245, 96
      %v2329 = vpop.permute.xlu0 %2328
      %2330 = vrot.lane.b32.xlu0 %v2246, 96
      %v2331 = vpop.permute.xlu0 %2330
      %2332 = vrot.lane.b32.xlu0 %v2247, 96
      %v2333 = vpop.permute.xlu0 %2332
      %2334 = vrot.lane.b32.xlu0 %v2248, 96
      %v2335 = vpop.permute.xlu0 %2334
      %2336 = vrot.lane.b32.xlu0 %v2249, 96
      %v2337 = vpop.permute.xlu0 %2336
      %2338 = vrot.lane.b32.xlu0 %v2250, 96
      %v2339 = vpop.permute.xlu0 %2338
      %2340 = vrot.lane.b32.xlu0 %v2251, 96
      %v2341 = vpop.permute.xlu0 %2340
      %2342 = vrot.lane.b32.xlu0 %v2252, 96
      %v2343 = vpop.permute.xlu0 %2342
      %2344 = vrot.lane.b32.xlu0 %v2253, 96
      %v2345 = vpop.permute.xlu0 %2344
      %2346 = vrot.lane.b32.xlu0 %v2254, 96
      %v2347 = vpop.permute.xlu0 %2346
      %2348 = vrot.lane.b32.xlu0 %v2255, 96
      %v2349 = vpop.permute.xlu0 %2348
      %2350 = vrot.lane.b32.xlu0 %v2256, 96
      %v2351 = vpop.permute.xlu0 %2350
      %2352 = vrot.lane.b32.xlu0 %v2257, 96
      %v2353 = vpop.permute.xlu0 %2352
      %2354 = vrot.lane.b32.xlu0 %v2258, 96
      %v2355 = vpop.permute.xlu0 %2354
      %2356 = vrot.lane.b32.xlu0 %v2259, 96
      %v2357 = vpop.permute.xlu0 %2356
      %2358 = vrot.lane.b32.xlu0 %v2260, 96
      %v2359 = vpop.permute.xlu0 %2358
      %2360 = vrot.lane.b32.xlu0 %v2261, 96
      %v2361 = vpop.permute.xlu0 %2360
      %2362 = vrot.lane.b32.xlu0 %v2262, 96
      %v2363 = vpop.permute.xlu0 %2362
      %2364 = vrot.lane.b32.xlu0 %v2263, 96
      %v2365 = vpop.permute.xlu0 %2364
      %2366 = vrot.lane.b32.xlu0 %v2264, 96
      %v2367 = vpop.permute.xlu0 %2366
      %2368 = vrot.lane.b32.xlu0 %v2265, 96
      %v2369 = vpop.permute.xlu0 %2368
      %2370 = vrot.lane.b32.xlu0 %v2266, 96
      %v2371 = vpop.permute.xlu0 %2370
      %2372 = vrot.lane.b32.xlu0 %v2267, 96
      %v2373 = vpop.permute.xlu0 %2372
      %2374 = vrot.lane.b32.xlu0 %v2268, 96
      %v2375 = vpop.permute.xlu0 %2374
      %2376 = vrot.lane.b32.xlu0 %v2269, 96
      %v2377 = vpop.permute.xlu0 %2376
      %2378 = vrot.lane.b32.xlu0 %v2270, 96
      %v2379 = vpop.permute.xlu0 %2378
      %2380 = vrot.lane.b32.xlu0 %v2271, 96
      %v2381 = vpop.permute.xlu0 %2380
      %2382 = vrot.lane.b32.xlu0 %v2272, 96
      %v2383 = vpop.permute.xlu0 %2382
      %2384 = vrot.lane.b32.xlu0 %v2273, 96
      %v2385 = vpop.permute.xlu0 %2384
      %2386 = vrot.lane.b32.xlu0 %v2274, 96
      %v2387 = vpop.permute.xlu0 %2386
      %2388 = vrot.lane.b32.xlu0 %v2275, 96
      %v2389 = vpop.permute.xlu0 %2388
      %2390 = vrot.lane.b32.xlu0 %v2276, 96
      %v2391 = vpop.permute.xlu0 %2390
      %2392 = vrot.lane.b32.xlu0 %v2277, 96
      %v2393 = vpop.permute.xlu0 %2392
      %2394 = vrot.lane.b32.xlu0 %v2278, 96
      %v2395 = vpop.permute.xlu0 %2394
      %2396 = vrot.lane.b32.xlu0 %v2279, 96
      %v2397 = vpop.permute.xlu0 %2396
      %2398 = vrot.lane.b32.xlu0 %v2280, 96
      %v2399 = vpop.permute.xlu0 %2398
      %2400 = vrot.lane.b32.xlu0 %v2281, 96
      %v2401 = vpop.permute.xlu0 %2400
      %2402 = vrot.lane.b32.xlu0 %v2282, 96
      %v2403 = vpop.permute.xlu0 %2402
      %2404 = vrot.lane.b32.xlu0 %v2283, 96
      %v2405 = vpop.permute.xlu0 %2404
      %2406 = vrot.lane.b32.xlu0 %v2284, 96
      %v2407 = vpop.permute.xlu0 %2406
      %vm2449 = vcmask 1044224
      %2450 = vst.msk [vmem:[#allocation3] sm:$0xf] %vm2449, %v2327
      %2451 = vst.msk [vmem:[#allocation3 + $0xc] sm:$0xf] %vm2449, %v2329
      %2452 = vst.msk [vmem:[#allocation3 + $0x18] sm:$0xf] %vm2449, %v2331
      %2453 = vst.msk [vmem:[#allocation3 + $0x24] sm:$0xf] %vm2449, %v2333
      %2454 = vst.msk [vmem:[#allocation3 + $0x30] sm:$0xf] %vm2449, %v2335
      %2455 = vst.msk [vmem:[#allocation3 + $0x3c] sm:$0xf] %vm2449, %v2337
      %2456 = vst.msk [vmem:[#allocation3 + $0x48] sm:$0xf] %vm2449, %v2339
      %2457 = vst.msk [vmem:[#allocation3 + $0x54] sm:$0xf] %vm2449, %v2341
      %2458 = vst.msk [vmem:[#allocation3 + $0x60] sm:$0xf] %vm2449, %v2343
      %2459 = vst.msk [vmem:[#allocation3 + $0x6c] sm:$0xf] %vm2449, %v2345
      %2460 = vst.msk [vmem:[#allocation3 + $0x78] sm:$0xf] %vm2449, %v2347
      %2461 = vst.msk [vmem:[#allocation3 + $0x84] sm:$0xf] %vm2449, %v2349
      %2462 = vst.msk [vmem:[#allocation3 + $0x90] sm:$0xf] %vm2449, %v2351
      %2463 = vst.msk [vmem:[#allocation3 + $0x9c] sm:$0xf] %vm2449, %v2353
      %2464 = vst.msk [vmem:[#allocation3 + $0xa8] sm:$0xf] %vm2449, %v2355
      %2465 = vst.msk [vmem:[#allocation3 + $0xb4] sm:$0xf] %vm2449, %v2357
      %2466 = vst.msk [vmem:[#allocation3 + $0xc0] sm:$0xf] %vm2449, %v2359
      %2467 = vst.msk [vmem:[#allocation3 + $0xcc] sm:$0xf] %vm2449, %v2361
      %2468 = vst.msk [vmem:[#allocation3 + $0xd8] sm:$0xf] %vm2449, %v2363
      %2469 = vst.msk [vmem:[#allocation3 + $0xe4] sm:$0xf] %vm2449, %v2365
      %2470 = vst.msk [vmem:[#allocation3 + $0xf0] sm:$0xf] %vm2449, %v2367
      %2471 = vst.msk [vmem:[#allocation3 + $0xfc] sm:$0xf] %vm2449, %v2369
      %2472 = vst.msk [vmem:[#allocation3 + $0x108] sm:$0xf] %vm2449, %v2371
      %2473 = vst.msk [vmem:[#allocation3 + $0x114] sm:$0xf] %vm2449, %v2373
      %2474 = vst.msk [vmem:[#allocation3 + $0x120] sm:$0xf] %vm2449, %v2375
      %2475 = vst.msk [vmem:[#allocation3 + $0x12c] sm:$0xf] %vm2449, %v2377
      %2476 = vst.msk [vmem:[#allocation3 + $0x138] sm:$0xf] %vm2449, %v2379
      %2477 = vst.msk [vmem:[#allocation3 + $0x144] sm:$0xf] %vm2449, %v2381
      %2478 = vst.msk [vmem:[#allocation3 + $0x150] sm:$0xf] %vm2449, %v2383
      %2479 = vst.msk [vmem:[#allocation3 + $0x15c] sm:$0xf] %vm2449, %v2385
      %2480 = vst.msk [vmem:[#allocation3 + $0x168] sm:$0xf] %vm2449, %v2387
      %2481 = vst.msk [vmem:[#allocation3 + $0x174] sm:$0xf] %vm2449, %v2389
      %2482 = vst.msk [vmem:[#allocation3 + $0x180] sm:$0xf] %vm2449, %v2391
      %2483 = vst.msk [vmem:[#allocation3 + $0x18c] sm:$0xf] %vm2449, %v2393
      %2484 = vst.msk [vmem:[#allocation3 + $0x198] sm:$0xf] %vm2449, %v2395
      %2485 = vst.msk [vmem:[#allocation3 + $0x1a4] sm:$0xf] %vm2449, %v2397
      %2486 = vst.msk [vmem:[#allocation3 + $0x1b0] sm:$0xf] %vm2449, %v2399
      %2487 = vst.msk [vmem:[#allocation3 + $0x1bc] sm:$0xf] %vm2449, %v2401
      %2488 = vst.msk [vmem:[#allocation3 + $0x1c8] sm:$0xf] %vm2449, %v2403
      %2489 = vst.msk [vmem:[#allocation3 + $0x1d4] sm:$0xf] %vm2449, %v2405
      %vm2490 = vcmask 1042176
      %2491 = vst.msk [vmem:[#allocation3 + $0x1e0] sm:$0x3] %vm2490, %v2407
      %v2492 = vld [vmem:[#allocation2 + $0x13] sm:$0xff]
      %v2493 = vld [vmem:[#allocation2 + $0x1b] sm:$0xff]
      %v2494 = vld [vmem:[#allocation2 + $0x23] sm:$0xff]
      %v2495 = vld [vmem:[#allocation2 + $0x2b] sm:$0xff]
      %v2496 = vld [vmem:[#allocation2 + $0x33] sm:$0xff]
      %v2497 = vld [vmem:[#allocation2 + $0x3b] sm:$0xff]
      %v2498 = vld [vmem:[#allocation2 + $0x43] sm:$0xff]
      %v2499 = vld [vmem:[#allocation2 + $0x4b] sm:$0xff]
      %v2500 = vld [vmem:[#allocation2 + $0x53] sm:$0xff]
      %v2501 = vld [vmem:[#allocation2 + $0x5b] sm:$0xff]
      %v2502 = vld [vmem:[#allocation2 + $0x63] sm:$0xff]
      %v2503 = vld [vmem:[#allocation2 + $0x6b] sm:$0xff]
      %v2504 = vld [vmem:[#allocation2 + $0x73] sm:$0xff]
      %v2505 = vld [vmem:[#allocation2 + $0x7b] sm:$0xff]
      %v2506 = vld [vmem:[#allocation2 + $0x83] sm:$0xff]
      %v2507 = vld [vmem:[#allocation2 + $0x8b] sm:$0xff]
      %v2508 = vld [vmem:[#allocation2 + $0x93] sm:$0xff]
      %v2509 = vld [vmem:[#allocation2 + $0x9b] sm:$0xff]
      %v2510 = vld [vmem:[#allocation2 + $0xa3] sm:$0xff]
      %v2511 = vld [vmem:[#allocation2 + $0xab] sm:$0xff]
      %v2512 = vld [vmem:[#allocation2 + $0xb3] sm:$0xff]
      %v2513 = vld [vmem:[#allocation2 + $0xbb] sm:$0xff]
      %v2514 = vld [vmem:[#allocation2 + $0xc3] sm:$0xff]
      %v2515 = vld [vmem:[#allocation2 + $0xcb] sm:$0xff]
      %v2516 = vld [vmem:[#allocation2 + $0xd3] sm:$0xff]
      %v2517 = vld [vmem:[#allocation2 + $0xdb] sm:$0xff]
      %v2518 = vld [vmem:[#allocation2 + $0xe3] sm:$0xff]
      %v2519 = vld [vmem:[#allocation2 + $0xeb] sm:$0xff]
      %v2520 = vld [vmem:[#allocation2 + $0xf3] sm:$0xff]
      %v2521 = vld [vmem:[#allocation2 + $0xfb] sm:$0xff]
      %v2522 = vld [vmem:[#allocation2 + $0x103] sm:$0xff]
      %v2523 = vld [vmem:[#allocation2 + $0x10b] sm:$0xff]
      %v2524 = vld [vmem:[#allocation2 + $0x113] sm:$0xff]
      %v2525 = vld [vmem:[#allocation2 + $0x11b] sm:$0xff]
      %v2526 = vld [vmem:[#allocation2 + $0x123] sm:$0xff]
      %v2527 = vld [vmem:[#allocation2 + $0x12b] sm:$0xff]
      %v2528 = vld [vmem:[#allocation2 + $0x133] sm:$0xff]
      %v2529 = vld [vmem:[#allocation2 + $0x13b] sm:$0xff]
      %v2530 = vld [vmem:[#allocation2 + $0x143] sm:$0xff]
      %v2531 = vld [vmem:[#allocation2 + $0x14b] sm:$0xff]
      %v2532 = vld [vmem:[#allocation2 + $0x153] sm:$0xf]
      %v2533 = vpack.c.bf16 %v2492, %v2492
      %v2534 = vpack.c.bf16 %v2493, %v2493
      %v2535 = vpack.c.bf16 %v2494, %v2494
      %v2536 = vpack.c.bf16 %v2495, %v2495
      %v2537 = vpack.c.bf16 %v2496, %v2496
      %v2538 = vpack.c.bf16 %v2497, %v2497
      %v2539 = vpack.c.bf16 %v2498, %v2498
      %v2540 = vpack.c.bf16 %v2499, %v2499
      %v2541 = vpack.c.bf16 %v2500, %v2500
      %v2542 = vpack.c.bf16 %v2501, %v2501
      %v2543 = vpack.c.bf16 %v2502, %v2502
      %v2544 = vpack.c.bf16 %v2503, %v2503
      %v2545 = vpack.c.bf16 %v2504, %v2504
      %v2546 = vpack.c.bf16 %v2505, %v2505
      %v2547 = vpack.c.bf16 %v2506, %v2506
      %v2548 = vpack.c.bf16 %v2507, %v2507
      %v2549 = vpack.c.bf16 %v2508, %v2508
      %v2550 = vpack.c.bf16 %v2509, %v2509
      %v2551 = vpack.c.bf16 %v2510, %v2510
      %v2552 = vpack.c.bf16 %v2511, %v2511
      %v2553 = vpack.c.bf16 %v2512, %v2512
      %v2554 = vpack.c.bf16 %v2513, %v2513
      %v2555 = vpack.c.bf16 %v2514, %v2514
      %v2556 = vpack.c.bf16 %v2515, %v2515
      %v2557 = vpack.c.bf16 %v2516, %v2516
      %v2558 = vpack.c.bf16 %v2517, %v2517
      %v2559 = vpack.c.bf16 %v2518, %v2518
      %v2560 = vpack.c.bf16 %v2519, %v2519
      %v2561 = vpack.c.bf16 %v2520, %v2520
      %v2562 = vpack.c.bf16 %v2521, %v2521
      %v2563 = vpack.c.bf16 %v2522, %v2522
      %v2564 = vpack.c.bf16 %v2523, %v2523
      %v2565 = vpack.c.bf16 %v2524, %v2524
      %v2566 = vpack.c.bf16 %v2525, %v2525
      %v2567 = vpack.c.bf16 %v2526, %v2526
      %v2568 = vpack.c.bf16 %v2527, %v2527
      %v2569 = vpack.c.bf16 %v2528, %v2528
      %v2570 = vpack.c.bf16 %v2529, %v2529
      %v2571 = vpack.c.bf16 %v2530, %v2530
      %v2572 = vpack.c.bf16 %v2531, %v2531
      %v2573 = vpack.c.bf16 %v2532, %v2532
      %2574 = vst.msk [vmem:[#allocation3 + $0x4] sm:$0xf] %vm1583, %v2533
      %2575 = vst.msk [vmem:[#allocation3 + $0x10] sm:$0xf] %vm1583, %v2534
      %2576 = vst.msk [vmem:[#allocation3 + $0x1c] sm:$0xf] %vm1583, %v2535
      %2577 = vst.msk [vmem:[#allocation3 + $0x28] sm:$0xf] %vm1583, %v2536
      %2578 = vst.msk [vmem:[#allocation3 + $0x34] sm:$0xf] %vm1583, %v2537
      %2579 = vst.msk [vmem:[#allocation3 + $0x40] sm:$0xf] %vm1583, %v2538
      %2580 = vst.msk [vmem:[#allocation3 + $0x4c] sm:$0xf] %vm1583, %v2539
      %2581 = vst.msk [vmem:[#allocation3 + $0x58] sm:$0xf] %vm1583, %v2540
      %2582 = vst.msk [vmem:[#allocation3 + $0x64] sm:$0xf] %vm1583, %v2541
      %2583 = vst.msk [vmem:[#allocation3 + $0x70] sm:$0xf] %vm1583, %v2542
      %2584 = vst.msk [vmem:[#allocation3 + $0x7c] sm:$0xf] %vm1583, %v2543
      %2585 = vst.msk [vmem:[#allocation3 + $0x88] sm:$0xf] %vm1583, %v2544
      %2586 = vst.msk [vmem:[#allocation3 + $0x94] sm:$0xf] %vm1583, %v2545
      %2587 = vst.msk [vmem:[#allocation3 + $0xa0] sm:$0xf] %vm1583, %v2546
      %2588 = vst.msk [vmem:[#allocation3 + $0xac] sm:$0xf] %vm1583, %v2547
      %2589 = vst.msk [vmem:[#allocation3 + $0xb8] sm:$0xf] %vm1583, %v2548
      %2590 = vst.msk [vmem:[#allocation3 + $0xc4] sm:$0xf] %vm1583, %v2549
      %2591 = vst.msk [vmem:[#allocation3 + $0xd0] sm:$0xf] %vm1583, %v2550
      %2592 = vst.msk [vmem:[#allocation3 + $0xdc] sm:$0xf] %vm1583, %v2551
      %2593 = vst.msk [vmem:[#allocation3 + $0xe8] sm:$0xf] %vm1583, %v2552
      %2594 = vst.msk [vmem:[#allocation3 + $0xf4] sm:$0xf] %vm1583, %v2553
      %2595 = vst.msk [vmem:[#allocation3 + $0x100] sm:$0xf] %vm1583, %v2554
      %2596 = vst.msk [vmem:[#allocation3 + $0x10c] sm:$0xf] %vm1583, %v2555
      %2597 = vst.msk [vmem:[#allocation3 + $0x118] sm:$0xf] %vm1583, %v2556
      %2598 = vst.msk [vmem:[#allocation3 + $0x124] sm:$0xf] %vm1583, %v2557
      %2599 = vst.msk [vmem:[#allocation3 + $0x130] sm:$0xf] %vm1583, %v2558
      %2600 = vst.msk [vmem:[#allocation3 + $0x13c] sm:$0xf] %vm1583, %v2559
      %2601 = vst.msk [vmem:[#allocation3 + $0x148] sm:$0xf] %vm1583, %v2560
      %2602 = vst.msk [vmem:[#allocation3 + $0x154] sm:$0xf] %vm1583, %v2561
      %2603 = vst.msk [vmem:[#allocation3 + $0x160] sm:$0xf] %vm1583, %v2562
      %2604 = vst.msk [vmem:[#allocation3 + $0x16c] sm:$0xf] %vm1583, %v2563
      %2605 = vst.msk [vmem:[#allocation3 + $0x178] sm:$0xf] %vm1583, %v2564
      %2606 = vst.msk [vmem:[#allocation3 + $0x184] sm:$0xf] %vm1583, %v2565
      %2607 = vst.msk [vmem:[#allocation3 + $0x190] sm:$0xf] %vm1583, %v2566
      %2608 = vst.msk [vmem:[#allocation3 + $0x19c] sm:$0xf] %vm1583, %v2567
      %2609 = vst.msk [vmem:[#allocation3 + $0x1a8] sm:$0xf] %vm1583, %v2568
      %2610 = vst.msk [vmem:[#allocation3 + $0x1b4] sm:$0xf] %vm1583, %v2569
      %2611 = vst.msk [vmem:[#allocation3 + $0x1c0] sm:$0xf] %vm1583, %v2570
      %2612 = vst.msk [vmem:[#allocation3 + $0x1cc] sm:$0xf] %vm1583, %v2571
      %2613 = vst.msk [vmem:[#allocation3 + $0x1d8] sm:$0xf] %vm1583, %v2572
      %2614 = vst.msk [vmem:[#allocation3 + $0x1e4] sm:$0x3] %vm632, %v2573
      %v2615 = vld [vmem:[#allocation2 + $0x14] sm:$0xff]
      %v2616 = vld [vmem:[#allocation2 + $0x1c] sm:$0xff]
      %v2617 = vld [vmem:[#allocation2 + $0x24] sm:$0xff]
      %v2618 = vld [vmem:[#allocation2 + $0x2c] sm:$0xff]
      %v2619 = vld [vmem:[#allocation2 + $0x34] sm:$0xff]
      %v2620 = vld [vmem:[#allocation2 + $0x3c] sm:$0xff]
      %v2621 = vld [vmem:[#allocation2 + $0x44] sm:$0xff]
      %v2622 = vld [vmem:[#allocation2 + $0x4c] sm:$0xff]
      %v2623 = vld [vmem:[#allocation2 + $0x54] sm:$0xff]
      %v2624 = vld [vmem:[#allocation2 + $0x5c] sm:$0xff]
      %v2625 = vld [vmem:[#allocation2 + $0x64] sm:$0xff]
      %v2626 = vld [vmem:[#allocation2 + $0x6c] sm:$0xff]
      %v2627 = vld [vmem:[#allocation2 + $0x74] sm:$0xff]
      %v2628 = vld [vmem:[#allocation2 + $0x7c] sm:$0xff]
      %v2629 = vld [vmem:[#allocation2 + $0x84] sm:$0xff]
      %v2630 = vld [vmem:[#allocation2 + $0x8c] sm:$0xff]
      %v2631 = vld [vmem:[#allocation2 + $0x94] sm:$0xff]
      %v2632 = vld [vmem:[#allocation2 + $0x9c] sm:$0xff]
      %v2633 = vld [vmem:[#allocation2 + $0xa4] sm:$0xff]
      %v2634 = vld [vmem:[#allocation2 + $0xac] sm:$0xff]
      %v2635 = vld [vmem:[#allocation2 + $0xb4] sm:$0xff]
      %v2636 = vld [vmem:[#allocation2 + $0xbc] sm:$0xff]
      %v2637 = vld [vmem:[#allocation2 + $0xc4] sm:$0xff]
      %v2638 = vld [vmem:[#allocation2 + $0xcc] sm:$0xff]
      %v2639 = vld [vmem:[#allocation2 + $0xd4] sm:$0xff]
      %v2640 = vld [vmem:[#allocation2 + $0xdc] sm:$0xff]
      %v2641 = vld [vmem:[#allocation2 + $0xe4] sm:$0xff]
      %v2642 = vld [vmem:[#allocation2 + $0xec] sm:$0xff]
      %v2643 = vld [vmem:[#allocation2 + $0xf4] sm:$0xff]
      %v2644 = vld [vmem:[#allocation2 + $0xfc] sm:$0xff]
      %v2645 = vld [vmem:[#allocation2 + $0x104] sm:$0xff]
      %v2646 = vld [vmem:[#allocation2 + $0x10c] sm:$0xff]
      %v2647 = vld [vmem:[#allocation2 + $0x114] sm:$0xff]
      %v2648 = vld [vmem:[#allocation2 + $0x11c] sm:$0xff]
      %v2649 = vld [vmem:[#allocation2 + $0x124] sm:$0xff]
      %v2650 = vld [vmem:[#allocation2 + $0x12c] sm:$0xff]
      %v2651 = vld [vmem:[#allocation2 + $0x134] sm:$0xff]
      %v2652 = vld [vmem:[#allocation2 + $0x13c] sm:$0xff]
      %v2653 = vld [vmem:[#allocation2 + $0x144] sm:$0xff]
      %v2654 = vld [vmem:[#allocation2 + $0x14c] sm:$0xff]
      %v2655 = vld [vmem:[#allocation2 + $0x154] sm:$0xf]
      %v2656 = vpack.c.bf16 %v2615, %v2615
      %v2657 = vpack.c.bf16 %v2616, %v2616
      %v2658 = vpack.c.bf16 %v2617, %v2617
      %v2659 = vpack.c.bf16 %v2618, %v2618
      %v2660 = vpack.c.bf16 %v2619, %v2619
      %v2661 = vpack.c.bf16 %v2620, %v2620
      %v2662 = vpack.c.bf16 %v2621, %v2621
      %v2663 = vpack.c.bf16 %v2622, %v2622
      %v2664 = vpack.c.bf16 %v2623, %v2623
      %v2665 = vpack.c.bf16 %v2624, %v2624
      %v2666 = vpack.c.bf16 %v2625, %v2625
      %v2667 = vpack.c.bf16 %v2626, %v2626
      %v2668 = vpack.c.bf16 %v2627, %v2627
      %v2669 = vpack.c.bf16 %v2628, %v2628
      %v2670 = vpack.c.bf16 %v2629, %v2629
      %v2671 = vpack.c.bf16 %v2630, %v2630
      %v2672 = vpack.c.bf16 %v2631, %v2631
      %v2673 = vpack.c.bf16 %v2632, %v2632
      %v2674 = vpack.c.bf16 %v2633, %v2633
      %v2675 = vpack.c.bf16 %v2634, %v2634
      %v2676 = vpack.c.bf16 %v2635, %v2635
      %v2677 = vpack.c.bf16 %v2636, %v2636
      %v2678 = vpack.c.bf16 %v2637, %v2637
      %v2679 = vpack.c.bf16 %v2638, %v2638
      %v2680 = vpack.c.bf16 %v2639, %v2639
      %v2681 = vpack.c.bf16 %v2640, %v2640
      %v2682 = vpack.c.bf16 %v2641, %v2641
      %v2683 = vpack.c.bf16 %v2642, %v2642
      %v2684 = vpack.c.bf16 %v2643, %v2643
      %v2685 = vpack.c.bf16 %v2644, %v2644
      %v2686 = vpack.c.bf16 %v2645, %v2645
      %v2687 = vpack.c.bf16 %v2646, %v2646
      %v2688 = vpack.c.bf16 %v2647, %v2647
      %v2689 = vpack.c.bf16 %v2648, %v2648
      %v2690 = vpack.c.bf16 %v2649, %v2649
      %v2691 = vpack.c.bf16 %v2650, %v2650
      %v2692 = vpack.c.bf16 %v2651, %v2651
      %v2693 = vpack.c.bf16 %v2652, %v2652
      %v2694 = vpack.c.bf16 %v2653, %v2653
      %v2695 = vpack.c.bf16 %v2654, %v2654
      %v2696 = vpack.c.bf16 %v2655, %v2655
      %2738 = vrot.lane.b32.xlu0 %v2656, 32
      %v2739 = vpop.permute.xlu0 %2738
      %2740 = vrot.lane.b32.xlu0 %v2657, 32
      %v2741 = vpop.permute.xlu0 %2740
      %2742 = vrot.lane.b32.xlu0 %v2658, 32
      %v2743 = vpop.permute.xlu0 %2742
      %2744 = vrot.lane.b32.xlu0 %v2659, 32
      %v2745 = vpop.permute.xlu0 %2744
      %2746 = vrot.lane.b32.xlu0 %v2660, 32
      %v2747 = vpop.permute.xlu0 %2746
      %2748 = vrot.lane.b32.xlu0 %v2661, 32
      %v2749 = vpop.permute.xlu0 %2748
      %2750 = vrot.lane.b32.xlu0 %v2662, 32
      %v2751 = vpop.permute.xlu0 %2750
      %2752 = vrot.lane.b32.xlu0 %v2663, 32
      %v2753 = vpop.permute.xlu0 %2752
      %2754 = vrot.lane.b32.xlu0 %v2664, 32
      %v2755 = vpop.permute.xlu0 %2754
      %2756 = vrot.lane.b32.xlu0 %v2665, 32
      %v2757 = vpop.permute.xlu0 %2756
      %2758 = vrot.lane.b32.xlu0 %v2666, 32
      %v2759 = vpop.permute.xlu0 %2758
      %2760 = vrot.lane.b32.xlu0 %v2667, 32
      %v2761 = vpop.permute.xlu0 %2760
      %2762 = vrot.lane.b32.xlu0 %v2668, 32
      %v2763 = vpop.permute.xlu0 %2762
      %2764 = vrot.lane.b32.xlu0 %v2669, 32
      %v2765 = vpop.permute.xlu0 %2764
      %2766 = vrot.lane.b32.xlu0 %v2670, 32
      %v2767 = vpop.permute.xlu0 %2766
      %2768 = vrot.lane.b32.xlu0 %v2671, 32
      %v2769 = vpop.permute.xlu0 %2768
      %2770 = vrot.lane.b32.xlu0 %v2672, 32
      %v2771 = vpop.permute.xlu0 %2770
      %2772 = vrot.lane.b32.xlu0 %v2673, 32
      %v2773 = vpop.permute.xlu0 %2772
      %2774 = vrot.lane.b32.xlu0 %v2674, 32
      %v2775 = vpop.permute.xlu0 %2774
      %2776 = vrot.lane.b32.xlu0 %v2675, 32
      %v2777 = vpop.permute.xlu0 %2776
      %2778 = vrot.lane.b32.xlu0 %v2676, 32
      %v2779 = vpop.permute.xlu0 %2778
      %2780 = vrot.lane.b32.xlu0 %v2677, 32
      %v2781 = vpop.permute.xlu0 %2780
      %2782 = vrot.lane.b32.xlu0 %v2678, 32
      %v2783 = vpop.permute.xlu0 %2782
      %2784 = vrot.lane.b32.xlu0 %v2679, 32
      %v2785 = vpop.permute.xlu0 %2784
      %2786 = vrot.lane.b32.xlu0 %v2680, 32
      %v2787 = vpop.permute.xlu0 %2786
      %2788 = vrot.lane.b32.xlu0 %v2681, 32
      %v2789 = vpop.permute.xlu0 %2788
      %2790 = vrot.lane.b32.xlu0 %v2682, 32
      %v2791 = vpop.permute.xlu0 %2790
      %2792 = vrot.lane.b32.xlu0 %v2683, 32
      %v2793 = vpop.permute.xlu0 %2792
      %2794 = vrot.lane.b32.xlu0 %v2684, 32
      %v2795 = vpop.permute.xlu0 %2794
      %2796 = vrot.lane.b32.xlu0 %v2685, 32
      %v2797 = vpop.permute.xlu0 %2796
      %2798 = vrot.lane.b32.xlu0 %v2686, 32
      %v2799 = vpop.permute.xlu0 %2798
      %2800 = vrot.lane.b32.xlu0 %v2687, 32
      %v2801 = vpop.permute.xlu0 %2800
      %2802 = vrot.lane.b32.xlu0 %v2688, 32
      %v2803 = vpop.permute.xlu0 %2802
      %2804 = vrot.lane.b32.xlu0 %v2689, 32
      %v2805 = vpop.permute.xlu0 %2804
      %2806 = vrot.lane.b32.xlu0 %v2690, 32
      %v2807 = vpop.permute.xlu0 %2806
      %2808 = vrot.lane.b32.xlu0 %v2691, 32
      %v2809 = vpop.permute.xlu0 %2808
      %2810 = vrot.lane.b32.xlu0 %v2692, 32
      %v2811 = vpop.permute.xlu0 %2810
      %2812 = vrot.lane.b32.xlu0 %v2693, 32
      %v2813 = vpop.permute.xlu0 %2812
      %2814 = vrot.lane.b32.xlu0 %v2694, 32
      %v2815 = vpop.permute.xlu0 %2814
      %2816 = vrot.lane.b32.xlu0 %v2695, 32
      %v2817 = vpop.permute.xlu0 %2816
      %2818 = vrot.lane.b32.xlu0 %v2696, 32
      %v2819 = vpop.permute.xlu0 %2818
      %2861 = vst.msk [vmem:[#allocation3 + $0x4] sm:$0xf] %vm1871, %v2739
      %2862 = vst.msk [vmem:[#allocation3 + $0x10] sm:$0xf] %vm1871, %v2741
      %2863 = vst.msk [vmem:[#allocation3 + $0x1c] sm:$0xf] %vm1871, %v2743
      %2864 = vst.msk [vmem:[#allocation3 + $0x28] sm:$0xf] %vm1871, %v2745
      %2865 = vst.msk [vmem:[#allocation3 + $0x34] sm:$0xf] %vm1871, %v2747
      %2866 = vst.msk [vmem:[#allocation3 + $0x40] sm:$0xf] %vm1871, %v2749
      %2867 = vst.msk [vmem:[#allocation3 + $0x4c] sm:$0xf] %vm1871, %v2751
      %2868 = vst.msk [vmem:[#allocation3 + $0x58] sm:$0xf] %vm1871, %v2753
      %2869 = vst.msk [vmem:[#allocation3 + $0x64] sm:$0xf] %vm1871, %v2755
      %2870 = vst.msk [vmem:[#allocation3 + $0x70] sm:$0xf] %vm1871, %v2757
      %2871 = vst.msk [vmem:[#allocation3 + $0x7c] sm:$0xf] %vm1871, %v2759
      %2872 = vst.msk [vmem:[#allocation3 + $0x88] sm:$0xf] %vm1871, %v2761
      %2873 = vst.msk [vmem:[#allocation3 + $0x94] sm:$0xf] %vm1871, %v2763
      %2874 = vst.msk [vmem:[#allocation3 + $0xa0] sm:$0xf] %vm1871, %v2765
      %2875 = vst.msk [vmem:[#allocation3 + $0xac] sm:$0xf] %vm1871, %v2767
      %2876 = vst.msk [vmem:[#allocation3 + $0xb8] sm:$0xf] %vm1871, %v2769
      %2877 = vst.msk [vmem:[#allocation3 + $0xc4] sm:$0xf] %vm1871, %v2771
      %2878 = vst.msk [vmem:[#allocation3 + $0xd0] sm:$0xf] %vm1871, %v2773
      %2879 = vst.msk [vmem:[#allocation3 + $0xdc] sm:$0xf] %vm1871, %v2775
      %2880 = vst.msk [vmem:[#allocation3 + $0xe8] sm:$0xf] %vm1871, %v2777
      %2881 = vst.msk [vmem:[#allocation3 + $0xf4] sm:$0xf] %vm1871, %v2779
      %2882 = vst.msk [vmem:[#allocation3 + $0x100] sm:$0xf] %vm1871, %v2781
      %2883 = vst.msk [vmem:[#allocation3 + $0x10c] sm:$0xf] %vm1871, %v2783
      %2884 = vst.msk [vmem:[#allocation3 + $0x118] sm:$0xf] %vm1871, %v2785
      %2885 = vst.msk [vmem:[#allocation3 + $0x124] sm:$0xf] %vm1871, %v2787
      %2886 = vst.msk [vmem:[#allocation3 + $0x130] sm:$0xf] %vm1871, %v2789
      %2887 = vst.msk [vmem:[#allocation3 + $0x13c] sm:$0xf] %vm1871, %v2791
      %2888 = vst.msk [vmem:[#allocation3 + $0x148] sm:$0xf] %vm1871, %v2793
      %2889 = vst.msk [vmem:[#allocation3 + $0x154] sm:$0xf] %vm1871, %v2795
      %2890 = vst.msk [vmem:[#allocation3 + $0x160] sm:$0xf] %vm1871, %v2797
      %2891 = vst.msk [vmem:[#allocation3 + $0x16c] sm:$0xf] %vm1871, %v2799
      %2892 = vst.msk [vmem:[#allocation3 + $0x178] sm:$0xf] %vm1871, %v2801
      %2893 = vst.msk [vmem:[#allocation3 + $0x184] sm:$0xf] %vm1871, %v2803
      %2894 = vst.msk [vmem:[#allocation3 + $0x190] sm:$0xf] %vm1871, %v2805
      %2895 = vst.msk [vmem:[#allocation3 + $0x19c] sm:$0xf] %vm1871, %v2807
      %2896 = vst.msk [vmem:[#allocation3 + $0x1a8] sm:$0xf] %vm1871, %v2809
      %2897 = vst.msk [vmem:[#allocation3 + $0x1b4] sm:$0xf] %vm1871, %v2811
      %2898 = vst.msk [vmem:[#allocation3 + $0x1c0] sm:$0xf] %vm1871, %v2813
      %2899 = vst.msk [vmem:[#allocation3 + $0x1cc] sm:$0xf] %vm1871, %v2815
      %2900 = vst.msk [vmem:[#allocation3 + $0x1d8] sm:$0xf] %vm1871, %v2817
      %2901 = vst.msk [vmem:[#allocation3 + $0x1e4] sm:$0x3] %vm1912, %v2819
      %v2902 = vld [vmem:[#allocation2 + $0x24] sm:$0xff]
      %v2903 = vld [vmem:[#allocation2 + $0x2c] sm:$0xff]
      %v2904 = vld [vmem:[#allocation2 + $0x34] sm:$0xff]
      %v2905 = vld [vmem:[#allocation2 + $0x3c] sm:$0xff]
      %v2906 = vld [vmem:[#allocation2 + $0x44] sm:$0xff]
      %v2907 = vld [vmem:[#allocation2 + $0x4c] sm:$0xff]
      %v2908 = vld [vmem:[#allocation2 + $0x54] sm:$0xff]
      %v2909 = vld [vmem:[#allocation2 + $0x5c] sm:$0xff]
      %v2910 = vld [vmem:[#allocation2 + $0x64] sm:$0xff]
      %v2911 = vld [vmem:[#allocation2 + $0x6c] sm:$0xff]
      %v2912 = vld [vmem:[#allocation2 + $0x74] sm:$0xff]
      %v2913 = vld [vmem:[#allocation2 + $0x7c] sm:$0xff]
      %v2914 = vld [vmem:[#allocation2 + $0x84] sm:$0xff]
      %v2915 = vld [vmem:[#allocation2 + $0x8c] sm:$0xff]
      %v2916 = vld [vmem:[#allocation2 + $0x94] sm:$0xff]
      %v2917 = vld [vmem:[#allocation2 + $0x9c] sm:$0xff]
      %v2918 = vld [vmem:[#allocation2 + $0xa4] sm:$0xff]
      %v2919 = vld [vmem:[#allocation2 + $0xac] sm:$0xff]
      %v2920 = vld [vmem:[#allocation2 + $0xb4] sm:$0xff]
      %v2921 = vld [vmem:[#allocation2 + $0xbc] sm:$0xff]
      %v2922 = vld [vmem:[#allocation2 + $0xc4] sm:$0xff]
      %v2923 = vld [vmem:[#allocation2 + $0xcc] sm:$0xff]
      %v2924 = vld [vmem:[#allocation2 + $0xd4] sm:$0xff]
      %v2925 = vld [vmem:[#allocation2 + $0xdc] sm:$0xff]
      %v2926 = vld [vmem:[#allocation2 + $0xe4] sm:$0xff]
      %v2927 = vld [vmem:[#allocation2 + $0xec] sm:$0xff]
      %v2928 = vld [vmem:[#allocation2 + $0xf4] sm:$0xff]
      %v2929 = vld [vmem:[#allocation2 + $0xfc] sm:$0xff]
      %v2930 = vld [vmem:[#allocation2 + $0x104] sm:$0xff]
      %v2931 = vld [vmem:[#allocation2 + $0x10c] sm:$0xff]
      %v2932 = vld [vmem:[#allocation2 + $0x114] sm:$0xff]
      %v2933 = vld [vmem:[#allocation2 + $0x11c] sm:$0xff]
      %v2934 = vld [vmem:[#allocation2 + $0x124] sm:$0xff]
      %v2935 = vld [vmem:[#allocation2 + $0x12c] sm:$0xff]
      %v2936 = vld [vmem:[#allocation2 + $0x134] sm:$0xff]
      %v2937 = vld [vmem:[#allocation2 + $0x13c] sm:$0xff]
      %v2938 = vld [vmem:[#allocation2 + $0x144] sm:$0xff]
      %v2939 = vld [vmem:[#allocation2 + $0x14c] sm:$0xff]
      %v2940 = vld [vmem:[#allocation2 + $0x154] sm:$0xff]
      %v2941 = vld [vmem:[#allocation2 + $0x15c] sm:$0xff]
      %v2942 = vld [vmem:[#allocation2 + $0x164] sm:$0xf]
      %v2943 = vpack.c.bf16 %v2902, %v2902
      %v2944 = vpack.c.bf16 %v2903, %v2903
      %v2945 = vpack.c.bf16 %v2904, %v2904
      %v2946 = vpack.c.bf16 %v2905, %v2905
      %v2947 = vpack.c.bf16 %v2906, %v2906
      %v2948 = vpack.c.bf16 %v2907, %v2907
      %v2949 = vpack.c.bf16 %v2908, %v2908
      %v2950 = vpack.c.bf16 %v2909, %v2909
      %v2951 = vpack.c.bf16 %v2910, %v2910
      %v2952 = vpack.c.bf16 %v2911, %v2911
      %v2953 = vpack.c.bf16 %v2912, %v2912
      %v2954 = vpack.c.bf16 %v2913, %v2913
      %v2955 = vpack.c.bf16 %v2914, %v2914
      %v2956 = vpack.c.bf16 %v2915, %v2915
      %v2957 = vpack.c.bf16 %v2916, %v2916
      %v2958 = vpack.c.bf16 %v2917, %v2917
      %v2959 = vpack.c.bf16 %v2918, %v2918
      %v2960 = vpack.c.bf16 %v2919, %v2919
      %v2961 = vpack.c.bf16 %v2920, %v2920
      %v2962 = vpack.c.bf16 %v2921, %v2921
      %v2963 = vpack.c.bf16 %v2922, %v2922
      %v2964 = vpack.c.bf16 %v2923, %v2923
      %v2965 = vpack.c.bf16 %v2924, %v2924
      %v2966 = vpack.c.bf16 %v2925, %v2925
      %v2967 = vpack.c.bf16 %v2926, %v2926
      %v2968 = vpack.c.bf16 %v2927, %v2927
      %v2969 = vpack.c.bf16 %v2928, %v2928
      %v2970 = vpack.c.bf16 %v2929, %v2929
      %v2971 = vpack.c.bf16 %v2930, %v2930
      %v2972 = vpack.c.bf16 %v2931, %v2931
      %v2973 = vpack.c.bf16 %v2932, %v2932
      %v2974 = vpack.c.bf16 %v2933, %v2933
      %v2975 = vpack.c.bf16 %v2934, %v2934
      %v2976 = vpack.c.bf16 %v2935, %v2935
      %v2977 = vpack.c.bf16 %v2936, %v2936
      %v2978 = vpack.c.bf16 %v2937, %v2937
      %v2979 = vpack.c.bf16 %v2938, %v2938
      %v2980 = vpack.c.bf16 %v2939, %v2939
      %v2981 = vpack.c.bf16 %v2940, %v2940
      %v2982 = vpack.c.bf16 %v2941, %v2941
      %v2983 = vpack.c.bf16 %v2942, %v2942
      %3025 = vrot.lane.b32.xlu0 %v2943, 64
      %v3026 = vpop.permute.xlu0 %3025
      %3027 = vrot.lane.b32.xlu0 %v2944, 64
      %v3028 = vpop.permute.xlu0 %3027
      %3029 = vrot.lane.b32.xlu0 %v2945, 64
      %v3030 = vpop.permute.xlu0 %3029
      %3031 = vrot.lane.b32.xlu0 %v2946, 64
      %v3032 = vpop.permute.xlu0 %3031
      %3033 = vrot.lane.b32.xlu0 %v2947, 64
      %v3034 = vpop.permute.xlu0 %3033
      %3035 = vrot.lane.b32.xlu0 %v2948, 64
      %v3036 = vpop.permute.xlu0 %3035
      %3037 = vrot.lane.b32.xlu0 %v2949, 64
      %v3038 = vpop.permute.xlu0 %3037
      %3039 = vrot.lane.b32.xlu0 %v2950, 64
      %v3040 = vpop.permute.xlu0 %3039
      %3041 = vrot.lane.b32.xlu0 %v2951, 64
      %v3042 = vpop.permute.xlu0 %3041
      %3043 = vrot.lane.b32.xlu0 %v2952, 64
      %v3044 = vpop.permute.xlu0 %3043
      %3045 = vrot.lane.b32.xlu0 %v2953, 64
      %v3046 = vpop.permute.xlu0 %3045
      %3047 = vrot.lane.b32.xlu0 %v2954, 64
      %v3048 = vpop.permute.xlu0 %3047
      %3049 = vrot.lane.b32.xlu0 %v2955, 64
      %v3050 = vpop.permute.xlu0 %3049
      %3051 = vrot.lane.b32.xlu0 %v2956, 64
      %v3052 = vpop.permute.xlu0 %3051
      %3053 = vrot.lane.b32.xlu0 %v2957, 64
      %v3054 = vpop.permute.xlu0 %3053
      %3055 = vrot.lane.b32.xlu0 %v2958, 64
      %v3056 = vpop.permute.xlu0 %3055
      %3057 = vrot.lane.b32.xlu0 %v2959, 64
      %v3058 = vpop.permute.xlu0 %3057
      %3059 = vrot.lane.b32.xlu0 %v2960, 64
      %v3060 = vpop.permute.xlu0 %3059
      %3061 = vrot.lane.b32.xlu0 %v2961, 64
      %v3062 = vpop.permute.xlu0 %3061
      %3063 = vrot.lane.b32.xlu0 %v2962, 64
      %v3064 = vpop.permute.xlu0 %3063
      %3065 = vrot.lane.b32.xlu0 %v2963, 64
      %v3066 = vpop.permute.xlu0 %3065
      %3067 = vrot.lane.b32.xlu0 %v2964, 64
      %v3068 = vpop.permute.xlu0 %3067
      %3069 = vrot.lane.b32.xlu0 %v2965, 64
      %v3070 = vpop.permute.xlu0 %3069
      %3071 = vrot.lane.b32.xlu0 %v2966, 64
      %v3072 = vpop.permute.xlu0 %3071
      %3073 = vrot.lane.b32.xlu0 %v2967, 64
      %v3074 = vpop.permute.xlu0 %3073
      %3075 = vrot.lane.b32.xlu0 %v2968, 64
      %v3076 = vpop.permute.xlu0 %3075
      %3077 = vrot.lane.b32.xlu0 %v2969, 64
      %v3078 = vpop.permute.xlu0 %3077
      %3079 = vrot.lane.b32.xlu0 %v2970, 64
      %v3080 = vpop.permute.xlu0 %3079
      %3081 = vrot.lane.b32.xlu0 %v2971, 64
      %v3082 = vpop.permute.xlu0 %3081
      %3083 = vrot.lane.b32.xlu0 %v2972, 64
      %v3084 = vpop.permute.xlu0 %3083
      %3085 = vrot.lane.b32.xlu0 %v2973, 64
      %v3086 = vpop.permute.xlu0 %3085
      %3087 = vrot.lane.b32.xlu0 %v2974, 64
      %v3088 = vpop.permute.xlu0 %3087
      %3089 = vrot.lane.b32.xlu0 %v2975, 64
      %v3090 = vpop.permute.xlu0 %3089
      %3091 = vrot.lane.b32.xlu0 %v2976, 64
      %v3092 = vpop.permute.xlu0 %3091
      %3093 = vrot.lane.b32.xlu0 %v2977, 64
      %v3094 = vpop.permute.xlu0 %3093
      %3095 = vrot.lane.b32.xlu0 %v2978, 64
      %v3096 = vpop.permute.xlu0 %3095
      %3097 = vrot.lane.b32.xlu0 %v2979, 64
      %v3098 = vpop.permute.xlu0 %3097
      %3099 = vrot.lane.b32.xlu0 %v2980, 64
      %v3100 = vpop.permute.xlu0 %3099
      %3101 = vrot.lane.b32.xlu0 %v2981, 64
      %v3102 = vpop.permute.xlu0 %3101
      %3103 = vrot.lane.b32.xlu0 %v2982, 64
      %v3104 = vpop.permute.xlu0 %3103
      %3105 = vrot.lane.b32.xlu0 %v2983, 64
      %v3106 = vpop.permute.xlu0 %3105
      %3148 = vst.msk [vmem:[#allocation3 + $0x4] sm:$0xf] %vm2160, %v3026
      %3149 = vst.msk [vmem:[#allocation3 + $0x10] sm:$0xf] %vm2160, %v3028
      %3150 = vst.msk [vmem:[#allocation3 + $0x1c] sm:$0xf] %vm2160, %v3030
      %3151 = vst.msk [vmem:[#allocation3 + $0x28] sm:$0xf] %vm2160, %v3032
      %3152 = vst.msk [vmem:[#allocation3 + $0x34] sm:$0xf] %vm2160, %v3034
      %3153 = vst.msk [vmem:[#allocation3 + $0x40] sm:$0xf] %vm2160, %v3036
      %3154 = vst.msk [vmem:[#allocation3 + $0x4c] sm:$0xf] %vm2160, %v3038
      %3155 = vst.msk [vmem:[#allocation3 + $0x58] sm:$0xf] %vm2160, %v3040
      %3156 = vst.msk [vmem:[#allocation3 + $0x64] sm:$0xf] %vm2160, %v3042
      %3157 = vst.msk [vmem:[#allocation3 + $0x70] sm:$0xf] %vm2160, %v3044
      %3158 = vst.msk [vmem:[#allocation3 + $0x7c] sm:$0xf] %vm2160, %v3046
      %3159 = vst.msk [vmem:[#allocation3 + $0x88] sm:$0xf] %vm2160, %v3048
      %3160 = vst.msk [vmem:[#allocation3 + $0x94] sm:$0xf] %vm2160, %v3050
      %3161 = vst.msk [vmem:[#allocation3 + $0xa0] sm:$0xf] %vm2160, %v3052
      %3162 = vst.msk [vmem:[#allocation3 + $0xac] sm:$0xf] %vm2160, %v3054
      %3163 = vst.msk [vmem:[#allocation3 + $0xb8] sm:$0xf] %vm2160, %v3056
      %3164 = vst.msk [vmem:[#allocation3 + $0xc4] sm:$0xf] %vm2160, %v3058
      %3165 = vst.msk [vmem:[#allocation3 + $0xd0] sm:$0xf] %vm2160, %v3060
      %3166 = vst.msk [vmem:[#allocation3 + $0xdc] sm:$0xf] %vm2160, %v3062
      %3167 = vst.msk [vmem:[#allocation3 + $0xe8] sm:$0xf] %vm2160, %v3064
      %3168 = vst.msk [vmem:[#allocation3 + $0xf4] sm:$0xf] %vm2160, %v3066
      %3169 = vst.msk [vmem:[#allocation3 + $0x100] sm:$0xf] %vm2160, %v3068
      %3170 = vst.msk [vmem:[#allocation3 + $0x10c] sm:$0xf] %vm2160, %v3070
      %3171 = vst.msk [vmem:[#allocation3 + $0x118] sm:$0xf] %vm2160, %v3072
      %3172 = vst.msk [vmem:[#allocation3 + $0x124] sm:$0xf] %vm2160, %v3074
      %3173 = vst.msk [vmem:[#allocation3 + $0x130] sm:$0xf] %vm2160, %v3076
      %3174 = vst.msk [vmem:[#allocation3 + $0x13c] sm:$0xf] %vm2160, %v3078
      %3175 = vst.msk [vmem:[#allocation3 + $0x148] sm:$0xf] %vm2160, %v3080
      %3176 = vst.msk [vmem:[#allocation3 + $0x154] sm:$0xf] %vm2160, %v3082
      %3177 = vst.msk [vmem:[#allocation3 + $0x160] sm:$0xf] %vm2160, %v3084
      %3178 = vst.msk [vmem:[#allocation3 + $0x16c] sm:$0xf] %vm2160, %v3086
      %3179 = vst.msk [vmem:[#allocation3 + $0x178] sm:$0xf] %vm2160, %v3088
      %3180 = vst.msk [vmem:[#allocation3 + $0x184] sm:$0xf] %vm2160, %v3090
      %3181 = vst.msk [vmem:[#allocation3 + $0x190] sm:$0xf] %vm2160, %v3092
      %3182 = vst.msk [vmem:[#allocation3 + $0x19c] sm:$0xf] %vm2160, %v3094
      %3183 = vst.msk [vmem:[#allocation3 + $0x1a8] sm:$0xf] %vm2160, %v3096
      %3184 = vst.msk [vmem:[#allocation3 + $0x1b4] sm:$0xf] %vm2160, %v3098
      %3185 = vst.msk [vmem:[#allocation3 + $0x1c0] sm:$0xf] %vm2160, %v3100
      %3186 = vst.msk [vmem:[#allocation3 + $0x1cc] sm:$0xf] %vm2160, %v3102
      %3187 = vst.msk [vmem:[#allocation3 + $0x1d8] sm:$0xf] %vm2160, %v3104
      %3188 = vst.msk [vmem:[#allocation3 + $0x1e4] sm:$0x3] %vm2201, %v3106
      %v3189 = vld [vmem:[#allocation2 + $0x25] sm:$0xff]
      %v3190 = vld [vmem:[#allocation2 + $0x2d] sm:$0xff]
      %v3191 = vld [vmem:[#allocation2 + $0x35] sm:$0xff]
      %v3192 = vld [vmem:[#allocation2 + $0x3d] sm:$0xff]
      %v3193 = vld [vmem:[#allocation2 + $0x45] sm:$0xff]
      %v3194 = vld [vmem:[#allocation2 + $0x4d] sm:$0xff]
      %v3195 = vld [vmem:[#allocation2 + $0x55] sm:$0xff]
      %v3196 = vld [vmem:[#allocation2 + $0x5d] sm:$0xff]
      %v3197 = vld [vmem:[#allocation2 + $0x65] sm:$0xff]
      %v3198 = vld [vmem:[#allocation2 + $0x6d] sm:$0xff]
      %v3199 = vld [vmem:[#allocation2 + $0x75] sm:$0xff]
      %v3200 = vld [vmem:[#allocation2 + $0x7d] sm:$0xff]
      %v3201 = vld [vmem:[#allocation2 + $0x85] sm:$0xff]
      %v3202 = vld [vmem:[#allocation2 + $0x8d] sm:$0xff]
      %v3203 = vld [vmem:[#allocation2 + $0x95] sm:$0xff]
      %v3204 = vld [vmem:[#allocation2 + $0x9d] sm:$0xff]
      %v3205 = vld [vmem:[#allocation2 + $0xa5] sm:$0xff]
      %v3206 = vld [vmem:[#allocation2 + $0xad] sm:$0xff]
      %v3207 = vld [vmem:[#allocation2 + $0xb5] sm:$0xff]
      %v3208 = vld [vmem:[#allocation2 + $0xbd] sm:$0xff]
      %v3209 = vld [vmem:[#allocation2 + $0xc5] sm:$0xff]
      %v3210 = vld [vmem:[#allocation2 + $0xcd] sm:$0xff]
      %v3211 = vld [vmem:[#allocation2 + $0xd5] sm:$0xff]
      %v3212 = vld [vmem:[#allocation2 + $0xdd] sm:$0xff]
      %v3213 = vld [vmem:[#allocation2 + $0xe5] sm:$0xff]
      %v3214 = vld [vmem:[#allocation2 + $0xed] sm:$0xff]
      %v3215 = vld [vmem:[#allocation2 + $0xf5] sm:$0xff]
      %v3216 = vld [vmem:[#allocation2 + $0xfd] sm:$0xff]
      %v3217 = vld [vmem:[#allocation2 + $0x105] sm:$0xff]
      %v3218 = vld [vmem:[#allocation2 + $0x10d] sm:$0xff]
      %v3219 = vld [vmem:[#allocation2 + $0x115] sm:$0xff]
      %v3220 = vld [vmem:[#allocation2 + $0x11d] sm:$0xff]
      %v3221 = vld [vmem:[#allocation2 + $0x125] sm:$0xff]
      %v3222 = vld [vmem:[#allocation2 + $0x12d] sm:$0xff]
      %v3223 = vld [vmem:[#allocation2 + $0x135] sm:$0xff]
      %v3224 = vld [vmem:[#allocation2 + $0x13d] sm:$0xff]
      %v3225 = vld [vmem:[#allocation2 + $0x145] sm:$0xff]
      %v3226 = vld [vmem:[#allocation2 + $0x14d] sm:$0xff]
      %v3227 = vld [vmem:[#allocation2 + $0x155] sm:$0xff]
      %v3228 = vld [vmem:[#allocation2 + $0x15d] sm:$0xff]
      %v3229 = vld [vmem:[#allocation2 + $0x165] sm:$0xf]
      %v3230 = vpack.c.bf16 %v3189, %v3189
      %v3231 = vpack.c.bf16 %v3190, %v3190
      %v3232 = vpack.c.bf16 %v3191, %v3191
      %v3233 = vpack.c.bf16 %v3192, %v3192
      %v3234 = vpack.c.bf16 %v3193, %v3193
      %v3235 = vpack.c.bf16 %v3194, %v3194
      %v3236 = vpack.c.bf16 %v3195, %v3195
      %v3237 = vpack.c.bf16 %v3196, %v3196
      %v3238 = vpack.c.bf16 %v3197, %v3197
      %v3239 = vpack.c.bf16 %v3198, %v3198
      %v3240 = vpack.c.bf16 %v3199, %v3199
      %v3241 = vpack.c.bf16 %v3200, %v3200
      %v3242 = vpack.c.bf16 %v3201, %v3201
      %v3243 = vpack.c.bf16 %v3202, %v3202
      %v3244 = vpack.c.bf16 %v3203, %v3203
      %v3245 = vpack.c.bf16 %v3204, %v3204
      %v3246 = vpack.c.bf16 %v3205, %v3205
      %v3247 = vpack.c.bf16 %v3206, %v3206
      %v3248 = vpack.c.bf16 %v3207, %v3207
      %v3249 = vpack.c.bf16 %v3208, %v3208
      %v3250 = vpack.c.bf16 %v3209, %v3209
      %v3251 = vpack.c.bf16 %v3210, %v3210
      %v3252 = vpack.c.bf16 %v3211, %v3211
      %v3253 = vpack.c.bf16 %v3212, %v3212
      %v3254 = vpack.c.bf16 %v3213, %v3213
      %v3255 = vpack.c.bf16 %v3214, %v3214
      %v3256 = vpack.c.bf16 %v3215, %v3215
      %v3257 = vpack.c.bf16 %v3216, %v3216
      %v3258 = vpack.c.bf16 %v3217, %v3217
      %v3259 = vpack.c.bf16 %v3218, %v3218
      %v3260 = vpack.c.bf16 %v3219, %v3219
      %v3261 = vpack.c.bf16 %v3220, %v3220
      %v3262 = vpack.c.bf16 %v3221, %v3221
      %v3263 = vpack.c.bf16 %v3222, %v3222
      %v3264 = vpack.c.bf16 %v3223, %v3223
      %v3265 = vpack.c.bf16 %v3224, %v3224
      %v3266 = vpack.c.bf16 %v3225, %v3225
      %v3267 = vpack.c.bf16 %v3226, %v3226
      %v3268 = vpack.c.bf16 %v3227, %v3227
      %v3269 = vpack.c.bf16 %v3228, %v3228
      %v3270 = vpack.c.bf16 %v3229, %v3229
      %3312 = vrot.lane.b32.xlu0 %v3230, 96
      %v3313 = vpop.permute.xlu0 %3312
      %3314 = vrot.lane.b32.xlu0 %v3231, 96
      %v3315 = vpop.permute.xlu0 %3314
      %3316 = vrot.lane.b32.xlu0 %v3232, 96
      %v3317 = vpop.permute.xlu0 %3316
      %3318 = vrot.lane.b32.xlu0 %v3233, 96
      %v3319 = vpop.permute.xlu0 %3318
      %3320 = vrot.lane.b32.xlu0 %v3234, 96
      %v3321 = vpop.permute.xlu0 %3320
      %3322 = vrot.lane.b32.xlu0 %v3235, 96
      %v3323 = vpop.permute.xlu0 %3322
      %3324 = vrot.lane.b32.xlu0 %v3236, 96
      %v3325 = vpop.permute.xlu0 %3324
      %3326 = vrot.lane.b32.xlu0 %v3237, 96
      %v3327 = vpop.permute.xlu0 %3326
      %3328 = vrot.lane.b32.xlu0 %v3238, 96
      %v3329 = vpop.permute.xlu0 %3328
      %3330 = vrot.lane.b32.xlu0 %v3239, 96
      %v3331 = vpop.permute.xlu0 %3330
      %3332 = vrot.lane.b32.xlu0 %v3240, 96
      %v3333 = vpop.permute.xlu0 %3332
      %3334 = vrot.lane.b32.xlu0 %v3241, 96
      %v3335 = vpop.permute.xlu0 %3334
      %3336 = vrot.lane.b32.xlu0 %v3242, 96
      %v3337 = vpop.permute.xlu0 %3336
      %3338 = vrot.lane.b32.xlu0 %v3243, 96
      %v3339 = vpop.permute.xlu0 %3338
      %3340 = vrot.lane.b32.xlu0 %v3244, 96
      %v3341 = vpop.permute.xlu0 %3340
      %3342 = vrot.lane.b32.xlu0 %v3245, 96
      %v3343 = vpop.permute.xlu0 %3342
      %3344 = vrot.lane.b32.xlu0 %v3246, 96
      %v3345 = vpop.permute.xlu0 %3344
      %3346 = vrot.lane.b32.xlu0 %v3247, 96
      %v3347 = vpop.permute.xlu0 %3346
      %3348 = vrot.lane.b32.xlu0 %v3248, 96
      %v3349 = vpop.permute.xlu0 %3348
      %3350 = vrot.lane.b32.xlu0 %v3249, 96
      %v3351 = vpop.permute.xlu0 %3350
      %3352 = vrot.lane.b32.xlu0 %v3250, 96
      %v3353 = vpop.permute.xlu0 %3352
      %3354 = vrot.lane.b32.xlu0 %v3251, 96
      %v3355 = vpop.permute.xlu0 %3354
      %3356 = vrot.lane.b32.xlu0 %v3252, 96
      %v3357 = vpop.permute.xlu0 %3356
      %3358 = vrot.lane.b32.xlu0 %v3253, 96
      %v3359 = vpop.permute.xlu0 %3358
      %3360 = vrot.lane.b32.xlu0 %v3254, 96
      %v3361 = vpop.permute.xlu0 %3360
      %3362 = vrot.lane.b32.xlu0 %v3255, 96
      %v3363 = vpop.permute.xlu0 %3362
      %3364 = vrot.lane.b32.xlu0 %v3256, 96
      %v3365 = vpop.permute.xlu0 %3364
      %3366 = vrot.lane.b32.xlu0 %v3257, 96
      %v3367 = vpop.permute.xlu0 %3366
      %3368 = vrot.lane.b32.xlu0 %v3258, 96
      %v3369 = vpop.permute.xlu0 %3368
      %3370 = vrot.lane.b32.xlu0 %v3259, 96
      %v3371 = vpop.permute.xlu0 %3370
      %3372 = vrot.lane.b32.xlu0 %v3260, 96
      %v3373 = vpop.permute.xlu0 %3372
      %3374 = vrot.lane.b32.xlu0 %v3261, 96
      %v3375 = vpop.permute.xlu0 %3374
      %3376 = vrot.lane.b32.xlu0 %v3262, 96
      %v3377 = vpop.permute.xlu0 %3376
      %3378 = vrot.lane.b32.xlu0 %v3263, 96
      %v3379 = vpop.permute.xlu0 %3378
      %3380 = vrot.lane.b32.xlu0 %v3264, 96
      %v3381 = vpop.permute.xlu0 %3380
      %3382 = vrot.lane.b32.xlu0 %v3265, 96
      %v3383 = vpop.permute.xlu0 %3382
      %3384 = vrot.lane.b32.xlu0 %v3266, 96
      %v3385 = vpop.permute.xlu0 %3384
      %3386 = vrot.lane.b32.xlu0 %v3267, 96
      %v3387 = vpop.permute.xlu0 %3386
      %3388 = vrot.lane.b32.xlu0 %v3268, 96
      %v3389 = vpop.permute.xlu0 %3388
      %3390 = vrot.lane.b32.xlu0 %v3269, 96
      %v3391 = vpop.permute.xlu0 %3390
      %3392 = vrot.lane.b32.xlu0 %v3270, 96
      %v3393 = vpop.permute.xlu0 %3392
      %3435 = vst.msk [vmem:[#allocation3 + $0x4] sm:$0xf] %vm2449, %v3313
      %3436 = vst.msk [vmem:[#allocation3 + $0x10] sm:$0xf] %vm2449, %v3315
      %3437 = vst.msk [vmem:[#allocation3 + $0x1c] sm:$0xf] %vm2449, %v3317
      %3438 = vst.msk [vmem:[#allocation3 + $0x28] sm:$0xf] %vm2449, %v3319
      %3439 = vst.msk [vmem:[#allocation3 + $0x34] sm:$0xf] %vm2449, %v3321
      %3440 = vst.msk [vmem:[#allocation3 + $0x40] sm:$0xf] %vm2449, %v3323
      %3441 = vst.msk [vmem:[#allocation3 + $0x4c] sm:$0xf] %vm2449, %v3325
      %3442 = vst.msk [vmem:[#allocation3 + $0x58] sm:$0xf] %vm2449, %v3327
      %3443 = vst.msk [vmem:[#allocation3 + $0x64] sm:$0xf] %vm2449, %v3329
      %3444 = vst.msk [vmem:[#allocation3 + $0x70] sm:$0xf] %vm2449, %v3331
      %3445 = vst.msk [vmem:[#allocation3 + $0x7c] sm:$0xf] %vm2449, %v3333
      %3446 = vst.msk [vmem:[#allocation3 + $0x88] sm:$0xf] %vm2449, %v3335
      %3447 = vst.msk [vmem:[#allocation3 + $0x94] sm:$0xf] %vm2449, %v3337
      %3448 = vst.msk [vmem:[#allocation3 + $0xa0] sm:$0xf] %vm2449, %v3339
      %3449 = vst.msk [vmem:[#allocation3 + $0xac] sm:$0xf] %vm2449, %v3341
      %3450 = vst.msk [vmem:[#allocation3 + $0xb8] sm:$0xf] %vm2449, %v3343
      %3451 = vst.msk [vmem:[#allocation3 + $0xc4] sm:$0xf] %vm2449, %v3345
      %3452 = vst.msk [vmem:[#allocation3 + $0xd0] sm:$0xf] %vm2449, %v3347
      %3453 = vst.msk [vmem:[#allocation3 + $0xdc] sm:$0xf] %vm2449, %v3349
      %3454 = vst.msk [vmem:[#allocation3 + $0xe8] sm:$0xf] %vm2449, %v3351
      %3455 = vst.msk [vmem:[#allocation3 + $0xf4] sm:$0xf] %vm2449, %v3353
      %3456 = vst.msk [vmem:[#allocation3 + $0x100] sm:$0xf] %vm2449, %v3355
      %3457 = vst.msk [vmem:[#allocation3 + $0x10c] sm:$0xf] %vm2449, %v3357
      %3458 = vst.msk [vmem:[#allocation3 + $0x118] sm:$0xf] %vm2449, %v3359
      %3459 = vst.msk [vmem:[#allocation3 + $0x124] sm:$0xf] %vm2449, %v3361
      %3460 = vst.msk [vmem:[#allocation3 + $0x130] sm:$0xf] %vm2449, %v3363
      %3461 = vst.msk [vmem:[#allocation3 + $0x13c] sm:$0xf] %vm2449, %v3365
      %3462 = vst.msk [vmem:[#allocation3 + $0x148] sm:$0xf] %vm2449, %v3367
      %3463 = vst.msk [vmem:[#allocation3 + $0x154] sm:$0xf] %vm2449, %v3369
      %3464 = vst.msk [vmem:[#allocation3 + $0x160] sm:$0xf] %vm2449, %v3371
      %3465 = vst.msk [vmem:[#allocation3 + $0x16c] sm:$0xf] %vm2449, %v3373
      %3466 = vst.msk [vmem:[#allocation3 + $0x178] sm:$0xf] %vm2449, %v3375
      %3467 = vst.msk [vmem:[#allocation3 + $0x184] sm:$0xf] %vm2449, %v3377
      %3468 = vst.msk [vmem:[#allocation3 + $0x190] sm:$0xf] %vm2449, %v3379
      %3469 = vst.msk [vmem:[#allocation3 + $0x19c] sm:$0xf] %vm2449, %v3381
      %3470 = vst.msk [vmem:[#allocation3 + $0x1a8] sm:$0xf] %vm2449, %v3383
      %3471 = vst.msk [vmem:[#allocation3 + $0x1b4] sm:$0xf] %vm2449, %v3385
      %3472 = vst.msk [vmem:[#allocation3 + $0x1c0] sm:$0xf] %vm2449, %v3387
      %3473 = vst.msk [vmem:[#allocation3 + $0x1cc] sm:$0xf] %vm2449, %v3389
      %3474 = vst.msk [vmem:[#allocation3 + $0x1d8] sm:$0xf] %vm2449, %v3391
      %3475 = vst.msk [vmem:[#allocation3 + $0x1e4] sm:$0x3] %vm2490, %v3393
      %v3476 = vld [vmem:[#allocation2 + $0x26] sm:$0xff]
      %v3477 = vld [vmem:[#allocation2 + $0x2e] sm:$0xff]
      %v3478 = vld [vmem:[#allocation2 + $0x36] sm:$0xff]
      %v3479 = vld [vmem:[#allocation2 + $0x3e] sm:$0xff]
      %v3480 = vld [vmem:[#allocation2 + $0x46] sm:$0xff]
      %v3481 = vld [vmem:[#allocation2 + $0x4e] sm:$0xff]
      %v3482 = vld [vmem:[#allocation2 + $0x56] sm:$0xff]
      %v3483 = vld [vmem:[#allocation2 + $0x5e] sm:$0xff]
      %v3484 = vld [vmem:[#allocation2 + $0x66] sm:$0xff]
      %v3485 = vld [vmem:[#allocation2 + $0x6e] sm:$0xff]
      %v3486 = vld [vmem:[#allocation2 + $0x76] sm:$0xff]
      %v3487 = vld [vmem:[#allocation2 + $0x7e] sm:$0xff]
      %v3488 = vld [vmem:[#allocation2 + $0x86] sm:$0xff]
      %v3489 = vld [vmem:[#allocation2 + $0x8e] sm:$0xff]
      %v3490 = vld [vmem:[#allocation2 + $0x96] sm:$0xff]
      %v3491 = vld [vmem:[#allocation2 + $0x9e] sm:$0xff]
      %v3492 = vld [vmem:[#allocation2 + $0xa6] sm:$0xff]
      %v3493 = vld [vmem:[#allocation2 + $0xae] sm:$0xff]
      %v3494 = vld [vmem:[#allocation2 + $0xb6] sm:$0xff]
      %v3495 = vld [vmem:[#allocation2 + $0xbe] sm:$0xff]
      %v3496 = vld [vmem:[#allocation2 + $0xc6] sm:$0xff]
      %v3497 = vld [vmem:[#allocation2 + $0xce] sm:$0xff]
      %v3498 = vld [vmem:[#allocation2 + $0xd6] sm:$0xff]
      %v3499 = vld [vmem:[#allocation2 + $0xde] sm:$0xff]
      %v3500 = vld [vmem:[#allocation2 + $0xe6] sm:$0xff]
      %v3501 = vld [vmem:[#allocation2 + $0xee] sm:$0xff]
      %v3502 = vld [vmem:[#allocation2 + $0xf6] sm:$0xff]
      %v3503 = vld [vmem:[#allocation2 + $0xfe] sm:$0xff]
      %v3504 = vld [vmem:[#allocation2 + $0x106] sm:$0xff]
      %v3505 = vld [vmem:[#allocation2 + $0x10e] sm:$0xff]
      %v3506 = vld [vmem:[#allocation2 + $0x116] sm:$0xff]
      %v3507 = vld [vmem:[#allocation2 + $0x11e] sm:$0xff]
      %v3508 = vld [vmem:[#allocation2 + $0x126] sm:$0xff]
      %v3509 = vld [vmem:[#allocation2 + $0x12e] sm:$0xff]
      %v3510 = vld [vmem:[#allocation2 + $0x136] sm:$0xff]
      %v3511 = vld [vmem:[#allocation2 + $0x13e] sm:$0xff]
      %v3512 = vld [vmem:[#allocation2 + $0x146] sm:$0xff]
      %v3513 = vld [vmem:[#allocation2 + $0x14e] sm:$0xff]
      %v3514 = vld [vmem:[#allocation2 + $0x156] sm:$0xff]
      %v3515 = vld [vmem:[#allocation2 + $0x15e] sm:$0xff]
      %v3516 = vld [vmem:[#allocation2 + $0x166] sm:$0xf]
      %v3517 = vpack.c.bf16 %v3476, %v3476
      %v3518 = vpack.c.bf16 %v3477, %v3477
      %v3519 = vpack.c.bf16 %v3478, %v3478
      %v3520 = vpack.c.bf16 %v3479, %v3479
      %v3521 = vpack.c.bf16 %v3480, %v3480
      %v3522 = vpack.c.bf16 %v3481, %v3481
      %v3523 = vpack.c.bf16 %v3482, %v3482
      %v3524 = vpack.c.bf16 %v3483, %v3483
      %v3525 = vpack.c.bf16 %v3484, %v3484
      %v3526 = vpack.c.bf16 %v3485, %v3485
      %v3527 = vpack.c.bf16 %v3486, %v3486
      %v3528 = vpack.c.bf16 %v3487, %v3487
      %v3529 = vpack.c.bf16 %v3488, %v3488
      %v3530 = vpack.c.bf16 %v3489, %v3489
      %v3531 = vpack.c.bf16 %v3490, %v3490
      %v3532 = vpack.c.bf16 %v3491, %v3491
      %v3533 = vpack.c.bf16 %v3492, %v3492
      %v3534 = vpack.c.bf16 %v3493, %v3493
      %v3535 = vpack.c.bf16 %v3494, %v3494
      %v3536 = vpack.c.bf16 %v3495, %v3495
      %v3537 = vpack.c.bf16 %v3496, %v3496
      %v3538 = vpack.c.bf16 %v3497, %v3497
      %v3539 = vpack.c.bf16 %v3498, %v3498
      %v3540 = vpack.c.bf16 %v3499, %v3499
      %v3541 = vpack.c.bf16 %v3500, %v3500
      %v3542 = vpack.c.bf16 %v3501, %v3501
      %v3543 = vpack.c.bf16 %v3502, %v3502
      %v3544 = vpack.c.bf16 %v3503, %v3503
      %v3545 = vpack.c.bf16 %v3504, %v3504
      %v3546 = vpack.c.bf16 %v3505, %v3505
      %v3547 = vpack.c.bf16 %v3506, %v3506
      %v3548 = vpack.c.bf16 %v3507, %v3507
      %v3549 = vpack.c.bf16 %v3508, %v3508
      %v3550 = vpack.c.bf16 %v3509, %v3509
      %v3551 = vpack.c.bf16 %v3510, %v3510
      %v3552 = vpack.c.bf16 %v3511, %v3511
      %v3553 = vpack.c.bf16 %v3512, %v3512
      %v3554 = vpack.c.bf16 %v3513, %v3513
      %v3555 = vpack.c.bf16 %v3514, %v3514
      %v3556 = vpack.c.bf16 %v3515, %v3515
      %v3557 = vpack.c.bf16 %v3516, %v3516
      %3558 = vst.msk [vmem:[#allocation3 + $0x8] sm:$0xf] %vm1583, %v3517
      %3559 = vst.msk [vmem:[#allocation3 + $0x14] sm:$0xf] %vm1583, %v3518
      %3560 = vst.msk [vmem:[#allocation3 + $0x20] sm:$0xf] %vm1583, %v3519
      %3561 = vst.msk [vmem:[#allocation3 + $0x2c] sm:$0xf] %vm1583, %v3520
      %3562 = vst.msk [vmem:[#allocation3 + $0x38] sm:$0xf] %vm1583, %v3521
      %3563 = vst.msk [vmem:[#allocation3 + $0x44] sm:$0xf] %vm1583, %v3522
      %3564 = vst.msk [vmem:[#allocation3 + $0x50] sm:$0xf] %vm1583, %v3523
      %3565 = vst.msk [vmem:[#allocation3 + $0x5c] sm:$0xf] %vm1583, %v3524
      %3566 = vst.msk [vmem:[#allocation3 + $0x68] sm:$0xf] %vm1583, %v3525
      %3567 = vst.msk [vmem:[#allocation3 + $0x74] sm:$0xf] %vm1583, %v3526
      %3568 = vst.msk [vmem:[#allocation3 + $0x80] sm:$0xf] %vm1583, %v3527
      %3569 = vst.msk [vmem:[#allocation3 + $0x8c] sm:$0xf] %vm1583, %v3528
      %3570 = vst.msk [vmem:[#allocation3 + $0x98] sm:$0xf] %vm1583, %v3529
      %3571 = vst.msk [vmem:[#allocation3 + $0xa4] sm:$0xf] %vm1583, %v3530
      %3572 = vst.msk [vmem:[#allocation3 + $0xb0] sm:$0xf] %vm1583, %v3531
      %3573 = vst.msk [vmem:[#allocation3 + $0xbc] sm:$0xf] %vm1583, %v3532
      %3574 = vst.msk [vmem:[#allocation3 + $0xc8] sm:$0xf] %vm1583, %v3533
      %3575 = vst.msk [vmem:[#allocation3 + $0xd4] sm:$0xf] %vm1583, %v3534
      %3576 = vst.msk [vmem:[#allocation3 + $0xe0] sm:$0xf] %vm1583, %v3535
      %3577 = vst.msk [vmem:[#allocation3 + $0xec] sm:$0xf] %vm1583, %v3536
      %3578 = vst.msk [vmem:[#allocation3 + $0xf8] sm:$0xf] %vm1583, %v3537
      %3579 = vst.msk [vmem:[#allocation3 + $0x104] sm:$0xf] %vm1583, %v3538
      %3580 = vst.msk [vmem:[#allocation3 + $0x110] sm:$0xf] %vm1583, %v3539
      %3581 = vst.msk [vmem:[#allocation3 + $0x11c] sm:$0xf] %vm1583, %v3540
      %3582 = vst.msk [vmem:[#allocation3 + $0x128] sm:$0xf] %vm1583, %v3541
      %3583 = vst.msk [vmem:[#allocation3 + $0x134] sm:$0xf] %vm1583, %v3542
      %3584 = vst.msk [vmem:[#allocation3 + $0x140] sm:$0xf] %vm1583, %v3543
      %3585 = vst.msk [vmem:[#allocation3 + $0x14c] sm:$0xf] %vm1583, %v3544
      %3586 = vst.msk [vmem:[#allocation3 + $0x158] sm:$0xf] %vm1583, %v3545
      %3587 = vst.msk [vmem:[#allocation3 + $0x164] sm:$0xf] %vm1583, %v3546
      %3588 = vst.msk [vmem:[#allocation3 + $0x170] sm:$0xf] %vm1583, %v3547
      %3589 = vst.msk [vmem:[#allocation3 + $0x17c] sm:$0xf] %vm1583, %v3548
      %3590 = vst.msk [vmem:[#allocation3 + $0x188] sm:$0xf] %vm1583, %v3549
      %3591 = vst.msk [vmem:[#allocation3 + $0x194] sm:$0xf] %vm1583, %v3550
      %3592 = vst.msk [vmem:[#allocation3 + $0x1a0] sm:$0xf] %vm1583, %v3551
      %3593 = vst.msk [vmem:[#allocation3 + $0x1ac] sm:$0xf] %vm1583, %v3552
      %3594 = vst.msk [vmem:[#allocation3 + $0x1b8] sm:$0xf] %vm1583, %v3553
      %3595 = vst.msk [vmem:[#allocation3 + $0x1c4] sm:$0xf] %vm1583, %v3554
      %3596 = vst.msk [vmem:[#allocation3 + $0x1d0] sm:$0xf] %vm1583, %v3555
      %3597 = vst.msk [vmem:[#allocation3 + $0x1dc] sm:$0xf] %vm1583, %v3556
      %3598 = vst.msk [vmem:[#allocation3 + $0x1e8] sm:$0x3] %vm632, %v3557
      %v3599 = vld [vmem:[#allocation3] sm:$0xff]
      %v3600 = vld [vmem:[#allocation3 + $0x8] sm:$0xf]
      %v3601 = vld [vmem:[#allocation3 + $0xc] sm:$0xff]
      %v3602 = vld [vmem:[#allocation3 + $0x14] sm:$0xf]
      %v3603 = vld [vmem:[#allocation3 + $0x18] sm:$0xff]
      %v3604 = vld [vmem:[#allocation3 + $0x20] sm:$0xf]
      %v3605 = vld [vmem:[#allocation3 + $0x24] sm:$0xff]
      %v3606 = vld [vmem:[#allocation3 + $0x2c] sm:$0xf]
      %v3607 = vld [vmem:[#allocation3 + $0x30] sm:$0xff]
      %v3608 = vld [vmem:[#allocation3 + $0x38] sm:$0xf]
      %v3609 = vld [vmem:[#allocation3 + $0x3c] sm:$0xff]
      %v3610 = vld [vmem:[#allocation3 + $0x44] sm:$0xf]
      %v3611 = vld [vmem:[#allocation3 + $0x48] sm:$0xff]
      %v3612 = vld [vmem:[#allocation3 + $0x50] sm:$0xf]
      %v3613 = vld [vmem:[#allocation3 + $0x54] sm:$0xff]
      %v3614 = vld [vmem:[#allocation3 + $0x5c] sm:$0xf]
      %v3615 = vld [vmem:[#allocation3 + $0x60] sm:$0xff]
      %v3616 = vld [vmem:[#allocation3 + $0x68] sm:$0xf]
      %v3617 = vld [vmem:[#allocation3 + $0x6c] sm:$0xff]
      %v3618 = vld [vmem:[#allocation3 + $0x74] sm:$0xf]
      %v3619 = vld [vmem:[#allocation3 + $0x78] sm:$0xff]
      %v3620 = vld [vmem:[#allocation3 + $0x80] sm:$0xf]
      %v3621 = vld [vmem:[#allocation3 + $0x84] sm:$0xff]
      %v3622 = vld [vmem:[#allocation3 + $0x8c] sm:$0xf]
      %v3623 = vld [vmem:[#allocation3 + $0x90] sm:$0xff]
      %v3624 = vld [vmem:[#allocation3 + $0x98] sm:$0xf]
      %v3625 = vld [vmem:[#allocation3 + $0x9c] sm:$0xff]
      %v3626 = vld [vmem:[#allocation3 + $0xa4] sm:$0xf]
      %v3627 = vld [vmem:[#allocation3 + $0xa8] sm:$0xff]
      %v3628 = vld [vmem:[#allocation3 + $0xb0] sm:$0xf]
      %v3629 = vld [vmem:[#allocation3 + $0xb4] sm:$0xff]
      %v3630 = vld [vmem:[#allocation3 + $0xbc] sm:$0xf]
      %v3631 = vld [vmem:[#allocation3 + $0xc0] sm:$0xff]
      %v3632 = vld [vmem:[#allocation3 + $0xc8] sm:$0xf]
      %v3633 = vld [vmem:[#allocation3 + $0xcc] sm:$0xff]
      %v3634 = vld [vmem:[#allocation3 + $0xd4] sm:$0xf]
      %v3635 = vld [vmem:[#allocation3 + $0xd8] sm:$0xff]
      %v3636 = vld [vmem:[#allocation3 + $0xe0] sm:$0xf]
      %v3637 = vld [vmem:[#allocation3 + $0xe4] sm:$0xff]
      %v3638 = vld [vmem:[#allocation3 + $0xec] sm:$0xf]
      %v3639 = vld [vmem:[#allocation3 + $0xf0] sm:$0xff]
      %v3640 = vld [vmem:[#allocation3 + $0xf8] sm:$0xf]
      %v3641 = vld [vmem:[#allocation3 + $0xfc] sm:$0xff]
      %v3642 = vld [vmem:[#allocation3 + $0x104] sm:$0xf]
      %v3643 = vld [vmem:[#allocation3 + $0x108] sm:$0xff]
      %v3644 = vld [vmem:[#allocation3 + $0x110] sm:$0xf]
      %v3645 = vld [vmem:[#allocation3 + $0x114] sm:$0xff]
      %v3646 = vld [vmem:[#allocation3 + $0x11c] sm:$0xf]
      %v3647 = vld [vmem:[#allocation3 + $0x120] sm:$0xff]
      %v3648 = vld [vmem:[#allocation3 + $0x128] sm:$0xf]
      %v3649 = vld [vmem:[#allocation3 + $0x12c] sm:$0xff]
      %v3650 = vld [vmem:[#allocation3 + $0x134] sm:$0xf]
      %v3651 = vld [vmem:[#allocation3 + $0x138] sm:$0xff]
      %v3652 = vld [vmem:[#allocation3 + $0x140] sm:$0xf]
      %v3653 = vld [vmem:[#allocation3 + $0x144] sm:$0xff]
      %v3654 = vld [vmem:[#allocation3 + $0x14c] sm:$0xf]
      %v3655 = vld [vmem:[#allocation3 + $0x150] sm:$0xff]
      %v3656 = vld [vmem:[#allocation3 + $0x158] sm:$0xf]
      %v3657 = vld [vmem:[#allocation3 + $0x15c] sm:$0xff]
      %v3658 = vld [vmem:[#allocation3 + $0x164] sm:$0xf]
      %v3659 = vld [vmem:[#allocation3 + $0x168] sm:$0xff]
      %v3660 = vld [vmem:[#allocation3 + $0x170] sm:$0xf]
      %v3661 = vld [vmem:[#allocation3 + $0x174] sm:$0xff]
      %v3662 = vld [vmem:[#allocation3 + $0x17c] sm:$0xf]
      %v3663 = vld [vmem:[#allocation3 + $0x180] sm:$0xff]
      %v3664 = vld [vmem:[#allocation3 + $0x188] sm:$0xf]
      %v3665 = vld [vmem:[#allocation3 + $0x18c] sm:$0xff]
      %v3666 = vld [vmem:[#allocation3 + $0x194] sm:$0xf]
      %v3667 = vld [vmem:[#allocation3 + $0x198] sm:$0xff]
      %v3668 = vld [vmem:[#allocation3 + $0x1a0] sm:$0xf]
      %v3669 = vld [vmem:[#allocation3 + $0x1a4] sm:$0xff]
      %v3670 = vld [vmem:[#allocation3 + $0x1ac] sm:$0xf]
      %v3671 = vld [vmem:[#allocation3 + $0x1b0] sm:$0xff]
      %v3672 = vld [vmem:[#allocation3 + $0x1b8] sm:$0xf]
      %v3673 = vld [vmem:[#allocation3 + $0x1bc] sm:$0xff]
      %v3674 = vld [vmem:[#allocation3 + $0x1c4] sm:$0xf]
      %v3675 = vld [vmem:[#allocation3 + $0x1c8] sm:$0xff]
      %v3676 = vld [vmem:[#allocation3 + $0x1d0] sm:$0xf]
      %v3677 = vld [vmem:[#allocation3 + $0x1d4] sm:$0xff]
      %v3678 = vld [vmem:[#allocation3 + $0x1dc] sm:$0xf]
      %v3679 = vld [vmem:[#allocation3 + $0x1e0] sm:$0x33]
      %v3680 = vld [vmem:[#allocation3 + $0x1e8] sm:$0x3]
      %v3681 = vld [vmem:[%s4] sm:$0xf]
      %v3682 = vld [vmem:[%s4 + $0x4] sm:$0xf]
      %v3683 = vld [vmem:[%s4 + $0x8] sm:$0xf]
      %v3684 = vld [vmem:[%s4 + $0xc] sm:$0xf]
      %v3685 = vld [vmem:[%s4 + $0x10] sm:$0xf]
      %v3686 = vld [vmem:[%s4 + $0x14] sm:$0xf]
      %v3687 = vld [vmem:[%s4 + $0x18] sm:$0xf]
      %v3688 = vld [vmem:[%s4 + $0x1c] sm:$0xf]
      %v3689 = vld [vmem:[%s4 + $0x20] sm:$0xf]
      %v3690 = vld [vmem:[%s4 + $0x24] sm:$0xf]
      %v3691 = vld [vmem:[%s4 + $0x28] sm:$0xf]
      %v3692 = vld [vmem:[%s4 + $0x2c] sm:$0xf]
      %v3693 = vld [vmem:[%s4 + $0x30] sm:$0xf]
      %v3694 = vld [vmem:[%s4 + $0x34] sm:$0xf]
      %v3695 = vld [vmem:[%s4 + $0x38] sm:$0xf]
      %v3696 = vld [vmem:[%s4 + $0x3c] sm:$0xf]
      %v3697 = vld [vmem:[%s4 + $0x40] sm:$0xf]
      %v3698 = vld [vmem:[%s4 + $0x44] sm:$0xf]
      %v3699 = vld [vmem:[%s4 + $0x48] sm:$0xf]
      %v3700 = vld [vmem:[%s4 + $0x4c] sm:$0xf]
      %v3701 = vld [vmem:[%s4 + $0x50] sm:$0xf]
      %v3702 = vld [vmem:[%s4 + $0x54] sm:$0xf]
      %v3703 = vld [vmem:[%s4 + $0x58] sm:$0xf]
      %v3704 = vld [vmem:[%s4 + $0x5c] sm:$0xf]
      %v3705 = vld [vmem:[%s4 + $0x60] sm:$0xf]
      %v3706 = vld [vmem:[%s4 + $0x64] sm:$0xf]
      %v3707 = vld [vmem:[%s4 + $0x68] sm:$0xf]
      %v3708 = vld [vmem:[%s4 + $0x6c] sm:$0xf]
      %v3709 = vld [vmem:[%s4 + $0x70] sm:$0xf]
      %v3710 = vld [vmem:[%s4 + $0x74] sm:$0xf]
      %v3711 = vld [vmem:[%s4 + $0x78] sm:$0xf]
      %v3712 = vld [vmem:[%s4 + $0x7c] sm:$0xf]
      %v3713 = vld [vmem:[%s4 + $0x80] sm:$0xf]
      %v3714 = vld [vmem:[%s4 + $0x84] sm:$0xf]
      %v3715 = vld [vmem:[%s4 + $0x88] sm:$0xf]
      %v3716 = vld [vmem:[%s4 + $0x8c] sm:$0xf]
      %v3799 = vunpack.c.l.b16 %v3599
      %v3800 = vunpack.c.h.b16 %v3599
      %v3801 = vunpack.c.l.b16 %v3600
      %v3802 = vunpack.c.l.b16 %v3601
      %v3803 = vunpack.c.h.b16 %v3601
      %v3804 = vunpack.c.l.b16 %v3602
      %v3805 = vunpack.c.l.b16 %v3603
      %v3806 = vunpack.c.h.b16 %v3603
      %v3807 = vunpack.c.l.b16 %v3604
      %v3808 = vunpack.c.l.b16 %v3605
      %v3809 = vunpack.c.h.b16 %v3605
      %v3810 = vunpack.c.l.b16 %v3606
      %v3811 = vunpack.c.l.b16 %v3607
      %v3812 = vunpack.c.h.b16 %v3607
      %v3813 = vunpack.c.l.b16 %v3608
      %v3814 = vunpack.c.l.b16 %v3609
      %v3815 = vunpack.c.h.b16 %v3609
      %v3816 = vunpack.c.l.b16 %v3610
      %v3817 = vunpack.c.l.b16 %v3611
      %v3818 = vunpack.c.h.b16 %v3611
      %v3819 = vunpack.c.l.b16 %v3612
      %v3820 = vunpack.c.l.b16 %v3613
      %v3821 = vunpack.c.h.b16 %v3613
      %v3822 = vunpack.c.l.b16 %v3614
      %v3823 = vunpack.c.l.b16 %v3615
      %v3824 = vunpack.c.h.b16 %v3615
      %v3825 = vunpack.c.l.b16 %v3616
      %v3826 = vunpack.c.l.b16 %v3617
      %v3827 = vunpack.c.h.b16 %v3617
      %v3828 = vunpack.c.l.b16 %v3618
      %v3829 = vunpack.c.l.b16 %v3619
      %v3830 = vunpack.c.h.b16 %v3619
      %v3831 = vunpack.c.l.b16 %v3620
      %v3832 = vunpack.c.l.b16 %v3621
      %v3833 = vunpack.c.h.b16 %v3621
      %v3834 = vunpack.c.l.b16 %v3622
      %v3835 = vunpack.c.l.b16 %v3623
      %v3836 = vunpack.c.h.b16 %v3623
      %v3837 = vunpack.c.l.b16 %v3624
      %v3838 = vunpack.c.l.b16 %v3625
      %v3839 = vunpack.c.h.b16 %v3625
      %v3840 = vunpack.c.l.b16 %v3626
      %v3841 = vunpack.c.l.b16 %v3627
      %v3842 = vunpack.c.h.b16 %v3627
      %v3843 = vunpack.c.l.b16 %v3628
      %v3844 = vunpack.c.l.b16 %v3629
      %v3845 = vunpack.c.h.b16 %v3629
      %v3846 = vunpack.c.l.b16 %v3630
      %v3847 = vunpack.c.l.b16 %v3631
      %v3848 = vunpack.c.h.b16 %v3631
      %v3849 = vunpack.c.l.b16 %v3632
      %v3850 = vunpack.c.l.b16 %v3633
      %v3851 = vunpack.c.h.b16 %v3633
      %v3852 = vunpack.c.l.b16 %v3634
      %v3853 = vunpack.c.l.b16 %v3635
      %v3854 = vunpack.c.h.b16 %v3635
      %v3855 = vunpack.c.l.b16 %v3636
      %v3856 = vunpack.c.l.b16 %v3637
      %v3857 = vunpack.c.h.b16 %v3637
      %v3858 = vunpack.c.l.b16 %v3638
      %v3859 = vunpack.c.l.b16 %v3639
      %v3860 = vunpack.c.h.b16 %v3639
      %v3861 = vunpack.c.l.b16 %v3640
      %v3862 = vunpack.c.l.b16 %v3641
      %v3863 = vunpack.c.h.b16 %v3641
      %v3864 = vunpack.c.l.b16 %v3642
      %v3865 = vunpack.c.l.b16 %v3643
      %v3866 = vunpack.c.h.b16 %v3643
      %v3867 = vunpack.c.l.b16 %v3644
      %v3868 = vunpack.c.l.b16 %v3645
      %v3869 = vunpack.c.h.b16 %v3645
      %v3870 = vunpack.c.l.b16 %v3646
      %v3871 = vunpack.c.l.b16 %v3647
      %v3872 = vunpack.c.h.b16 %v3647
      %v3873 = vunpack.c.l.b16 %v3648
      %v3874 = vunpack.c.l.b16 %v3649
      %v3875 = vunpack.c.h.b16 %v3649
      %v3876 = vunpack.c.l.b16 %v3650
      %v3877 = vunpack.c.l.b16 %v3651
      %v3878 = vunpack.c.h.b16 %v3651
      %v3879 = vunpack.c.l.b16 %v3652
      %v3880 = vunpack.c.l.b16 %v3653
      %v3881 = vunpack.c.h.b16 %v3653
      %v3882 = vunpack.c.l.b16 %v3654
      %v3883 = vunpack.c.l.b16 %v3655
      %v3884 = vunpack.c.h.b16 %v3655
      %v3885 = vunpack.c.l.b16 %v3656
      %v3886 = vunpack.c.l.b16 %v3657
      %v3887 = vunpack.c.h.b16 %v3657
      %v3888 = vunpack.c.l.b16 %v3658
      %v3889 = vunpack.c.l.b16 %v3659
      %v3890 = vunpack.c.h.b16 %v3659
      %v3891 = vunpack.c.l.b16 %v3660
      %v3892 = vunpack.c.l.b16 %v3661
      %v3893 = vunpack.c.h.b16 %v3661
      %v3894 = vunpack.c.l.b16 %v3662
      %v3895 = vunpack.c.l.b16 %v3663
      %v3896 = vunpack.c.h.b16 %v3663
      %v3897 = vunpack.c.l.b16 %v3664
      %v3898 = vunpack.c.l.b16 %v3665
      %v3899 = vunpack.c.h.b16 %v3665
      %v3900 = vunpack.c.l.b16 %v3666
      %v3901 = vunpack.c.l.b16 %v3667
      %v3902 = vunpack.c.h.b16 %v3667
      %v3903 = vunpack.c.l.b16 %v3668
      %v3904 = vunpack.c.l.b16 %v3669
      %v3905 = vunpack.c.h.b16 %v3669
      %v3906 = vunpack.c.l.b16 %v3670
      %v3907 = vunpack.c.l.b16 %v3671
      %v3908 = vunpack.c.h.b16 %v3671
      %v3909 = vunpack.c.l.b16 %v3672
      %v3910 = vunpack.c.l.b16 %v3673
      %v3911 = vunpack.c.h.b16 %v3673
      %v3912 = vunpack.c.l.b16 %v3674
      %v3913 = vunpack.c.l.b16 %v3675
      %v3914 = vunpack.c.h.b16 %v3675
      %v3915 = vunpack.c.l.b16 %v3676
      %v3916 = vunpack.c.l.b16 %v3677
      %v3917 = vunpack.c.h.b16 %v3677
      %v3918 = vunpack.c.l.b16 %v3678
      %v3919 = vunpack.c.l.b16 %v3679
      %v3920 = vunpack.c.h.b16 %v3679
      %v3921 = vunpack.c.l.b16 %v3680
      %v3922 = vpack.c.b16 %v3802, %v3799
      %v3923 = vpack.c.b16 %v3803, %v3800
      %v3924 = vpack.c.b16 %v3804, %v3801
      %v3925 = vpack.c.b16 %v3808, %v3805
      %v3926 = vpack.c.b16 %v3809, %v3806
      %v3927 = vpack.c.b16 %v3810, %v3807
      %v3928 = vpack.c.b16 %v3814, %v3811
      %v3929 = vpack.c.b16 %v3815, %v3812
      %v3930 = vpack.c.b16 %v3816, %v3813
      %v3931 = vpack.c.b16 %v3820, %v3817
      %v3932 = vpack.c.b16 %v3821, %v3818
      %v3933 = vpack.c.b16 %v3822, %v3819
      %v3934 = vpack.c.b16 %v3826, %v3823
      %v3935 = vpack.c.b16 %v3827, %v3824
      %v3936 = vpack.c.b16 %v3828, %v3825
      %v3937 = vpack.c.b16 %v3832, %v3829
      %v3938 = vpack.c.b16 %v3833, %v3830
      %v3939 = vpack.c.b16 %v3834, %v3831
      %v3940 = vpack.c.b16 %v3838, %v3835
      %v3941 = vpack.c.b16 %v3839, %v3836
      %v3942 = vpack.c.b16 %v3840, %v3837
      %v3943 = vpack.c.b16 %v3844, %v3841
      %v3944 = vpack.c.b16 %v3845, %v3842
      %v3945 = vpack.c.b16 %v3846, %v3843
      %v3946 = vpack.c.b16 %v3850, %v3847
      %v3947 = vpack.c.b16 %v3851, %v3848
      %v3948 = vpack.c.b16 %v3852, %v3849
      %v3949 = vpack.c.b16 %v3856, %v3853
      %v3950 = vpack.c.b16 %v3857, %v3854
      %v3951 = vpack.c.b16 %v3858, %v3855
      %v3952 = vpack.c.b16 %v3862, %v3859
      %v3953 = vpack.c.b16 %v3863, %v3860
      %v3954 = vpack.c.b16 %v3864, %v3861
      %v3955 = vpack.c.b16 %v3868, %v3865
      %v3956 = vpack.c.b16 %v3869, %v3866
      %v3957 = vpack.c.b16 %v3870, %v3867
      %v3958 = vpack.c.b16 %v3874, %v3871
      %v3959 = vpack.c.b16 %v3875, %v3872
      %v3960 = vpack.c.b16 %v3876, %v3873
      %v3961 = vpack.c.b16 %v3880, %v3877
      %v3962 = vpack.c.b16 %v3881, %v3878
      %v3963 = vpack.c.b16 %v3882, %v3879
      %v3964 = vpack.c.b16 %v3886, %v3883
      %v3965 = vpack.c.b16 %v3887, %v3884
      %v3966 = vpack.c.b16 %v3888, %v3885
      %v3967 = vpack.c.b16 %v3892, %v3889
      %v3968 = vpack.c.b16 %v3893, %v3890
      %v3969 = vpack.c.b16 %v3894, %v3891
      %v3970 = vpack.c.b16 %v3898, %v3895
      %v3971 = vpack.c.b16 %v3899, %v3896
      %v3972 = vpack.c.b16 %v3900, %v3897
      %v3973 = vpack.c.b16 %v3904, %v3901
      %v3974 = vpack.c.b16 %v3905, %v3902
      %v3975 = vpack.c.b16 %v3906, %v3903
      %v3976 = vpack.c.b16 %v3910, %v3907
      %v3977 = vpack.c.b16 %v3911, %v3908
      %v3978 = vpack.c.b16 %v3912, %v3909
      %v3979 = vpack.c.b16 %v3916, %v3913
      %v3980 = vpack.c.b16 %v3917, %v3914
      %v3981 = vpack.c.b16 %v3918, %v3915
      %v3982 = vpack.c.b16 %v3919, %v3919
      %v3983 = vpack.c.b16 %v3920, %v3920
      %v3984 = vpack.c.b16 %v3921, %v3921
      %v4063 = vunpack.c.l.b16 %v3681
      %v4064 = vunpack.c.l.b16 %v3682
      %v4065 = vunpack.c.l.b16 %v3683
      %v4066 = vunpack.c.l.b16 %v3684
      %v4067 = vunpack.c.l.b16 %v3685
      %v4068 = vunpack.c.l.b16 %v3686
      %v4069 = vunpack.c.l.b16 %v3687
      %v4070 = vunpack.c.l.b16 %v3688
      %v4071 = vunpack.c.l.b16 %v3689
      %v4072 = vunpack.c.l.b16 %v3690
      %v4073 = vunpack.c.l.b16 %v3691
      %v4074 = vunpack.c.l.b16 %v3692
      %v4075 = vunpack.c.l.b16 %v3693
      %v4076 = vunpack.c.l.b16 %v3694
      %v4077 = vunpack.c.l.b16 %v3695
      %v4078 = vunpack.c.l.b16 %v3696
      %v4079 = vunpack.c.l.b16 %v3697
      %v4080 = vunpack.c.l.b16 %v3698
      %v4081 = vunpack.c.l.b16 %v3699
      %v4082 = vunpack.c.l.b16 %v3700
      %v4083 = vunpack.c.l.b16 %v3701
      %v4084 = vunpack.c.l.b16 %v3702
      %v4085 = vunpack.c.l.b16 %v3703
      %v4086 = vunpack.c.l.b16 %v3704
      %v4087 = vunpack.c.l.b16 %v3705
      %v4088 = vunpack.c.l.b16 %v3706
      %v4089 = vunpack.c.l.b16 %v3707
      %v4090 = vunpack.c.l.b16 %v3708
      %v4091 = vunpack.c.l.b16 %v3709
      %v4092 = vunpack.c.l.b16 %v3710
      %v4093 = vunpack.c.l.b16 %v3711
      %v4094 = vunpack.c.l.b16 %v3712
      %v4095 = vunpack.c.l.b16 %v3713
      %v4096 = vunpack.c.l.b16 %v3714
      %v4097 = vunpack.c.l.b16 %v3715
      %v4098 = vunpack.c.l.b16 %v3716
      %v4099 = vpack.c.b16 %v4064, %v4063
      %v4100 = vpack.c.b16 %v4066, %v4065
      %v4101 = vpack.c.b16 %v4068, %v4067
      %v4102 = vpack.c.b16 %v4070, %v4069
      %v4103 = vpack.c.b16 %v4072, %v4071
      %v4104 = vpack.c.b16 %v4074, %v4073
      %v4105 = vpack.c.b16 %v4076, %v4075
      %v4106 = vpack.c.b16 %v4078, %v4077
      %v4107 = vpack.c.b16 %v4080, %v4079
      %v4108 = vpack.c.b16 %v4082, %v4081
      %v4109 = vpack.c.b16 %v4084, %v4083
      %v4110 = vpack.c.b16 %v4086, %v4085
      %v4111 = vpack.c.b16 %v4088, %v4087
      %v4112 = vpack.c.b16 %v4090, %v4089
      %v4113 = vpack.c.b16 %v4092, %v4091
      %v4114 = vpack.c.b16 %v4094, %v4093
      %v4115 = vpack.c.b16 %v4096, %v4095
      %v4116 = vpack.c.b16 %v4098, %v4097
      %v4136 = vsel %vm496, %v3924, 0
      %v4139 = vsel %vm496, %v3927, 0
      %v4142 = vsel %vm496, %v3930, 0
      %v4145 = vsel %vm496, %v3933, 0
      %v4148 = vsel %vm496, %v3936, 0
      %v4151 = vsel %vm496, %v3939, 0
      %v4154 = vsel %vm496, %v3942, 0
      %v4157 = vsel %vm496, %v3945, 0
      %v4160 = vsel %vm496, %v3948, 0
      %v4163 = vsel %vm496, %v3951, 0
      %v4166 = vsel %vm496, %v3954, 0
      %v4169 = vsel %vm496, %v3957, 0
      %v4172 = vsel %vm496, %v3960, 0
      %v4175 = vsel %vm496, %v3963, 0
      %v4178 = vsel %vm496, %v3966, 0
      %v4181 = vsel %vm496, %v3969, 0
      %v4184 = vsel %vm496, %v3972, 0
      %v4187 = vsel %vm496, %v3975, 0
      %v4190 = vsel %vm496, %v3978, 0
      %v4193 = vsel %vm496, %v3981, 0
      %v4196 = vsel %vm496, %v3984, 0
      %4198 = vmatpush.bf16.msra.mxu0 %v4106
      %4199 = vmatpush.bf16.msra.mxu0 %v4105
      %4200 = vmatpush.bf16.msra.mxu0 %v4104
      %4201 = vmatpush.bf16.msra.mxu0 %v4103
      %4202 = vmatpush.bf16.msra.mxu0 %v4102
      %4203 = vmatpush.bf16.msra.mxu0 %v4101
      %4204 = vmatpush.bf16.msra.mxu0 %v4100
      %4205 = vmatpush.bf16.msra.mxu0 %v4099
      %4206 = vmatmul.bf16.gmra.mxu0 %v3922
      %v4207 = vpop.f32.mrf.mxu0
      %v4208 = vadd.f32 0.0, %v4207
      %v4209 = vpop.f32.mrf.mxu0
      %v4210 = vadd.f32 0.0, %v4209
      %4211 = vmatmul.bf16.gmra.mxu0 %v3925
      %v4212 = vpop.f32.mrf.mxu0
      %v4213 = vadd.f32 0.0, %v4212
      %v4214 = vpop.f32.mrf.mxu0
      %v4215 = vadd.f32 0.0, %v4214
      %4216 = vmatmul.bf16.gmra.mxu0 %v3928
      %v4217 = vpop.f32.mrf.mxu0
      %v4218 = vadd.f32 0.0, %v4217
      %v4219 = vpop.f32.mrf.mxu0
      %v4220 = vadd.f32 0.0, %v4219
      %4221 = vmatmul.bf16.gmra.mxu0 %v3931
      %v4222 = vpop.f32.mrf.mxu0
      %v4223 = vadd.f32 0.0, %v4222
      %v4224 = vpop.f32.mrf.mxu0
      %v4225 = vadd.f32 0.0, %v4224
      %4226 = vmatmul.bf16.gmra.mxu0 %v3934
      %v4227 = vpop.f32.mrf.mxu0
      %v4228 = vadd.f32 0.0, %v4227
      %v4229 = vpop.f32.mrf.mxu0
      %v4230 = vadd.f32 0.0, %v4229
      %4231 = vmatmul.bf16.gmra.mxu0 %v3937
      %v4232 = vpop.f32.mrf.mxu0
      %v4233 = vadd.f32 0.0, %v4232
      %v4234 = vpop.f32.mrf.mxu0
      %v4235 = vadd.f32 0.0, %v4234
      %4236 = vmatmul.bf16.gmra.mxu0 %v3940
      %v4237 = vpop.f32.mrf.mxu0
      %v4238 = vadd.f32 0.0, %v4237
      %v4239 = vpop.f32.mrf.mxu0
      %v4240 = vadd.f32 0.0, %v4239
      %4241 = vmatmul.bf16.gmra.mxu0 %v3943
      %v4242 = vpop.f32.mrf.mxu0
      %v4243 = vadd.f32 0.0, %v4242
      %v4244 = vpop.f32.mrf.mxu0
      %v4245 = vadd.f32 0.0, %v4244
      %4246 = vmatmul.bf16.gmra.mxu0 %v3946
      %v4247 = vpop.f32.mrf.mxu0
      %v4248 = vadd.f32 0.0, %v4247
      %v4249 = vpop.f32.mrf.mxu0
      %v4250 = vadd.f32 0.0, %v4249
      %4251 = vmatmul.bf16.gmra.mxu0 %v3949
      %v4252 = vpop.f32.mrf.mxu0
      %v4253 = vadd.f32 0.0, %v4252
      %v4254 = vpop.f32.mrf.mxu0
      %v4255 = vadd.f32 0.0, %v4254
      %4256 = vmatmul.bf16.gmra.mxu0 %v3952
      %v4257 = vpop.f32.mrf.mxu0
      %v4258 = vadd.f32 0.0, %v4257
      %v4259 = vpop.f32.mrf.mxu0
      %v4260 = vadd.f32 0.0, %v4259
      %4261 = vmatmul.bf16.gmra.mxu0 %v3955
      %v4262 = vpop.f32.mrf.mxu0
      %v4263 = vadd.f32 0.0, %v4262
      %v4264 = vpop.f32.mrf.mxu0
      %v4265 = vadd.f32 0.0, %v4264
      %4266 = vmatmul.bf16.gmra.mxu0 %v3958
      %v4267 = vpop.f32.mrf.mxu0
      %v4268 = vadd.f32 0.0, %v4267
      %v4269 = vpop.f32.mrf.mxu0
      %v4270 = vadd.f32 0.0, %v4269
      %4271 = vmatmul.bf16.gmra.mxu0 %v3961
      %v4272 = vpop.f32.mrf.mxu0
      %v4273 = vadd.f32 0.0, %v4272
      %v4274 = vpop.f32.mrf.mxu0
      %v4275 = vadd.f32 0.0, %v4274
      %4276 = vmatmul.bf16.gmra.mxu0 %v3964
      %v4277 = vpop.f32.mrf.mxu0
      %v4278 = vadd.f32 0.0, %v4277
      %v4279 = vpop.f32.mrf.mxu0
      %v4280 = vadd.f32 0.0, %v4279
      %4281 = vmatmul.bf16.gmra.mxu0 %v3967
      %v4282 = vpop.f32.mrf.mxu0
      %v4283 = vadd.f32 0.0, %v4282
      %v4284 = vpop.f32.mrf.mxu0
      %v4285 = vadd.f32 0.0, %v4284
      %4286 = vmatmul.bf16.gmra.mxu0 %v3970
      %v4287 = vpop.f32.mrf.mxu0
      %v4288 = vadd.f32 0.0, %v4287
      %v4289 = vpop.f32.mrf.mxu0
      %v4290 = vadd.f32 0.0, %v4289
      %4291 = vmatmul.bf16.gmra.mxu0 %v3973
      %v4292 = vpop.f32.mrf.mxu0
      %v4293 = vadd.f32 0.0, %v4292
      %v4294 = vpop.f32.mrf.mxu0
      %v4295 = vadd.f32 0.0, %v4294
      %4296 = vmatmul.bf16.gmra.mxu0 %v3976
      %v4297 = vpop.f32.mrf.mxu0
      %v4298 = vadd.f32 0.0, %v4297
      %v4299 = vpop.f32.mrf.mxu0
      %v4300 = vadd.f32 0.0, %v4299
      %4301 = vmatmul.bf16.gmra.mxu0 %v3979
      %v4302 = vpop.f32.mrf.mxu0
      %v4303 = vadd.f32 0.0, %v4302
      %v4304 = vpop.f32.mrf.mxu0
      %v4305 = vadd.f32 0.0, %v4304
      %4306 = vmatmul.bf16.gmra.mxu0 %v3982
      %v4307 = vpop.f32.mrf.mxu0
      %v4308 = vadd.f32 0.0, %v4307
      %v4309 = vpop.f32.mrf.mxu0
      %4310 = vdwg.mxu0
      %4311 = vmatpush.bf16.msra.mxu0 %v4114
      %4312 = vmatpush.bf16.msra.mxu0 %v4113
      %4313 = vmatpush.bf16.msra.mxu0 %v4112
      %4314 = vmatpush.bf16.msra.mxu0 %v4111
      %4315 = vmatpush.bf16.msra.mxu0 %v4110
      %4316 = vmatpush.bf16.msra.mxu0 %v4109
      %4317 = vmatpush.bf16.msra.mxu0 %v4108
      %4318 = vmatpush.bf16.msra.mxu0 %v4107
      %4319 = vmatmul.bf16.gmra.mxu0 %v3923
      %v4320 = vpop.f32.mrf.mxu0
      %v4321 = vadd.f32 %v4208, %v4320
      %v4322 = vpop.f32.mrf.mxu0
      %v4323 = vadd.f32 %v4210, %v4322
      %4324 = vmatmul.bf16.gmra.mxu0 %v3926
      %v4325 = vpop.f32.mrf.mxu0
      %v4326 = vadd.f32 %v4213, %v4325
      %v4327 = vpop.f32.mrf.mxu0
      %v4328 = vadd.f32 %v4215, %v4327
      %4329 = vmatmul.bf16.gmra.mxu0 %v3929
      %v4330 = vpop.f32.mrf.mxu0
      %v4331 = vadd.f32 %v4218, %v4330
      %v4332 = vpop.f32.mrf.mxu0
      %v4333 = vadd.f32 %v4220, %v4332
      %4334 = vmatmul.bf16.gmra.mxu0 %v3932
      %v4335 = vpop.f32.mrf.mxu0
      %v4336 = vadd.f32 %v4223, %v4335
      %v4337 = vpop.f32.mrf.mxu0
      %v4338 = vadd.f32 %v4225, %v4337
      %4339 = vmatmul.bf16.gmra.mxu0 %v3935
      %v4340 = vpop.f32.mrf.mxu0
      %v4341 = vadd.f32 %v4228, %v4340
      %v4342 = vpop.f32.mrf.mxu0
      %v4343 = vadd.f32 %v4230, %v4342
      %4344 = vmatmul.bf16.gmra.mxu0 %v3938
      %v4345 = vpop.f32.mrf.mxu0
      %v4346 = vadd.f32 %v4233, %v4345
      %v4347 = vpop.f32.mrf.mxu0
      %v4348 = vadd.f32 %v4235, %v4347
      %4349 = vmatmul.bf16.gmra.mxu0 %v3941
      %v4350 = vpop.f32.mrf.mxu0
      %v4351 = vadd.f32 %v4238, %v4350
      %v4352 = vpop.f32.mrf.mxu0
      %v4353 = vadd.f32 %v4240, %v4352
      %4354 = vmatmul.bf16.gmra.mxu0 %v3944
      %v4355 = vpop.f32.mrf.mxu0
      %v4356 = vadd.f32 %v4243, %v4355
      %v4357 = vpop.f32.mrf.mxu0
      %v4358 = vadd.f32 %v4245, %v4357
      %4359 = vmatmul.bf16.gmra.mxu0 %v3947
      %v4360 = vpop.f32.mrf.mxu0
      %v4361 = vadd.f32 %v4248, %v4360
      %v4362 = vpop.f32.mrf.mxu0
      %v4363 = vadd.f32 %v4250, %v4362
      %4364 = vmatmul.bf16.gmra.mxu0 %v3950
      %v4365 = vpop.f32.mrf.mxu0
      %v4366 = vadd.f32 %v4253, %v4365
      %v4367 = vpop.f32.mrf.mxu0
      %v4368 = vadd.f32 %v4255, %v4367
      %4369 = vmatmul.bf16.gmra.mxu0 %v3953
      %v4370 = vpop.f32.mrf.mxu0
      %v4371 = vadd.f32 %v4258, %v4370
      %v4372 = vpop.f32.mrf.mxu0
      %v4373 = vadd.f32 %v4260, %v4372
      %4374 = vmatmul.bf16.gmra.mxu0 %v3956
      %v4375 = vpop.f32.mrf.mxu0
      %v4376 = vadd.f32 %v4263, %v4375
      %v4377 = vpop.f32.mrf.mxu0
      %v4378 = vadd.f32 %v4265, %v4377
      %4379 = vmatmul.bf16.gmra.mxu0 %v3959
      %v4380 = vpop.f32.mrf.mxu0
      %v4381 = vadd.f32 %v4268, %v4380
      %v4382 = vpop.f32.mrf.mxu0
      %v4383 = vadd.f32 %v4270, %v4382
      %4384 = vmatmul.bf16.gmra.mxu0 %v3962
      %v4385 = vpop.f32.mrf.mxu0
      %v4386 = vadd.f32 %v4273, %v4385
      %v4387 = vpop.f32.mrf.mxu0
      %v4388 = vadd.f32 %v4275, %v4387
      %4389 = vmatmul.bf16.gmra.mxu0 %v3965
      %v4390 = vpop.f32.mrf.mxu0
      %v4391 = vadd.f32 %v4278, %v4390
      %v4392 = vpop.f32.mrf.mxu0
      %v4393 = vadd.f32 %v4280, %v4392
      %4394 = vmatmul.bf16.gmra.mxu0 %v3968
      %v4395 = vpop.f32.mrf.mxu0
      %v4396 = vadd.f32 %v4283, %v4395
      %v4397 = vpop.f32.mrf.mxu0
      %v4398 = vadd.f32 %v4285, %v4397
      %4399 = vmatmul.bf16.gmra.mxu0 %v3971
      %v4400 = vpop.f32.mrf.mxu0
      %v4401 = vadd.f32 %v4288, %v4400
      %v4402 = vpop.f32.mrf.mxu0
      %v4403 = vadd.f32 %v4290, %v4402
      %4404 = vmatmul.bf16.gmra.mxu0 %v3974
      %v4405 = vpop.f32.mrf.mxu0
      %v4406 = vadd.f32 %v4293, %v4405
      %v4407 = vpop.f32.mrf.mxu0
      %v4408 = vadd.f32 %v4295, %v4407
      %4409 = vmatmul.bf16.gmra.mxu0 %v3977
      %v4410 = vpop.f32.mrf.mxu0
      %v4411 = vadd.f32 %v4298, %v4410
      %v4412 = vpop.f32.mrf.mxu0
      %v4413 = vadd.f32 %v4300, %v4412
      %4414 = vmatmul.bf16.gmra.mxu0 %v3980
      %v4415 = vpop.f32.mrf.mxu0
      %v4416 = vadd.f32 %v4303, %v4415
      %v4417 = vpop.f32.mrf.mxu0
      %v4418 = vadd.f32 %v4305, %v4417
      %4419 = vmatmul.bf16.gmra.mxu0 %v3983
      %v4420 = vpop.f32.mrf.mxu0
      %v4421 = vadd.f32 %v4308, %v4420
      %v4422 = vpop.f32.mrf.mxu0
      %4423 = vdwg.mxu0
      %4424 = vmatpush.bf16.msra.mxu0 0
      %4425 = vmatpush.bf16.msra.mxu0 0
      %4426 = vmatpush.bf16.msra.mxu0 0
      %4427 = vmatpush.bf16.msra.mxu0 0
      %4428 = vmatpush.bf16.msra.mxu0 0
      %4429 = vmatpush.bf16.msra.mxu0 0
      %4430 = vmatpush.bf16.msra.mxu0 %v4116
      %4431 = vmatpush.bf16.msra.mxu0 %v4115
      %4432 = vmatmul.bf16.gmra.mxu0 %v4136
      %v4433 = vpop.f32.mrf.mxu0
      %v4434 = vadd.f32 %v4321, %v4433
      %v4435 = vpop.f32.mrf.mxu0
      %v4436 = vadd.f32 %v4323, %v4435
      %4437 = vmatmul.bf16.gmra.mxu0 %v4139
      %v4438 = vpop.f32.mrf.mxu0
      %v4439 = vadd.f32 %v4326, %v4438
      %v4440 = vpop.f32.mrf.mxu0
      %v4441 = vadd.f32 %v4328, %v4440
      %4442 = vmatmul.bf16.gmra.mxu0 %v4142
      %v4443 = vpop.f32.mrf.mxu0
      %v4444 = vadd.f32 %v4331, %v4443
      %v4445 = vpop.f32.mrf.mxu0
      %v4446 = vadd.f32 %v4333, %v4445
      %4447 = vmatmul.bf16.gmra.mxu0 %v4145
      %v4448 = vpop.f32.mrf.mxu0
      %v4449 = vadd.f32 %v4336, %v4448
      %v4450 = vpop.f32.mrf.mxu0
      %v4451 = vadd.f32 %v4338, %v4450
      %4452 = vmatmul.bf16.gmra.mxu0 %v4148
      %v4453 = vpop.f32.mrf.mxu0
      %v4454 = vadd.f32 %v4341, %v4453
      %v4455 = vpop.f32.mrf.mxu0
      %v4456 = vadd.f32 %v4343, %v4455
      %4457 = vmatmul.bf16.gmra.mxu0 %v4151
      %v4458 = vpop.f32.mrf.mxu0
      %v4459 = vadd.f32 %v4346, %v4458
      %v4460 = vpop.f32.mrf.mxu0
      %v4461 = vadd.f32 %v4348, %v4460
      %4462 = vmatmul.bf16.gmra.mxu0 %v4154
      %v4463 = vpop.f32.mrf.mxu0
      %v4464 = vadd.f32 %v4351, %v4463
      %v4465 = vpop.f32.mrf.mxu0
      %v4466 = vadd.f32 %v4353, %v4465
      %4467 = vmatmul.bf16.gmra.mxu0 %v4157
      %v4468 = vpop.f32.mrf.mxu0
      %v4469 = vadd.f32 %v4356, %v4468
      %v4470 = vpop.f32.mrf.mxu0
      %v4471 = vadd.f32 %v4358, %v4470
      %4472 = vmatmul.bf16.gmra.mxu0 %v4160
      %v4473 = vpop.f32.mrf.mxu0
      %v4474 = vadd.f32 %v4361, %v4473
      %v4475 = vpop.f32.mrf.mxu0
      %v4476 = vadd.f32 %v4363, %v4475
      %4477 = vmatmul.bf16.gmra.mxu0 %v4163
      %v4478 = vpop.f32.mrf.mxu0
      %v4479 = vadd.f32 %v4366, %v4478
      %v4480 = vpop.f32.mrf.mxu0
      %v4481 = vadd.f32 %v4368, %v4480
      %4482 = vmatmul.bf16.gmra.mxu0 %v4166
      %v4483 = vpop.f32.mrf.mxu0
      %v4484 = vadd.f32 %v4371, %v4483
      %v4485 = vpop.f32.mrf.mxu0
      %v4486 = vadd.f32 %v4373, %v4485
      %4487 = vmatmul.bf16.gmra.mxu0 %v4169
      %v4488 = vpop.f32.mrf.mxu0
      %v4489 = vadd.f32 %v4376, %v4488
      %v4490 = vpop.f32.mrf.mxu0
      %v4491 = vadd.f32 %v4378, %v4490
      %4492 = vmatmul.bf16.gmra.mxu0 %v4172
      %v4493 = vpop.f32.mrf.mxu0
      %v4494 = vadd.f32 %v4381, %v4493
      %v4495 = vpop.f32.mrf.mxu0
      %v4496 = vadd.f32 %v4383, %v4495
      %4497 = vmatmul.bf16.gmra.mxu0 %v4175
      %v4498 = vpop.f32.mrf.mxu0
      %v4499 = vadd.f32 %v4386, %v4498
      %v4500 = vpop.f32.mrf.mxu0
      %v4501 = vadd.f32 %v4388, %v4500
      %4502 = vmatmul.bf16.gmra.mxu0 %v4178
      %v4503 = vpop.f32.mrf.mxu0
      %v4504 = vadd.f32 %v4391, %v4503
      %v4505 = vpop.f32.mrf.mxu0
      %v4506 = vadd.f32 %v4393, %v4505
      %4507 = vmatmul.bf16.gmra.mxu0 %v4181
      %v4508 = vpop.f32.mrf.mxu0
      %v4509 = vadd.f32 %v4396, %v4508
      %v4510 = vpop.f32.mrf.mxu0
      %v4511 = vadd.f32 %v4398, %v4510
      %4512 = vmatmul.bf16.gmra.mxu0 %v4184
      %v4513 = vpop.f32.mrf.mxu0
      %v4514 = vadd.f32 %v4401, %v4513
      %v4515 = vpop.f32.mrf.mxu0
      %v4516 = vadd.f32 %v4403, %v4515
      %4517 = vmatmul.bf16.gmra.mxu0 %v4187
      %v4518 = vpop.f32.mrf.mxu0
      %v4519 = vadd.f32 %v4406, %v4518
      %v4520 = vpop.f32.mrf.mxu0
      %v4521 = vadd.f32 %v4408, %v4520
      %4522 = vmatmul.bf16.gmra.mxu0 %v4190
      %v4523 = vpop.f32.mrf.mxu0
      %v4524 = vadd.f32 %v4411, %v4523
      %v4525 = vpop.f32.mrf.mxu0
      %v4526 = vadd.f32 %v4413, %v4525
      %4527 = vmatmul.bf16.gmra.mxu0 %v4193
      %v4528 = vpop.f32.mrf.mxu0
      %v4529 = vadd.f32 %v4416, %v4528
      %v4530 = vpop.f32.mrf.mxu0
      %v4531 = vadd.f32 %v4418, %v4530
      %4532 = vmatmul.bf16.gmra.mxu0 %v4196
      %v4533 = vpop.f32.mrf.mxu0
      %v4534 = vadd.f32 %v4421, %v4533
      %v4535 = vpop.f32.mrf.mxu0
      %4536 = vdwg.mxu0
      %4537 = vst.msk [vmem:[#allocation4] sm:$0xff] %vm496, %v4434
      %4538 = vst.msk [vmem:[#allocation4 + $0x8] sm:$0xff] %vm496, %v4436
      %4539 = vst.msk [vmem:[#allocation4 + $0x10] sm:$0xff] %vm496, %v4439
      %4540 = vst.msk [vmem:[#allocation4 + $0x18] sm:$0xff] %vm496, %v4441
      %4541 = vst.msk [vmem:[#allocation4 + $0x20] sm:$0xff] %vm496, %v4444
      %4542 = vst.msk [vmem:[#allocation4 + $0x28] sm:$0xff] %vm496, %v4446
      %4543 = vst.msk [vmem:[#allocation4 + $0x30] sm:$0xff] %vm496, %v4449
      %4544 = vst.msk [vmem:[#allocation4 + $0x38] sm:$0xff] %vm496, %v4451
      %4545 = vst.msk [vmem:[#allocation4 + $0x40] sm:$0xff] %vm496, %v4454
      %4546 = vst.msk [vmem:[#allocation4 + $0x48] sm:$0xff] %vm496, %v4456
      %4547 = vst.msk [vmem:[#allocation4 + $0x50] sm:$0xff] %vm496, %v4459
      %4548 = vst.msk [vmem:[#allocation4 + $0x58] sm:$0xff] %vm496, %v4461
      %4549 = vst.msk [vmem:[#allocation4 + $0x60] sm:$0xff] %vm496, %v4464
      %4550 = vst.msk [vmem:[#allocation4 + $0x68] sm:$0xff] %vm496, %v4466
      %4551 = vst.msk [vmem:[#allocation4 + $0x70] sm:$0xff] %vm496, %v4469
      %4552 = vst.msk [vmem:[#allocation4 + $0x78] sm:$0xff] %vm496, %v4471
      %4553 = vst.msk [vmem:[#allocation4 + $0x80] sm:$0xff] %vm496, %v4474
      %4554 = vst.msk [vmem:[#allocation4 + $0x88] sm:$0xff] %vm496, %v4476
      %4555 = vst.msk [vmem:[#allocation4 + $0x90] sm:$0xff] %vm496, %v4479
      %4556 = vst.msk [vmem:[#allocation4 + $0x98] sm:$0xff] %vm496, %v4481
      %4557 = vst.msk [vmem:[#allocation4 + $0xa0] sm:$0xff] %vm496, %v4484
      %4558 = vst.msk [vmem:[#allocation4 + $0xa8] sm:$0xff] %vm496, %v4486
      %4559 = vst.msk [vmem:[#allocation4 + $0xb0] sm:$0xff] %vm496, %v4489
      %4560 = vst.msk [vmem:[#allocation4 + $0xb8] sm:$0xff] %vm496, %v4491
      %4561 = vst.msk [vmem:[#allocation4 + $0xc0] sm:$0xff] %vm496, %v4494
      %4562 = vst.msk [vmem:[#allocation4 + $0xc8] sm:$0xff] %vm496, %v4496
      %4563 = vst.msk [vmem:[#allocation4 + $0xd0] sm:$0xff] %vm496, %v4499
      %4564 = vst.msk [vmem:[#allocation4 + $0xd8] sm:$0xff] %vm496, %v4501
      %4565 = vst.msk [vmem:[#allocation4 + $0xe0] sm:$0xff] %vm496, %v4504
      %4566 = vst.msk [vmem:[#allocation4 + $0xe8] sm:$0xff] %vm496, %v4506
      %4567 = vst.msk [vmem:[#allocation4 + $0xf0] sm:$0xff] %vm496, %v4509
      %4568 = vst.msk [vmem:[#allocation4 + $0xf8] sm:$0xff] %vm496, %v4511
      %4569 = vst.msk [vmem:[#allocation4 + $0x100] sm:$0xff] %vm496, %v4514
      %4570 = vst.msk [vmem:[#allocation4 + $0x108] sm:$0xff] %vm496, %v4516
      %4571 = vst.msk [vmem:[#allocation4 + $0x110] sm:$0xff] %vm496, %v4519
      %4572 = vst.msk [vmem:[#allocation4 + $0x118] sm:$0xff] %vm496, %v4521
      %4573 = vst.msk [vmem:[#allocation4 + $0x120] sm:$0xff] %vm496, %v4524
      %4574 = vst.msk [vmem:[#allocation4 + $0x128] sm:$0xff] %vm496, %v4526
      %4575 = vst.msk [vmem:[#allocation4 + $0x130] sm:$0xff] %vm496, %v4529
      %4576 = vst.msk [vmem:[#allocation4 + $0x138] sm:$0xff] %vm496, %v4531
      %4577 = vst.msk [vmem:[#allocation4 + $0x140] sm:$0xf] %vm1583, %v4534
      %v4578 = vld [vmem:[#allocation4] sm:$0xff]
      %v4579 = vld [vmem:[#allocation4 + $0x8] sm:$0xff]
      %v4580 = vld [vmem:[#allocation4 + $0x10] sm:$0xff]
      %v4581 = vld [vmem:[#allocation4 + $0x18] sm:$0xff]
      %v4582 = vld [vmem:[#allocation4 + $0x20] sm:$0xff]
      %v4583 = vld [vmem:[#allocation4 + $0x28] sm:$0xff]
      %v4584 = vld [vmem:[#allocation4 + $0x30] sm:$0xff]
      %v4585 = vld [vmem:[#allocation4 + $0x38] sm:$0xff]
      %v4586 = vld [vmem:[#allocation4 + $0x40] sm:$0xff]
      %v4587 = vld [vmem:[#allocation4 + $0x48] sm:$0xff]
      %v4588 = vld [vmem:[#allocation4 + $0x50] sm:$0xff]
      %v4589 = vld [vmem:[#allocation4 + $0x58] sm:$0xff]
      %v4590 = vld [vmem:[#allocation4 + $0x60] sm:$0xff]
      %v4591 = vld [vmem:[#allocation4 + $0x68] sm:$0xff]
      %v4592 = vld [vmem:[#allocation4 + $0x70] sm:$0xff]
      %v4593 = vld [vmem:[#allocation4 + $0x78] sm:$0xff]
      %v4594 = vld [vmem:[#allocation4 + $0x80] sm:$0xff]
      %v4595 = vld [vmem:[#allocation4 + $0x88] sm:$0xff]
      %v4596 = vld [vmem:[#allocation4 + $0x90] sm:$0xff]
      %v4597 = vld [vmem:[#allocation4 + $0x98] sm:$0xff]
      %v4598 = vld [vmem:[#allocation4 + $0xa0] sm:$0xff]
      %v4599 = vld [vmem:[#allocation4 + $0xa8] sm:$0xff]
      %v4600 = vld [vmem:[#allocation4 + $0xb0] sm:$0xff]
      %v4601 = vld [vmem:[#allocation4 + $0xb8] sm:$0xff]
      %v4602 = vld [vmem:[#allocation4 + $0xc0] sm:$0xff]
      %v4603 = vld [vmem:[#allocation4 + $0xc8] sm:$0xff]
      %v4604 = vld [vmem:[#allocation4 + $0xd0] sm:$0xff]
      %v4605 = vld [vmem:[#allocation4 + $0xd8] sm:$0xff]
      %v4606 = vld [vmem:[#allocation4 + $0xe0] sm:$0xff]
      %v4607 = vld [vmem:[#allocation4 + $0xe8] sm:$0xff]
      %v4608 = vld [vmem:[#allocation4 + $0xf0] sm:$0xff]
      %v4609 = vld [vmem:[#allocation4 + $0xf8] sm:$0xff]
      %v4610 = vld [vmem:[#allocation4 + $0x100] sm:$0xff]
      %v4611 = vld [vmem:[#allocation4 + $0x108] sm:$0xff]
      %v4612 = vld [vmem:[#allocation4 + $0x110] sm:$0xff]
      %v4613 = vld [vmem:[#allocation4 + $0x118] sm:$0xff]
      %v4614 = vld [vmem:[#allocation4 + $0x120] sm:$0xff]
      %v4615 = vld [vmem:[#allocation4 + $0x128] sm:$0xff]
      %v4616 = vld [vmem:[#allocation4 + $0x130] sm:$0xff]
      %v4617 = vld [vmem:[#allocation4 + $0x138] sm:$0xff]
      %v4618 = vld [vmem:[#allocation4 + $0x140] sm:$0xf]
      %v4619 = vld [vmem:[%s5] sm:$0x1]
      %v4621 = vperm.slane %v4619, 0
      %v4623 = vadd.f32 %v4578, %v4621
      %v4624 = vadd.f32 %v4579, %v4621
      %v4625 = vadd.f32 %v4580, %v4621
      %v4626 = vadd.f32 %v4581, %v4621
      %v4627 = vadd.f32 %v4582, %v4621
      %v4628 = vadd.f32 %v4583, %v4621
      %v4629 = vadd.f32 %v4584, %v4621
      %v4630 = vadd.f32 %v4585, %v4621
      %v4631 = vadd.f32 %v4586, %v4621
      %v4632 = vadd.f32 %v4587, %v4621
      %v4633 = vadd.f32 %v4588, %v4621
      %v4634 = vadd.f32 %v4589, %v4621
      %v4635 = vadd.f32 %v4590, %v4621
      %v4636 = vadd.f32 %v4591, %v4621
      %v4637 = vadd.f32 %v4592, %v4621
      %v4638 = vadd.f32 %v4593, %v4621
      %v4639 = vadd.f32 %v4594, %v4621
      %v4640 = vadd.f32 %v4595, %v4621
      %v4641 = vadd.f32 %v4596, %v4621
      %v4642 = vadd.f32 %v4597, %v4621
      %v4643 = vadd.f32 %v4598, %v4621
      %v4644 = vadd.f32 %v4599, %v4621
      %v4645 = vadd.f32 %v4600, %v4621
      %v4646 = vadd.f32 %v4601, %v4621
      %v4647 = vadd.f32 %v4602, %v4621
      %v4648 = vadd.f32 %v4603, %v4621
      %v4649 = vadd.f32 %v4604, %v4621
      %v4650 = vadd.f32 %v4605, %v4621
      %v4651 = vadd.f32 %v4606, %v4621
      %v4652 = vadd.f32 %v4607, %v4621
      %v4653 = vadd.f32 %v4608, %v4621
      %v4654 = vadd.f32 %v4609, %v4621
      %v4655 = vadd.f32 %v4610, %v4621
      %v4656 = vadd.f32 %v4611, %v4621
      %v4657 = vadd.f32 %v4612, %v4621
      %v4658 = vadd.f32 %v4613, %v4621
      %v4659 = vadd.f32 %v4614, %v4621
      %v4660 = vadd.f32 %v4615, %v4621
      %v4661 = vadd.f32 %v4616, %v4621
      %v4662 = vadd.f32 %v4617, %v4621
      %v4663 = vadd.f32 %v4618, %v4621
      %4665 = vset.pattern.permute.xlu0 0
      %4666 = vperm.xlu0 %4665, %v407
      %v4667 = vpop.permute.xlu0 %4666
      %4670 = vset.pattern.permute.xlu0 0
      %4671 = vperm.xlu0 %4670, %v408
      %v4672 = vpop.permute.xlu0 %4671
      %4675 = vset.pattern.permute.xlu0 0
      %4676 = vperm.xlu0 %4675, %v409
      %v4677 = vpop.permute.xlu0 %4676
      %4680 = vset.pattern.permute.xlu0 0
      %4681 = vperm.xlu0 %4680, %v410
      %v4682 = vpop.permute.xlu0 %4681
      %4685 = vset.pattern.permute.xlu0 0
      %4686 = vperm.xlu0 %4685, %v411
      %v4687 = vpop.permute.xlu0 %4686
      %4690 = vset.pattern.permute.xlu0 0
      %4691 = vperm.xlu0 %4690, %v412
      %v4692 = vpop.permute.xlu0 %4691
      %4695 = vset.pattern.permute.xlu0 0
      %4696 = vperm.xlu0 %4695, %v413
      %v4697 = vpop.permute.xlu0 %4696
      %4700 = vset.pattern.permute.xlu0 0
      %4701 = vperm.xlu0 %4700, %v414
      %v4702 = vpop.permute.xlu0 %4701
      %4705 = vset.pattern.permute.xlu0 0
      %4706 = vperm.xlu0 %4705, %v415
      %v4707 = vpop.permute.xlu0 %4706
      %4710 = vset.pattern.permute.xlu0 0
      %4711 = vperm.xlu0 %4710, %v416
      %v4712 = vpop.permute.xlu0 %4711
      %4715 = vset.pattern.permute.xlu0 0
      %4716 = vperm.xlu0 %4715, %v417
      %v4717 = vpop.permute.xlu0 %4716
      %4720 = vset.pattern.permute.xlu0 0
      %4721 = vperm.xlu0 %4720, %v418
      %v4722 = vpop.permute.xlu0 %4721
      %4725 = vset.pattern.permute.xlu0 0
      %4726 = vperm.xlu0 %4725, %v419
      %v4727 = vpop.permute.xlu0 %4726
      %4730 = vset.pattern.permute.xlu0 0
      %4731 = vperm.xlu0 %4730, %v420
      %v4732 = vpop.permute.xlu0 %4731
      %4735 = vset.pattern.permute.xlu0 0
      %4736 = vperm.xlu0 %4735, %v421
      %v4737 = vpop.permute.xlu0 %4736
      %4740 = vset.pattern.permute.xlu0 0
      %4741 = vperm.xlu0 %4740, %v422
      %v4742 = vpop.permute.xlu0 %4741
      %4745 = vset.pattern.permute.xlu0 0
      %4746 = vperm.xlu0 %4745, %v423
      %v4747 = vpop.permute.xlu0 %4746
      %4750 = vset.pattern.permute.xlu0 0
      %4751 = vperm.xlu0 %4750, %v424
      %v4752 = vpop.permute.xlu0 %4751
      %4755 = vset.pattern.permute.xlu0 0
      %4756 = vperm.xlu0 %4755, %v425
      %v4757 = vpop.permute.xlu0 %4756
      %4760 = vset.pattern.permute.xlu0 0
      %4761 = vperm.xlu0 %4760, %v426
      %v4762 = vpop.permute.xlu0 %4761
      %4765 = vset.pattern.permute.xlu0 0
      %4766 = vperm.xlu0 %4765, %v427
      %v4767 = vpop.permute.xlu0 %4766
      %4770 = vset.pattern.permute.xlu0 0
      %4771 = vperm.xlu0 %4770, %v428
      %v4772 = vpop.permute.xlu0 %4771
      %4775 = vset.pattern.permute.xlu0 0
      %4776 = vperm.xlu0 %4775, %v429
      %v4777 = vpop.permute.xlu0 %4776
      %4780 = vset.pattern.permute.xlu0 0
      %4781 = vperm.xlu0 %4780, %v430
      %v4782 = vpop.permute.xlu0 %4781
      %4785 = vset.pattern.permute.xlu0 0
      %4786 = vperm.xlu0 %4785, %v431
      %v4787 = vpop.permute.xlu0 %4786
      %4790 = vset.pattern.permute.xlu0 0
      %4791 = vperm.xlu0 %4790, %v432
      %v4792 = vpop.permute.xlu0 %4791
      %4795 = vset.pattern.permute.xlu0 0
      %4796 = vperm.xlu0 %4795, %v433
      %v4797 = vpop.permute.xlu0 %4796
      %4800 = vset.pattern.permute.xlu0 0
      %4801 = vperm.xlu0 %4800, %v434
      %v4802 = vpop.permute.xlu0 %4801
      %4805 = vset.pattern.permute.xlu0 0
      %4806 = vperm.xlu0 %4805, %v435
      %v4807 = vpop.permute.xlu0 %4806
      %4810 = vset.pattern.permute.xlu0 0
      %4811 = vperm.xlu0 %4810, %v436
      %v4812 = vpop.permute.xlu0 %4811
      %4815 = vset.pattern.permute.xlu0 0
      %4816 = vperm.xlu0 %4815, %v437
      %v4817 = vpop.permute.xlu0 %4816
      %4820 = vset.pattern.permute.xlu0 0
      %4821 = vperm.xlu0 %4820, %v438
      %v4822 = vpop.permute.xlu0 %4821
      %4825 = vset.pattern.permute.xlu0 0
      %4826 = vperm.xlu0 %4825, %v439
      %v4827 = vpop.permute.xlu0 %4826
      %4830 = vset.pattern.permute.xlu0 0
      %4831 = vperm.xlu0 %4830, %v440
      %v4832 = vpop.permute.xlu0 %4831
      %4835 = vset.pattern.permute.xlu0 0
      %4836 = vperm.xlu0 %4835, %v441
      %v4837 = vpop.permute.xlu0 %4836
      %4840 = vset.pattern.permute.xlu0 0
      %4841 = vperm.xlu0 %4840, %v442
      %v4842 = vpop.permute.xlu0 %4841
      %4845 = vset.pattern.permute.xlu0 0
      %4846 = vperm.xlu0 %4845, %v443
      %v4847 = vpop.permute.xlu0 %4846
      %4850 = vset.pattern.permute.xlu0 0
      %4851 = vperm.xlu0 %4850, %v444
      %v4852 = vpop.permute.xlu0 %4851
      %4855 = vset.pattern.permute.xlu0 0
      %4856 = vperm.xlu0 %4855, %v445
      %v4857 = vpop.permute.xlu0 %4856
      %4860 = vset.pattern.permute.xlu0 0
      %4861 = vperm.xlu0 %4860, %v446
      %v4862 = vpop.permute.xlu0 %4861
      %4865 = vset.pattern.permute.xlu0 0
      %4866 = vperm.xlu0 %4865, %v447
      %v4867 = vpop.permute.xlu0 %4866
      %v4869 = vmul.f32 %v4623, %v4667
      %v4870 = vmul.f32 %v4624, %v4672
      %v4871 = vmul.f32 %v4625, %v4677
      %v4872 = vmul.f32 %v4626, %v4682
      %v4873 = vmul.f32 %v4627, %v4687
      %v4874 = vmul.f32 %v4628, %v4692
      %v4875 = vmul.f32 %v4629, %v4697
      %v4876 = vmul.f32 %v4630, %v4702
      %v4877 = vmul.f32 %v4631, %v4707
      %v4878 = vmul.f32 %v4632, %v4712
      %v4879 = vmul.f32 %v4633, %v4717
      %v4880 = vmul.f32 %v4634, %v4722
      %v4881 = vmul.f32 %v4635, %v4727
      %v4882 = vmul.f32 %v4636, %v4732
      %v4883 = vmul.f32 %v4637, %v4737
      %v4884 = vmul.f32 %v4638, %v4742
      %v4885 = vmul.f32 %v4639, %v4747
      %v4886 = vmul.f32 %v4640, %v4752
      %v4887 = vmul.f32 %v4641, %v4757
      %v4888 = vmul.f32 %v4642, %v4762
      %v4889 = vmul.f32 %v4643, %v4767
      %v4890 = vmul.f32 %v4644, %v4772
      %v4891 = vmul.f32 %v4645, %v4777
      %v4892 = vmul.f32 %v4646, %v4782
      %v4893 = vmul.f32 %v4647, %v4787
      %v4894 = vmul.f32 %v4648, %v4792
      %v4895 = vmul.f32 %v4649, %v4797
      %v4896 = vmul.f32 %v4650, %v4802
      %v4897 = vmul.f32 %v4651, %v4807
      %v4898 = vmul.f32 %v4652, %v4812
      %v4899 = vmul.f32 %v4653, %v4817
      %v4900 = vmul.f32 %v4654, %v4822
      %v4901 = vmul.f32 %v4655, %v4827
      %v4902 = vmul.f32 %v4656, %v4832
      %v4903 = vmul.f32 %v4657, %v4837
      %v4904 = vmul.f32 %v4658, %v4842
      %v4905 = vmul.f32 %v4659, %v4847
      %v4906 = vmul.f32 %v4660, %v4852
      %v4907 = vmul.f32 %v4661, %v4857
      %v4908 = vmul.f32 %v4662, %v4862
      %v4909 = vmul.f32 %v4663, %v4867
      %v4910 = vld [vmem:[%s6] sm:$0x1]
      %v4911 = vld [vmem:[%s7] sm:$0x1]
      %v4912 = vsel %vm496, %v4869, 0.0
      %4913 = vadd.xlane.f32.xlu0 %v4912
      %v4914 = vpop.xlane.xlu0 %4913
      %v4915 = vsel %vm496, %v4870, 0.0
      %4916 = vadd.xlane.f32.xlu0 %v4915
      %v4917 = vpop.xlane.xlu0 %4916
      %v4918 = vsel %vm496, %v4871, 0.0
      %4919 = vadd.xlane.f32.xlu0 %v4918
      %v4920 = vpop.xlane.xlu0 %4919
      %v4921 = vsel %vm496, %v4872, 0.0
      %4922 = vadd.xlane.f32.xlu0 %v4921
      %v4923 = vpop.xlane.xlu0 %4922
      %v4924 = vsel %vm496, %v4873, 0.0
      %4925 = vadd.xlane.f32.xlu0 %v4924
      %v4926 = vpop.xlane.xlu0 %4925
      %v4927 = vsel %vm496, %v4874, 0.0
      %4928 = vadd.xlane.f32.xlu0 %v4927
      %v4929 = vpop.xlane.xlu0 %4928
      %v4930 = vsel %vm496, %v4875, 0.0
      %4931 = vadd.xlane.f32.xlu0 %v4930
      %v4932 = vpop.xlane.xlu0 %4931
      %v4933 = vsel %vm496, %v4876, 0.0
      %4934 = vadd.xlane.f32.xlu0 %v4933
      %v4935 = vpop.xlane.xlu0 %4934
      %v4936 = vsel %vm496, %v4877, 0.0
      %4937 = vadd.xlane.f32.xlu0 %v4936
      %v4938 = vpop.xlane.xlu0 %4937
      %v4939 = vsel %vm496, %v4878, 0.0
      %4940 = vadd.xlane.f32.xlu0 %v4939
      %v4941 = vpop.xlane.xlu0 %4940
      %v4942 = vsel %vm496, %v4879, 0.0
      %4943 = vadd.xlane.f32.xlu0 %v4942
      %v4944 = vpop.xlane.xlu0 %4943
      %v4945 = vsel %vm496, %v4880, 0.0
      %4946 = vadd.xlane.f32.xlu0 %v4945
      %v4947 = vpop.xlane.xlu0 %4946
      %v4948 = vsel %vm496, %v4881, 0.0
      %4949 = vadd.xlane.f32.xlu0 %v4948
      %v4950 = vpop.xlane.xlu0 %4949
      %v4951 = vsel %vm496, %v4882, 0.0
      %4952 = vadd.xlane.f32.xlu0 %v4951
      %v4953 = vpop.xlane.xlu0 %4952
      %v4954 = vsel %vm496, %v4883, 0.0
      %4955 = vadd.xlane.f32.xlu0 %v4954
      %v4956 = vpop.xlane.xlu0 %4955
      %v4957 = vsel %vm496, %v4884, 0.0
      %4958 = vadd.xlane.f32.xlu0 %v4957
      %v4959 = vpop.xlane.xlu0 %4958
      %v4960 = vsel %vm496, %v4885, 0.0
      %4961 = vadd.xlane.f32.xlu0 %v4960
      %v4962 = vpop.xlane.xlu0 %4961
      %v4963 = vsel %vm496, %v4886, 0.0
      %4964 = vadd.xlane.f32.xlu0 %v4963
      %v4965 = vpop.xlane.xlu0 %4964
      %v4966 = vsel %vm496, %v4887, 0.0
      %4967 = vadd.xlane.f32.xlu0 %v4966
      %v4968 = vpop.xlane.xlu0 %4967
      %v4969 = vsel %vm496, %v4888, 0.0
      %4970 = vadd.xlane.f32.xlu0 %v4969
      %v4971 = vpop.xlane.xlu0 %4970
      %v4972 = vsel %vm496, %v4889, 0.0
      %4973 = vadd.xlane.f32.xlu0 %v4972
      %v4974 = vpop.xlane.xlu0 %4973
      %v4975 = vsel %vm496, %v4890, 0.0
      %4976 = vadd.xlane.f32.xlu0 %v4975
      %v4977 = vpop.xlane.xlu0 %4976
      %v4978 = vsel %vm496, %v4891, 0.0
      %4979 = vadd.xlane.f32.xlu0 %v4978
      %v4980 = vpop.xlane.xlu0 %4979
      %v4981 = vsel %vm496, %v4892, 0.0
      %4982 = vadd.xlane.f32.xlu0 %v4981
      %v4983 = vpop.xlane.xlu0 %4982
      %v4984 = vsel %vm496, %v4893, 0.0
      %4985 = vadd.xlane.f32.xlu0 %v4984
      %v4986 = vpop.xlane.xlu0 %4985
      %v4987 = vsel %vm496, %v4894, 0.0
      %4988 = vadd.xlane.f32.xlu0 %v4987
      %v4989 = vpop.xlane.xlu0 %4988
      %v4990 = vsel %vm496, %v4895, 0.0
      %4991 = vadd.xlane.f32.xlu0 %v4990
      %v4992 = vpop.xlane.xlu0 %4991
      %v4993 = vsel %vm496, %v4896, 0.0
      %4994 = vadd.xlane.f32.xlu0 %v4993
      %v4995 = vpop.xlane.xlu0 %4994
      %v4996 = vsel %vm496, %v4897, 0.0
      %4997 = vadd.xlane.f32.xlu0 %v4996
      %v4998 = vpop.xlane.xlu0 %4997
      %v4999 = vsel %vm496, %v4898, 0.0
      %5000 = vadd.xlane.f32.xlu0 %v4999
      %v5001 = vpop.xlane.xlu0 %5000
      %v5002 = vsel %vm496, %v4899, 0.0
      %5003 = vadd.xlane.f32.xlu0 %v5002
      %v5004 = vpop.xlane.xlu0 %5003
      %v5005 = vsel %vm496, %v4900, 0.0
      %5006 = vadd.xlane.f32.xlu0 %v5005
      %v5007 = vpop.xlane.xlu0 %5006
      %v5008 = vsel %vm496, %v4901, 0.0
      %5009 = vadd.xlane.f32.xlu0 %v5008
      %v5010 = vpop.xlane.xlu0 %5009
      %v5011 = vsel %vm496, %v4902, 0.0
      %5012 = vadd.xlane.f32.xlu0 %v5011
      %v5013 = vpop.xlane.xlu0 %5012
      %v5014 = vsel %vm496, %v4903, 0.0
      %5015 = vadd.xlane.f32.xlu0 %v5014
      %v5016 = vpop.xlane.xlu0 %5015
      %v5017 = vsel %vm496, %v4904, 0.0
      %5018 = vadd.xlane.f32.xlu0 %v5017
      %v5019 = vpop.xlane.xlu0 %5018
      %v5020 = vsel %vm496, %v4905, 0.0
      %5021 = vadd.xlane.f32.xlu0 %v5020
      %v5022 = vpop.xlane.xlu0 %5021
      %v5023 = vsel %vm496, %v4906, 0.0
      %5024 = vadd.xlane.f32.xlu0 %v5023
      %v5025 = vpop.xlane.xlu0 %5024
      %v5026 = vsel %vm496, %v4907, 0.0
      %5027 = vadd.xlane.f32.xlu0 %v5026
      %v5028 = vpop.xlane.xlu0 %5027
      %v5029 = vsel %vm496, %v4908, 0.0
      %5030 = vadd.xlane.f32.xlu0 %v5029
      %v5031 = vpop.xlane.xlu0 %5030
      %v5032 = vsel %vm1583, %v4909, 0.0
      %5033 = vadd.xlane.f32.xlu0 %v5032
      %v5034 = vpop.xlane.xlu0 %5033
      %v5035 = vadd.f32 %v4914, %v4917
      %v5036 = vadd.f32 %v5035, %v4920
      %v5037 = vadd.f32 %v5036, %v4923
      %v5038 = vadd.f32 %v5037, %v4926
      %v5039 = vadd.f32 %v5038, %v4929
      %v5040 = vadd.f32 %v5039, %v4932
      %v5041 = vadd.f32 %v5040, %v4935
      %v5042 = vadd.f32 %v5041, %v4938
      %v5043 = vadd.f32 %v5042, %v4941
      %v5044 = vadd.f32 %v5043, %v4944
      %v5045 = vadd.f32 %v5044, %v4947
      %v5046 = vadd.f32 %v5045, %v4950
      %v5047 = vadd.f32 %v5046, %v4953
      %v5048 = vadd.f32 %v5047, %v4956
      %v5049 = vadd.f32 %v5048, %v4959
      %v5050 = vadd.f32 %v5049, %v4962
      %v5051 = vadd.f32 %v5050, %v4965
      %v5052 = vadd.f32 %v5051, %v4968
      %v5053 = vadd.f32 %v5052, %v4971
      %v5054 = vadd.f32 %v5053, %v4974
      %v5055 = vadd.f32 %v5054, %v4977
      %v5056 = vadd.f32 %v5055, %v4980
      %v5057 = vadd.f32 %v5056, %v4983
      %v5058 = vadd.f32 %v5057, %v4986
      %v5059 = vadd.f32 %v5058, %v4989
      %v5060 = vadd.f32 %v5059, %v4992
      %v5061 = vadd.f32 %v5060, %v4995
      %v5062 = vadd.f32 %v5061, %v4998
      %v5063 = vadd.f32 %v5062, %v5001
      %v5064 = vadd.f32 %v5063, %v5004
      %v5065 = vadd.f32 %v5064, %v5007
      %v5066 = vadd.f32 %v5065, %v5010
      %v5067 = vadd.f32 %v5066, %v5013
      %v5068 = vadd.f32 %v5067, %v5016
      %v5069 = vadd.f32 %v5068, %v5019
      %v5070 = vadd.f32 %v5069, %v5022
      %v5071 = vadd.f32 %v5070, %v5025
      %v5072 = vadd.f32 %v5071, %v5028
      %v5073 = vadd.f32 %v5072, %v5031
      %vm5074 = vcmask 1043456
      %v5075 = vsel %vm5074, %v5034, 0.0
      %v5076 = vadd.f32 %v5073, %v5075
      %v5077 = vrot.slane %v5076, 4
      %v5078 = vadd.f32 %v5076, %v5077
      %v5079 = vrot.slane %v5078, 2
      %v5080 = vadd.f32 %v5078, %v5079
      %v5081 = vrot.slane %v5080, 1
      %v5082 = vadd.f32 %v5080, %v5081
      %v5083 = vmul.f32 %v4869, %v4869
      %v5084 = vmul.f32 %v4870, %v4870
      %v5085 = vmul.f32 %v4871, %v4871
      %v5086 = vmul.f32 %v4872, %v4872
      %v5087 = vmul.f32 %v4873, %v4873
      %v5088 = vmul.f32 %v4874, %v4874
      %v5089 = vmul.f32 %v4875, %v4875
      %v5090 = vmul.f32 %v4876, %v4876
      %v5091 = vmul.f32 %v4877, %v4877
      %v5092 = vmul.f32 %v4878, %v4878
      %v5093 = vmul.f32 %v4879, %v4879
      %v5094 = vmul.f32 %v4880, %v4880
      %v5095 = vmul.f32 %v4881, %v4881
      %v5096 = vmul.f32 %v4882, %v4882
      %v5097 = vmul.f32 %v4883, %v4883
      %v5098 = vmul.f32 %v4884, %v4884
      %v5099 = vmul.f32 %v4885, %v4885
      %v5100 = vmul.f32 %v4886, %v4886
      %v5101 = vmul.f32 %v4887, %v4887
      %v5102 = vmul.f32 %v4888, %v4888
      %v5103 = vmul.f32 %v4889, %v4889
      %v5104 = vmul.f32 %v4890, %v4890
      %v5105 = vmul.f32 %v4891, %v4891
      %v5106 = vmul.f32 %v4892, %v4892
      %v5107 = vmul.f32 %v4893, %v4893
      %v5108 = vmul.f32 %v4894, %v4894
      %v5109 = vmul.f32 %v4895, %v4895
      %v5110 = vmul.f32 %v4896, %v4896
      %v5111 = vmul.f32 %v4897, %v4897
      %v5112 = vmul.f32 %v4898, %v4898
      %v5113 = vmul.f32 %v4899, %v4899
      %v5114 = vmul.f32 %v4900, %v4900
      %v5115 = vmul.f32 %v4901, %v4901
      %v5116 = vmul.f32 %v4902, %v4902
      %v5117 = vmul.f32 %v4903, %v4903
      %v5118 = vmul.f32 %v4904, %v4904
      %v5119 = vmul.f32 %v4905, %v4905
      %v5120 = vmul.f32 %v4906, %v4906
      %v5121 = vmul.f32 %v4907, %v4907
      %v5122 = vmul.f32 %v4908, %v4908
      %v5123 = vmul.f32 %v4909, %v4909
      %v5124 = vsel %vm496, %v5083, 0.0
      %5125 = vadd.xlane.f32.xlu0 %v5124
      %v5126 = vpop.xlane.xlu0 %5125
      %v5127 = vsel %vm496, %v5084, 0.0
      %5128 = vadd.xlane.f32.xlu0 %v5127
      %v5129 = vpop.xlane.xlu0 %5128
      %v5130 = vsel %vm496, %v5085, 0.0
      %5131 = vadd.xlane.f32.xlu0 %v5130
      %v5132 = vpop.xlane.xlu0 %5131
      %v5133 = vsel %vm496, %v5086, 0.0
      %5134 = vadd.xlane.f32.xlu0 %v5133
      %v5135 = vpop.xlane.xlu0 %5134
      %v5136 = vsel %vm496, %v5087, 0.0
      %5137 = vadd.xlane.f32.xlu0 %v5136
      %v5138 = vpop.xlane.xlu0 %5137
      %v5139 = vsel %vm496, %v5088, 0.0
      %5140 = vadd.xlane.f32.xlu0 %v5139
      %v5141 = vpop.xlane.xlu0 %5140
      %v5142 = vsel %vm496, %v5089, 0.0
      %5143 = vadd.xlane.f32.xlu0 %v5142
      %v5144 = vpop.xlane.xlu0 %5143
      %v5145 = vsel %vm496, %v5090, 0.0
      %5146 = vadd.xlane.f32.xlu0 %v5145
      %v5147 = vpop.xlane.xlu0 %5146
      %v5148 = vsel %vm496, %v5091, 0.0
      %5149 = vadd.xlane.f32.xlu0 %v5148
      %v5150 = vpop.xlane.xlu0 %5149
      %v5151 = vsel %vm496, %v5092, 0.0
      %5152 = vadd.xlane.f32.xlu0 %v5151
      %v5153 = vpop.xlane.xlu0 %5152
      %v5154 = vsel %vm496, %v5093, 0.0
      %5155 = vadd.xlane.f32.xlu0 %v5154
      %v5156 = vpop.xlane.xlu0 %5155
      %v5157 = vsel %vm496, %v5094, 0.0
      %5158 = vadd.xlane.f32.xlu0 %v5157
      %v5159 = vpop.xlane.xlu0 %5158
      %v5160 = vsel %vm496, %v5095, 0.0
      %5161 = vadd.xlane.f32.xlu0 %v5160
      %v5162 = vpop.xlane.xlu0 %5161
      %v5163 = vsel %vm496, %v5096, 0.0
      %5164 = vadd.xlane.f32.xlu0 %v5163
      %v5165 = vpop.xlane.xlu0 %5164
      %v5166 = vsel %vm496, %v5097, 0.0
      %5167 = vadd.xlane.f32.xlu0 %v5166
      %v5168 = vpop.xlane.xlu0 %5167
      %v5169 = vsel %vm496, %v5098, 0.0
      %5170 = vadd.xlane.f32.xlu0 %v5169
      %v5171 = vpop.xlane.xlu0 %5170
      %v5172 = vsel %vm496, %v5099, 0.0
      %5173 = vadd.xlane.f32.xlu0 %v5172
      %v5174 = vpop.xlane.xlu0 %5173
      %v5175 = vsel %vm496, %v5100, 0.0
      %5176 = vadd.xlane.f32.xlu0 %v5175
      %v5177 = vpop.xlane.xlu0 %5176
      %v5178 = vsel %vm496, %v5101, 0.0
      %5179 = vadd.xlane.f32.xlu0 %v5178
      %v5180 = vpop.xlane.xlu0 %5179
      %v5181 = vsel %vm496, %v5102, 0.0
      %5182 = vadd.xlane.f32.xlu0 %v5181
      %v5183 = vpop.xlane.xlu0 %5182
      %v5184 = vsel %vm496, %v5103, 0.0
      %5185 = vadd.xlane.f32.xlu0 %v5184
      %v5186 = vpop.xlane.xlu0 %5185
      %v5187 = vsel %vm496, %v5104, 0.0
      %5188 = vadd.xlane.f32.xlu0 %v5187
      %v5189 = vpop.xlane.xlu0 %5188
      %v5190 = vsel %vm496, %v5105, 0.0
      %5191 = vadd.xlane.f32.xlu0 %v5190
      %v5192 = vpop.xlane.xlu0 %5191
      %v5193 = vsel %vm496, %v5106, 0.0
      %5194 = vadd.xlane.f32.xlu0 %v5193
      %v5195 = vpop.xlane.xlu0 %5194
      %v5196 = vsel %vm496, %v5107, 0.0
      %5197 = vadd.xlane.f32.xlu0 %v5196
      %v5198 = vpop.xlane.xlu0 %5197
      %v5199 = vsel %vm496, %v5108, 0.0
      %5200 = vadd.xlane.f32.xlu0 %v5199
      %v5201 = vpop.xlane.xlu0 %5200
      %v5202 = vsel %vm496, %v5109, 0.0
      %5203 = vadd.xlane.f32.xlu0 %v5202
      %v5204 = vpop.xlane.xlu0 %5203
      %v5205 = vsel %vm496, %v5110, 0.0
      %5206 = vadd.xlane.f32.xlu0 %v5205
      %v5207 = vpop.xlane.xlu0 %5206
      %v5208 = vsel %vm496, %v5111, 0.0
      %5209 = vadd.xlane.f32.xlu0 %v5208
      %v5210 = vpop.xlane.xlu0 %5209
      %v5211 = vsel %vm496, %v5112, 0.0
      %5212 = vadd.xlane.f32.xlu0 %v5211
      %v5213 = vpop.xlane.xlu0 %5212
      %v5214 = vsel %vm496, %v5113, 0.0
      %5215 = vadd.xlane.f32.xlu0 %v5214
      %v5216 = vpop.xlane.xlu0 %5215
      %v5217 = vsel %vm496, %v5114, 0.0
      %5218 = vadd.xlane.f32.xlu0 %v5217
      %v5219 = vpop.xlane.xlu0 %5218
      %v5220 = vsel %vm496, %v5115, 0.0
      %5221 = vadd.xlane.f32.xlu0 %v5220
      %v5222 = vpop.xlane.xlu0 %5221
      %v5223 = vsel %vm496, %v5116, 0.0
      %5224 = vadd.xlane.f32.xlu0 %v5223
      %v5225 = vpop.xlane.xlu0 %5224
      %v5226 = vsel %vm496, %v5117, 0.0
      %5227 = vadd.xlane.f32.xlu0 %v5226
      %v5228 = vpop.xlane.xlu0 %5227
      %v5229 = vsel %vm496, %v5118, 0.0
      %5230 = vadd.xlane.f32.xlu0 %v5229
      %v5231 = vpop.xlane.xlu0 %5230
      %v5232 = vsel %vm496, %v5119, 0.0
      %5233 = vadd.xlane.f32.xlu0 %v5232
      %v5234 = vpop.xlane.xlu0 %5233
      %v5235 = vsel %vm496, %v5120, 0.0
      %5236 = vadd.xlane.f32.xlu0 %v5235
      %v5237 = vpop.xlane.xlu0 %5236
      %v5238 = vsel %vm496, %v5121, 0.0
      %5239 = vadd.xlane.f32.xlu0 %v5238
      %v5240 = vpop.xlane.xlu0 %5239
      %v5241 = vsel %vm496, %v5122, 0.0
      %5242 = vadd.xlane.f32.xlu0 %v5241
      %v5243 = vpop.xlane.xlu0 %5242
      %v5244 = vsel %vm1583, %v5123, 0.0
      %5245 = vadd.xlane.f32.xlu0 %v5244
      %v5246 = vpop.xlane.xlu0 %5245
      %v5247 = vadd.f32 %v5126, %v5129
      %v5248 = vadd.f32 %v5247, %v5132
      %v5249 = vadd.f32 %v5248, %v5135
      %v5250 = vadd.f32 %v5249, %v5138
      %v5251 = vadd.f32 %v5250, %v5141
      %v5252 = vadd.f32 %v5251, %v5144
      %v5253 = vadd.f32 %v5252, %v5147
      %v5254 = vadd.f32 %v5253, %v5150
      %v5255 = vadd.f32 %v5254, %v5153
      %v5256 = vadd.f32 %v5255, %v5156
      %v5257 = vadd.f32 %v5256, %v5159
      %v5258 = vadd.f32 %v5257, %v5162
      %v5259 = vadd.f32 %v5258, %v5165
      %v5260 = vadd.f32 %v5259, %v5168
      %v5261 = vadd.f32 %v5260, %v5171
      %v5262 = vadd.f32 %v5261, %v5174
      %v5263 = vadd.f32 %v5262, %v5177
      %v5264 = vadd.f32 %v5263, %v5180
      %v5265 = vadd.f32 %v5264, %v5183
      %v5266 = vadd.f32 %v5265, %v5186
      %v5267 = vadd.f32 %v5266, %v5189
      %v5268 = vadd.f32 %v5267, %v5192
      %v5269 = vadd.f32 %v5268, %v5195
      %v5270 = vadd.f32 %v5269, %v5198
      %v5271 = vadd.f32 %v5270, %v5201
      %v5272 = vadd.f32 %v5271, %v5204
      %v5273 = vadd.f32 %v5272, %v5207
      %v5274 = vadd.f32 %v5273, %v5210
      %v5275 = vadd.f32 %v5274, %v5213
      %v5276 = vadd.f32 %v5275, %v5216
      %v5277 = vadd.f32 %v5276, %v5219
      %v5278 = vadd.f32 %v5277, %v5222
      %v5279 = vadd.f32 %v5278, %v5225
      %v5280 = vadd.f32 %v5279, %v5228
      %v5281 = vadd.f32 %v5280, %v5231
      %v5282 = vadd.f32 %v5281, %v5234
      %v5283 = vadd.f32 %v5282, %v5237
      %v5284 = vadd.f32 %v5283, %v5240
      %v5285 = vadd.f32 %v5284, %v5243
      %v5286 = vsel %vm5074, %v5246, 0.0
      %v5287 = vadd.f32 %v5285, %v5286
      %v5288 = vrot.slane %v5287, 4
      %v5289 = vadd.f32 %v5287, %v5288
      %v5290 = vrot.slane %v5289, 2
      %v5291 = vadd.f32 %v5289, %v5290
      %v5292 = vrot.slane %v5291, 1
      %v5293 = vadd.f32 %v5291, %v5292
      %v5294 = vmul.f32 %v5082, 0.00012207031
      %v5295 = vmul.f32 %v5293, 0.00012207031
      %v5296 = vmul.f32 %v5294, %v5294
      %v5297 = vsub.f32 %v5295, %v5296
      %v5298 = vadd.f32 %v5297, 1e-05
      %v5299 = vrsqrt.pop %v5298
      %v5300 = vmul.f32 %v5299, %v5298
      %v5301 = vmul.f32 %v5300, %v5299
      %v5302 = vmul.f32 0.5, %v5301
      %v5303 = vsub.f32 1.5, %v5302
      %v5304 = vmul.f32 %v5299, %v5303
      %vm5305 = vweird.f32 %v5298
      %vm5306 = vweird.f32 %v5299
      %vm5307 = vmor %vm5305, %vm5306
      %v5308 = vsel %vm5307, %v5299, %v5304
      %v5309 = vmul.f32 %v5308, %v4910
      %v5310 = vmul.f32 %v5294, %v5309
      %v5311 = vsub.f32 %v4911, %v5310
      %v5313 = vperm.slane %v5309, 0
      %v5315 = vmul.f32 %v4869, %v5313
      %v5316 = vmul.f32 %v4870, %v5313
      %v5317 = vmul.f32 %v4871, %v5313
      %v5318 = vmul.f32 %v4872, %v5313
      %v5319 = vmul.f32 %v4873, %v5313
      %v5320 = vmul.f32 %v4874, %v5313
      %v5321 = vmul.f32 %v4875, %v5313
      %v5322 = vmul.f32 %v4876, %v5313
      %v5323 = vmul.f32 %v4877, %v5313
      %v5324 = vmul.f32 %v4878, %v5313
      %v5325 = vmul.f32 %v4879, %v5313
      %v5326 = vmul.f32 %v4880, %v5313
      %v5327 = vmul.f32 %v4881, %v5313
      %v5328 = vmul.f32 %v4882, %v5313
      %v5329 = vmul.f32 %v4883, %v5313
      %v5330 = vmul.f32 %v4884, %v5313
      %v5331 = vmul.f32 %v4885, %v5313
      %v5332 = vmul.f32 %v4886, %v5313
      %v5333 = vmul.f32 %v4887, %v5313
      %v5334 = vmul.f32 %v4888, %v5313
      %v5335 = vmul.f32 %v4889, %v5313
      %v5336 = vmul.f32 %v4890, %v5313
      %v5337 = vmul.f32 %v4891, %v5313
      %v5338 = vmul.f32 %v4892, %v5313
      %v5339 = vmul.f32 %v4893, %v5313
      %v5340 = vmul.f32 %v4894, %v5313
      %v5341 = vmul.f32 %v4895, %v5313
      %v5342 = vmul.f32 %v4896, %v5313
      %v5343 = vmul.f32 %v4897, %v5313
      %v5344 = vmul.f32 %v4898, %v5313
      %v5345 = vmul.f32 %v4899, %v5313
      %v5346 = vmul.f32 %v4900, %v5313
      %v5347 = vmul.f32 %v4901, %v5313
      %v5348 = vmul.f32 %v4902, %v5313
      %v5349 = vmul.f32 %v4903, %v5313
      %v5350 = vmul.f32 %v4904, %v5313
      %v5351 = vmul.f32 %v4905, %v5313
      %v5352 = vmul.f32 %v4906, %v5313
      %v5353 = vmul.f32 %v4907, %v5313
      %v5354 = vmul.f32 %v4908, %v5313
      %v5355 = vmul.f32 %v4909, %v5313
      %v5357 = vperm.slane %v5311, 0
      %v5359 = vadd.f32 %v5315, %v5357
      %v5360 = vadd.f32 %v5316, %v5357
      %v5361 = vadd.f32 %v5317, %v5357
      %v5362 = vadd.f32 %v5318, %v5357
      %v5363 = vadd.f32 %v5319, %v5357
      %v5364 = vadd.f32 %v5320, %v5357
      %v5365 = vadd.f32 %v5321, %v5357
      %v5366 = vadd.f32 %v5322, %v5357
      %v5367 = vadd.f32 %v5323, %v5357
      %v5368 = vadd.f32 %v5324, %v5357
      %v5369 = vadd.f32 %v5325, %v5357
      %v5370 = vadd.f32 %v5326, %v5357
      %v5371 = vadd.f32 %v5327, %v5357
      %v5372 = vadd.f32 %v5328, %v5357
      %v5373 = vadd.f32 %v5329, %v5357
      %v5374 = vadd.f32 %v5330, %v5357
      %v5375 = vadd.f32 %v5331, %v5357
      %v5376 = vadd.f32 %v5332, %v5357
      %v5377 = vadd.f32 %v5333, %v5357
      %v5378 = vadd.f32 %v5334, %v5357
      %v5379 = vadd.f32 %v5335, %v5357
      %v5380 = vadd.f32 %v5336, %v5357
      %v5381 = vadd.f32 %v5337, %v5357
      %v5382 = vadd.f32 %v5338, %v5357
      %v5383 = vadd.f32 %v5339, %v5357
      %v5384 = vadd.f32 %v5340, %v5357
      %v5385 = vadd.f32 %v5341, %v5357
      %v5386 = vadd.f32 %v5342, %v5357
      %v5387 = vadd.f32 %v5343, %v5357
      %v5388 = vadd.f32 %v5344, %v5357
      %v5389 = vadd.f32 %v5345, %v5357
      %v5390 = vadd.f32 %v5346, %v5357
      %v5391 = vadd.f32 %v5347, %v5357
      %v5392 = vadd.f32 %v5348, %v5357
      %v5393 = vadd.f32 %v5349, %v5357
      %v5394 = vadd.f32 %v5350, %v5357
      %v5395 = vadd.f32 %v5351, %v5357
      %v5396 = vadd.f32 %v5352, %v5357
      %v5397 = vadd.f32 %v5353, %v5357
      %v5398 = vadd.f32 %v5354, %v5357
      %v5399 = vadd.f32 %v5355, %v5357
      %vm5400 = vcmp.gt.f32.partialorder %v5359, 0.0
      %vm5401 = vcmp.gt.f32.partialorder %v5360, 0.0
      %vm5402 = vcmp.gt.f32.partialorder %v5361, 0.0
      %vm5403 = vcmp.gt.f32.partialorder %v5362, 0.0
      %vm5404 = vcmp.gt.f32.partialorder %v5363, 0.0
      %vm5405 = vcmp.gt.f32.partialorder %v5364, 0.0
      %vm5406 = vcmp.gt.f32.partialorder %v5365, 0.0
      %vm5407 = vcmp.gt.f32.partialorder %v5366, 0.0
      %vm5408 = vcmp.gt.f32.partialorder %v5367, 0.0
      %vm5409 = vcmp.gt.f32.partialorder %v5368, 0.0
      %vm5410 = vcmp.gt.f32.partialorder %v5369, 0.0
      %vm5411 = vcmp.gt.f32.partialorder %v5370, 0.0
      %vm5412 = vcmp.gt.f32.partialorder %v5371, 0.0
      %vm5413 = vcmp.gt.f32.partialorder %v5372, 0.0
      %vm5414 = vcmp.gt.f32.partialorder %v5373, 0.0
      %vm5415 = vcmp.gt.f32.partialorder %v5374, 0.0
      %vm5416 = vcmp.gt.f32.partialorder %v5375, 0.0
      %vm5417 = vcmp.gt.f32.partialorder %v5376, 0.0
      %vm5418 = vcmp.gt.f32.partialorder %v5377, 0.0
      %vm5419 = vcmp.gt.f32.partialorder %v5378, 0.0
      %vm5420 = vcmp.gt.f32.partialorder %v5379, 0.0
      %vm5421 = vcmp.gt.f32.partialorder %v5380, 0.0
      %vm5422 = vcmp.gt.f32.partialorder %v5381, 0.0
      %vm5423 = vcmp.gt.f32.partialorder %v5382, 0.0
      %vm5424 = vcmp.gt.f32.partialorder %v5383, 0.0
      %vm5425 = vcmp.gt.f32.partialorder %v5384, 0.0
      %vm5426 = vcmp.gt.f32.partialorder %v5385, 0.0
      %vm5427 = vcmp.gt.f32.partialorder %v5386, 0.0
      %vm5428 = vcmp.gt.f32.partialorder %v5387, 0.0
      %vm5429 = vcmp.gt.f32.partialorder %v5388, 0.0
      %vm5430 = vcmp.gt.f32.partialorder %v5389, 0.0
      %vm5431 = vcmp.gt.f32.partialorder %v5390, 0.0
      %vm5432 = vcmp.gt.f32.partialorder %v5391, 0.0
      %vm5433 = vcmp.gt.f32.partialorder %v5392, 0.0
      %vm5434 = vcmp.gt.f32.partialorder %v5393, 0.0
      %vm5435 = vcmp.gt.f32.partialorder %v5394, 0.0
      %vm5436 = vcmp.gt.f32.partialorder %v5395, 0.0
      %vm5437 = vcmp.gt.f32.partialorder %v5396, 0.0
      %vm5438 = vcmp.gt.f32.partialorder %v5397, 0.0
      %vm5439 = vcmp.gt.f32.partialorder %v5398, 0.0
      %vm5440 = vcmp.gt.f32.partialorder %v5399, 0.0
      %v5441 = vmul.f32 %v5359, 0.01
      %v5442 = vmul.f32 %v5360, 0.01
      %v5443 = vmul.f32 %v5361, 0.01
      %v5444 = vmul.f32 %v5362, 0.01
      %v5445 = vmul.f32 %v5363, 0.01
      %v5446 = vmul.f32 %v5364, 0.01
      %v5447 = vmul.f32 %v5365, 0.01
      %v5448 = vmul.f32 %v5366, 0.01
      %v5449 = vmul.f32 %v5367, 0.01
      %v5450 = vmul.f32 %v5368, 0.01
      %v5451 = vmul.f32 %v5369, 0.01
      %v5452 = vmul.f32 %v5370, 0.01
      %v5453 = vmul.f32 %v5371, 0.01
      %v5454 = vmul.f32 %v5372, 0.01
      %v5455 = vmul.f32 %v5373, 0.01
      %v5456 = vmul.f32 %v5374, 0.01
      %v5457 = vmul.f32 %v5375, 0.01
      %v5458 = vmul.f32 %v5376, 0.01
      %v5459 = vmul.f32 %v5377, 0.01
      %v5460 = vmul.f32 %v5378, 0.01
      %v5461 = vmul.f32 %v5379, 0.01
      %v5462 = vmul.f32 %v5380, 0.01
      %v5463 = vmul.f32 %v5381, 0.01
      %v5464 = vmul.f32 %v5382, 0.01
      %v5465 = vmul.f32 %v5383, 0.01
      %v5466 = vmul.f32 %v5384, 0.01
      %v5467 = vmul.f32 %v5385, 0.01
      %v5468 = vmul.f32 %v5386, 0.01
      %v5469 = vmul.f32 %v5387, 0.01
      %v5470 = vmul.f32 %v5388, 0.01
      %v5471 = vmul.f32 %v5389, 0.01
      %v5472 = vmul.f32 %v5390, 0.01
      %v5473 = vmul.f32 %v5391, 0.01
      %v5474 = vmul.f32 %v5392, 0.01
      %v5475 = vmul.f32 %v5393, 0.01
      %v5476 = vmul.f32 %v5394, 0.01
      %v5477 = vmul.f32 %v5395, 0.01
      %v5478 = vmul.f32 %v5396, 0.01
      %v5479 = vmul.f32 %v5397, 0.01
      %v5480 = vmul.f32 %v5398, 0.01
      %v5481 = vmul.f32 %v5399, 0.01
      %v5482 = vsel %vm5400, %v5359, %v5441
      %v5483 = vsel %vm5401, %v5360, %v5442
      %v5484 = vsel %vm5402, %v5361, %v5443
      %v5485 = vsel %vm5403, %v5362, %v5444
      %v5486 = vsel %vm5404, %v5363, %v5445
      %v5487 = vsel %vm5405, %v5364, %v5446
      %v5488 = vsel %vm5406, %v5365, %v5447
      %v5489 = vsel %vm5407, %v5366, %v5448
      %v5490 = vsel %vm5408, %v5367, %v5449
      %v5491 = vsel %vm5409, %v5368, %v5450
      %v5492 = vsel %vm5410, %v5369, %v5451
      %v5493 = vsel %vm5411, %v5370, %v5452
      %v5494 = vsel %vm5412, %v5371, %v5453
      %v5495 = vsel %vm5413, %v5372, %v5454
      %v5496 = vsel %vm5414, %v5373, %v5455
      %v5497 = vsel %vm5415, %v5374, %v5456
      %v5498 = vsel %vm5416, %v5375, %v5457
      %v5499 = vsel %vm5417, %v5376, %v5458
      %v5500 = vsel %vm5418, %v5377, %v5459
      %v5501 = vsel %vm5419, %v5378, %v5460
      %v5502 = vsel %vm5420, %v5379, %v5461
      %v5503 = vsel %vm5421, %v5380, %v5462
      %v5504 = vsel %vm5422, %v5381, %v5463
      %v5505 = vsel %vm5423, %v5382, %v5464
      %v5506 = vsel %vm5424, %v5383, %v5465
      %v5507 = vsel %vm5425, %v5384, %v5466
      %v5508 = vsel %vm5426, %v5385, %v5467
      %v5509 = vsel %vm5427, %v5386, %v5468
      %v5510 = vsel %vm5428, %v5387, %v5469
      %v5511 = vsel %vm5429, %v5388, %v5470
      %v5512 = vsel %vm5430, %v5389, %v5471
      %v5513 = vsel %vm5431, %v5390, %v5472
      %v5514 = vsel %vm5432, %v5391, %v5473
      %v5515 = vsel %vm5433, %v5392, %v5474
      %v5516 = vsel %vm5434, %v5393, %v5475
      %v5517 = vsel %vm5435, %v5394, %v5476
      %v5518 = vsel %vm5436, %v5395, %v5477
      %v5519 = vsel %vm5437, %v5396, %v5478
      %v5520 = vsel %vm5438, %v5397, %v5479
      %v5521 = vsel %vm5439, %v5398, %v5480
      %v5522 = vsel %vm5440, %v5399, %v5481
      %v5523 = vmul.f32 %v5482, %v4667
      %v5524 = vmul.f32 %v5483, %v4672
      %v5525 = vmul.f32 %v5484, %v4677
      %v5526 = vmul.f32 %v5485, %v4682
      %v5527 = vmul.f32 %v5486, %v4687
      %v5528 = vmul.f32 %v5487, %v4692
      %v5529 = vmul.f32 %v5488, %v4697
      %v5530 = vmul.f32 %v5489, %v4702
      %v5531 = vmul.f32 %v5490, %v4707
      %v5532 = vmul.f32 %v5491, %v4712
      %v5533 = vmul.f32 %v5492, %v4717
      %v5534 = vmul.f32 %v5493, %v4722
      %v5535 = vmul.f32 %v5494, %v4727
      %v5536 = vmul.f32 %v5495, %v4732
      %v5537 = vmul.f32 %v5496, %v4737
      %v5538 = vmul.f32 %v5497, %v4742
      %v5539 = vmul.f32 %v5498, %v4747
      %v5540 = vmul.f32 %v5499, %v4752
      %v5541 = vmul.f32 %v5500, %v4757
      %v5542 = vmul.f32 %v5501, %v4762
      %v5543 = vmul.f32 %v5502, %v4767
      %v5544 = vmul.f32 %v5503, %v4772
      %v5545 = vmul.f32 %v5504, %v4777
      %v5546 = vmul.f32 %v5505, %v4782
      %v5547 = vmul.f32 %v5506, %v4787
      %v5548 = vmul.f32 %v5507, %v4792
      %v5549 = vmul.f32 %v5508, %v4797
      %v5550 = vmul.f32 %v5509, %v4802
      %v5551 = vmul.f32 %v5510, %v4807
      %v5552 = vmul.f32 %v5511, %v4812
      %v5553 = vmul.f32 %v5512, %v4817
      %v5554 = vmul.f32 %v5513, %v4822
      %v5555 = vmul.f32 %v5514, %v4827
      %v5556 = vmul.f32 %v5515, %v4832
      %v5557 = vmul.f32 %v5516, %v4837
      %v5558 = vmul.f32 %v5517, %v4842
      %v5559 = vmul.f32 %v5518, %v4847
      %v5560 = vmul.f32 %v5519, %v4852
      %v5561 = vmul.f32 %v5520, %v4857
      %v5562 = vmul.f32 %v5521, %v4862
      %v5563 = vmul.f32 %v5522, %v4867
      %5564 = vst.msk [vmem:[#allocation2 + $0x13] sm:$0xff] %vm496, %v5523
      %5565 = vst.msk [vmem:[#allocation2 + $0x1b] sm:$0xff] %vm496, %v5524
      %5566 = vst.msk [vmem:[#allocation2 + $0x23] sm:$0xff] %vm496, %v5525
      %5567 = vst.msk [vmem:[#allocation2 + $0x2b] sm:$0xff] %vm496, %v5526
      %5568 = vst.msk [vmem:[#allocation2 + $0x33] sm:$0xff] %vm496, %v5527
      %5569 = vst.msk [vmem:[#allocation2 + $0x3b] sm:$0xff] %vm496, %v5528
      %5570 = vst.msk [vmem:[#allocation2 + $0x43] sm:$0xff] %vm496, %v5529
      %5571 = vst.msk [vmem:[#allocation2 + $0x4b] sm:$0xff] %vm496, %v5530
      %5572 = vst.msk [vmem:[#allocation2 + $0x53] sm:$0xff] %vm496, %v5531
      %5573 = vst.msk [vmem:[#allocation2 + $0x5b] sm:$0xff] %vm496, %v5532
      %5574 = vst.msk [vmem:[#allocation2 + $0x63] sm:$0xff] %vm496, %v5533
      %5575 = vst.msk [vmem:[#allocation2 + $0x6b] sm:$0xff] %vm496, %v5534
      %5576 = vst.msk [vmem:[#allocation2 + $0x73] sm:$0xff] %vm496, %v5535
      %5577 = vst.msk [vmem:[#allocation2 + $0x7b] sm:$0xff] %vm496, %v5536
      %5578 = vst.msk [vmem:[#allocation2 + $0x83] sm:$0xff] %vm496, %v5537
      %5579 = vst.msk [vmem:[#allocation2 + $0x8b] sm:$0xff] %vm496, %v5538
      %5580 = vst.msk [vmem:[#allocation2 + $0x93] sm:$0xff] %vm496, %v5539
      %5581 = vst.msk [vmem:[#allocation2 + $0x9b] sm:$0xff] %vm496, %v5540
      %5582 = vst.msk [vmem:[#allocation2 + $0xa3] sm:$0xff] %vm496, %v5541
      %5583 = vst.msk [vmem:[#allocation2 + $0xab] sm:$0xff] %vm496, %v5542
      %5584 = vst.msk [vmem:[#allocation2 + $0xb3] sm:$0xff] %vm496, %v5543
      %5585 = vst.msk [vmem:[#allocation2 + $0xbb] sm:$0xff] %vm496, %v5544
      %5586 = vst.msk [vmem:[#allocation2 + $0xc3] sm:$0xff] %vm496, %v5545
      %5587 = vst.msk [vmem:[#allocation2 + $0xcb] sm:$0xff] %vm496, %v5546
      %5588 = vst.msk [vmem:[#allocation2 + $0xd3] sm:$0xff] %vm496, %v5547
      %5589 = vst.msk [vmem:[#allocation2 + $0xdb] sm:$0xff] %vm496, %v5548
      %5590 = vst.msk [vmem:[#allocation2 + $0xe3] sm:$0xff] %vm496, %v5549
      %5591 = vst.msk [vmem:[#allocation2 + $0xeb] sm:$0xff] %vm496, %v5550
      %5592 = vst.msk [vmem:[#allocation2 + $0xf3] sm:$0xff] %vm496, %v5551
      %5593 = vst.msk [vmem:[#allocation2 + $0xfb] sm:$0xff] %vm496, %v5552
      %5594 = vst.msk [vmem:[#allocation2 + $0x103] sm:$0xff] %vm496, %v5553
      %5595 = vst.msk [vmem:[#allocation2 + $0x10b] sm:$0xff] %vm496, %v5554
      %5596 = vst.msk [vmem:[#allocation2 + $0x113] sm:$0xff] %vm496, %v5555
      %5597 = vst.msk [vmem:[#allocation2 + $0x11b] sm:$0xff] %vm496, %v5556
      %5598 = vst.msk [vmem:[#allocation2 + $0x123] sm:$0xff] %vm496, %v5557
      %5599 = vst.msk [vmem:[#allocation2 + $0x12b] sm:$0xff] %vm496, %v5558
      %5600 = vst.msk [vmem:[#allocation2 + $0x133] sm:$0xff] %vm496, %v5559
      %5601 = vst.msk [vmem:[#allocation2 + $0x13b] sm:$0xff] %vm496, %v5560
      %5602 = vst.msk [vmem:[#allocation2 + $0x143] sm:$0xff] %vm496, %v5561
      %5603 = vst.msk [vmem:[#allocation2 + $0x14b] sm:$0xff] %vm496, %v5562
      %5604 = vst.msk [vmem:[#allocation2 + $0x153] sm:$0xf] %vm1583, %v5563
      %v5605 = vld [vmem:[#allocation2] sm:$0xff]
      %v5606 = vld [vmem:[#allocation2 + $0x8] sm:$0xff]
      %v5607 = vld [vmem:[#allocation2 + $0x10] sm:$0xff]
      %v5608 = vld [vmem:[#allocation2 + $0x18] sm:$0xff]
      %v5609 = vld [vmem:[#allocation2 + $0x20] sm:$0xff]
      %v5610 = vld [vmem:[#allocation2 + $0x28] sm:$0xff]
      %v5611 = vld [vmem:[#allocation2 + $0x30] sm:$0xff]
      %v5612 = vld [vmem:[#allocation2 + $0x38] sm:$0xff]
      %v5613 = vld [vmem:[#allocation2 + $0x40] sm:$0xff]
      %v5614 = vld [vmem:[#allocation2 + $0x48] sm:$0xff]
      %v5615 = vld [vmem:[#allocation2 + $0x50] sm:$0xff]
      %v5616 = vld [vmem:[#allocation2 + $0x58] sm:$0xff]
      %v5617 = vld [vmem:[#allocation2 + $0x60] sm:$0xff]
      %v5618 = vld [vmem:[#allocation2 + $0x68] sm:$0xff]
      %v5619 = vld [vmem:[#allocation2 + $0x70] sm:$0xff]
      %v5620 = vld [vmem:[#allocation2 + $0x78] sm:$0xff]
      %v5621 = vld [vmem:[#allocation2 + $0x80] sm:$0xff]
      %v5622 = vld [vmem:[#allocation2 + $0x88] sm:$0xff]
      %v5623 = vld [vmem:[#allocation2 + $0x90] sm:$0xff]
      %v5624 = vld [vmem:[#allocation2 + $0x98] sm:$0xff]
      %v5625 = vld [vmem:[#allocation2 + $0xa0] sm:$0xff]
      %v5626 = vld [vmem:[#allocation2 + $0xa8] sm:$0xff]
      %v5627 = vld [vmem:[#allocation2 + $0xb0] sm:$0xff]
      %v5628 = vld [vmem:[#allocation2 + $0xb8] sm:$0xff]
      %v5629 = vld [vmem:[#allocation2 + $0xc0] sm:$0xff]
      %v5630 = vld [vmem:[#allocation2 + $0xc8] sm:$0xff]
      %v5631 = vld [vmem:[#allocation2 + $0xd0] sm:$0xff]
      %v5632 = vld [vmem:[#allocation2 + $0xd8] sm:$0xff]
      %v5633 = vld [vmem:[#allocation2 + $0xe0] sm:$0xff]
      %v5634 = vld [vmem:[#allocation2 + $0xe8] sm:$0xff]
      %v5635 = vld [vmem:[#allocation2 + $0xf0] sm:$0xff]
      %v5636 = vld [vmem:[#allocation2 + $0xf8] sm:$0xff]
      %v5637 = vld [vmem:[#allocation2 + $0x100] sm:$0xff]
      %v5638 = vld [vmem:[#allocation2 + $0x108] sm:$0xff]
      %v5639 = vld [vmem:[#allocation2 + $0x110] sm:$0xff]
      %v5640 = vld [vmem:[#allocation2 + $0x118] sm:$0xff]
      %v5641 = vld [vmem:[#allocation2 + $0x120] sm:$0xff]
      %v5642 = vld [vmem:[#allocation2 + $0x128] sm:$0xff]
      %v5643 = vld [vmem:[#allocation2 + $0x130] sm:$0xff]
      %v5644 = vld [vmem:[#allocation2 + $0x138] sm:$0xff]
      %v5645 = vld [vmem:[#allocation2 + $0x140] sm:$0xf]
      %v5646 = vpack.c.bf16 %v5605, %v5605
      %v5647 = vpack.c.bf16 %v5606, %v5606
      %v5648 = vpack.c.bf16 %v5607, %v5607
      %v5649 = vpack.c.bf16 %v5608, %v5608
      %v5650 = vpack.c.bf16 %v5609, %v5609
      %v5651 = vpack.c.bf16 %v5610, %v5610
      %v5652 = vpack.c.bf16 %v5611, %v5611
      %v5653 = vpack.c.bf16 %v5612, %v5612
      %v5654 = vpack.c.bf16 %v5613, %v5613
      %v5655 = vpack.c.bf16 %v5614, %v5614
      %v5656 = vpack.c.bf16 %v5615, %v5615
      %v5657 = vpack.c.bf16 %v5616, %v5616
      %v5658 = vpack.c.bf16 %v5617, %v5617
      %v5659 = vpack.c.bf16 %v5618, %v5618
      %v5660 = vpack.c.bf16 %v5619, %v5619
      %v5661 = vpack.c.bf16 %v5620, %v5620
      %v5662 = vpack.c.bf16 %v5621, %v5621
      %v5663 = vpack.c.bf16 %v5622, %v5622
      %v5664 = vpack.c.bf16 %v5623, %v5623
      %v5665 = vpack.c.bf16 %v5624, %v5624
      %v5666 = vpack.c.bf16 %v5625, %v5625
      %v5667 = vpack.c.bf16 %v5626, %v5626
      %v5668 = vpack.c.bf16 %v5627, %v5627
      %v5669 = vpack.c.bf16 %v5628, %v5628
      %v5670 = vpack.c.bf16 %v5629, %v5629
      %v5671 = vpack.c.bf16 %v5630, %v5630
      %v5672 = vpack.c.bf16 %v5631, %v5631
      %v5673 = vpack.c.bf16 %v5632, %v5632
      %v5674 = vpack.c.bf16 %v5633, %v5633
      %v5675 = vpack.c.bf16 %v5634, %v5634
      %v5676 = vpack.c.bf16 %v5635, %v5635
      %v5677 = vpack.c.bf16 %v5636, %v5636
      %v5678 = vpack.c.bf16 %v5637, %v5637
      %v5679 = vpack.c.bf16 %v5638, %v5638
      %v5680 = vpack.c.bf16 %v5639, %v5639
      %v5681 = vpack.c.bf16 %v5640, %v5640
      %v5682 = vpack.c.bf16 %v5641, %v5641
      %v5683 = vpack.c.bf16 %v5642, %v5642
      %v5684 = vpack.c.bf16 %v5643, %v5643
      %v5685 = vpack.c.bf16 %v5644, %v5644
      %v5686 = vpack.c.bf16 %v5645, %v5645
      %5687 = vst.msk [vmem:[#allocation3] sm:$0xf] %vm1583, %v5646
      %5688 = vst.msk [vmem:[#allocation3 + $0xc] sm:$0xf] %vm1583, %v5647
      %5689 = vst.msk [vmem:[#allocation3 + $0x18] sm:$0xf] %vm1583, %v5648
      %5690 = vst.msk [vmem:[#allocation3 + $0x24] sm:$0xf] %vm1583, %v5649
      %5691 = vst.msk [vmem:[#allocation3 + $0x30] sm:$0xf] %vm1583, %v5650
      %5692 = vst.msk [vmem:[#allocation3 + $0x3c] sm:$0xf] %vm1583, %v5651
      %5693 = vst.msk [vmem:[#allocation3 + $0x48] sm:$0xf] %vm1583, %v5652
      %5694 = vst.msk [vmem:[#allocation3 + $0x54] sm:$0xf] %vm1583, %v5653
      %5695 = vst.msk [vmem:[#allocation3 + $0x60] sm:$0xf] %vm1583, %v5654
      %5696 = vst.msk [vmem:[#allocation3 + $0x6c] sm:$0xf] %vm1583, %v5655
      %5697 = vst.msk [vmem:[#allocation3 + $0x78] sm:$0xf] %vm1583, %v5656
      %5698 = vst.msk [vmem:[#allocation3 + $0x84] sm:$0xf] %vm1583, %v5657
      %5699 = vst.msk [vmem:[#allocation3 + $0x90] sm:$0xf] %vm1583, %v5658
      %5700 = vst.msk [vmem:[#allocation3 + $0x9c] sm:$0xf] %vm1583, %v5659
      %5701 = vst.msk [vmem:[#allocation3 + $0xa8] sm:$0xf] %vm1583, %v5660
      %5702 = vst.msk [vmem:[#allocation3 + $0xb4] sm:$0xf] %vm1583, %v5661
      %5703 = vst.msk [vmem:[#allocation3 + $0xc0] sm:$0xf] %vm1583, %v5662
      %5704 = vst.msk [vmem:[#allocation3 + $0xcc] sm:$0xf] %vm1583, %v5663
      %5705 = vst.msk [vmem:[#allocation3 + $0xd8] sm:$0xf] %vm1583, %v5664
      %5706 = vst.msk [vmem:[#allocation3 + $0xe4] sm:$0xf] %vm1583, %v5665
      %5707 = vst.msk [vmem:[#allocation3 + $0xf0] sm:$0xf] %vm1583, %v5666
      %5708 = vst.msk [vmem:[#allocation3 + $0xfc] sm:$0xf] %vm1583, %v5667
      %5709 = vst.msk [vmem:[#allocation3 + $0x108] sm:$0xf] %vm1583, %v5668
      %5710 = vst.msk [vmem:[#allocation3 + $0x114] sm:$0xf] %vm1583, %v5669
      %5711 = vst.msk [vmem:[#allocation3 + $0x120] sm:$0xf] %vm1583, %v5670
      %5712 = vst.msk [vmem:[#allocation3 + $0x12c] sm:$0xf] %vm1583, %v5671
      %5713 = vst.msk [vmem:[#allocation3 + $0x138] sm:$0xf] %vm1583, %v5672
      %5714 = vst.msk [vmem:[#allocation3 + $0x144] sm:$0xf] %vm1583, %v5673
      %5715 = vst.msk [vmem:[#allocation3 + $0x150] sm:$0xf] %vm1583, %v5674
      %5716 = vst.msk [vmem:[#allocation3 + $0x15c] sm:$0xf] %vm1583, %v5675
      %5717 = vst.msk [vmem:[#allocation3 + $0x168] sm:$0xf] %vm1583, %v5676
      %5718 = vst.msk [vmem:[#allocation3 + $0x174] sm:$0xf] %vm1583, %v5677
      %5719 = vst.msk [vmem:[#allocation3 + $0x180] sm:$0xf] %vm1583, %v5678
      %5720 = vst.msk [vmem:[#allocation3 + $0x18c] sm:$0xf] %vm1583, %v5679
      %5721 = vst.msk [vmem:[#allocation3 + $0x198] sm:$0xf] %vm1583, %v5680
      %5722 = vst.msk [vmem:[#allocation3 + $0x1a4] sm:$0xf] %vm1583, %v5681
      %5723 = vst.msk [vmem:[#allocation3 + $0x1b0] sm:$0xf] %vm1583, %v5682
      %5724 = vst.msk [vmem:[#allocation3 + $0x1bc] sm:$0xf] %vm1583, %v5683
      %5725 = vst.msk [vmem:[#allocation3 + $0x1c8] sm:$0xf] %vm1583, %v5684
      %5726 = vst.msk [vmem:[#allocation3 + $0x1d4] sm:$0xf] %vm1583, %v5685
      %5727 = vst.msk [vmem:[#allocation3 + $0x1e0] sm:$0x3] %vm632, %v5686
      %v5728 = vld [vmem:[#allocation2 + $0x1] sm:$0xff]
      %v5729 = vld [vmem:[#allocation2 + $0x9] sm:$0xff]
      %v5730 = vld [vmem:[#allocation2 + $0x11] sm:$0xff]
      %v5731 = vld [vmem:[#allocation2 + $0x19] sm:$0xff]
      %v5732 = vld [vmem:[#allocation2 + $0x21] sm:$0xff]
      %v5733 = vld [vmem:[#allocation2 + $0x29] sm:$0xff]
      %v5734 = vld [vmem:[#allocation2 + $0x31] sm:$0xff]
      %v5735 = vld [vmem:[#allocation2 + $0x39] sm:$0xff]
      %v5736 = vld [vmem:[#allocation2 + $0x41] sm:$0xff]
      %v5737 = vld [vmem:[#allocation2 + $0x49] sm:$0xff]
      %v5738 = vld [vmem:[#allocation2 + $0x51] sm:$0xff]
      %v5739 = vld [vmem:[#allocation2 + $0x59] sm:$0xff]
      %v5740 = vld [vmem:[#allocation2 + $0x61] sm:$0xff]
      %v5741 = vld [vmem:[#allocation2 + $0x69] sm:$0xff]
      %v5742 = vld [vmem:[#allocation2 + $0x71] sm:$0xff]
      %v5743 = vld [vmem:[#allocation2 + $0x79] sm:$0xff]
      %v5744 = vld [vmem:[#allocation2 + $0x81] sm:$0xff]
      %v5745 = vld [vmem:[#allocation2 + $0x89] sm:$0xff]
      %v5746 = vld [vmem:[#allocation2 + $0x91] sm:$0xff]
      %v5747 = vld [vmem:[#allocation2 + $0x99] sm:$0xff]
      %v5748 = vld [vmem:[#allocation2 + $0xa1] sm:$0xff]
      %v5749 = vld [vmem:[#allocation2 + $0xa9] sm:$0xff]
      %v5750 = vld [vmem:[#allocation2 + $0xb1] sm:$0xff]
      %v5751 = vld [vmem:[#allocation2 + $0xb9] sm:$0xff]
      %v5752 = vld [vmem:[#allocation2 + $0xc1] sm:$0xff]
      %v5753 = vld [vmem:[#allocation2 + $0xc9] sm:$0xff]
      %v5754 = vld [vmem:[#allocation2 + $0xd1] sm:$0xff]
      %v5755 = vld [vmem:[#allocation2 + $0xd9] sm:$0xff]
      %v5756 = vld [vmem:[#allocation2 + $0xe1] sm:$0xff]
      %v5757 = vld [vmem:[#allocation2 + $0xe9] sm:$0xff]
      %v5758 = vld [vmem:[#allocation2 + $0xf1] sm:$0xff]
      %v5759 = vld [vmem:[#allocation2 + $0xf9] sm:$0xff]
      %v5760 = vld [vmem:[#allocation2 + $0x101] sm:$0xff]
      %v5761 = vld [vmem:[#allocation2 + $0x109] sm:$0xff]
      %v5762 = vld [vmem:[#allocation2 + $0x111] sm:$0xff]
      %v5763 = vld [vmem:[#allocation2 + $0x119] sm:$0xff]
      %v5764 = vld [vmem:[#allocation2 + $0x121] sm:$0xff]
      %v5765 = vld [vmem:[#allocation2 + $0x129] sm:$0xff]
      %v5766 = vld [vmem:[#allocation2 + $0x131] sm:$0xff]
      %v5767 = vld [vmem:[#allocation2 + $0x139] sm:$0xff]
      %v5768 = vld [vmem:[#allocation2 + $0x141] sm:$0xf]
      %v5769 = vpack.c.bf16 %v5728, %v5728
      %v5770 = vpack.c.bf16 %v5729, %v5729
      %v5771 = vpack.c.bf16 %v5730, %v5730
      %v5772 = vpack.c.bf16 %v5731, %v5731
      %v5773 = vpack.c.bf16 %v5732, %v5732
      %v5774 = vpack.c.bf16 %v5733, %v5733
      %v5775 = vpack.c.bf16 %v5734, %v5734
      %v5776 = vpack.c.bf16 %v5735, %v5735
      %v5777 = vpack.c.bf16 %v5736, %v5736
      %v5778 = vpack.c.bf16 %v5737, %v5737
      %v5779 = vpack.c.bf16 %v5738, %v5738
      %v5780 = vpack.c.bf16 %v5739, %v5739
      %v5781 = vpack.c.bf16 %v5740, %v5740
      %v5782 = vpack.c.bf16 %v5741, %v5741
      %v5783 = vpack.c.bf16 %v5742, %v5742
      %v5784 = vpack.c.bf16 %v5743, %v5743
      %v5785 = vpack.c.bf16 %v5744, %v5744
      %v5786 = vpack.c.bf16 %v5745, %v5745
      %v5787 = vpack.c.bf16 %v5746, %v5746
      %v5788 = vpack.c.bf16 %v5747, %v5747
      %v5789 = vpack.c.bf16 %v5748, %v5748
      %v5790 = vpack.c.bf16 %v5749, %v5749
      %v5791 = vpack.c.bf16 %v5750, %v5750
      %v5792 = vpack.c.bf16 %v5751, %v5751
      %v5793 = vpack.c.bf16 %v5752, %v5752
      %v5794 = vpack.c.bf16 %v5753, %v5753
      %v5795 = vpack.c.bf16 %v5754, %v5754
      %v5796 = vpack.c.bf16 %v5755, %v5755
      %v5797 = vpack.c.bf16 %v5756, %v5756
      %v5798 = vpack.c.bf16 %v5757, %v5757
      %v5799 = vpack.c.bf16 %v5758, %v5758
      %v5800 = vpack.c.bf16 %v5759, %v5759
      %v5801 = vpack.c.bf16 %v5760, %v5760
      %v5802 = vpack.c.bf16 %v5761, %v5761
      %v5803 = vpack.c.bf16 %v5762, %v5762
      %v5804 = vpack.c.bf16 %v5763, %v5763
      %v5805 = vpack.c.bf16 %v5764, %v5764
      %v5806 = vpack.c.bf16 %v5765, %v5765
      %v5807 = vpack.c.bf16 %v5766, %v5766
      %v5808 = vpack.c.bf16 %v5767, %v5767
      %v5809 = vpack.c.bf16 %v5768, %v5768
      %5851 = vrot.lane.b32.xlu0 %v5769, 32
      %v5852 = vpop.permute.xlu0 %5851
      %5853 = vrot.lane.b32.xlu0 %v5770, 32
      %v5854 = vpop.permute.xlu0 %5853
      %5855 = vrot.lane.b32.xlu0 %v5771, 32
      %v5856 = vpop.permute.xlu0 %5855
      %5857 = vrot.lane.b32.xlu0 %v5772, 32
      %v5858 = vpop.permute.xlu0 %5857
      %5859 = vrot.lane.b32.xlu0 %v5773, 32
      %v5860 = vpop.permute.xlu0 %5859
      %5861 = vrot.lane.b32.xlu0 %v5774, 32
      %v5862 = vpop.permute.xlu0 %5861
      %5863 = vrot.lane.b32.xlu0 %v5775, 32
      %v5864 = vpop.permute.xlu0 %5863
      %5865 = vrot.lane.b32.xlu0 %v5776, 32
      %v5866 = vpop.permute.xlu0 %5865
      %5867 = vrot.lane.b32.xlu0 %v5777, 32
      %v5868 = vpop.permute.xlu0 %5867
      %5869 = vrot.lane.b32.xlu0 %v5778, 32
      %v5870 = vpop.permute.xlu0 %5869
      %5871 = vrot.lane.b32.xlu0 %v5779, 32
      %v5872 = vpop.permute.xlu0 %5871
      %5873 = vrot.lane.b32.xlu0 %v5780, 32
      %v5874 = vpop.permute.xlu0 %5873
      %5875 = vrot.lane.b32.xlu0 %v5781, 32
      %v5876 = vpop.permute.xlu0 %5875
      %5877 = vrot.lane.b32.xlu0 %v5782, 32
      %v5878 = vpop.permute.xlu0 %5877
      %5879 = vrot.lane.b32.xlu0 %v5783, 32
      %v5880 = vpop.permute.xlu0 %5879
      %5881 = vrot.lane.b32.xlu0 %v5784, 32
      %v5882 = vpop.permute.xlu0 %5881
      %5883 = vrot.lane.b32.xlu0 %v5785, 32
      %v5884 = vpop.permute.xlu0 %5883
      %5885 = vrot.lane.b32.xlu0 %v5786, 32
      %v5886 = vpop.permute.xlu0 %5885
      %5887 = vrot.lane.b32.xlu0 %v5787, 32
      %v5888 = vpop.permute.xlu0 %5887
      %5889 = vrot.lane.b32.xlu0 %v5788, 32
      %v5890 = vpop.permute.xlu0 %5889
      %5891 = vrot.lane.b32.xlu0 %v5789, 32
      %v5892 = vpop.permute.xlu0 %5891
      %5893 = vrot.lane.b32.xlu0 %v5790, 32
      %v5894 = vpop.permute.xlu0 %5893
      %5895 = vrot.lane.b32.xlu0 %v5791, 32
      %v5896 = vpop.permute.xlu0 %5895
      %5897 = vrot.lane.b32.xlu0 %v5792, 32
      %v5898 = vpop.permute.xlu0 %5897
      %5899 = vrot.lane.b32.xlu0 %v5793, 32
      %v5900 = vpop.permute.xlu0 %5899
      %5901 = vrot.lane.b32.xlu0 %v5794, 32
      %v5902 = vpop.permute.xlu0 %5901
      %5903 = vrot.lane.b32.xlu0 %v5795, 32
      %v5904 = vpop.permute.xlu0 %5903
      %5905 = vrot.lane.b32.xlu0 %v5796, 32
      %v5906 = vpop.permute.xlu0 %5905
      %5907 = vrot.lane.b32.xlu0 %v5797, 32
      %v5908 = vpop.permute.xlu0 %5907
      %5909 = vrot.lane.b32.xlu0 %v5798, 32
      %v5910 = vpop.permute.xlu0 %5909
      %5911 = vrot.lane.b32.xlu0 %v5799, 32
      %v5912 = vpop.permute.xlu0 %5911
      %5913 = vrot.lane.b32.xlu0 %v5800, 32
      %v5914 = vpop.permute.xlu0 %5913
      %5915 = vrot.lane.b32.xlu0 %v5801, 32
      %v5916 = vpop.permute.xlu0 %5915
      %5917 = vrot.lane.b32.xlu0 %v5802, 32
      %v5918 = vpop.permute.xlu0 %5917
      %5919 = vrot.lane.b32.xlu0 %v5803, 32
      %v5920 = vpop.permute.xlu0 %5919
      %5921 = vrot.lane.b32.xlu0 %v5804, 32
      %v5922 = vpop.permute.xlu0 %5921
      %5923 = vrot.lane.b32.xlu0 %v5805, 32
      %v5924 = vpop.permute.xlu0 %5923
      %5925 = vrot.lane.b32.xlu0 %v5806, 32
      %v5926 = vpop.permute.xlu0 %5925
      %5927 = vrot.lane.b32.xlu0 %v5807, 32
      %v5928 = vpop.permute.xlu0 %5927
      %5929 = vrot.lane.b32.xlu0 %v5808, 32
      %v5930 = vpop.permute.xlu0 %5929
      %5931 = vrot.lane.b32.xlu0 %v5809, 32
      %v5932 = vpop.permute.xlu0 %5931
      %5974 = vst.msk [vmem:[#allocation3] sm:$0xf] %vm1871, %v5852
      %5975 = vst.msk [vmem:[#allocation3 + $0xc] sm:$0xf] %vm1871, %v5854
      %5976 = vst.msk [vmem:[#allocation3 + $0x18] sm:$0xf] %vm1871, %v5856
      %5977 = vst.msk [vmem:[#allocation3 + $0x24] sm:$0xf] %vm1871, %v5858
      %5978 = vst.msk [vmem:[#allocation3 + $0x30] sm:$0xf] %vm1871, %v5860
      %5979 = vst.msk [vmem:[#allocation3 + $0x3c] sm:$0xf] %vm1871, %v5862
      %5980 = vst.msk [vmem:[#allocation3 + $0x48] sm:$0xf] %vm1871, %v5864
      %5981 = vst.msk [vmem:[#allocation3 + $0x54] sm:$0xf] %vm1871, %v5866
      %5982 = vst.msk [vmem:[#allocation3 + $0x60] sm:$0xf] %vm1871, %v5868
      %5983 = vst.msk [vmem:[#allocation3 + $0x6c] sm:$0xf] %vm1871, %v5870
      %5984 = vst.msk [vmem:[#allocation3 + $0x78] sm:$0xf] %vm1871, %v5872
      %5985 = vst.msk [vmem:[#allocation3 + $0x84] sm:$0xf] %vm1871, %v5874
      %5986 = vst.msk [vmem:[#allocation3 + $0x90] sm:$0xf] %vm1871, %v5876
      %5987 = vst.msk [vmem:[#allocation3 + $0x9c] sm:$0xf] %vm1871, %v5878
      %5988 = vst.msk [vmem:[#allocation3 + $0xa8] sm:$0xf] %vm1871, %v5880
      %5989 = vst.msk [vmem:[#allocation3 + $0xb4] sm:$0xf] %vm1871, %v5882
      %5990 = vst.msk [vmem:[#allocation3 + $0xc0] sm:$0xf] %vm1871, %v5884
      %5991 = vst.msk [vmem:[#allocation3 + $0xcc] sm:$0xf] %vm1871, %v5886
      %5992 = vst.msk [vmem:[#allocation3 + $0xd8] sm:$0xf] %vm1871, %v5888
      %5993 = vst.msk [vmem:[#allocation3 + $0xe4] sm:$0xf] %vm1871, %v5890
      %5994 = vst.msk [vmem:[#allocation3 + $0xf0] sm:$0xf] %vm1871, %v5892
      %5995 = vst.msk [vmem:[#allocation3 + $0xfc] sm:$0xf] %vm1871, %v5894
      %5996 = vst.msk [vmem:[#allocation3 + $0x108] sm:$0xf] %vm1871, %v5896
      %5997 = vst.msk [vmem:[#allocation3 + $0x114] sm:$0xf] %vm1871, %v5898
      %5998 = vst.msk [vmem:[#allocation3 + $0x120] sm:$0xf] %vm1871, %v5900
      %5999 = vst.msk [vmem:[#allocation3 + $0x12c] sm:$0xf] %vm1871, %v5902
      %6000 = vst.msk [vmem:[#allocation3 + $0x138] sm:$0xf] %vm1871, %v5904
      %6001 = vst.msk [vmem:[#allocation3 + $0x144] sm:$0xf] %vm1871, %v5906
      %6002 = vst.msk [vmem:[#allocation3 + $0x150] sm:$0xf] %vm1871, %v5908
      %6003 = vst.msk [vmem:[#allocation3 + $0x15c] sm:$0xf] %vm1871, %v5910
      %6004 = vst.msk [vmem:[#allocation3 + $0x168] sm:$0xf] %vm1871, %v5912
      %6005 = vst.msk [vmem:[#allocation3 + $0x174] sm:$0xf] %vm1871, %v5914
      %6006 = vst.msk [vmem:[#allocation3 + $0x180] sm:$0xf] %vm1871, %v5916
      %6007 = vst.msk [vmem:[#allocation3 + $0x18c] sm:$0xf] %vm1871, %v5918
      %6008 = vst.msk [vmem:[#allocation3 + $0x198] sm:$0xf] %vm1871, %v5920
      %6009 = vst.msk [vmem:[#allocation3 + $0x1a4] sm:$0xf] %vm1871, %v5922
      %6010 = vst.msk [vmem:[#allocation3 + $0x1b0] sm:$0xf] %vm1871, %v5924
      %6011 = vst.msk [vmem:[#allocation3 + $0x1bc] sm:$0xf] %vm1871, %v5926
      %6012 = vst.msk [vmem:[#allocation3 + $0x1c8] sm:$0xf] %vm1871, %v5928
      %6013 = vst.msk [vmem:[#allocation3 + $0x1d4] sm:$0xf] %vm1871, %v5930
      %6014 = vst.msk [vmem:[#allocation3 + $0x1e0] sm:$0x3] %vm1912, %v5932
      %v6015 = vld [vmem:[#allocation2 + $0x2] sm:$0xff]
      %v6016 = vld [vmem:[#allocation2 + $0xa] sm:$0xff]
      %v6017 = vld [vmem:[#allocation2 + $0x12] sm:$0xff]
      %v6018 = vld [vmem:[#allocation2 + $0x1a] sm:$0xff]
      %v6019 = vld [vmem:[#allocation2 + $0x22] sm:$0xff]
      %v6020 = vld [vmem:[#allocation2 + $0x2a] sm:$0xff]
      %v6021 = vld [vmem:[#allocation2 + $0x32] sm:$0xff]
      %v6022 = vld [vmem:[#allocation2 + $0x3a] sm:$0xff]
      %v6023 = vld [vmem:[#allocation2 + $0x42] sm:$0xff]
      %v6024 = vld [vmem:[#allocation2 + $0x4a] sm:$0xff]
      %v6025 = vld [vmem:[#allocation2 + $0x52] sm:$0xff]
      %v6026 = vld [vmem:[#allocation2 + $0x5a] sm:$0xff]
      %v6027 = vld [vmem:[#allocation2 + $0x62] sm:$0xff]
      %v6028 = vld [vmem:[#allocation2 + $0x6a] sm:$0xff]
      %v6029 = vld [vmem:[#allocation2 + $0x72] sm:$0xff]
      %v6030 = vld [vmem:[#allocation2 + $0x7a] sm:$0xff]
      %v6031 = vld [vmem:[#allocation2 + $0x82] sm:$0xff]
      %v6032 = vld [vmem:[#allocation2 + $0x8a] sm:$0xff]
      %v6033 = vld [vmem:[#allocation2 + $0x92] sm:$0xff]
      %v6034 = vld [vmem:[#allocation2 + $0x9a] sm:$0xff]
      %v6035 = vld [vmem:[#allocation2 + $0xa2] sm:$0xff]
      %v6036 = vld [vmem:[#allocation2 + $0xaa] sm:$0xff]
      %v6037 = vld [vmem:[#allocation2 + $0xb2] sm:$0xff]
      %v6038 = vld [vmem:[#allocation2 + $0xba] sm:$0xff]
      %v6039 = vld [vmem:[#allocation2 + $0xc2] sm:$0xff]
      %v6040 = vld [vmem:[#allocation2 + $0xca] sm:$0xff]
      %v6041 = vld [vmem:[#allocation2 + $0xd2] sm:$0xff]
      %v6042 = vld [vmem:[#allocation2 + $0xda] sm:$0xff]
      %v6043 = vld [vmem:[#allocation2 + $0xe2] sm:$0xff]
      %v6044 = vld [vmem:[#allocation2 + $0xea] sm:$0xff]
      %v6045 = vld [vmem:[#allocation2 + $0xf2] sm:$0xff]
      %v6046 = vld [vmem:[#allocation2 + $0xfa] sm:$0xff]
      %v6047 = vld [vmem:[#allocation2 + $0x102] sm:$0xff]
      %v6048 = vld [vmem:[#allocation2 + $0x10a] sm:$0xff]
      %v6049 = vld [vmem:[#allocation2 + $0x112] sm:$0xff]
      %v6050 = vld [vmem:[#allocation2 + $0x11a] sm:$0xff]
      %v6051 = vld [vmem:[#allocation2 + $0x122] sm:$0xff]
      %v6052 = vld [vmem:[#allocation2 + $0x12a] sm:$0xff]
      %v6053 = vld [vmem:[#allocation2 + $0x132] sm:$0xff]
      %v6054 = vld [vmem:[#allocation2 + $0x13a] sm:$0xff]
      %v6055 = vld [vmem:[#allocation2 + $0x142] sm:$0xf]
      %v6056 = vpack.c.bf16 %v6015, %v6015
      %v6057 = vpack.c.bf16 %v6016, %v6016
      %v6058 = vpack.c.bf16 %v6017, %v6017
      %v6059 = vpack.c.bf16 %v6018, %v6018
      %v6060 = vpack.c.bf16 %v6019, %v6019
      %v6061 = vpack.c.bf16 %v6020, %v6020
      %v6062 = vpack.c.bf16 %v6021, %v6021
      %v6063 = vpack.c.bf16 %v6022, %v6022
      %v6064 = vpack.c.bf16 %v6023, %v6023
      %v6065 = vpack.c.bf16 %v6024, %v6024
      %v6066 = vpack.c.bf16 %v6025, %v6025
      %v6067 = vpack.c.bf16 %v6026, %v6026
      %v6068 = vpack.c.bf16 %v6027, %v6027
      %v6069 = vpack.c.bf16 %v6028, %v6028
      %v6070 = vpack.c.bf16 %v6029, %v6029
      %v6071 = vpack.c.bf16 %v6030, %v6030
      %v6072 = vpack.c.bf16 %v6031, %v6031
      %v6073 = vpack.c.bf16 %v6032, %v6032
      %v6074 = vpack.c.bf16 %v6033, %v6033
      %v6075 = vpack.c.bf16 %v6034, %v6034
      %v6076 = vpack.c.bf16 %v6035, %v6035
      %v6077 = vpack.c.bf16 %v6036, %v6036
      %v6078 = vpack.c.bf16 %v6037, %v6037
      %v6079 = vpack.c.bf16 %v6038, %v6038
      %v6080 = vpack.c.bf16 %v6039, %v6039
      %v6081 = vpack.c.bf16 %v6040, %v6040
      %v6082 = vpack.c.bf16 %v6041, %v6041
      %v6083 = vpack.c.bf16 %v6042, %v6042
      %v6084 = vpack.c.bf16 %v6043, %v6043
      %v6085 = vpack.c.bf16 %v6044, %v6044
      %v6086 = vpack.c.bf16 %v6045, %v6045
      %v6087 = vpack.c.bf16 %v6046, %v6046
      %v6088 = vpack.c.bf16 %v6047, %v6047
      %v6089 = vpack.c.bf16 %v6048, %v6048
      %v6090 = vpack.c.bf16 %v6049, %v6049
      %v6091 = vpack.c.bf16 %v6050, %v6050
      %v6092 = vpack.c.bf16 %v6051, %v6051
      %v6093 = vpack.c.bf16 %v6052, %v6052
      %v6094 = vpack.c.bf16 %v6053, %v6053
      %v6095 = vpack.c.bf16 %v6054, %v6054
      %v6096 = vpack.c.bf16 %v6055, %v6055
      %6138 = vrot.lane.b32.xlu0 %v6056, 64
      %v6139 = vpop.permute.xlu0 %6138
      %6140 = vrot.lane.b32.xlu0 %v6057, 64
      %v6141 = vpop.permute.xlu0 %6140
      %6142 = vrot.lane.b32.xlu0 %v6058, 64
      %v6143 = vpop.permute.xlu0 %6142
      %6144 = vrot.lane.b32.xlu0 %v6059, 64
      %v6145 = vpop.permute.xlu0 %6144
      %6146 = vrot.lane.b32.xlu0 %v6060, 64
      %v6147 = vpop.permute.xlu0 %6146
      %6148 = vrot.lane.b32.xlu0 %v6061, 64
      %v6149 = vpop.permute.xlu0 %6148
      %6150 = vrot.lane.b32.xlu0 %v6062, 64
      %v6151 = vpop.permute.xlu0 %6150
      %6152 = vrot.lane.b32.xlu0 %v6063, 64
      %v6153 = vpop.permute.xlu0 %6152
      %6154 = vrot.lane.b32.xlu0 %v6064, 64
      %v6155 = vpop.permute.xlu0 %6154
      %6156 = vrot.lane.b32.xlu0 %v6065, 64
      %v6157 = vpop.permute.xlu0 %6156
      %6158 = vrot.lane.b32.xlu0 %v6066, 64
      %v6159 = vpop.permute.xlu0 %6158
      %6160 = vrot.lane.b32.xlu0 %v6067, 64
      %v6161 = vpop.permute.xlu0 %6160
      %6162 = vrot.lane.b32.xlu0 %v6068, 64
      %v6163 = vpop.permute.xlu0 %6162
      %6164 = vrot.lane.b32.xlu0 %v6069, 64
      %v6165 = vpop.permute.xlu0 %6164
      %6166 = vrot.lane.b32.xlu0 %v6070, 64
      %v6167 = vpop.permute.xlu0 %6166
      %6168 = vrot.lane.b32.xlu0 %v6071, 64
      %v6169 = vpop.permute.xlu0 %6168
      %6170 = vrot.lane.b32.xlu0 %v6072, 64
      %v6171 = vpop.permute.xlu0 %6170
      %6172 = vrot.lane.b32.xlu0 %v6073, 64
      %v6173 = vpop.permute.xlu0 %6172
      %6174 = vrot.lane.b32.xlu0 %v6074, 64
      %v6175 = vpop.permute.xlu0 %6174
      %6176 = vrot.lane.b32.xlu0 %v6075, 64
      %v6177 = vpop.permute.xlu0 %6176
      %6178 = vrot.lane.b32.xlu0 %v6076, 64
      %v6179 = vpop.permute.xlu0 %6178
      %6180 = vrot.lane.b32.xlu0 %v6077, 64
      %v6181 = vpop.permute.xlu0 %6180
      %6182 = vrot.lane.b32.xlu0 %v6078, 64
      %v6183 = vpop.permute.xlu0 %6182
      %6184 = vrot.lane.b32.xlu0 %v6079, 64
      %v6185 = vpop.permute.xlu0 %6184
      %6186 = vrot.lane.b32.xlu0 %v6080, 64
      %v6187 = vpop.permute.xlu0 %6186
      %6188 = vrot.lane.b32.xlu0 %v6081, 64
      %v6189 = vpop.permute.xlu0 %6188
      %6190 = vrot.lane.b32.xlu0 %v6082, 64
      %v6191 = vpop.permute.xlu0 %6190
      %6192 = vrot.lane.b32.xlu0 %v6083, 64
      %v6193 = vpop.permute.xlu0 %6192
      %6194 = vrot.lane.b32.xlu0 %v6084, 64
      %v6195 = vpop.permute.xlu0 %6194
      %6196 = vrot.lane.b32.xlu0 %v6085, 64
      %v6197 = vpop.permute.xlu0 %6196
      %6198 = vrot.lane.b32.xlu0 %v6086, 64
      %v6199 = vpop.permute.xlu0 %6198
      %6200 = vrot.lane.b32.xlu0 %v6087, 64
      %v6201 = vpop.permute.xlu0 %6200
      %6202 = vrot.lane.b32.xlu0 %v6088, 64
      %v6203 = vpop.permute.xlu0 %6202
      %6204 = vrot.lane.b32.xlu0 %v6089, 64
      %v6205 = vpop.permute.xlu0 %6204
      %6206 = vrot.lane.b32.xlu0 %v6090, 64
      %v6207 = vpop.permute.xlu0 %6206
      %6208 = vrot.lane.b32.xlu0 %v6091, 64
      %v6209 = vpop.permute.xlu0 %6208
      %6210 = vrot.lane.b32.xlu0 %v6092, 64
      %v6211 = vpop.permute.xlu0 %6210
      %6212 = vrot.lane.b32.xlu0 %v6093, 64
      %v6213 = vpop.permute.xlu0 %6212
      %6214 = vrot.lane.b32.xlu0 %v6094, 64
      %v6215 = vpop.permute.xlu0 %6214
      %6216 = vrot.lane.b32.xlu0 %v6095, 64
      %v6217 = vpop.permute.xlu0 %6216
      %6218 = vrot.lane.b32.xlu0 %v6096, 64
      %v6219 = vpop.permute.xlu0 %6218
      %6261 = vst.msk [vmem:[#allocation3] sm:$0xf] %vm2160, %v6139
      %6262 = vst.msk [vmem:[#allocation3 + $0xc] sm:$0xf] %vm2160, %v6141
      %6263 = vst.msk [vmem:[#allocation3 + $0x18] sm:$0xf] %vm2160, %v6143
      %6264 = vst.msk [vmem:[#allocation3 + $0x24] sm:$0xf] %vm2160, %v6145
      %6265 = vst.msk [vmem:[#allocation3 + $0x30] sm:$0xf] %vm2160, %v6147
      %6266 = vst.msk [vmem:[#allocation3 + $0x3c] sm:$0xf] %vm2160, %v6149
      %6267 = vst.msk [vmem:[#allocation3 + $0x48] sm:$0xf] %vm2160, %v6151
      %6268 = vst.msk [vmem:[#allocation3 + $0x54] sm:$0xf] %vm2160, %v6153
      %6269 = vst.msk [vmem:[#allocation3 + $0x60] sm:$0xf] %vm2160, %v6155
      %6270 = vst.msk [vmem:[#allocation3 + $0x6c] sm:$0xf] %vm2160, %v6157
      %6271 = vst.msk [vmem:[#allocation3 + $0x78] sm:$0xf] %vm2160, %v6159
      %6272 = vst.msk [vmem:[#allocation3 + $0x84] sm:$0xf] %vm2160, %v6161
      %6273 = vst.msk [vmem:[#allocation3 + $0x90] sm:$0xf] %vm2160, %v6163
      %6274 = vst.msk [vmem:[#allocation3 + $0x9c] sm:$0xf] %vm2160, %v6165
      %6275 = vst.msk [vmem:[#allocation3 + $0xa8] sm:$0xf] %vm2160, %v6167
      %6276 = vst.msk [vmem:[#allocation3 + $0xb4] sm:$0xf] %vm2160, %v6169
      %6277 = vst.msk [vmem:[#allocation3 + $0xc0] sm:$0xf] %vm2160, %v6171
      %6278 = vst.msk [vmem:[#allocation3 + $0xcc] sm:$0xf] %vm2160, %v6173
      %6279 = vst.msk [vmem:[#allocation3 + $0xd8] sm:$0xf] %vm2160, %v6175
      %6280 = vst.msk [vmem:[#allocation3 + $0xe4] sm:$0xf] %vm2160, %v6177
      %6281 = vst.msk [vmem:[#allocation3 + $0xf0] sm:$0xf] %vm2160, %v6179
      %6282 = vst.msk [vmem:[#allocation3 + $0xfc] sm:$0xf] %vm2160, %v6181
      %6283 = vst.msk [vmem:[#allocation3 + $0x108] sm:$0xf] %vm2160, %v6183
      %6284 = vst.msk [vmem:[#allocation3 + $0x114] sm:$0xf] %vm2160, %v6185
      %6285 = vst.msk [vmem:[#allocation3 + $0x120] sm:$0xf] %vm2160, %v6187
      %6286 = vst.msk [vmem:[#allocation3 + $0x12c] sm:$0xf] %vm2160, %v6189
      %6287 = vst.msk [vmem:[#allocation3 + $0x138] sm:$0xf] %vm2160, %v6191
      %6288 = vst.msk [vmem:[#allocation3 + $0x144] sm:$0xf] %vm2160, %v6193
      %6289 = vst.msk [vmem:[#allocation3 + $0x150] sm:$0xf] %vm2160, %v6195
      %6290 = vst.msk [vmem:[#allocation3 + $0x15c] sm:$0xf] %vm2160, %v6197
      %6291 = vst.msk [vmem:[#allocation3 + $0x168] sm:$0xf] %vm2160, %v6199
      %6292 = vst.msk [vmem:[#allocation3 + $0x174] sm:$0xf] %vm2160, %v6201
      %6293 = vst.msk [vmem:[#allocation3 + $0x180] sm:$0xf] %vm2160, %v6203
      %6294 = vst.msk [vmem:[#allocation3 + $0x18c] sm:$0xf] %vm2160, %v6205
      %6295 = vst.msk [vmem:[#allocation3 + $0x198] sm:$0xf] %vm2160, %v6207
      %6296 = vst.msk [vmem:[#allocation3 + $0x1a4] sm:$0xf] %vm2160, %v6209
      %6297 = vst.msk [vmem:[#allocation3 + $0x1b0] sm:$0xf] %vm2160, %v6211
      %6298 = vst.msk [vmem:[#allocation3 + $0x1bc] sm:$0xf] %vm2160, %v6213
      %6299 = vst.msk [vmem:[#allocation3 + $0x1c8] sm:$0xf] %vm2160, %v6215
      %6300 = vst.msk [vmem:[#allocation3 + $0x1d4] sm:$0xf] %vm2160, %v6217
      %6301 = vst.msk [vmem:[#allocation3 + $0x1e0] sm:$0x3] %vm2201, %v6219
      %v6302 = vld [vmem:[#allocation2 + $0x12] sm:$0xff]
      %v6303 = vld [vmem:[#allocation2 + $0x1a] sm:$0xff]
      %v6304 = vld [vmem:[#allocation2 + $0x22] sm:$0xff]
      %v6305 = vld [vmem:[#allocation2 + $0x2a] sm:$0xff]
      %v6306 = vld [vmem:[#allocation2 + $0x32] sm:$0xff]
      %v6307 = vld [vmem:[#allocation2 + $0x3a] sm:$0xff]
      %v6308 = vld [vmem:[#allocation2 + $0x42] sm:$0xff]
      %v6309 = vld [vmem:[#allocation2 + $0x4a] sm:$0xff]
      %v6310 = vld [vmem:[#allocation2 + $0x52] sm:$0xff]
      %v6311 = vld [vmem:[#allocation2 + $0x5a] sm:$0xff]
      %v6312 = vld [vmem:[#allocation2 + $0x62] sm:$0xff]
      %v6313 = vld [vmem:[#allocation2 + $0x6a] sm:$0xff]
      %v6314 = vld [vmem:[#allocation2 + $0x72] sm:$0xff]
      %v6315 = vld [vmem:[#allocation2 + $0x7a] sm:$0xff]
      %v6316 = vld [vmem:[#allocation2 + $0x82] sm:$0xff]
      %v6317 = vld [vmem:[#allocation2 + $0x8a] sm:$0xff]
      %v6318 = vld [vmem:[#allocation2 + $0x92] sm:$0xff]
      %v6319 = vld [vmem:[#allocation2 + $0x9a] sm:$0xff]
      %v6320 = vld [vmem:[#allocation2 + $0xa2] sm:$0xff]
      %v6321 = vld [vmem:[#allocation2 + $0xaa] sm:$0xff]
      %v6322 = vld [vmem:[#allocation2 + $0xb2] sm:$0xff]
      %v6323 = vld [vmem:[#allocation2 + $0xba] sm:$0xff]
      %v6324 = vld [vmem:[#allocation2 + $0xc2] sm:$0xff]
      %v6325 = vld [vmem:[#allocation2 + $0xca] sm:$0xff]
      %v6326 = vld [vmem:[#allocation2 + $0xd2] sm:$0xff]
      %v6327 = vld [vmem:[#allocation2 + $0xda] sm:$0xff]
      %v6328 = vld [vmem:[#allocation2 + $0xe2] sm:$0xff]
      %v6329 = vld [vmem:[#allocation2 + $0xea] sm:$0xff]
      %v6330 = vld [vmem:[#allocation2 + $0xf2] sm:$0xff]
      %v6331 = vld [vmem:[#allocation2 + $0xfa] sm:$0xff]
      %v6332 = vld [vmem:[#allocation2 + $0x102] sm:$0xff]
      %v6333 = vld [vmem:[#allocation2 + $0x10a] sm:$0xff]
      %v6334 = vld [vmem:[#allocation2 + $0x112] sm:$0xff]
      %v6335 = vld [vmem:[#allocation2 + $0x11a] sm:$0xff]
      %v6336 = vld [vmem:[#allocation2 + $0x122] sm:$0xff]
      %v6337 = vld [vmem:[#allocation2 + $0x12a] sm:$0xff]
      %v6338 = vld [vmem:[#allocation2 + $0x132] sm:$0xff]
      %v6339 = vld [vmem:[#allocation2 + $0x13a] sm:$0xff]
      %v6340 = vld [vmem:[#allocation2 + $0x142] sm:$0xff]
      %v6341 = vld [vmem:[#allocation2 + $0x14a] sm:$0xff]
      %v6342 = vld [vmem:[#allocation2 + $0x152] sm:$0xf]
      %v6343 = vpack.c.bf16 %v6302, %v6302
      %v6344 = vpack.c.bf16 %v6303, %v6303
      %v6345 = vpack.c.bf16 %v6304, %v6304
      %v6346 = vpack.c.bf16 %v6305, %v6305
      %v6347 = vpack.c.bf16 %v6306, %v6306
      %v6348 = vpack.c.bf16 %v6307, %v6307
      %v6349 = vpack.c.bf16 %v6308, %v6308
      %v6350 = vpack.c.bf16 %v6309, %v6309
      %v6351 = vpack.c.bf16 %v6310, %v6310
      %v6352 = vpack.c.bf16 %v6311, %v6311
      %v6353 = vpack.c.bf16 %v6312, %v6312
      %v6354 = vpack.c.bf16 %v6313, %v6313
      %v6355 = vpack.c.bf16 %v6314, %v6314
      %v6356 = vpack.c.bf16 %v6315, %v6315
      %v6357 = vpack.c.bf16 %v6316, %v6316
      %v6358 = vpack.c.bf16 %v6317, %v6317
      %v6359 = vpack.c.bf16 %v6318, %v6318
      %v6360 = vpack.c.bf16 %v6319, %v6319
      %v6361 = vpack.c.bf16 %v6320, %v6320
      %v6362 = vpack.c.bf16 %v6321, %v6321
      %v6363 = vpack.c.bf16 %v6322, %v6322
      %v6364 = vpack.c.bf16 %v6323, %v6323
      %v6365 = vpack.c.bf16 %v6324, %v6324
      %v6366 = vpack.c.bf16 %v6325, %v6325
      %v6367 = vpack.c.bf16 %v6326, %v6326
      %v6368 = vpack.c.bf16 %v6327, %v6327
      %v6369 = vpack.c.bf16 %v6328, %v6328
      %v6370 = vpack.c.bf16 %v6329, %v6329
      %v6371 = vpack.c.bf16 %v6330, %v6330
      %v6372 = vpack.c.bf16 %v6331, %v6331
      %v6373 = vpack.c.bf16 %v6332, %v6332
      %v6374 = vpack.c.bf16 %v6333, %v6333
      %v6375 = vpack.c.bf16 %v6334, %v6334
      %v6376 = vpack.c.bf16 %v6335, %v6335
      %v6377 = vpack.c.bf16 %v6336, %v6336
      %v6378 = vpack.c.bf16 %v6337, %v6337
      %v6379 = vpack.c.bf16 %v6338, %v6338
      %v6380 = vpack.c.bf16 %v6339, %v6339
      %v6381 = vpack.c.bf16 %v6340, %v6340
      %v6382 = vpack.c.bf16 %v6341, %v6341
      %v6383 = vpack.c.bf16 %v6342, %v6342
      %6425 = vrot.lane.b32.xlu0 %v6343, 96
      %v6426 = vpop.permute.xlu0 %6425
      %6427 = vrot.lane.b32.xlu0 %v6344, 96
      %v6428 = vpop.permute.xlu0 %6427
      %6429 = vrot.lane.b32.xlu0 %v6345, 96
      %v6430 = vpop.permute.xlu0 %6429
      %6431 = vrot.lane.b32.xlu0 %v6346, 96
      %v6432 = vpop.permute.xlu0 %6431
      %6433 = vrot.lane.b32.xlu0 %v6347, 96
      %v6434 = vpop.permute.xlu0 %6433
      %6435 = vrot.lane.b32.xlu0 %v6348, 96
      %v6436 = vpop.permute.xlu0 %6435
      %6437 = vrot.lane.b32.xlu0 %v6349, 96
      %v6438 = vpop.permute.xlu0 %6437
      %6439 = vrot.lane.b32.xlu0 %v6350, 96
      %v6440 = vpop.permute.xlu0 %6439
      %6441 = vrot.lane.b32.xlu0 %v6351, 96
      %v6442 = vpop.permute.xlu0 %6441
      %6443 = vrot.lane.b32.xlu0 %v6352, 96
      %v6444 = vpop.permute.xlu0 %6443
      %6445 = vrot.lane.b32.xlu0 %v6353, 96
      %v6446 = vpop.permute.xlu0 %6445
      %6447 = vrot.lane.b32.xlu0 %v6354, 96
      %v6448 = vpop.permute.xlu0 %6447
      %6449 = vrot.lane.b32.xlu0 %v6355, 96
      %v6450 = vpop.permute.xlu0 %6449
      %6451 = vrot.lane.b32.xlu0 %v6356, 96
      %v6452 = vpop.permute.xlu0 %6451
      %6453 = vrot.lane.b32.xlu0 %v6357, 96
      %v6454 = vpop.permute.xlu0 %6453
      %6455 = vrot.lane.b32.xlu0 %v6358, 96
      %v6456 = vpop.permute.xlu0 %6455
      %6457 = vrot.lane.b32.xlu0 %v6359, 96
      %v6458 = vpop.permute.xlu0 %6457
      %6459 = vrot.lane.b32.xlu0 %v6360, 96
      %v6460 = vpop.permute.xlu0 %6459
      %6461 = vrot.lane.b32.xlu0 %v6361, 96
      %v6462 = vpop.permute.xlu0 %6461
      %6463 = vrot.lane.b32.xlu0 %v6362, 96
      %v6464 = vpop.permute.xlu0 %6463
      %6465 = vrot.lane.b32.xlu0 %v6363, 96
      %v6466 = vpop.permute.xlu0 %6465
      %6467 = vrot.lane.b32.xlu0 %v6364, 96
      %v6468 = vpop.permute.xlu0 %6467
      %6469 = vrot.lane.b32.xlu0 %v6365, 96
      %v6470 = vpop.permute.xlu0 %6469
      %6471 = vrot.lane.b32.xlu0 %v6366, 96
      %v6472 = vpop.permute.xlu0 %6471
      %6473 = vrot.lane.b32.xlu0 %v6367, 96
      %v6474 = vpop.permute.xlu0 %6473
      %6475 = vrot.lane.b32.xlu0 %v6368, 96
      %v6476 = vpop.permute.xlu0 %6475
      %6477 = vrot.lane.b32.xlu0 %v6369, 96
      %v6478 = vpop.permute.xlu0 %6477
      %6479 = vrot.lane.b32.xlu0 %v6370, 96
      %v6480 = vpop.permute.xlu0 %6479
      %6481 = vrot.lane.b32.xlu0 %v6371, 96
      %v6482 = vpop.permute.xlu0 %6481
      %6483 = vrot.lane.b32.xlu0 %v6372, 96
      %v6484 = vpop.permute.xlu0 %6483
      %6485 = vrot.lane.b32.xlu0 %v6373, 96
      %v6486 = vpop.permute.xlu0 %6485
      %6487 = vrot.lane.b32.xlu0 %v6374, 96
      %v6488 = vpop.permute.xlu0 %6487
      %6489 = vrot.lane.b32.xlu0 %v6375, 96
      %v6490 = vpop.permute.xlu0 %6489
      %6491 = vrot.lane.b32.xlu0 %v6376, 96
      %v6492 = vpop.permute.xlu0 %6491
      %6493 = vrot.lane.b32.xlu0 %v6377, 96
      %v6494 = vpop.permute.xlu0 %6493
      %6495 = vrot.lane.b32.xlu0 %v6378, 96
      %v6496 = vpop.permute.xlu0 %6495
      %6497 = vrot.lane.b32.xlu0 %v6379, 96
      %v6498 = vpop.permute.xlu0 %6497
      %6499 = vrot.lane.b32.xlu0 %v6380, 96
      %v6500 = vpop.permute.xlu0 %6499
      %6501 = vrot.lane.b32.xlu0 %v6381, 96
      %v6502 = vpop.permute.xlu0 %6501
      %6503 = vrot.lane.b32.xlu0 %v6382, 96
      %v6504 = vpop.permute.xlu0 %6503
      %6505 = vrot.lane.b32.xlu0 %v6383, 96
      %v6506 = vpop.permute.xlu0 %6505
      %6548 = vst.msk [vmem:[#allocation3] sm:$0xf] %vm2449, %v6426
      %6549 = vst.msk [vmem:[#allocation3 + $0xc] sm:$0xf] %vm2449, %v6428
      %6550 = vst.msk [vmem:[#allocation3 + $0x18] sm:$0xf] %vm2449, %v6430
      %6551 = vst.msk [vmem:[#allocation3 + $0x24] sm:$0xf] %vm2449, %v6432
      %6552 = vst.msk [vmem:[#allocation3 + $0x30] sm:$0xf] %vm2449, %v6434
      %6553 = vst.msk [vmem:[#allocation3 + $0x3c] sm:$0xf] %vm2449, %v6436
      %6554 = vst.msk [vmem:[#allocation3 + $0x48] sm:$0xf] %vm2449, %v6438
      %6555 = vst.msk [vmem:[#allocation3 + $0x54] sm:$0xf] %vm2449, %v6440
      %6556 = vst.msk [vmem:[#allocation3 + $0x60] sm:$0xf] %vm2449, %v6442
      %6557 = vst.msk [vmem:[#allocation3 + $0x6c] sm:$0xf] %vm2449, %v6444
      %6558 = vst.msk [vmem:[#allocation3 + $0x78] sm:$0xf] %vm2449, %v6446
      %6559 = vst.msk [vmem:[#allocation3 + $0x84] sm:$0xf] %vm2449, %v6448
      %6560 = vst.msk [vmem:[#allocation3 + $0x90] sm:$0xf] %vm2449, %v6450
      %6561 = vst.msk [vmem:[#allocation3 + $0x9c] sm:$0xf] %vm2449, %v6452
      %6562 = vst.msk [vmem:[#allocation3 + $0xa8] sm:$0xf] %vm2449, %v6454
      %6563 = vst.msk [vmem:[#allocation3 + $0xb4] sm:$0xf] %vm2449, %v6456
      %6564 = vst.msk [vmem:[#allocation3 + $0xc0] sm:$0xf] %vm2449, %v6458
      %6565 = vst.msk [vmem:[#allocation3 + $0xcc] sm:$0xf] %vm2449, %v6460
      %6566 = vst.msk [vmem:[#allocation3 + $0xd8] sm:$0xf] %vm2449, %v6462
      %6567 = vst.msk [vmem:[#allocation3 + $0xe4] sm:$0xf] %vm2449, %v6464
      %6568 = vst.msk [vmem:[#allocation3 + $0xf0] sm:$0xf] %vm2449, %v6466
      %6569 = vst.msk [vmem:[#allocation3 + $0xfc] sm:$0xf] %vm2449, %v6468
      %6570 = vst.msk [vmem:[#allocation3 + $0x108] sm:$0xf] %vm2449, %v6470
      %6571 = vst.msk [vmem:[#allocation3 + $0x114] sm:$0xf] %vm2449, %v6472
      %6572 = vst.msk [vmem:[#allocation3 + $0x120] sm:$0xf] %vm2449, %v6474
      %6573 = vst.msk [vmem:[#allocation3 + $0x12c] sm:$0xf] %vm2449, %v6476
      %6574 = vst.msk [vmem:[#allocation3 + $0x138] sm:$0xf] %vm2449, %v6478
      %6575 = vst.msk [vmem:[#allocation3 + $0x144] sm:$0xf] %vm2449, %v6480
      %6576 = vst.msk [vmem:[#allocation3 + $0x150] sm:$0xf] %vm2449, %v6482
      %6577 = vst.msk [vmem:[#allocation3 + $0x15c] sm:$0xf] %vm2449, %v6484
      %6578 = vst.msk [vmem:[#allocation3 + $0x168] sm:$0xf] %vm2449, %v6486
      %6579 = vst.msk [vmem:[#allocation3 + $0x174] sm:$0xf] %vm2449, %v6488
      %6580 = vst.msk [vmem:[#allocation3 + $0x180] sm:$0xf] %vm2449, %v6490
      %6581 = vst.msk [vmem:[#allocation3 + $0x18c] sm:$0xf] %vm2449, %v6492
      %6582 = vst.msk [vmem:[#allocation3 + $0x198] sm:$0xf] %vm2449, %v6494
      %6583 = vst.msk [vmem:[#allocation3 + $0x1a4] sm:$0xf] %vm2449, %v6496
      %6584 = vst.msk [vmem:[#allocation3 + $0x1b0] sm:$0xf] %vm2449, %v6498
      %6585 = vst.msk [vmem:[#allocation3 + $0x1bc] sm:$0xf] %vm2449, %v6500
      %6586 = vst.msk [vmem:[#allocation3 + $0x1c8] sm:$0xf] %vm2449, %v6502
      %6587 = vst.msk [vmem:[#allocation3 + $0x1d4] sm:$0xf] %vm2449, %v6504
      %6588 = vst.msk [vmem:[#allocation3 + $0x1e0] sm:$0x3] %vm2490, %v6506
      %v6589 = vld [vmem:[#allocation2 + $0x13] sm:$0xff]
      %v6590 = vld [vmem:[#allocation2 + $0x1b] sm:$0xff]
      %v6591 = vld [vmem:[#allocation2 + $0x23] sm:$0xff]
      %v6592 = vld [vmem:[#allocation2 + $0x2b] sm:$0xff]
      %v6593 = vld [vmem:[#allocation2 + $0x33] sm:$0xff]
      %v6594 = vld [vmem:[#allocation2 + $0x3b] sm:$0xff]
      %v6595 = vld [vmem:[#allocation2 + $0x43] sm:$0xff]
      %v6596 = vld [vmem:[#allocation2 + $0x4b] sm:$0xff]
      %v6597 = vld [vmem:[#allocation2 + $0x53] sm:$0xff]
      %v6598 = vld [vmem:[#allocation2 + $0x5b] sm:$0xff]
      %v6599 = vld [vmem:[#allocation2 + $0x63] sm:$0xff]
      %v6600 = vld [vmem:[#allocation2 + $0x6b] sm:$0xff]
      %v6601 = vld [vmem:[#allocation2 + $0x73] sm:$0xff]
      %v6602 = vld [vmem:[#allocation2 + $0x7b] sm:$0xff]
      %v6603 = vld [vmem:[#allocation2 + $0x83] sm:$0xff]
      %v6604 = vld [vmem:[#allocation2 + $0x8b] sm:$0xff]
      %v6605 = vld [vmem:[#allocation2 + $0x93] sm:$0xff]
      %v6606 = vld [vmem:[#allocation2 + $0x9b] sm:$0xff]
      %v6607 = vld [vmem:[#allocation2 + $0xa3] sm:$0xff]
      %v6608 = vld [vmem:[#allocation2 + $0xab] sm:$0xff]
      %v6609 = vld [vmem:[#allocation2 + $0xb3] sm:$0xff]
      %v6610 = vld [vmem:[#allocation2 + $0xbb] sm:$0xff]
      %v6611 = vld [vmem:[#allocation2 + $0xc3] sm:$0xff]
      %v6612 = vld [vmem:[#allocation2 + $0xcb] sm:$0xff]
      %v6613 = vld [vmem:[#allocation2 + $0xd3] sm:$0xff]
      %v6614 = vld [vmem:[#allocation2 + $0xdb] sm:$0xff]
      %v6615 = vld [vmem:[#allocation2 + $0xe3] sm:$0xff]
      %v6616 = vld [vmem:[#allocation2 + $0xeb] sm:$0xff]
      %v6617 = vld [vmem:[#allocation2 + $0xf3] sm:$0xff]
      %v6618 = vld [vmem:[#allocation2 + $0xfb] sm:$0xff]
      %v6619 = vld [vmem:[#allocation2 + $0x103] sm:$0xff]
      %v6620 = vld [vmem:[#allocation2 + $0x10b] sm:$0xff]
      %v6621 = vld [vmem:[#allocation2 + $0x113] sm:$0xff]
      %v6622 = vld [vmem:[#allocation2 + $0x11b] sm:$0xff]
      %v6623 = vld [vmem:[#allocation2 + $0x123] sm:$0xff]
      %v6624 = vld [vmem:[#allocation2 + $0x12b] sm:$0xff]
      %v6625 = vld [vmem:[#allocation2 + $0x133] sm:$0xff]
      %v6626 = vld [vmem:[#allocation2 + $0x13b] sm:$0xff]
      %v6627 = vld [vmem:[#allocation2 + $0x143] sm:$0xff]
      %v6628 = vld [vmem:[#allocation2 + $0x14b] sm:$0xff]
      %v6629 = vld [vmem:[#allocation2 + $0x153] sm:$0xf]
      %v6630 = vpack.c.bf16 %v6589, %v6589
      %v6631 = vpack.c.bf16 %v6590, %v6590
      %v6632 = vpack.c.bf16 %v6591, %v6591
      %v6633 = vpack.c.bf16 %v6592, %v6592
      %v6634 = vpack.c.bf16 %v6593, %v6593
      %v6635 = vpack.c.bf16 %v6594, %v6594
      %v6636 = vpack.c.bf16 %v6595, %v6595
      %v6637 = vpack.c.bf16 %v6596, %v6596
      %v6638 = vpack.c.bf16 %v6597, %v6597
      %v6639 = vpack.c.bf16 %v6598, %v6598
      %v6640 = vpack.c.bf16 %v6599, %v6599
      %v6641 = vpack.c.bf16 %v6600, %v6600
      %v6642 = vpack.c.bf16 %v6601, %v6601
      %v6643 = vpack.c.bf16 %v6602, %v6602
      %v6644 = vpack.c.bf16 %v6603, %v6603
      %v6645 = vpack.c.bf16 %v6604, %v6604
      %v6646 = vpack.c.bf16 %v6605, %v6605
      %v6647 = vpack.c.bf16 %v6606, %v6606
      %v6648 = vpack.c.bf16 %v6607, %v6607
      %v6649 = vpack.c.bf16 %v6608, %v6608
      %v6650 = vpack.c.bf16 %v6609, %v6609
      %v6651 = vpack.c.bf16 %v6610, %v6610
      %v6652 = vpack.c.bf16 %v6611, %v6611
      %v6653 = vpack.c.bf16 %v6612, %v6612
      %v6654 = vpack.c.bf16 %v6613, %v6613
      %v6655 = vpack.c.bf16 %v6614, %v6614
      %v6656 = vpack.c.bf16 %v6615, %v6615
      %v6657 = vpack.c.bf16 %v6616, %v6616
      %v6658 = vpack.c.bf16 %v6617, %v6617
      %v6659 = vpack.c.bf16 %v6618, %v6618
      %v6660 = vpack.c.bf16 %v6619, %v6619
      %v6661 = vpack.c.bf16 %v6620, %v6620
      %v6662 = vpack.c.bf16 %v6621, %v6621
      %v6663 = vpack.c.bf16 %v6622, %v6622
      %v6664 = vpack.c.bf16 %v6623, %v6623
      %v6665 = vpack.c.bf16 %v6624, %v6624
      %v6666 = vpack.c.bf16 %v6625, %v6625
      %v6667 = vpack.c.bf16 %v6626, %v6626
      %v6668 = vpack.c.bf16 %v6627, %v6627
      %v6669 = vpack.c.bf16 %v6628, %v6628
      %v6670 = vpack.c.bf16 %v6629, %v6629
      %6671 = vst.msk [vmem:[#allocation3 + $0x4] sm:$0xf] %vm1583, %v6630
      %6672 = vst.msk [vmem:[#allocation3 + $0x10] sm:$0xf] %vm1583, %v6631
      %6673 = vst.msk [vmem:[#allocation3 + $0x1c] sm:$0xf] %vm1583, %v6632
      %6674 = vst.msk [vmem:[#allocation3 + $0x28] sm:$0xf] %vm1583, %v6633
      %6675 = vst.msk [vmem:[#allocation3 + $0x34] sm:$0xf] %vm1583, %v6634
      %6676 = vst.msk [vmem:[#allocation3 + $0x40] sm:$0xf] %vm1583, %v6635
      %6677 = vst.msk [vmem:[#allocation3 + $0x4c] sm:$0xf] %vm1583, %v6636
      %6678 = vst.msk [vmem:[#allocation3 + $0x58] sm:$0xf] %vm1583, %v6637
      %6679 = vst.msk [vmem:[#allocation3 + $0x64] sm:$0xf] %vm1583, %v6638
      %6680 = vst.msk [vmem:[#allocation3 + $0x70] sm:$0xf] %vm1583, %v6639
      %6681 = vst.msk [vmem:[#allocation3 + $0x7c] sm:$0xf] %vm1583, %v6640
      %6682 = vst.msk [vmem:[#allocation3 + $0x88] sm:$0xf] %vm1583, %v6641
      %6683 = vst.msk [vmem:[#allocation3 + $0x94] sm:$0xf] %vm1583, %v6642
      %6684 = vst.msk [vmem:[#allocation3 + $0xa0] sm:$0xf] %vm1583, %v6643
      %6685 = vst.msk [vmem:[#allocation3 + $0xac] sm:$0xf] %vm1583, %v6644
      %6686 = vst.msk [vmem:[#allocation3 + $0xb8] sm:$0xf] %vm1583, %v6645
      %6687 = vst.msk [vmem:[#allocation3 + $0xc4] sm:$0xf] %vm1583, %v6646
      %6688 = vst.msk [vmem:[#allocation3 + $0xd0] sm:$0xf] %vm1583, %v6647
      %6689 = vst.msk [vmem:[#allocation3 + $0xdc] sm:$0xf] %vm1583, %v6648
      %6690 = vst.msk [vmem:[#allocation3 + $0xe8] sm:$0xf] %vm1583, %v6649
      %6691 = vst.msk [vmem:[#allocation3 + $0xf4] sm:$0xf] %vm1583, %v6650
      %6692 = vst.msk [vmem:[#allocation3 + $0x100] sm:$0xf] %vm1583, %v6651
      %6693 = vst.msk [vmem:[#allocation3 + $0x10c] sm:$0xf] %vm1583, %v6652
      %6694 = vst.msk [vmem:[#allocation3 + $0x118] sm:$0xf] %vm1583, %v6653
      %6695 = vst.msk [vmem:[#allocation3 + $0x124] sm:$0xf] %vm1583, %v6654
      %6696 = vst.msk [vmem:[#allocation3 + $0x130] sm:$0xf] %vm1583, %v6655
      %6697 = vst.msk [vmem:[#allocation3 + $0x13c] sm:$0xf] %vm1583, %v6656
      %6698 = vst.msk [vmem:[#allocation3 + $0x148] sm:$0xf] %vm1583, %v6657
      %6699 = vst.msk [vmem:[#allocation3 + $0x154] sm:$0xf] %vm1583, %v6658
      %6700 = vst.msk [vmem:[#allocation3 + $0x160] sm:$0xf] %vm1583, %v6659
      %6701 = vst.msk [vmem:[#allocation3 + $0x16c] sm:$0xf] %vm1583, %v6660
      %6702 = vst.msk [vmem:[#allocation3 + $0x178] sm:$0xf] %vm1583, %v6661
      %6703 = vst.msk [vmem:[#allocation3 + $0x184] sm:$0xf] %vm1583, %v6662
      %6704 = vst.msk [vmem:[#allocation3 + $0x190] sm:$0xf] %vm1583, %v6663
      %6705 = vst.msk [vmem:[#allocation3 + $0x19c] sm:$0xf] %vm1583, %v6664
      %6706 = vst.msk [vmem:[#allocation3 + $0x1a8] sm:$0xf] %vm1583, %v6665
      %6707 = vst.msk [vmem:[#allocation3 + $0x1b4] sm:$0xf] %vm1583, %v6666
      %6708 = vst.msk [vmem:[#allocation3 + $0x1c0] sm:$0xf] %vm1583, %v6667
      %6709 = vst.msk [vmem:[#allocation3 + $0x1cc] sm:$0xf] %vm1583, %v6668
      %6710 = vst.msk [vmem:[#allocation3 + $0x1d8] sm:$0xf] %vm1583, %v6669
      %6711 = vst.msk [vmem:[#allocation3 + $0x1e4] sm:$0x3] %vm632, %v6670
      %v6712 = vld [vmem:[#allocation2 + $0x14] sm:$0xff]
      %v6713 = vld [vmem:[#allocation2 + $0x1c] sm:$0xff]
      %v6714 = vld [vmem:[#allocation2 + $0x24] sm:$0xff]
      %v6715 = vld [vmem:[#allocation2 + $0x2c] sm:$0xff]
      %v6716 = vld [vmem:[#allocation2 + $0x34] sm:$0xff]
      %v6717 = vld [vmem:[#allocation2 + $0x3c] sm:$0xff]
      %v6718 = vld [vmem:[#allocation2 + $0x44] sm:$0xff]
      %v6719 = vld [vmem:[#allocation2 + $0x4c] sm:$0xff]
      %v6720 = vld [vmem:[#allocation2 + $0x54] sm:$0xff]
      %v6721 = vld [vmem:[#allocation2 + $0x5c] sm:$0xff]
      %v6722 = vld [vmem:[#allocation2 + $0x64] sm:$0xff]
      %v6723 = vld [vmem:[#allocation2 + $0x6c] sm:$0xff]
      %v6724 = vld [vmem:[#allocation2 + $0x74] sm:$0xff]
      %v6725 = vld [vmem:[#allocation2 + $0x7c] sm:$0xff]
      %v6726 = vld [vmem:[#allocation2 + $0x84] sm:$0xff]
      %v6727 = vld [vmem:[#allocation2 + $0x8c] sm:$0xff]
      %v6728 = vld [vmem:[#allocation2 + $0x94] sm:$0xff]
      %v6729 = vld [vmem:[#allocation2 + $0x9c] sm:$0xff]
      %v6730 = vld [vmem:[#allocation2 + $0xa4] sm:$0xff]
      %v6731 = vld [vmem:[#allocation2 + $0xac] sm:$0xff]
      %v6732 = vld [vmem:[#allocation2 + $0xb4] sm:$0xff]
      %v6733 = vld [vmem:[#allocation2 + $0xbc] sm:$0xff]
      %v6734 = vld [vmem:[#allocation2 + $0xc4] sm:$0xff]
      %v6735 = vld [vmem:[#allocation2 + $0xcc] sm:$0xff]
      %v6736 = vld [vmem:[#allocation2 + $0xd4] sm:$0xff]
      %v6737 = vld [vmem:[#allocation2 + $0xdc] sm:$0xff]
      %v6738 = vld [vmem:[#allocation2 + $0xe4] sm:$0xff]
      %v6739 = vld [vmem:[#allocation2 + $0xec] sm:$0xff]
      %v6740 = vld [vmem:[#allocation2 + $0xf4] sm:$0xff]
      %v6741 = vld [vmem:[#allocation2 + $0xfc] sm:$0xff]
      %v6742 = vld [vmem:[#allocation2 + $0x104] sm:$0xff]
      %v6743 = vld [vmem:[#allocation2 + $0x10c] sm:$0xff]
      %v6744 = vld [vmem:[#allocation2 + $0x114] sm:$0xff]
      %v6745 = vld [vmem:[#allocation2 + $0x11c] sm:$0xff]
      %v6746 = vld [vmem:[#allocation2 + $0x124] sm:$0xff]
      %v6747 = vld [vmem:[#allocation2 + $0x12c] sm:$0xff]
      %v6748 = vld [vmem:[#allocation2 + $0x134] sm:$0xff]
      %v6749 = vld [vmem:[#allocation2 + $0x13c] sm:$0xff]
      %v6750 = vld [vmem:[#allocation2 + $0x144] sm:$0xff]
      %v6751 = vld [vmem:[#allocation2 + $0x14c] sm:$0xff]
      %v6752 = vld [vmem:[#allocation2 + $0x154] sm:$0xf]
      %v6753 = vpack.c.bf16 %v6712, %v6712
      %v6754 = vpack.c.bf16 %v6713, %v6713
      %v6755 = vpack.c.bf16 %v6714, %v6714
      %v6756 = vpack.c.bf16 %v6715, %v6715
      %v6757 = vpack.c.bf16 %v6716, %v6716
      %v6758 = vpack.c.bf16 %v6717, %v6717
      %v6759 = vpack.c.bf16 %v6718, %v6718
      %v6760 = vpack.c.bf16 %v6719, %v6719
      %v6761 = vpack.c.bf16 %v6720, %v6720
      %v6762 = vpack.c.bf16 %v6721, %v6721
      %v6763 = vpack.c.bf16 %v6722, %v6722
      %v6764 = vpack.c.bf16 %v6723, %v6723
      %v6765 = vpack.c.bf16 %v6724, %v6724
      %v6766 = vpack.c.bf16 %v6725, %v6725
      %v6767 = vpack.c.bf16 %v6726, %v6726
      %v6768 = vpack.c.bf16 %v6727, %v6727
      %v6769 = vpack.c.bf16 %v6728, %v6728
      %v6770 = vpack.c.bf16 %v6729, %v6729
      %v6771 = vpack.c.bf16 %v6730, %v6730
      %v6772 = vpack.c.bf16 %v6731, %v6731
      %v6773 = vpack.c.bf16 %v6732, %v6732
      %v6774 = vpack.c.bf16 %v6733, %v6733
      %v6775 = vpack.c.bf16 %v6734, %v6734
      %v6776 = vpack.c.bf16 %v6735, %v6735
      %v6777 = vpack.c.bf16 %v6736, %v6736
      %v6778 = vpack.c.bf16 %v6737, %v6737
      %v6779 = vpack.c.bf16 %v6738, %v6738
      %v6780 = vpack.c.bf16 %v6739, %v6739
      %v6781 = vpack.c.bf16 %v6740, %v6740
      %v6782 = vpack.c.bf16 %v6741, %v6741
      %v6783 = vpack.c.bf16 %v6742, %v6742
      %v6784 = vpack.c.bf16 %v6743, %v6743
      %v6785 = vpack.c.bf16 %v6744, %v6744
      %v6786 = vpack.c.bf16 %v6745, %v6745
      %v6787 = vpack.c.bf16 %v6746, %v6746
      %v6788 = vpack.c.bf16 %v6747, %v6747
      %v6789 = vpack.c.bf16 %v6748, %v6748
      %v6790 = vpack.c.bf16 %v6749, %v6749
      %v6791 = vpack.c.bf16 %v6750, %v6750
      %v6792 = vpack.c.bf16 %v6751, %v6751
      %v6793 = vpack.c.bf16 %v6752, %v6752
      %6835 = vrot.lane.b32.xlu0 %v6753, 32
      %v6836 = vpop.permute.xlu0 %6835
      %6837 = vrot.lane.b32.xlu0 %v6754, 32
      %v6838 = vpop.permute.xlu0 %6837
      %6839 = vrot.lane.b32.xlu0 %v6755, 32
      %v6840 = vpop.permute.xlu0 %6839
      %6841 = vrot.lane.b32.xlu0 %v6756, 32
      %v6842 = vpop.permute.xlu0 %6841
      %6843 = vrot.lane.b32.xlu0 %v6757, 32
      %v6844 = vpop.permute.xlu0 %6843
      %6845 = vrot.lane.b32.xlu0 %v6758, 32
      %v6846 = vpop.permute.xlu0 %6845
      %6847 = vrot.lane.b32.xlu0 %v6759, 32
      %v6848 = vpop.permute.xlu0 %6847
      %6849 = vrot.lane.b32.xlu0 %v6760, 32
      %v6850 = vpop.permute.xlu0 %6849
      %6851 = vrot.lane.b32.xlu0 %v6761, 32
      %v6852 = vpop.permute.xlu0 %6851
      %6853 = vrot.lane.b32.xlu0 %v6762, 32
      %v6854 = vpop.permute.xlu0 %6853
      %6855 = vrot.lane.b32.xlu0 %v6763, 32
      %v6856 = vpop.permute.xlu0 %6855
      %6857 = vrot.lane.b32.xlu0 %v6764, 32
      %v6858 = vpop.permute.xlu0 %6857
      %6859 = vrot.lane.b32.xlu0 %v6765, 32
      %v6860 = vpop.permute.xlu0 %6859
      %6861 = vrot.lane.b32.xlu0 %v6766, 32
      %v6862 = vpop.permute.xlu0 %6861
      %6863 = vrot.lane.b32.xlu0 %v6767, 32
      %v6864 = vpop.permute.xlu0 %6863
      %6865 = vrot.lane.b32.xlu0 %v6768, 32
      %v6866 = vpop.permute.xlu0 %6865
      %6867 = vrot.lane.b32.xlu0 %v6769, 32
      %v6868 = vpop.permute.xlu0 %6867
      %6869 = vrot.lane.b32.xlu0 %v6770, 32
      %v6870 = vpop.permute.xlu0 %6869
      %6871 = vrot.lane.b32.xlu0 %v6771, 32
      %v6872 = vpop.permute.xlu0 %6871
      %6873 = vrot.lane.b32.xlu0 %v6772, 32
      %v6874 = vpop.permute.xlu0 %6873
      %6875 = vrot.lane.b32.xlu0 %v6773, 32
      %v6876 = vpop.permute.xlu0 %6875
      %6877 = vrot.lane.b32.xlu0 %v6774, 32
      %v6878 = vpop.permute.xlu0 %6877
      %6879 = vrot.lane.b32.xlu0 %v6775, 32
      %v6880 = vpop.permute.xlu0 %6879
      %6881 = vrot.lane.b32.xlu0 %v6776, 32
      %v6882 = vpop.permute.xlu0 %6881
      %6883 = vrot.lane.b32.xlu0 %v6777, 32
      %v6884 = vpop.permute.xlu0 %6883
      %6885 = vrot.lane.b32.xlu0 %v6778, 32
      %v6886 = vpop.permute.xlu0 %6885
      %6887 = vrot.lane.b32.xlu0 %v6779, 32
      %v6888 = vpop.permute.xlu0 %6887
      %6889 = vrot.lane.b32.xlu0 %v6780, 32
      %v6890 = vpop.permute.xlu0 %6889
      %6891 = vrot.lane.b32.xlu0 %v6781, 32
      %v6892 = vpop.permute.xlu0 %6891
      %6893 = vrot.lane.b32.xlu0 %v6782, 32
      %v6894 = vpop.permute.xlu0 %6893
      %6895 = vrot.lane.b32.xlu0 %v6783, 32
      %v6896 = vpop.permute.xlu0 %6895
      %6897 = vrot.lane.b32.xlu0 %v6784, 32
      %v6898 = vpop.permute.xlu0 %6897
      %6899 = vrot.lane.b32.xlu0 %v6785, 32
      %v6900 = vpop.permute.xlu0 %6899
      %6901 = vrot.lane.b32.xlu0 %v6786, 32
      %v6902 = vpop.permute.xlu0 %6901
      %6903 = vrot.lane.b32.xlu0 %v6787, 32
      %v6904 = vpop.permute.xlu0 %6903
      %6905 = vrot.lane.b32.xlu0 %v6788, 32
      %v6906 = vpop.permute.xlu0 %6905
      %6907 = vrot.lane.b32.xlu0 %v6789, 32
      %v6908 = vpop.permute.xlu0 %6907
      %6909 = vrot.lane.b32.xlu0 %v6790, 32
      %v6910 = vpop.permute.xlu0 %6909
      %6911 = vrot.lane.b32.xlu0 %v6791, 32
      %v6912 = vpop.permute.xlu0 %6911
      %6913 = vrot.lane.b32.xlu0 %v6792, 32
      %v6914 = vpop.permute.xlu0 %6913
      %6915 = vrot.lane.b32.xlu0 %v6793, 32
      %v6916 = vpop.permute.xlu0 %6915
      %6958 = vst.msk [vmem:[#allocation3 + $0x4] sm:$0xf] %vm1871, %v6836
      %6959 = vst.msk [vmem:[#allocation3 + $0x10] sm:$0xf] %vm1871, %v6838
      %6960 = vst.msk [vmem:[#allocation3 + $0x1c] sm:$0xf] %vm1871, %v6840
      %6961 = vst.msk [vmem:[#allocation3 + $0x28] sm:$0xf] %vm1871, %v6842
      %6962 = vst.msk [vmem:[#allocation3 + $0x34] sm:$0xf] %vm1871, %v6844
      %6963 = vst.msk [vmem:[#allocation3 + $0x40] sm:$0xf] %vm1871, %v6846
      %6964 = vst.msk [vmem:[#allocation3 + $0x4c] sm:$0xf] %vm1871, %v6848
      %6965 = vst.msk [vmem:[#allocation3 + $0x58] sm:$0xf] %vm1871, %v6850
      %6966 = vst.msk [vmem:[#allocation3 + $0x64] sm:$0xf] %vm1871, %v6852
      %6967 = vst.msk [vmem:[#allocation3 + $0x70] sm:$0xf] %vm1871, %v6854
      %6968 = vst.msk [vmem:[#allocation3 + $0x7c] sm:$0xf] %vm1871, %v6856
      %6969 = vst.msk [vmem:[#allocation3 + $0x88] sm:$0xf] %vm1871, %v6858
      %6970 = vst.msk [vmem:[#allocation3 + $0x94] sm:$0xf] %vm1871, %v6860
      %6971 = vst.msk [vmem:[#allocation3 + $0xa0] sm:$0xf] %vm1871, %v6862
      %6972 = vst.msk [vmem:[#allocation3 + $0xac] sm:$0xf] %vm1871, %v6864
      %6973 = vst.msk [vmem:[#allocation3 + $0xb8] sm:$0xf] %vm1871, %v6866
      %6974 = vst.msk [vmem:[#allocation3 + $0xc4] sm:$0xf] %vm1871, %v6868
      %6975 = vst.msk [vmem:[#allocation3 + $0xd0] sm:$0xf] %vm1871, %v6870
      %6976 = vst.msk [vmem:[#allocation3 + $0xdc] sm:$0xf] %vm1871, %v6872
      %6977 = vst.msk [vmem:[#allocation3 + $0xe8] sm:$0xf] %vm1871, %v6874
      %6978 = vst.msk [vmem:[#allocation3 + $0xf4] sm:$0xf] %vm1871, %v6876
      %6979 = vst.msk [vmem:[#allocation3 + $0x100] sm:$0xf] %vm1871, %v6878
      %6980 = vst.msk [vmem:[#allocation3 + $0x10c] sm:$0xf] %vm1871, %v6880
      %6981 = vst.msk [vmem:[#allocation3 + $0x118] sm:$0xf] %vm1871, %v6882
      %6982 = vst.msk [vmem:[#allocation3 + $0x124] sm:$0xf] %vm1871, %v6884
      %6983 = vst.msk [vmem:[#allocation3 + $0x130] sm:$0xf] %vm1871, %v6886
      %6984 = vst.msk [vmem:[#allocation3 + $0x13c] sm:$0xf] %vm1871, %v6888
      %6985 = vst.msk [vmem:[#allocation3 + $0x148] sm:$0xf] %vm1871, %v6890
      %6986 = vst.msk [vmem:[#allocation3 + $0x154] sm:$0xf] %vm1871, %v6892
      %6987 = vst.msk [vmem:[#allocation3 + $0x160] sm:$0xf] %vm1871, %v6894
      %6988 = vst.msk [vmem:[#allocation3 + $0x16c] sm:$0xf] %vm1871, %v6896
      %6989 = vst.msk [vmem:[#allocation3 + $0x178] sm:$0xf] %vm1871, %v6898
      %6990 = vst.msk [vmem:[#allocation3 + $0x184] sm:$0xf] %vm1871, %v6900
      %6991 = vst.msk [vmem:[#allocation3 + $0x190] sm:$0xf] %vm1871, %v6902
      %6992 = vst.msk [vmem:[#allocation3 + $0x19c] sm:$0xf] %vm1871, %v6904
      %6993 = vst.msk [vmem:[#allocation3 + $0x1a8] sm:$0xf] %vm1871, %v6906
      %6994 = vst.msk [vmem:[#allocation3 + $0x1b4] sm:$0xf] %vm1871, %v6908
      %6995 = vst.msk [vmem:[#allocation3 + $0x1c0] sm:$0xf] %vm1871, %v6910
      %6996 = vst.msk [vmem:[#allocation3 + $0x1cc] sm:$0xf] %vm1871, %v6912
      %6997 = vst.msk [vmem:[#allocation3 + $0x1d8] sm:$0xf] %vm1871, %v6914
      %6998 = vst.msk [vmem:[#allocation3 + $0x1e4] sm:$0x3] %vm1912, %v6916
      %v6999 = vld [vmem:[#allocation2 + $0x24] sm:$0xff]
      %v7000 = vld [vmem:[#allocation2 + $0x2c] sm:$0xff]
      %v7001 = vld [vmem:[#allocation2 + $0x34] sm:$0xff]
      %v7002 = vld [vmem:[#allocation2 + $0x3c] sm:$0xff]
      %v7003 = vld [vmem:[#allocation2 + $0x44] sm:$0xff]
      %v7004 = vld [vmem:[#allocation2 + $0x4c] sm:$0xff]
      %v7005 = vld [vmem:[#allocation2 + $0x54] sm:$0xff]
      %v7006 = vld [vmem:[#allocation2 + $0x5c] sm:$0xff]
      %v7007 = vld [vmem:[#allocation2 + $0x64] sm:$0xff]
      %v7008 = vld [vmem:[#allocation2 + $0x6c] sm:$0xff]
      %v7009 = vld [vmem:[#allocation2 + $0x74] sm:$0xff]
      %v7010 = vld [vmem:[#allocation2 + $0x7c] sm:$0xff]
      %v7011 = vld [vmem:[#allocation2 + $0x84] sm:$0xff]
      %v7012 = vld [vmem:[#allocation2 + $0x8c] sm:$0xff]
      %v7013 = vld [vmem:[#allocation2 + $0x94] sm:$0xff]
      %v7014 = vld [vmem:[#allocation2 + $0x9c] sm:$0xff]
      %v7015 = vld [vmem:[#allocation2 + $0xa4] sm:$0xff]
      %v7016 = vld [vmem:[#allocation2 + $0xac] sm:$0xff]
      %v7017 = vld [vmem:[#allocation2 + $0xb4] sm:$0xff]
      %v7018 = vld [vmem:[#allocation2 + $0xbc] sm:$0xff]
      %v7019 = vld [vmem:[#allocation2 + $0xc4] sm:$0xff]
      %v7020 = vld [vmem:[#allocation2 + $0xcc] sm:$0xff]
      %v7021 = vld [vmem:[#allocation2 + $0xd4] sm:$0xff]
      %v7022 = vld [vmem:[#allocation2 + $0xdc] sm:$0xff]
      %v7023 = vld [vmem:[#allocation2 + $0xe4] sm:$0xff]
      %v7024 = vld [vmem:[#allocation2 + $0xec] sm:$0xff]
      %v7025 = vld [vmem:[#allocation2 + $0xf4] sm:$0xff]
      %v7026 = vld [vmem:[#allocation2 + $0xfc] sm:$0xff]
      %v7027 = vld [vmem:[#allocation2 + $0x104] sm:$0xff]
      %v7028 = vld [vmem:[#allocation2 + $0x10c] sm:$0xff]
      %v7029 = vld [vmem:[#allocation2 + $0x114] sm:$0xff]
      %v7030 = vld [vmem:[#allocation2 + $0x11c] sm:$0xff]
      %v7031 = vld [vmem:[#allocation2 + $0x124] sm:$0xff]
      %v7032 = vld [vmem:[#allocation2 + $0x12c] sm:$0xff]
      %v7033 = vld [vmem:[#allocation2 + $0x134] sm:$0xff]
      %v7034 = vld [vmem:[#allocation2 + $0x13c] sm:$0xff]
      %v7035 = vld [vmem:[#allocation2 + $0x144] sm:$0xff]
      %v7036 = vld [vmem:[#allocation2 + $0x14c] sm:$0xff]
      %v7037 = vld [vmem:[#allocation2 + $0x154] sm:$0xff]
      %v7038 = vld [vmem:[#allocation2 + $0x15c] sm:$0xff]
      %v7039 = vld [vmem:[#allocation2 + $0x164] sm:$0xf]
      %v7040 = vpack.c.bf16 %v6999, %v6999
      %v7041 = vpack.c.bf16 %v7000, %v7000
      %v7042 = vpack.c.bf16 %v7001, %v7001
      %v7043 = vpack.c.bf16 %v7002, %v7002
      %v7044 = vpack.c.bf16 %v7003, %v7003
      %v7045 = vpack.c.bf16 %v7004, %v7004
      %v7046 = vpack.c.bf16 %v7005, %v7005
      %v7047 = vpack.c.bf16 %v7006, %v7006
      %v7048 = vpack.c.bf16 %v7007, %v7007
      %v7049 = vpack.c.bf16 %v7008, %v7008
      %v7050 = vpack.c.bf16 %v7009, %v7009
      %v7051 = vpack.c.bf16 %v7010, %v7010
      %v7052 = vpack.c.bf16 %v7011, %v7011
      %v7053 = vpack.c.bf16 %v7012, %v7012
      %v7054 = vpack.c.bf16 %v7013, %v7013
      %v7055 = vpack.c.bf16 %v7014, %v7014
      %v7056 = vpack.c.bf16 %v7015, %v7015
      %v7057 = vpack.c.bf16 %v7016, %v7016
      %v7058 = vpack.c.bf16 %v7017, %v7017
      %v7059 = vpack.c.bf16 %v7018, %v7018
      %v7060 = vpack.c.bf16 %v7019, %v7019
      %v7061 = vpack.c.bf16 %v7020, %v7020
      %v7062 = vpack.c.bf16 %v7021, %v7021
      %v7063 = vpack.c.bf16 %v7022, %v7022
      %v7064 = vpack.c.bf16 %v7023, %v7023
      %v7065 = vpack.c.bf16 %v7024, %v7024
      %v7066 = vpack.c.bf16 %v7025, %v7025
      %v7067 = vpack.c.bf16 %v7026, %v7026
      %v7068 = vpack.c.bf16 %v7027, %v7027
      %v7069 = vpack.c.bf16 %v7028, %v7028
      %v7070 = vpack.c.bf16 %v7029, %v7029
      %v7071 = vpack.c.bf16 %v7030, %v7030
      %v7072 = vpack.c.bf16 %v7031, %v7031
      %v7073 = vpack.c.bf16 %v7032, %v7032
      %v7074 = vpack.c.bf16 %v7033, %v7033
      %v7075 = vpack.c.bf16 %v7034, %v7034
      %v7076 = vpack.c.bf16 %v7035, %v7035
      %v7077 = vpack.c.bf16 %v7036, %v7036
      %v7078 = vpack.c.bf16 %v7037, %v7037
      %v7079 = vpack.c.bf16 %v7038, %v7038
      %v7080 = vpack.c.bf16 %v7039, %v7039
      %7122 = vrot.lane.b32.xlu0 %v7040, 64
      %v7123 = vpop.permute.xlu0 %7122
      %7124 = vrot.lane.b32.xlu0 %v7041, 64
      %v7125 = vpop.permute.xlu0 %7124
      %7126 = vrot.lane.b32.xlu0 %v7042, 64
      %v7127 = vpop.permute.xlu0 %7126
      %7128 = vrot.lane.b32.xlu0 %v7043, 64
      %v7129 = vpop.permute.xlu0 %7128
      %7130 = vrot.lane.b32.xlu0 %v7044, 64
      %v7131 = vpop.permute.xlu0 %7130
      %7132 = vrot.lane.b32.xlu0 %v7045, 64
      %v7133 = vpop.permute.xlu0 %7132
      %7134 = vrot.lane.b32.xlu0 %v7046, 64
      %v7135 = vpop.permute.xlu0 %7134
      %7136 = vrot.lane.b32.xlu0 %v7047, 64
      %v7137 = vpop.permute.xlu0 %7136
      %7138 = vrot.lane.b32.xlu0 %v7048, 64
      %v7139 = vpop.permute.xlu0 %7138
      %7140 = vrot.lane.b32.xlu0 %v7049, 64
      %v7141 = vpop.permute.xlu0 %7140
      %7142 = vrot.lane.b32.xlu0 %v7050, 64
      %v7143 = vpop.permute.xlu0 %7142
      %7144 = vrot.lane.b32.xlu0 %v7051, 64
      %v7145 = vpop.permute.xlu0 %7144
      %7146 = vrot.lane.b32.xlu0 %v7052, 64
      %v7147 = vpop.permute.xlu0 %7146
      %7148 = vrot.lane.b32.xlu0 %v7053, 64
      %v7149 = vpop.permute.xlu0 %7148
      %7150 = vrot.lane.b32.xlu0 %v7054, 64
      %v7151 = vpop.permute.xlu0 %7150
      %7152 = vrot.lane.b32.xlu0 %v7055, 64
      %v7153 = vpop.permute.xlu0 %7152
      %7154 = vrot.lane.b32.xlu0 %v7056, 64
      %v7155 = vpop.permute.xlu0 %7154
      %7156 = vrot.lane.b32.xlu0 %v7057, 64
      %v7157 = vpop.permute.xlu0 %7156
      %7158 = vrot.lane.b32.xlu0 %v7058, 64
      %v7159 = vpop.permute.xlu0 %7158
      %7160 = vrot.lane.b32.xlu0 %v7059, 64
      %v7161 = vpop.permute.xlu0 %7160
      %7162 = vrot.lane.b32.xlu0 %v7060, 64
      %v7163 = vpop.permute.xlu0 %7162
      %7164 = vrot.lane.b32.xlu0 %v7061, 64
      %v7165 = vpop.permute.xlu0 %7164
      %7166 = vrot.lane.b32.xlu0 %v7062, 64
      %v7167 = vpop.permute.xlu0 %7166
      %7168 = vrot.lane.b32.xlu0 %v7063, 64
      %v7169 = vpop.permute.xlu0 %7168
      %7170 = vrot.lane.b32.xlu0 %v7064, 64
      %v7171 = vpop.permute.xlu0 %7170
      %7172 = vrot.lane.b32.xlu0 %v7065, 64
      %v7173 = vpop.permute.xlu0 %7172
      %7174 = vrot.lane.b32.xlu0 %v7066, 64
      %v7175 = vpop.permute.xlu0 %7174
      %7176 = vrot.lane.b32.xlu0 %v7067, 64
      %v7177 = vpop.permute.xlu0 %7176
      %7178 = vrot.lane.b32.xlu0 %v7068, 64
      %v7179 = vpop.permute.xlu0 %7178
      %7180 = vrot.lane.b32.xlu0 %v7069, 64
      %v7181 = vpop.permute.xlu0 %7180
      %7182 = vrot.lane.b32.xlu0 %v7070, 64
      %v7183 = vpop.permute.xlu0 %7182
      %7184 = vrot.lane.b32.xlu0 %v7071, 64
      %v7185 = vpop.permute.xlu0 %7184
      %7186 = vrot.lane.b32.xlu0 %v7072, 64
      %v7187 = vpop.permute.xlu0 %7186
      %7188 = vrot.lane.b32.xlu0 %v7073, 64
      %v7189 = vpop.permute.xlu0 %7188
      %7190 = vrot.lane.b32.xlu0 %v7074, 64
      %v7191 = vpop.permute.xlu0 %7190
      %7192 = vrot.lane.b32.xlu0 %v7075, 64
      %v7193 = vpop.permute.xlu0 %7192
      %7194 = vrot.lane.b32.xlu0 %v7076, 64
      %v7195 = vpop.permute.xlu0 %7194
      %7196 = vrot.lane.b32.xlu0 %v7077, 64
      %v7197 = vpop.permute.xlu0 %7196
      %7198 = vrot.lane.b32.xlu0 %v7078, 64
      %v7199 = vpop.permute.xlu0 %7198
      %7200 = vrot.lane.b32.xlu0 %v7079, 64
      %v7201 = vpop.permute.xlu0 %7200
      %7202 = vrot.lane.b32.xlu0 %v7080, 64
      %v7203 = vpop.permute.xlu0 %7202
      %7245 = vst.msk [vmem:[#allocation3 + $0x4] sm:$0xf] %vm2160, %v7123
      %7246 = vst.msk [vmem:[#allocation3 + $0x10] sm:$0xf] %vm2160, %v7125
      %7247 = vst.msk [vmem:[#allocation3 + $0x1c] sm:$0xf] %vm2160, %v7127
      %7248 = vst.msk [vmem:[#allocation3 + $0x28] sm:$0xf] %vm2160, %v7129
      %7249 = vst.msk [vmem:[#allocation3 + $0x34] sm:$0xf] %vm2160, %v7131
      %7250 = vst.msk [vmem:[#allocation3 + $0x40] sm:$0xf] %vm2160, %v7133
      %7251 = vst.msk [vmem:[#allocation3 + $0x4c] sm:$0xf] %vm2160, %v7135
      %7252 = vst.msk [vmem:[#allocation3 + $0x58] sm:$0xf] %vm2160, %v7137
      %7253 = vst.msk [vmem:[#allocation3 + $0x64] sm:$0xf] %vm2160, %v7139
      %7254 = vst.msk [vmem:[#allocation3 + $0x70] sm:$0xf] %vm2160, %v7141
      %7255 = vst.msk [vmem:[#allocation3 + $0x7c] sm:$0xf] %vm2160, %v7143
      %7256 = vst.msk [vmem:[#allocation3 + $0x88] sm:$0xf] %vm2160, %v7145
      %7257 = vst.msk [vmem:[#allocation3 + $0x94] sm:$0xf] %vm2160, %v7147
      %7258 = vst.msk [vmem:[#allocation3 + $0xa0] sm:$0xf] %vm2160, %v7149
      %7259 = vst.msk [vmem:[#allocation3 + $0xac] sm:$0xf] %vm2160, %v7151
      %7260 = vst.msk [vmem:[#allocation3 + $0xb8] sm:$0xf] %vm2160, %v7153
      %7261 = vst.msk [vmem:[#allocation3 + $0xc4] sm:$0xf] %vm2160, %v7155
      %7262 = vst.msk [vmem:[#allocation3 + $0xd0] sm:$0xf] %vm2160, %v7157
      %7263 = vst.msk [vmem:[#allocation3 + $0xdc] sm:$0xf] %vm2160, %v7159
      %7264 = vst.msk [vmem:[#allocation3 + $0xe8] sm:$0xf] %vm2160, %v7161
      %7265 = vst.msk [vmem:[#allocation3 + $0xf4] sm:$0xf] %vm2160, %v7163
      %7266 = vst.msk [vmem:[#allocation3 + $0x100] sm:$0xf] %vm2160, %v7165
      %7267 = vst.msk [vmem:[#allocation3 + $0x10c] sm:$0xf] %vm2160, %v7167
      %7268 = vst.msk [vmem:[#allocation3 + $0x118] sm:$0xf] %vm2160, %v7169
      %7269 = vst.msk [vmem:[#allocation3 + $0x124] sm:$0xf] %vm2160, %v7171
      %7270 = vst.msk [vmem:[#allocation3 + $0x130] sm:$0xf] %vm2160, %v7173
      %7271 = vst.msk [vmem:[#allocation3 + $0x13c] sm:$0xf] %vm2160, %v7175
      %7272 = vst.msk [vmem:[#allocation3 + $0x148] sm:$0xf] %vm2160, %v7177
      %7273 = vst.msk [vmem:[#allocation3 + $0x154] sm:$0xf] %vm2160, %v7179
      %7274 = vst.msk [vmem:[#allocation3 + $0x160] sm:$0xf] %vm2160, %v7181
      %7275 = vst.msk [vmem:[#allocation3 + $0x16c] sm:$0xf] %vm2160, %v7183
      %7276 = vst.msk [vmem:[#allocation3 + $0x178] sm:$0xf] %vm2160, %v7185
      %7277 = vst.msk [vmem:[#allocation3 + $0x184] sm:$0xf] %vm2160, %v7187
      %7278 = vst.msk [vmem:[#allocation3 + $0x190] sm:$0xf] %vm2160, %v7189
      %7279 = vst.msk [vmem:[#allocation3 + $0x19c] sm:$0xf] %vm2160, %v7191
      %7280 = vst.msk [vmem:[#allocation3 + $0x1a8] sm:$0xf] %vm2160, %v7193
      %7281 = vst.msk [vmem:[#allocation3 + $0x1b4] sm:$0xf] %vm2160, %v7195
      %7282 = vst.msk [vmem:[#allocation3 + $0x1c0] sm:$0xf] %vm2160, %v7197
      %7283 = vst.msk [vmem:[#allocation3 + $0x1cc] sm:$0xf] %vm2160, %v7199
      %7284 = vst.msk [vmem:[#allocation3 + $0x1d8] sm:$0xf] %vm2160, %v7201
      %7285 = vst.msk [vmem:[#allocation3 + $0x1e4] sm:$0x3] %vm2201, %v7203
      %v7286 = vld [vmem:[#allocation2 + $0x25] sm:$0xff]
      %v7287 = vld [vmem:[#allocation2 + $0x2d] sm:$0xff]
      %v7288 = vld [vmem:[#allocation2 + $0x35] sm:$0xff]
      %v7289 = vld [vmem:[#allocation2 + $0x3d] sm:$0xff]
      %v7290 = vld [vmem:[#allocation2 + $0x45] sm:$0xff]
      %v7291 = vld [vmem:[#allocation2 + $0x4d] sm:$0xff]
      %v7292 = vld [vmem:[#allocation2 + $0x55] sm:$0xff]
      %v7293 = vld [vmem:[#allocation2 + $0x5d] sm:$0xff]
      %v7294 = vld [vmem:[#allocation2 + $0x65] sm:$0xff]
      %v7295 = vld [vmem:[#allocation2 + $0x6d] sm:$0xff]
      %v7296 = vld [vmem:[#allocation2 + $0x75] sm:$0xff]
      %v7297 = vld [vmem:[#allocation2 + $0x7d] sm:$0xff]
      %v7298 = vld [vmem:[#allocation2 + $0x85] sm:$0xff]
      %v7299 = vld [vmem:[#allocation2 + $0x8d] sm:$0xff]
      %v7300 = vld [vmem:[#allocation2 + $0x95] sm:$0xff]
      %v7301 = vld [vmem:[#allocation2 + $0x9d] sm:$0xff]
      %v7302 = vld [vmem:[#allocation2 + $0xa5] sm:$0xff]
      %v7303 = vld [vmem:[#allocation2 + $0xad] sm:$0xff]
      %v7304 = vld [vmem:[#allocation2 + $0xb5] sm:$0xff]
      %v7305 = vld [vmem:[#allocation2 + $0xbd] sm:$0xff]
      %v7306 = vld [vmem:[#allocation2 + $0xc5] sm:$0xff]
      %v7307 = vld [vmem:[#allocation2 + $0xcd] sm:$0xff]
      %v7308 = vld [vmem:[#allocation2 + $0xd5] sm:$0xff]
      %v7309 = vld [vmem:[#allocation2 + $0xdd] sm:$0xff]
      %v7310 = vld [vmem:[#allocation2 + $0xe5] sm:$0xff]
      %v7311 = vld [vmem:[#allocation2 + $0xed] sm:$0xff]
      %v7312 = vld [vmem:[#allocation2 + $0xf5] sm:$0xff]
      %v7313 = vld [vmem:[#allocation2 + $0xfd] sm:$0xff]
      %v7314 = vld [vmem:[#allocation2 + $0x105] sm:$0xff]
      %v7315 = vld [vmem:[#allocation2 + $0x10d] sm:$0xff]
      %v7316 = vld [vmem:[#allocation2 + $0x115] sm:$0xff]
      %v7317 = vld [vmem:[#allocation2 + $0x11d] sm:$0xff]
      %v7318 = vld [vmem:[#allocation2 + $0x125] sm:$0xff]
      %v7319 = vld [vmem:[#allocation2 + $0x12d] sm:$0xff]
      %v7320 = vld [vmem:[#allocation2 + $0x135] sm:$0xff]
      %v7321 = vld [vmem:[#allocation2 + $0x13d] sm:$0xff]
      %v7322 = vld [vmem:[#allocation2 + $0x145] sm:$0xff]
      %v7323 = vld [vmem:[#allocation2 + $0x14d] sm:$0xff]
      %v7324 = vld [vmem:[#allocation2 + $0x155] sm:$0xff]
      %v7325 = vld [vmem:[#allocation2 + $0x15d] sm:$0xff]
      %v7326 = vld [vmem:[#allocation2 + $0x165] sm:$0xf]
      %v7327 = vpack.c.bf16 %v7286, %v7286
      %v7328 = vpack.c.bf16 %v7287, %v7287
      %v7329 = vpack.c.bf16 %v7288, %v7288
      %v7330 = vpack.c.bf16 %v7289, %v7289
      %v7331 = vpack.c.bf16 %v7290, %v7290
      %v7332 = vpack.c.bf16 %v7291, %v7291
      %v7333 = vpack.c.bf16 %v7292, %v7292
      %v7334 = vpack.c.bf16 %v7293, %v7293
      %v7335 = vpack.c.bf16 %v7294, %v7294
      %v7336 = vpack.c.bf16 %v7295, %v7295
      %v7337 = vpack.c.bf16 %v7296, %v7296
      %v7338 = vpack.c.bf16 %v7297, %v7297
      %v7339 = vpack.c.bf16 %v7298, %v7298
      %v7340 = vpack.c.bf16 %v7299, %v7299
      %v7341 = vpack.c.bf16 %v7300, %v7300
      %v7342 = vpack.c.bf16 %v7301, %v7301
      %v7343 = vpack.c.bf16 %v7302, %v7302
      %v7344 = vpack.c.bf16 %v7303, %v7303
      %v7345 = vpack.c.bf16 %v7304, %v7304
      %v7346 = vpack.c.bf16 %v7305, %v7305
      %v7347 = vpack.c.bf16 %v7306, %v7306
      %v7348 = vpack.c.bf16 %v7307, %v7307
      %v7349 = vpack.c.bf16 %v7308, %v7308
      %v7350 = vpack.c.bf16 %v7309, %v7309
      %v7351 = vpack.c.bf16 %v7310, %v7310
      %v7352 = vpack.c.bf16 %v7311, %v7311
      %v7353 = vpack.c.bf16 %v7312, %v7312
      %v7354 = vpack.c.bf16 %v7313, %v7313
      %v7355 = vpack.c.bf16 %v7314, %v7314
      %v7356 = vpack.c.bf16 %v7315, %v7315
      %v7357 = vpack.c.bf16 %v7316, %v7316
      %v7358 = vpack.c.bf16 %v7317, %v7317
      %v7359 = vpack.c.bf16 %v7318, %v7318
      %v7360 = vpack.c.bf16 %v7319, %v7319
      %v7361 = vpack.c.bf16 %v7320, %v7320
      %v7362 = vpack.c.bf16 %v7321, %v7321
      %v7363 = vpack.c.bf16 %v7322, %v7322
      %v7364 = vpack.c.bf16 %v7323, %v7323
      %v7365 = vpack.c.bf16 %v7324, %v7324
      %v7366 = vpack.c.bf16 %v7325, %v7325
      %v7367 = vpack.c.bf16 %v7326, %v7326
      %7409 = vrot.lane.b32.xlu0 %v7327, 96
      %v7410 = vpop.permute.xlu0 %7409
      %7411 = vrot.lane.b32.xlu0 %v7328, 96
      %v7412 = vpop.permute.xlu0 %7411
      %7413 = vrot.lane.b32.xlu0 %v7329, 96
      %v7414 = vpop.permute.xlu0 %7413
      %7415 = vrot.lane.b32.xlu0 %v7330, 96
      %v7416 = vpop.permute.xlu0 %7415
      %7417 = vrot.lane.b32.xlu0 %v7331, 96
      %v7418 = vpop.permute.xlu0 %7417
      %7419 = vrot.lane.b32.xlu0 %v7332, 96
      %v7420 = vpop.permute.xlu0 %7419
      %7421 = vrot.lane.b32.xlu0 %v7333, 96
      %v7422 = vpop.permute.xlu0 %7421
      %7423 = vrot.lane.b32.xlu0 %v7334, 96
      %v7424 = vpop.permute.xlu0 %7423
      %7425 = vrot.lane.b32.xlu0 %v7335, 96
      %v7426 = vpop.permute.xlu0 %7425
      %7427 = vrot.lane.b32.xlu0 %v7336, 96
      %v7428 = vpop.permute.xlu0 %7427
      %7429 = vrot.lane.b32.xlu0 %v7337, 96
      %v7430 = vpop.permute.xlu0 %7429
      %7431 = vrot.lane.b32.xlu0 %v7338, 96
      %v7432 = vpop.permute.xlu0 %7431
      %7433 = vrot.lane.b32.xlu0 %v7339, 96
      %v7434 = vpop.permute.xlu0 %7433
      %7435 = vrot.lane.b32.xlu0 %v7340, 96
      %v7436 = vpop.permute.xlu0 %7435
      %7437 = vrot.lane.b32.xlu0 %v7341, 96
      %v7438 = vpop.permute.xlu0 %7437
      %7439 = vrot.lane.b32.xlu0 %v7342, 96
      %v7440 = vpop.permute.xlu0 %7439
      %7441 = vrot.lane.b32.xlu0 %v7343, 96
      %v7442 = vpop.permute.xlu0 %7441
      %7443 = vrot.lane.b32.xlu0 %v7344, 96
      %v7444 = vpop.permute.xlu0 %7443
      %7445 = vrot.lane.b32.xlu0 %v7345, 96
      %v7446 = vpop.permute.xlu0 %7445
      %7447 = vrot.lane.b32.xlu0 %v7346, 96
      %v7448 = vpop.permute.xlu0 %7447
      %7449 = vrot.lane.b32.xlu0 %v7347, 96
      %v7450 = vpop.permute.xlu0 %7449
      %7451 = vrot.lane.b32.xlu0 %v7348, 96
      %v7452 = vpop.permute.xlu0 %7451
      %7453 = vrot.lane.b32.xlu0 %v7349, 96
      %v7454 = vpop.permute.xlu0 %7453
      %7455 = vrot.lane.b32.xlu0 %v7350, 96
      %v7456 = vpop.permute.xlu0 %7455
      %7457 = vrot.lane.b32.xlu0 %v7351, 96
      %v7458 = vpop.permute.xlu0 %7457
      %7459 = vrot.lane.b32.xlu0 %v7352, 96
      %v7460 = vpop.permute.xlu0 %7459
      %7461 = vrot.lane.b32.xlu0 %v7353, 96
      %v7462 = vpop.permute.xlu0 %7461
      %7463 = vrot.lane.b32.xlu0 %v7354, 96
      %v7464 = vpop.permute.xlu0 %7463
      %7465 = vrot.lane.b32.xlu0 %v7355, 96
      %v7466 = vpop.permute.xlu0 %7465
      %7467 = vrot.lane.b32.xlu0 %v7356, 96
      %v7468 = vpop.permute.xlu0 %7467
      %7469 = vrot.lane.b32.xlu0 %v7357, 96
      %v7470 = vpop.permute.xlu0 %7469
      %7471 = vrot.lane.b32.xlu0 %v7358, 96
      %v7472 = vpop.permute.xlu0 %7471
      %7473 = vrot.lane.b32.xlu0 %v7359, 96
      %v7474 = vpop.permute.xlu0 %7473
      %7475 = vrot.lane.b32.xlu0 %v7360, 96
      %v7476 = vpop.permute.xlu0 %7475
      %7477 = vrot.lane.b32.xlu0 %v7361, 96
      %v7478 = vpop.permute.xlu0 %7477
      %7479 = vrot.lane.b32.xlu0 %v7362, 96
      %v7480 = vpop.permute.xlu0 %7479
      %7481 = vrot.lane.b32.xlu0 %v7363, 96
      %v7482 = vpop.permute.xlu0 %7481
      %7483 = vrot.lane.b32.xlu0 %v7364, 96
      %v7484 = vpop.permute.xlu0 %7483
      %7485 = vrot.lane.b32.xlu0 %v7365, 96
      %v7486 = vpop.permute.xlu0 %7485
      %7487 = vrot.lane.b32.xlu0 %v7366, 96
      %v7488 = vpop.permute.xlu0 %7487
      %7489 = vrot.lane.b32.xlu0 %v7367, 96
      %v7490 = vpop.permute.xlu0 %7489
      %7532 = vst.msk [vmem:[#allocation3 + $0x4] sm:$0xf] %vm2449, %v7410
      %7533 = vst.msk [vmem:[#allocation3 + $0x10] sm:$0xf] %vm2449, %v7412
      %7534 = vst.msk [vmem:[#allocation3 + $0x1c] sm:$0xf] %vm2449, %v7414
      %7535 = vst.msk [vmem:[#allocation3 + $0x28] sm:$0xf] %vm2449, %v7416
      %7536 = vst.msk [vmem:[#allocation3 + $0x34] sm:$0xf] %vm2449, %v7418
      %7537 = vst.msk [vmem:[#allocation3 + $0x40] sm:$0xf] %vm2449, %v7420
      %7538 = vst.msk [vmem:[#allocation3 + $0x4c] sm:$0xf] %vm2449, %v7422
      %7539 = vst.msk [vmem:[#allocation3 + $0x58] sm:$0xf] %vm2449, %v7424
      %7540 = vst.msk [vmem:[#allocation3 + $0x64] sm:$0xf] %vm2449, %v7426
      %7541 = vst.msk [vmem:[#allocation3 + $0x70] sm:$0xf] %vm2449, %v7428
      %7542 = vst.msk [vmem:[#allocation3 + $0x7c] sm:$0xf] %vm2449, %v7430
      %7543 = vst.msk [vmem:[#allocation3 + $0x88] sm:$0xf] %vm2449, %v7432
      %7544 = vst.msk [vmem:[#allocation3 + $0x94] sm:$0xf] %vm2449, %v7434
      %7545 = vst.msk [vmem:[#allocation3 + $0xa0] sm:$0xf] %vm2449, %v7436
      %7546 = vst.msk [vmem:[#allocation3 + $0xac] sm:$0xf] %vm2449, %v7438
      %7547 = vst.msk [vmem:[#allocation3 + $0xb8] sm:$0xf] %vm2449, %v7440
      %7548 = vst.msk [vmem:[#allocation3 + $0xc4] sm:$0xf] %vm2449, %v7442
      %7549 = vst.msk [vmem:[#allocation3 + $0xd0] sm:$0xf] %vm2449, %v7444
      %7550 = vst.msk [vmem:[#allocation3 + $0xdc] sm:$0xf] %vm2449, %v7446
      %7551 = vst.msk [vmem:[#allocation3 + $0xe8] sm:$0xf] %vm2449, %v7448
      %7552 = vst.msk [vmem:[#allocation3 + $0xf4] sm:$0xf] %vm2449, %v7450
      %7553 = vst.msk [vmem:[#allocation3 + $0x100] sm:$0xf] %vm2449, %v7452
      %7554 = vst.msk [vmem:[#allocation3 + $0x10c] sm:$0xf] %vm2449, %v7454
      %7555 = vst.msk [vmem:[#allocation3 + $0x118] sm:$0xf] %vm2449, %v7456
      %7556 = vst.msk [vmem:[#allocation3 + $0x124] sm:$0xf] %vm2449, %v7458
      %7557 = vst.msk [vmem:[#allocation3 + $0x130] sm:$0xf] %vm2449, %v7460
      %7558 = vst.msk [vmem:[#allocation3 + $0x13c] sm:$0xf] %vm2449, %v7462
      %7559 = vst.msk [vmem:[#allocation3 + $0x148] sm:$0xf] %vm2449, %v7464
      %7560 = vst.msk [vmem:[#allocation3 + $0x154] sm:$0xf] %vm2449, %v7466
      %7561 = vst.msk [vmem:[#allocation3 + $0x160] sm:$0xf] %vm2449, %v7468
      %7562 = vst.msk [vmem:[#allocation3 + $0x16c] sm:$0xf] %vm2449, %v7470
      %7563 = vst.msk [vmem:[#allocation3 + $0x178] sm:$0xf] %vm2449, %v7472
      %7564 = vst.msk [vmem:[#allocation3 + $0x184] sm:$0xf] %vm2449, %v7474
      %7565 = vst.msk [vmem:[#allocation3 + $0x190] sm:$0xf] %vm2449, %v7476
      %7566 = vst.msk [vmem:[#allocation3 + $0x19c] sm:$0xf] %vm2449, %v7478
      %7567 = vst.msk [vmem:[#allocation3 + $0x1a8] sm:$0xf] %vm2449, %v7480
      %7568 = vst.msk [vmem:[#allocation3 + $0x1b4] sm:$0xf] %vm2449, %v7482
      %7569 = vst.msk [vmem:[#allocation3 + $0x1c0] sm:$0xf] %vm2449, %v7484
      %7570 = vst.msk [vmem:[#allocation3 + $0x1cc] sm:$0xf] %vm2449, %v7486
      %7571 = vst.msk [vmem:[#allocation3 + $0x1d8] sm:$0xf] %vm2449, %v7488
      %7572 = vst.msk [vmem:[#allocation3 + $0x1e4] sm:$0x3] %vm2490, %v7490
      %v7573 = vld [vmem:[#allocation2 + $0x26] sm:$0xff]
      %v7574 = vld [vmem:[#allocation2 + $0x2e] sm:$0xff]
      %v7575 = vld [vmem:[#allocation2 + $0x36] sm:$0xff]
      %v7576 = vld [vmem:[#allocation2 + $0x3e] sm:$0xff]
      %v7577 = vld [vmem:[#allocation2 + $0x46] sm:$0xff]
      %v7578 = vld [vmem:[#allocation2 + $0x4e] sm:$0xff]
      %v7579 = vld [vmem:[#allocation2 + $0x56] sm:$0xff]
      %v7580 = vld [vmem:[#allocation2 + $0x5e] sm:$0xff]
      %v7581 = vld [vmem:[#allocation2 + $0x66] sm:$0xff]
      %v7582 = vld [vmem:[#allocation2 + $0x6e] sm:$0xff]
      %v7583 = vld [vmem:[#allocation2 + $0x76] sm:$0xff]
      %v7584 = vld [vmem:[#allocation2 + $0x7e] sm:$0xff]
      %v7585 = vld [vmem:[#allocation2 + $0x86] sm:$0xff]
      %v7586 = vld [vmem:[#allocation2 + $0x8e] sm:$0xff]
      %v7587 = vld [vmem:[#allocation2 + $0x96] sm:$0xff]
      %v7588 = vld [vmem:[#allocation2 + $0x9e] sm:$0xff]
      %v7589 = vld [vmem:[#allocation2 + $0xa6] sm:$0xff]
      %v7590 = vld [vmem:[#allocation2 + $0xae] sm:$0xff]
      %v7591 = vld [vmem:[#allocation2 + $0xb6] sm:$0xff]
      %v7592 = vld [vmem:[#allocation2 + $0xbe] sm:$0xff]
      %v7593 = vld [vmem:[#allocation2 + $0xc6] sm:$0xff]
      %v7594 = vld [vmem:[#allocation2 + $0xce] sm:$0xff]
      %v7595 = vld [vmem:[#allocation2 + $0xd6] sm:$0xff]
      %v7596 = vld [vmem:[#allocation2 + $0xde] sm:$0xff]
      %v7597 = vld [vmem:[#allocation2 + $0xe6] sm:$0xff]
      %v7598 = vld [vmem:[#allocation2 + $0xee] sm:$0xff]
      %v7599 = vld [vmem:[#allocation2 + $0xf6] sm:$0xff]
      %v7600 = vld [vmem:[#allocation2 + $0xfe] sm:$0xff]
      %v7601 = vld [vmem:[#allocation2 + $0x106] sm:$0xff]
      %v7602 = vld [vmem:[#allocation2 + $0x10e] sm:$0xff]
      %v7603 = vld [vmem:[#allocation2 + $0x116] sm:$0xff]
      %v7604 = vld [vmem:[#allocation2 + $0x11e] sm:$0xff]
      %v7605 = vld [vmem:[#allocation2 + $0x126] sm:$0xff]
      %v7606 = vld [vmem:[#allocation2 + $0x12e] sm:$0xff]
      %v7607 = vld [vmem:[#allocation2 + $0x136] sm:$0xff]
      %v7608 = vld [vmem:[#allocation2 + $0x13e] sm:$0xff]
      %v7609 = vld [vmem:[#allocation2 + $0x146] sm:$0xff]
      %v7610 = vld [vmem:[#allocation2 + $0x14e] sm:$0xff]
      %v7611 = vld [vmem:[#allocation2 + $0x156] sm:$0xff]
      %v7612 = vld [vmem:[#allocation2 + $0x15e] sm:$0xff]
      %v7613 = vld [vmem:[#allocation2 + $0x166] sm:$0xf]
      %v7614 = vpack.c.bf16 %v7573, %v7573
      %v7615 = vpack.c.bf16 %v7574, %v7574
      %v7616 = vpack.c.bf16 %v7575, %v7575
      %v7617 = vpack.c.bf16 %v7576, %v7576
      %v7618 = vpack.c.bf16 %v7577, %v7577
      %v7619 = vpack.c.bf16 %v7578, %v7578
      %v7620 = vpack.c.bf16 %v7579, %v7579
      %v7621 = vpack.c.bf16 %v7580, %v7580
      %v7622 = vpack.c.bf16 %v7581, %v7581
      %v7623 = vpack.c.bf16 %v7582, %v7582
      %v7624 = vpack.c.bf16 %v7583, %v7583
      %v7625 = vpack.c.bf16 %v7584, %v7584
      %v7626 = vpack.c.bf16 %v7585, %v7585
      %v7627 = vpack.c.bf16 %v7586, %v7586
      %v7628 = vpack.c.bf16 %v7587, %v7587
      %v7629 = vpack.c.bf16 %v7588, %v7588
      %v7630 = vpack.c.bf16 %v7589, %v7589
      %v7631 = vpack.c.bf16 %v7590, %v7590
      %v7632 = vpack.c.bf16 %v7591, %v7591
      %v7633 = vpack.c.bf16 %v7592, %v7592
      %v7634 = vpack.c.bf16 %v7593, %v7593
      %v7635 = vpack.c.bf16 %v7594, %v7594
      %v7636 = vpack.c.bf16 %v7595, %v7595
      %v7637 = vpack.c.bf16 %v7596, %v7596
      %v7638 = vpack.c.bf16 %v7597, %v7597
      %v7639 = vpack.c.bf16 %v7598, %v7598
      %v7640 = vpack.c.bf16 %v7599, %v7599
      %v7641 = vpack.c.bf16 %v7600, %v7600
      %v7642 = vpack.c.bf16 %v7601, %v7601
      %v7643 = vpack.c.bf16 %v7602, %v7602
      %v7644 = vpack.c.bf16 %v7603, %v7603
      %v7645 = vpack.c.bf16 %v7604, %v7604
      %v7646 = vpack.c.bf16 %v7605, %v7605
      %v7647 = vpack.c.bf16 %v7606, %v7606
      %v7648 = vpack.c.bf16 %v7607, %v7607
      %v7649 = vpack.c.bf16 %v7608, %v7608
      %v7650 = vpack.c.bf16 %v7609, %v7609
      %v7651 = vpack.c.bf16 %v7610, %v7610
      %v7652 = vpack.c.bf16 %v7611, %v7611
      %v7653 = vpack.c.bf16 %v7612, %v7612
      %v7654 = vpack.c.bf16 %v7613, %v7613
      %7655 = vst.msk [vmem:[#allocation3 + $0x8] sm:$0xf] %vm1583, %v7614
      %7656 = vst.msk [vmem:[#allocation3 + $0x14] sm:$0xf] %vm1583, %v7615
      %7657 = vst.msk [vmem:[#allocation3 + $0x20] sm:$0xf] %vm1583, %v7616
      %7658 = vst.msk [vmem:[#allocation3 + $0x2c] sm:$0xf] %vm1583, %v7617
      %7659 = vst.msk [vmem:[#allocation3 + $0x38] sm:$0xf] %vm1583, %v7618
      %7660 = vst.msk [vmem:[#allocation3 + $0x44] sm:$0xf] %vm1583, %v7619
      %7661 = vst.msk [vmem:[#allocation3 + $0x50] sm:$0xf] %vm1583, %v7620
      %7662 = vst.msk [vmem:[#allocation3 + $0x5c] sm:$0xf] %vm1583, %v7621
      %7663 = vst.msk [vmem:[#allocation3 + $0x68] sm:$0xf] %vm1583, %v7622
      %7664 = vst.msk [vmem:[#allocation3 + $0x74] sm:$0xf] %vm1583, %v7623
      %7665 = vst.msk [vmem:[#allocation3 + $0x80] sm:$0xf] %vm1583, %v7624
      %7666 = vst.msk [vmem:[#allocation3 + $0x8c] sm:$0xf] %vm1583, %v7625
      %7667 = vst.msk [vmem:[#allocation3 + $0x98] sm:$0xf] %vm1583, %v7626
      %7668 = vst.msk [vmem:[#allocation3 + $0xa4] sm:$0xf] %vm1583, %v7627
      %7669 = vst.msk [vmem:[#allocation3 + $0xb0] sm:$0xf] %vm1583, %v7628
      %7670 = vst.msk [vmem:[#allocation3 + $0xbc] sm:$0xf] %vm1583, %v7629
      %7671 = vst.msk [vmem:[#allocation3 + $0xc8] sm:$0xf] %vm1583, %v7630
      %7672 = vst.msk [vmem:[#allocation3 + $0xd4] sm:$0xf] %vm1583, %v7631
      %7673 = vst.msk [vmem:[#allocation3 + $0xe0] sm:$0xf] %vm1583, %v7632
      %7674 = vst.msk [vmem:[#allocation3 + $0xec] sm:$0xf] %vm1583, %v7633
      %7675 = vst.msk [vmem:[#allocation3 + $0xf8] sm:$0xf] %vm1583, %v7634
      %7676 = vst.msk [vmem:[#allocation3 + $0x104] sm:$0xf] %vm1583, %v7635
      %7677 = vst.msk [vmem:[#allocation3 + $0x110] sm:$0xf] %vm1583, %v7636
      %7678 = vst.msk [vmem:[#allocation3 + $0x11c] sm:$0xf] %vm1583, %v7637
      %7679 = vst.msk [vmem:[#allocation3 + $0x128] sm:$0xf] %vm1583, %v7638
      %7680 = vst.msk [vmem:[#allocation3 + $0x134] sm:$0xf] %vm1583, %v7639
      %7681 = vst.msk [vmem:[#allocation3 + $0x140] sm:$0xf] %vm1583, %v7640
      %7682 = vst.msk [vmem:[#allocation3 + $0x14c] sm:$0xf] %vm1583, %v7641
      %7683 = vst.msk [vmem:[#allocation3 + $0x158] sm:$0xf] %vm1583, %v7642
      %7684 = vst.msk [vmem:[#allocation3 + $0x164] sm:$0xf] %vm1583, %v7643
      %7685 = vst.msk [vmem:[#allocation3 + $0x170] sm:$0xf] %vm1583, %v7644
      %7686 = vst.msk [vmem:[#allocation3 + $0x17c] sm:$0xf] %vm1583, %v7645
      %7687 = vst.msk [vmem:[#allocation3 + $0x188] sm:$0xf] %vm1583, %v7646
      %7688 = vst.msk [vmem:[#allocation3 + $0x194] sm:$0xf] %vm1583, %v7647
      %7689 = vst.msk [vmem:[#allocation3 + $0x1a0] sm:$0xf] %vm1583, %v7648
      %7690 = vst.msk [vmem:[#allocation3 + $0x1ac] sm:$0xf] %vm1583, %v7649
      %7691 = vst.msk [vmem:[#allocation3 + $0x1b8] sm:$0xf] %vm1583, %v7650
      %7692 = vst.msk [vmem:[#allocation3 + $0x1c4] sm:$0xf] %vm1583, %v7651
      %7693 = vst.msk [vmem:[#allocation3 + $0x1d0] sm:$0xf] %vm1583, %v7652
      %7694 = vst.msk [vmem:[#allocation3 + $0x1dc] sm:$0xf] %vm1583, %v7653
      %7695 = vst.msk [vmem:[#allocation3 + $0x1e8] sm:$0x3] %vm632, %v7654
      %v7696 = vld [vmem:[#allocation3] sm:$0xff]
      %v7697 = vld [vmem:[#allocation3 + $0x8] sm:$0xf]
      %v7698 = vld [vmem:[#allocation3 + $0xc] sm:$0xff]
      %v7699 = vld [vmem:[#allocation3 + $0x14] sm:$0xf]
      %v7700 = vld [vmem:[#allocation3 + $0x18] sm:$0xff]
      %v7701 = vld [vmem:[#allocation3 + $0x20] sm:$0xf]
      %v7702 = vld [vmem:[#allocation3 + $0x24] sm:$0xff]
      %v7703 = vld [vmem:[#allocation3 + $0x2c] sm:$0xf]
      %v7704 = vld [vmem:[#allocation3 + $0x30] sm:$0xff]
      %v7705 = vld [vmem:[#allocation3 + $0x38] sm:$0xf]
      %v7706 = vld [vmem:[#allocation3 + $0x3c] sm:$0xff]
      %v7707 = vld [vmem:[#allocation3 + $0x44] sm:$0xf]
      %v7708 = vld [vmem:[#allocation3 + $0x48] sm:$0xff]
      %v7709 = vld [vmem:[#allocation3 + $0x50] sm:$0xf]
      %v7710 = vld [vmem:[#allocation3 + $0x54] sm:$0xff]
      %v7711 = vld [vmem:[#allocation3 + $0x5c] sm:$0xf]
      %v7712 = vld [vmem:[#allocation3 + $0x60] sm:$0xff]
      %v7713 = vld [vmem:[#allocation3 + $0x68] sm:$0xf]
      %v7714 = vld [vmem:[#allocation3 + $0x6c] sm:$0xff]
      %v7715 = vld [vmem:[#allocation3 + $0x74] sm:$0xf]
      %v7716 = vld [vmem:[#allocation3 + $0x78] sm:$0xff]
      %v7717 = vld [vmem:[#allocation3 + $0x80] sm:$0xf]
      %v7718 = vld [vmem:[#allocation3 + $0x84] sm:$0xff]
      %v7719 = vld [vmem:[#allocation3 + $0x8c] sm:$0xf]
      %v7720 = vld [vmem:[#allocation3 + $0x90] sm:$0xff]
      %v7721 = vld [vmem:[#allocation3 + $0x98] sm:$0xf]
      %v7722 = vld [vmem:[#allocation3 + $0x9c] sm:$0xff]
      %v7723 = vld [vmem:[#allocation3 + $0xa4] sm:$0xf]
      %v7724 = vld [vmem:[#allocation3 + $0xa8] sm:$0xff]
      %v7725 = vld [vmem:[#allocation3 + $0xb0] sm:$0xf]
      %v7726 = vld [vmem:[#allocation3 + $0xb4] sm:$0xff]
      %v7727 = vld [vmem:[#allocation3 + $0xbc] sm:$0xf]
      %v7728 = vld [vmem:[#allocation3 + $0xc0] sm:$0xff]
      %v7729 = vld [vmem:[#allocation3 + $0xc8] sm:$0xf]
      %v7730 = vld [vmem:[#allocation3 + $0xcc] sm:$0xff]
      %v7731 = vld [vmem:[#allocation3 + $0xd4] sm:$0xf]
      %v7732 = vld [vmem:[#allocation3 + $0xd8] sm:$0xff]
      %v7733 = vld [vmem:[#allocation3 + $0xe0] sm:$0xf]
      %v7734 = vld [vmem:[#allocation3 + $0xe4] sm:$0xff]
      %v7735 = vld [vmem:[#allocation3 + $0xec] sm:$0xf]
      %v7736 = vld [vmem:[#allocation3 + $0xf0] sm:$0xff]
      %v7737 = vld [vmem:[#allocation3 + $0xf8] sm:$0xf]
      %v7738 = vld [vmem:[#allocation3 + $0xfc] sm:$0xff]
      %v7739 = vld [vmem:[#allocation3 + $0x104] sm:$0xf]
      %v7740 = vld [vmem:[#allocation3 + $0x108] sm:$0xff]
      %v7741 = vld [vmem:[#allocation3 + $0x110] sm:$0xf]
      %v7742 = vld [vmem:[#allocation3 + $0x114] sm:$0xff]
      %v7743 = vld [vmem:[#allocation3 + $0x11c] sm:$0xf]
      %v7744 = vld [vmem:[#allocation3 + $0x120] sm:$0xff]
      %v7745 = vld [vmem:[#allocation3 + $0x128] sm:$0xf]
      %v7746 = vld [vmem:[#allocation3 + $0x12c] sm:$0xff]
      %v7747 = vld [vmem:[#allocation3 + $0x134] sm:$0xf]
      %v7748 = vld [vmem:[#allocation3 + $0x138] sm:$0xff]
      %v7749 = vld [vmem:[#allocation3 + $0x140] sm:$0xf]
      %v7750 = vld [vmem:[#allocation3 + $0x144] sm:$0xff]
      %v7751 = vld [vmem:[#allocation3 + $0x14c] sm:$0xf]
      %v7752 = vld [vmem:[#allocation3 + $0x150] sm:$0xff]
      %v7753 = vld [vmem:[#allocation3 + $0x158] sm:$0xf]
      %v7754 = vld [vmem:[#allocation3 + $0x15c] sm:$0xff]
      %v7755 = vld [vmem:[#allocation3 + $0x164] sm:$0xf]
      %v7756 = vld [vmem:[#allocation3 + $0x168] sm:$0xff]
      %v7757 = vld [vmem:[#allocation3 + $0x170] sm:$0xf]
      %v7758 = vld [vmem:[#allocation3 + $0x174] sm:$0xff]
      %v7759 = vld [vmem:[#allocation3 + $0x17c] sm:$0xf]
      %v7760 = vld [vmem:[#allocation3 + $0x180] sm:$0xff]
      %v7761 = vld [vmem:[#allocation3 + $0x188] sm:$0xf]
      %v7762 = vld [vmem:[#allocation3 + $0x18c] sm:$0xff]
      %v7763 = vld [vmem:[#allocation3 + $0x194] sm:$0xf]
      %v7764 = vld [vmem:[#allocation3 + $0x198] sm:$0xff]
      %v7765 = vld [vmem:[#allocation3 + $0x1a0] sm:$0xf]
      %v7766 = vld [vmem:[#allocation3 + $0x1a4] sm:$0xff]
      %v7767 = vld [vmem:[#allocation3 + $0x1ac] sm:$0xf]
      %v7768 = vld [vmem:[#allocation3 + $0x1b0] sm:$0xff]
      %v7769 = vld [vmem:[#allocation3 + $0x1b8] sm:$0xf]
      %v7770 = vld [vmem:[#allocation3 + $0x1bc] sm:$0xff]
      %v7771 = vld [vmem:[#allocation3 + $0x1c4] sm:$0xf]
      %v7772 = vld [vmem:[#allocation3 + $0x1c8] sm:$0xff]
      %v7773 = vld [vmem:[#allocation3 + $0x1d0] sm:$0xf]
      %v7774 = vld [vmem:[#allocation3 + $0x1d4] sm:$0xff]
      %v7775 = vld [vmem:[#allocation3 + $0x1dc] sm:$0xf]
      %v7776 = vld [vmem:[#allocation3 + $0x1e0] sm:$0x33]
      %v7777 = vld [vmem:[#allocation3 + $0x1e8] sm:$0x3]
      %v7778 = vld [vmem:[%s8] sm:$0xf]
      %v7779 = vld [vmem:[%s8 + $0x4] sm:$0xf]
      %v7780 = vld [vmem:[%s8 + $0x8] sm:$0xf]
      %v7781 = vld [vmem:[%s8 + $0xc] sm:$0xf]
      %v7782 = vld [vmem:[%s8 + $0x10] sm:$0xf]
      %v7783 = vld [vmem:[%s8 + $0x14] sm:$0xf]
      %v7784 = vld [vmem:[%s8 + $0x18] sm:$0xf]
      %v7785 = vld [vmem:[%s8 + $0x1c] sm:$0xf]
      %v7786 = vld [vmem:[%s8 + $0x20] sm:$0xf]
      %v7787 = vld [vmem:[%s8 + $0x24] sm:$0xf]
      %v7788 = vld [vmem:[%s8 + $0x28] sm:$0xf]
      %v7789 = vld [vmem:[%s8 + $0x2c] sm:$0xf]
      %v7790 = vld [vmem:[%s8 + $0x30] sm:$0xf]
      %v7791 = vld [vmem:[%s8 + $0x34] sm:$0xf]
      %v7792 = vld [vmem:[%s8 + $0x38] sm:$0xf]
      %v7793 = vld [vmem:[%s8 + $0x3c] sm:$0xf]
      %v7794 = vld [vmem:[%s8 + $0x40] sm:$0xf]
      %v7795 = vld [vmem:[%s8 + $0x44] sm:$0xf]
      %v7796 = vld [vmem:[%s8 + $0x48] sm:$0xf]
      %v7797 = vld [vmem:[%s8 + $0x4c] sm:$0xf]
      %v7798 = vld [vmem:[%s8 + $0x50] sm:$0xf]
      %v7799 = vld [vmem:[%s8 + $0x54] sm:$0xf]
      %v7800 = vld [vmem:[%s8 + $0x58] sm:$0xf]
      %v7801 = vld [vmem:[%s8 + $0x5c] sm:$0xf]
      %v7802 = vld [vmem:[%s8 + $0x60] sm:$0xf]
      %v7803 = vld [vmem:[%s8 + $0x64] sm:$0xf]
      %v7804 = vld [vmem:[%s8 + $0x68] sm:$0xf]
      %v7805 = vld [vmem:[%s8 + $0x6c] sm:$0xf]
      %v7806 = vld [vmem:[%s8 + $0x70] sm:$0xf]
      %v7807 = vld [vmem:[%s8 + $0x74] sm:$0xf]
      %v7808 = vld [vmem:[%s8 + $0x78] sm:$0xf]
      %v7809 = vld [vmem:[%s8 + $0x7c] sm:$0xf]
      %v7810 = vld [vmem:[%s8 + $0x80] sm:$0xf]
      %v7811 = vld [vmem:[%s8 + $0x84] sm:$0xf]
      %v7812 = vld [vmem:[%s8 + $0x88] sm:$0xf]
      %v7813 = vld [vmem:[%s8 + $0x8c] sm:$0xf]
      %v7896 = vunpack.c.l.b16 %v7696
      %v7897 = vunpack.c.h.b16 %v7696
      %v7898 = vunpack.c.l.b16 %v7697
      %v7899 = vunpack.c.l.b16 %v7698
      %v7900 = vunpack.c.h.b16 %v7698
      %v7901 = vunpack.c.l.b16 %v7699
      %v7902 = vunpack.c.l.b16 %v7700
      %v7903 = vunpack.c.h.b16 %v7700
      %v7904 = vunpack.c.l.b16 %v7701
      %v7905 = vunpack.c.l.b16 %v7702
      %v7906 = vunpack.c.h.b16 %v7702
      %v7907 = vunpack.c.l.b16 %v7703
      %v7908 = vunpack.c.l.b16 %v7704
      %v7909 = vunpack.c.h.b16 %v7704
      %v7910 = vunpack.c.l.b16 %v7705
      %v7911 = vunpack.c.l.b16 %v7706
      %v7912 = vunpack.c.h.b16 %v7706
      %v7913 = vunpack.c.l.b16 %v7707
      %v7914 = vunpack.c.l.b16 %v7708
      %v7915 = vunpack.c.h.b16 %v7708
      %v7916 = vunpack.c.l.b16 %v7709
      %v7917 = vunpack.c.l.b16 %v7710
      %v7918 = vunpack.c.h.b16 %v7710
      %v7919 = vunpack.c.l.b16 %v7711
      %v7920 = vunpack.c.l.b16 %v7712
      %v7921 = vunpack.c.h.b16 %v7712
      %v7922 = vunpack.c.l.b16 %v7713
      %v7923 = vunpack.c.l.b16 %v7714
      %v7924 = vunpack.c.h.b16 %v7714
      %v7925 = vunpack.c.l.b16 %v7715
      %v7926 = vunpack.c.l.b16 %v7716
      %v7927 = vunpack.c.h.b16 %v7716
      %v7928 = vunpack.c.l.b16 %v7717
      %v7929 = vunpack.c.l.b16 %v7718
      %v7930 = vunpack.c.h.b16 %v7718
      %v7931 = vunpack.c.l.b16 %v7719
      %v7932 = vunpack.c.l.b16 %v7720
      %v7933 = vunpack.c.h.b16 %v7720
      %v7934 = vunpack.c.l.b16 %v7721
      %v7935 = vunpack.c.l.b16 %v7722
      %v7936 = vunpack.c.h.b16 %v7722
      %v7937 = vunpack.c.l.b16 %v7723
      %v7938 = vunpack.c.l.b16 %v7724
      %v7939 = vunpack.c.h.b16 %v7724
      %v7940 = vunpack.c.l.b16 %v7725
      %v7941 = vunpack.c.l.b16 %v7726
      %v7942 = vunpack.c.h.b16 %v7726
      %v7943 = vunpack.c.l.b16 %v7727
      %v7944 = vunpack.c.l.b16 %v7728
      %v7945 = vunpack.c.h.b16 %v7728
      %v7946 = vunpack.c.l.b16 %v7729
      %v7947 = vunpack.c.l.b16 %v7730
      %v7948 = vunpack.c.h.b16 %v7730
      %v7949 = vunpack.c.l.b16 %v7731
      %v7950 = vunpack.c.l.b16 %v7732
      %v7951 = vunpack.c.h.b16 %v7732
      %v7952 = vunpack.c.l.b16 %v7733
      %v7953 = vunpack.c.l.b16 %v7734
      %v7954 = vunpack.c.h.b16 %v7734
      %v7955 = vunpack.c.l.b16 %v7735
      %v7956 = vunpack.c.l.b16 %v7736
      %v7957 = vunpack.c.h.b16 %v7736
      %v7958 = vunpack.c.l.b16 %v7737
      %v7959 = vunpack.c.l.b16 %v7738
      %v7960 = vunpack.c.h.b16 %v7738
      %v7961 = vunpack.c.l.b16 %v7739
      %v7962 = vunpack.c.l.b16 %v7740
      %v7963 = vunpack.c.h.b16 %v7740
      %v7964 = vunpack.c.l.b16 %v7741
      %v7965 = vunpack.c.l.b16 %v7742
      %v7966 = vunpack.c.h.b16 %v7742
      %v7967 = vunpack.c.l.b16 %v7743
      %v7968 = vunpack.c.l.b16 %v7744
      %v7969 = vunpack.c.h.b16 %v7744
      %v7970 = vunpack.c.l.b16 %v7745
      %v7971 = vunpack.c.l.b16 %v7746
      %v7972 = vunpack.c.h.b16 %v7746
      %v7973 = vunpack.c.l.b16 %v7747
      %v7974 = vunpack.c.l.b16 %v7748
      %v7975 = vunpack.c.h.b16 %v7748
      %v7976 = vunpack.c.l.b16 %v7749
      %v7977 = vunpack.c.l.b16 %v7750
      %v7978 = vunpack.c.h.b16 %v7750
      %v7979 = vunpack.c.l.b16 %v7751
      %v7980 = vunpack.c.l.b16 %v7752
      %v7981 = vunpack.c.h.b16 %v7752
      %v7982 = vunpack.c.l.b16 %v7753
      %v7983 = vunpack.c.l.b16 %v7754
      %v7984 = vunpack.c.h.b16 %v7754
      %v7985 = vunpack.c.l.b16 %v7755
      %v7986 = vunpack.c.l.b16 %v7756
      %v7987 = vunpack.c.h.b16 %v7756
      %v7988 = vunpack.c.l.b16 %v7757
      %v7989 = vunpack.c.l.b16 %v7758
      %v7990 = vunpack.c.h.b16 %v7758
      %v7991 = vunpack.c.l.b16 %v7759
      %v7992 = vunpack.c.l.b16 %v7760
      %v7993 = vunpack.c.h.b16 %v7760
      %v7994 = vunpack.c.l.b16 %v7761
      %v7995 = vunpack.c.l.b16 %v7762
      %v7996 = vunpack.c.h.b16 %v7762
      %v7997 = vunpack.c.l.b16 %v7763
      %v7998 = vunpack.c.l.b16 %v7764
      %v7999 = vunpack.c.h.b16 %v7764
      %v8000 = vunpack.c.l.b16 %v7765
      %v8001 = vunpack.c.l.b16 %v7766
      %v8002 = vunpack.c.h.b16 %v7766
      %v8003 = vunpack.c.l.b16 %v7767
      %v8004 = vunpack.c.l.b16 %v7768
      %v8005 = vunpack.c.h.b16 %v7768
      %v8006 = vunpack.c.l.b16 %v7769
      %v8007 = vunpack.c.l.b16 %v7770
      %v8008 = vunpack.c.h.b16 %v7770
      %v8009 = vunpack.c.l.b16 %v7771
      %v8010 = vunpack.c.l.b16 %v7772
      %v8011 = vunpack.c.h.b16 %v7772
      %v8012 = vunpack.c.l.b16 %v7773
      %v8013 = vunpack.c.l.b16 %v7774
      %v8014 = vunpack.c.h.b16 %v7774
      %v8015 = vunpack.c.l.b16 %v7775
      %v8016 = vunpack.c.l.b16 %v7776
      %v8017 = vunpack.c.h.b16 %v7776
      %v8018 = vunpack.c.l.b16 %v7777
      %v8019 = vpack.c.b16 %v7899, %v7896
      %v8020 = vpack.c.b16 %v7900, %v7897
      %v8021 = vpack.c.b16 %v7901, %v7898
      %v8022 = vpack.c.b16 %v7905, %v7902
      %v8023 = vpack.c.b16 %v7906, %v7903
      %v8024 = vpack.c.b16 %v7907, %v7904
      %v8025 = vpack.c.b16 %v7911, %v7908
      %v8026 = vpack.c.b16 %v7912, %v7909
      %v8027 = vpack.c.b16 %v7913, %v7910
      %v8028 = vpack.c.b16 %v7917, %v7914
      %v8029 = vpack.c.b16 %v7918, %v7915
      %v8030 = vpack.c.b16 %v7919, %v7916
      %v8031 = vpack.c.b16 %v7923, %v7920
      %v8032 = vpack.c.b16 %v7924, %v7921
      %v8033 = vpack.c.b16 %v7925, %v7922
      %v8034 = vpack.c.b16 %v7929, %v7926
      %v8035 = vpack.c.b16 %v7930, %v7927
      %v8036 = vpack.c.b16 %v7931, %v7928
      %v8037 = vpack.c.b16 %v7935, %v7932
      %v8038 = vpack.c.b16 %v7936, %v7933
      %v8039 = vpack.c.b16 %v7937, %v7934
      %v8040 = vpack.c.b16 %v7941, %v7938
      %v8041 = vpack.c.b16 %v7942, %v7939
      %v8042 = vpack.c.b16 %v7943, %v7940
      %v8043 = vpack.c.b16 %v7947, %v7944
      %v8044 = vpack.c.b16 %v7948, %v7945
      %v8045 = vpack.c.b16 %v7949, %v7946
      %v8046 = vpack.c.b16 %v7953, %v7950
      %v8047 = vpack.c.b16 %v7954, %v7951
      %v8048 = vpack.c.b16 %v7955, %v7952
      %v8049 = vpack.c.b16 %v7959, %v7956
      %v8050 = vpack.c.b16 %v7960, %v7957
      %v8051 = vpack.c.b16 %v7961, %v7958
      %v8052 = vpack.c.b16 %v7965, %v7962
      %v8053 = vpack.c.b16 %v7966, %v7963
      %v8054 = vpack.c.b16 %v7967, %v7964
      %v8055 = vpack.c.b16 %v7971, %v7968
      %v8056 = vpack.c.b16 %v7972, %v7969
      %v8057 = vpack.c.b16 %v7973, %v7970
      %v8058 = vpack.c.b16 %v7977, %v7974
      %v8059 = vpack.c.b16 %v7978, %v7975
      %v8060 = vpack.c.b16 %v7979, %v7976
      %v8061 = vpack.c.b16 %v7983, %v7980
      %v8062 = vpack.c.b16 %v7984, %v7981
      %v8063 = vpack.c.b16 %v7985, %v7982
      %v8064 = vpack.c.b16 %v7989, %v7986
      %v8065 = vpack.c.b16 %v7990, %v7987
      %v8066 = vpack.c.b16 %v7991, %v7988
      %v8067 = vpack.c.b16 %v7995, %v7992
      %v8068 = vpack.c.b16 %v7996, %v7993
      %v8069 = vpack.c.b16 %v7997, %v7994
      %v8070 = vpack.c.b16 %v8001, %v7998
      %v8071 = vpack.c.b16 %v8002, %v7999
      %v8072 = vpack.c.b16 %v8003, %v8000
      %v8073 = vpack.c.b16 %v8007, %v8004
      %v8074 = vpack.c.b16 %v8008, %v8005
      %v8075 = vpack.c.b16 %v8009, %v8006
      %v8076 = vpack.c.b16 %v8013, %v8010
      %v8077 = vpack.c.b16 %v8014, %v8011
      %v8078 = vpack.c.b16 %v8015, %v8012
      %v8079 = vpack.c.b16 %v8016, %v8016
      %v8080 = vpack.c.b16 %v8017, %v8017
      %v8081 = vpack.c.b16 %v8018, %v8018
      %v8160 = vunpack.c.l.b16 %v7778
      %v8161 = vunpack.c.l.b16 %v7779
      %v8162 = vunpack.c.l.b16 %v7780
      %v8163 = vunpack.c.l.b16 %v7781
      %v8164 = vunpack.c.l.b16 %v7782
      %v8165 = vunpack.c.l.b16 %v7783
      %v8166 = vunpack.c.l.b16 %v7784
      %v8167 = vunpack.c.l.b16 %v7785
      %v8168 = vunpack.c.l.b16 %v7786
      %v8169 = vunpack.c.l.b16 %v7787
      %v8170 = vunpack.c.l.b16 %v7788
      %v8171 = vunpack.c.l.b16 %v7789
      %v8172 = vunpack.c.l.b16 %v7790
      %v8173 = vunpack.c.l.b16 %v7791
      %v8174 = vunpack.c.l.b16 %v7792
      %v8175 = vunpack.c.l.b16 %v7793
      %v8176 = vunpack.c.l.b16 %v7794
      %v8177 = vunpack.c.l.b16 %v7795
      %v8178 = vunpack.c.l.b16 %v7796
      %v8179 = vunpack.c.l.b16 %v7797
      %v8180 = vunpack.c.l.b16 %v7798
      %v8181 = vunpack.c.l.b16 %v7799
      %v8182 = vunpack.c.l.b16 %v7800
      %v8183 = vunpack.c.l.b16 %v7801
      %v8184 = vunpack.c.l.b16 %v7802
      %v8185 = vunpack.c.l.b16 %v7803
      %v8186 = vunpack.c.l.b16 %v7804
      %v8187 = vunpack.c.l.b16 %v7805
      %v8188 = vunpack.c.l.b16 %v7806
      %v8189 = vunpack.c.l.b16 %v7807
      %v8190 = vunpack.c.l.b16 %v7808
      %v8191 = vunpack.c.l.b16 %v7809
      %v8192 = vunpack.c.l.b16 %v7810
      %v8193 = vunpack.c.l.b16 %v7811
      %v8194 = vunpack.c.l.b16 %v7812
      %v8195 = vunpack.c.l.b16 %v7813
      %v8196 = vpack.c.b16 %v8161, %v8160
      %v8197 = vpack.c.b16 %v8163, %v8162
      %v8198 = vpack.c.b16 %v8165, %v8164
      %v8199 = vpack.c.b16 %v8167, %v8166
      %v8200 = vpack.c.b16 %v8169, %v8168
      %v8201 = vpack.c.b16 %v8171, %v8170
      %v8202 = vpack.c.b16 %v8173, %v8172
      %v8203 = vpack.c.b16 %v8175, %v8174
      %v8204 = vpack.c.b16 %v8177, %v8176
      %v8205 = vpack.c.b16 %v8179, %v8178
      %v8206 = vpack.c.b16 %v8181, %v8180
      %v8207 = vpack.c.b16 %v8183, %v8182
      %v8208 = vpack.c.b16 %v8185, %v8184
      %v8209 = vpack.c.b16 %v8187, %v8186
      %v8210 = vpack.c.b16 %v8189, %v8188
      %v8211 = vpack.c.b16 %v8191, %v8190
      %v8212 = vpack.c.b16 %v8193, %v8192
      %v8213 = vpack.c.b16 %v8195, %v8194
      %v8233 = vsel %vm496, %v8021, 0
      %v8236 = vsel %vm496, %v8024, 0
      %v8239 = vsel %vm496, %v8027, 0
      %v8242 = vsel %vm496, %v8030, 0
      %v8245 = vsel %vm496, %v8033, 0
      %v8248 = vsel %vm496, %v8036, 0
      %v8251 = vsel %vm496, %v8039, 0
      %v8254 = vsel %vm496, %v8042, 0
      %v8257 = vsel %vm496, %v8045, 0
      %v8260 = vsel %vm496, %v8048, 0
      %v8263 = vsel %vm496, %v8051, 0
      %v8266 = vsel %vm496, %v8054, 0
      %v8269 = vsel %vm496, %v8057, 0
      %v8272 = vsel %vm496, %v8060, 0
      %v8275 = vsel %vm496, %v8063, 0
      %v8278 = vsel %vm496, %v8066, 0
      %v8281 = vsel %vm496, %v8069, 0
      %v8284 = vsel %vm496, %v8072, 0
      %v8287 = vsel %vm496, %v8075, 0
      %v8290 = vsel %vm496, %v8078, 0
      %v8293 = vsel %vm496, %v8081, 0
      %8295 = vmatpush.bf16.msra.mxu0 %v8203
      %8296 = vmatpush.bf16.msra.mxu0 %v8202
      %8297 = vmatpush.bf16.msra.mxu0 %v8201
      %8298 = vmatpush.bf16.msra.mxu0 %v8200
      %8299 = vmatpush.bf16.msra.mxu0 %v8199
      %8300 = vmatpush.bf16.msra.mxu0 %v8198
      %8301 = vmatpush.bf16.msra.mxu0 %v8197
      %8302 = vmatpush.bf16.msra.mxu0 %v8196
      %8303 = vmatmul.bf16.gmra.mxu0 %v8019
      %v8304 = vpop.f32.mrf.mxu0
      %v8305 = vadd.f32 0.0, %v8304
      %v8306 = vpop.f32.mrf.mxu0
      %v8307 = vadd.f32 0.0, %v8306
      %8308 = vmatmul.bf16.gmra.mxu0 %v8022
      %v8309 = vpop.f32.mrf.mxu0
      %v8310 = vadd.f32 0.0, %v8309
      %v8311 = vpop.f32.mrf.mxu0
      %v8312 = vadd.f32 0.0, %v8311
      %8313 = vmatmul.bf16.gmra.mxu0 %v8025
      %v8314 = vpop.f32.mrf.mxu0
      %v8315 = vadd.f32 0.0, %v8314
      %v8316 = vpop.f32.mrf.mxu0
      %v8317 = vadd.f32 0.0, %v8316
      %8318 = vmatmul.bf16.gmra.mxu0 %v8028
      %v8319 = vpop.f32.mrf.mxu0
      %v8320 = vadd.f32 0.0, %v8319
      %v8321 = vpop.f32.mrf.mxu0
      %v8322 = vadd.f32 0.0, %v8321
      %8323 = vmatmul.bf16.gmra.mxu0 %v8031
      %v8324 = vpop.f32.mrf.mxu0
      %v8325 = vadd.f32 0.0, %v8324
      %v8326 = vpop.f32.mrf.mxu0
      %v8327 = vadd.f32 0.0, %v8326
      %8328 = vmatmul.bf16.gmra.mxu0 %v8034
      %v8329 = vpop.f32.mrf.mxu0
      %v8330 = vadd.f32 0.0, %v8329
      %v8331 = vpop.f32.mrf.mxu0
      %v8332 = vadd.f32 0.0, %v8331
      %8333 = vmatmul.bf16.gmra.mxu0 %v8037
      %v8334 = vpop.f32.mrf.mxu0
      %v8335 = vadd.f32 0.0, %v8334
      %v8336 = vpop.f32.mrf.mxu0
      %v8337 = vadd.f32 0.0, %v8336
      %8338 = vmatmul.bf16.gmra.mxu0 %v8040
      %v8339 = vpop.f32.mrf.mxu0
      %v8340 = vadd.f32 0.0, %v8339
      %v8341 = vpop.f32.mrf.mxu0
      %v8342 = vadd.f32 0.0, %v8341
      %8343 = vmatmul.bf16.gmra.mxu0 %v8043
      %v8344 = vpop.f32.mrf.mxu0
      %v8345 = vadd.f32 0.0, %v8344
      %v8346 = vpop.f32.mrf.mxu0
      %v8347 = vadd.f32 0.0, %v8346
      %8348 = vmatmul.bf16.gmra.mxu0 %v8046
      %v8349 = vpop.f32.mrf.mxu0
      %v8350 = vadd.f32 0.0, %v8349
      %v8351 = vpop.f32.mrf.mxu0
      %v8352 = vadd.f32 0.0, %v8351
      %8353 = vmatmul.bf16.gmra.mxu0 %v8049
      %v8354 = vpop.f32.mrf.mxu0
      %v8355 = vadd.f32 0.0, %v8354
      %v8356 = vpop.f32.mrf.mxu0
      %v8357 = vadd.f32 0.0, %v8356
      %8358 = vmatmul.bf16.gmra.mxu0 %v8052
      %v8359 = vpop.f32.mrf.mxu0
      %v8360 = vadd.f32 0.0, %v8359
      %v8361 = vpop.f32.mrf.mxu0
      %v8362 = vadd.f32 0.0, %v8361
      %8363 = vmatmul.bf16.gmra.mxu0 %v8055
      %v8364 = vpop.f32.mrf.mxu0
      %v8365 = vadd.f32 0.0, %v8364
      %v8366 = vpop.f32.mrf.mxu0
      %v8367 = vadd.f32 0.0, %v8366
      %8368 = vmatmul.bf16.gmra.mxu0 %v8058
      %v8369 = vpop.f32.mrf.mxu0
      %v8370 = vadd.f32 0.0, %v8369
      %v8371 = vpop.f32.mrf.mxu0
      %v8372 = vadd.f32 0.0, %v8371
      %8373 = vmatmul.bf16.gmra.mxu0 %v8061
      %v8374 = vpop.f32.mrf.mxu0
      %v8375 = vadd.f32 0.0, %v8374
      %v8376 = vpop.f32.mrf.mxu0
      %v8377 = vadd.f32 0.0, %v8376
      %8378 = vmatmul.bf16.gmra.mxu0 %v8064
      %v8379 = vpop.f32.mrf.mxu0
      %v8380 = vadd.f32 0.0, %v8379
      %v8381 = vpop.f32.mrf.mxu0
      %v8382 = vadd.f32 0.0, %v8381
      %8383 = vmatmul.bf16.gmra.mxu0 %v8067
      %v8384 = vpop.f32.mrf.mxu0
      %v8385 = vadd.f32 0.0, %v8384
      %v8386 = vpop.f32.mrf.mxu0
      %v8387 = vadd.f32 0.0, %v8386
      %8388 = vmatmul.bf16.gmra.mxu0 %v8070
      %v8389 = vpop.f32.mrf.mxu0
      %v8390 = vadd.f32 0.0, %v8389
      %v8391 = vpop.f32.mrf.mxu0
      %v8392 = vadd.f32 0.0, %v8391
      %8393 = vmatmul.bf16.gmra.mxu0 %v8073
      %v8394 = vpop.f32.mrf.mxu0
      %v8395 = vadd.f32 0.0, %v8394
      %v8396 = vpop.f32.mrf.mxu0
      %v8397 = vadd.f32 0.0, %v8396
      %8398 = vmatmul.bf16.gmra.mxu0 %v8076
      %v8399 = vpop.f32.mrf.mxu0
      %v8400 = vadd.f32 0.0, %v8399
      %v8401 = vpop.f32.mrf.mxu0
      %v8402 = vadd.f32 0.0, %v8401
      %8403 = vmatmul.bf16.gmra.mxu0 %v8079
      %v8404 = vpop.f32.mrf.mxu0
      %v8405 = vadd.f32 0.0, %v8404
      %v8406 = vpop.f32.mrf.mxu0
      %8407 = vdwg.mxu0
      %8408 = vmatpush.bf16.msra.mxu0 %v8211
      %8409 = vmatpush.bf16.msra.mxu0 %v8210
      %8410 = vmatpush.bf16.msra.mxu0 %v8209
      %8411 = vmatpush.bf16.msra.mxu0 %v8208
      %8412 = vmatpush.bf16.msra.mxu0 %v8207
      %8413 = vmatpush.bf16.msra.mxu0 %v8206
      %8414 = vmatpush.bf16.msra.mxu0 %v8205
      %8415 = vmatpush.bf16.msra.mxu0 %v8204
      %8416 = vmatmul.bf16.gmra.mxu0 %v8020
      %v8417 = vpop.f32.mrf.mxu0
      %v8418 = vadd.f32 %v8305, %v8417
      %v8419 = vpop.f32.mrf.mxu0
      %v8420 = vadd.f32 %v8307, %v8419
      %8421 = vmatmul.bf16.gmra.mxu0 %v8023
      %v8422 = vpop.f32.mrf.mxu0
      %v8423 = vadd.f32 %v8310, %v8422
      %v8424 = vpop.f32.mrf.mxu0
      %v8425 = vadd.f32 %v8312, %v8424
      %8426 = vmatmul.bf16.gmra.mxu0 %v8026
      %v8427 = vpop.f32.mrf.mxu0
      %v8428 = vadd.f32 %v8315, %v8427
      %v8429 = vpop.f32.mrf.mxu0
      %v8430 = vadd.f32 %v8317, %v8429
      %8431 = vmatmul.bf16.gmra.mxu0 %v8029
      %v8432 = vpop.f32.mrf.mxu0
      %v8433 = vadd.f32 %v8320, %v8432
      %v8434 = vpop.f32.mrf.mxu0
      %v8435 = vadd.f32 %v8322, %v8434
      %8436 = vmatmul.bf16.gmra.mxu0 %v8032
      %v8437 = vpop.f32.mrf.mxu0
      %v8438 = vadd.f32 %v8325, %v8437
      %v8439 = vpop.f32.mrf.mxu0
      %v8440 = vadd.f32 %v8327, %v8439
      %8441 = vmatmul.bf16.gmra.mxu0 %v8035
      %v8442 = vpop.f32.mrf.mxu0
      %v8443 = vadd.f32 %v8330, %v8442
      %v8444 = vpop.f32.mrf.mxu0
      %v8445 = vadd.f32 %v8332, %v8444
      %8446 = vmatmul.bf16.gmra.mxu0 %v8038
      %v8447 = vpop.f32.mrf.mxu0
      %v8448 = vadd.f32 %v8335, %v8447
      %v8449 = vpop.f32.mrf.mxu0
      %v8450 = vadd.f32 %v8337, %v8449
      %8451 = vmatmul.bf16.gmra.mxu0 %v8041
      %v8452 = vpop.f32.mrf.mxu0
      %v8453 = vadd.f32 %v8340, %v8452
      %v8454 = vpop.f32.mrf.mxu0
      %v8455 = vadd.f32 %v8342, %v8454
      %8456 = vmatmul.bf16.gmra.mxu0 %v8044
      %v8457 = vpop.f32.mrf.mxu0
      %v8458 = vadd.f32 %v8345, %v8457
      %v8459 = vpop.f32.mrf.mxu0
      %v8460 = vadd.f32 %v8347, %v8459
      %8461 = vmatmul.bf16.gmra.mxu0 %v8047
      %v8462 = vpop.f32.mrf.mxu0
      %v8463 = vadd.f32 %v8350, %v8462
      %v8464 = vpop.f32.mrf.mxu0
      %v8465 = vadd.f32 %v8352, %v8464
      %8466 = vmatmul.bf16.gmra.mxu0 %v8050
      %v8467 = vpop.f32.mrf.mxu0
      %v8468 = vadd.f32 %v8355, %v8467
      %v8469 = vpop.f32.mrf.mxu0
      %v8470 = vadd.f32 %v8357, %v8469
      %8471 = vmatmul.bf16.gmra.mxu0 %v8053
      %v8472 = vpop.f32.mrf.mxu0
      %v8473 = vadd.f32 %v8360, %v8472
      %v8474 = vpop.f32.mrf.mxu0
      %v8475 = vadd.f32 %v8362, %v8474
      %8476 = vmatmul.bf16.gmra.mxu0 %v8056
      %v8477 = vpop.f32.mrf.mxu0
      %v8478 = vadd.f32 %v8365, %v8477
      %v8479 = vpop.f32.mrf.mxu0
      %v8480 = vadd.f32 %v8367, %v8479
      %8481 = vmatmul.bf16.gmra.mxu0 %v8059
      %v8482 = vpop.f32.mrf.mxu0
      %v8483 = vadd.f32 %v8370, %v8482
      %v8484 = vpop.f32.mrf.mxu0
      %v8485 = vadd.f32 %v8372, %v8484
      %8486 = vmatmul.bf16.gmra.mxu0 %v8062
      %v8487 = vpop.f32.mrf.mxu0
      %v8488 = vadd.f32 %v8375, %v8487
      %v8489 = vpop.f32.mrf.mxu0
      %v8490 = vadd.f32 %v8377, %v8489
      %8491 = vmatmul.bf16.gmra.mxu0 %v8065
      %v8492 = vpop.f32.mrf.mxu0
      %v8493 = vadd.f32 %v8380, %v8492
      %v8494 = vpop.f32.mrf.mxu0
      %v8495 = vadd.f32 %v8382, %v8494
      %8496 = vmatmul.bf16.gmra.mxu0 %v8068
      %v8497 = vpop.f32.mrf.mxu0
      %v8498 = vadd.f32 %v8385, %v8497
      %v8499 = vpop.f32.mrf.mxu0
      %v8500 = vadd.f32 %v8387, %v8499
      %8501 = vmatmul.bf16.gmra.mxu0 %v8071
      %v8502 = vpop.f32.mrf.mxu0
      %v8503 = vadd.f32 %v8390, %v8502
      %v8504 = vpop.f32.mrf.mxu0
      %v8505 = vadd.f32 %v8392, %v8504
      %8506 = vmatmul.bf16.gmra.mxu0 %v8074
      %v8507 = vpop.f32.mrf.mxu0
      %v8508 = vadd.f32 %v8395, %v8507
      %v8509 = vpop.f32.mrf.mxu0
      %v8510 = vadd.f32 %v8397, %v8509
      %8511 = vmatmul.bf16.gmra.mxu0 %v8077
      %v8512 = vpop.f32.mrf.mxu0
      %v8513 = vadd.f32 %v8400, %v8512
      %v8514 = vpop.f32.mrf.mxu0
      %v8515 = vadd.f32 %v8402, %v8514
      %8516 = vmatmul.bf16.gmra.mxu0 %v8080
      %v8517 = vpop.f32.mrf.mxu0
      %v8518 = vadd.f32 %v8405, %v8517
      %v8519 = vpop.f32.mrf.mxu0
      %8520 = vdwg.mxu0
      %8521 = vmatpush.bf16.msra.mxu0 0
      %8522 = vmatpush.bf16.msra.mxu0 0
      %8523 = vmatpush.bf16.msra.mxu0 0
      %8524 = vmatpush.bf16.msra.mxu0 0
      %8525 = vmatpush.bf16.msra.mxu0 0
      %8526 = vmatpush.bf16.msra.mxu0 0
      %8527 = vmatpush.bf16.msra.mxu0 %v8213
      %8528 = vmatpush.bf16.msra.mxu0 %v8212
      %8529 = vmatmul.bf16.gmra.mxu0 %v8233
      %v8530 = vpop.f32.mrf.mxu0
      %v8531 = vadd.f32 %v8418, %v8530
      %v8532 = vpop.f32.mrf.mxu0
      %v8533 = vadd.f32 %v8420, %v8532
      %8534 = vmatmul.bf16.gmra.mxu0 %v8236
      %v8535 = vpop.f32.mrf.mxu0
      %v8536 = vadd.f32 %v8423, %v8535
      %v8537 = vpop.f32.mrf.mxu0
      %v8538 = vadd.f32 %v8425, %v8537
      %8539 = vmatmul.bf16.gmra.mxu0 %v8239
      %v8540 = vpop.f32.mrf.mxu0
      %v8541 = vadd.f32 %v8428, %v8540
      %v8542 = vpop.f32.mrf.mxu0
      %v8543 = vadd.f32 %v8430, %v8542
      %8544 = vmatmul.bf16.gmra.mxu0 %v8242
      %v8545 = vpop.f32.mrf.mxu0
      %v8546 = vadd.f32 %v8433, %v8545
      %v8547 = vpop.f32.mrf.mxu0
      %v8548 = vadd.f32 %v8435, %v8547
      %8549 = vmatmul.bf16.gmra.mxu0 %v8245
      %v8550 = vpop.f32.mrf.mxu0
      %v8551 = vadd.f32 %v8438, %v8550
      %v8552 = vpop.f32.mrf.mxu0
      %v8553 = vadd.f32 %v8440, %v8552
      %8554 = vmatmul.bf16.gmra.mxu0 %v8248
      %v8555 = vpop.f32.mrf.mxu0
      %v8556 = vadd.f32 %v8443, %v8555
      %v8557 = vpop.f32.mrf.mxu0
      %v8558 = vadd.f32 %v8445, %v8557
      %8559 = vmatmul.bf16.gmra.mxu0 %v8251
      %v8560 = vpop.f32.mrf.mxu0
      %v8561 = vadd.f32 %v8448, %v8560
      %v8562 = vpop.f32.mrf.mxu0
      %v8563 = vadd.f32 %v8450, %v8562
      %8564 = vmatmul.bf16.gmra.mxu0 %v8254
      %v8565 = vpop.f32.mrf.mxu0
      %v8566 = vadd.f32 %v8453, %v8565
      %v8567 = vpop.f32.mrf.mxu0
      %v8568 = vadd.f32 %v8455, %v8567
      %8569 = vmatmul.bf16.gmra.mxu0 %v8257
      %v8570 = vpop.f32.mrf.mxu0
      %v8571 = vadd.f32 %v8458, %v8570
      %v8572 = vpop.f32.mrf.mxu0
      %v8573 = vadd.f32 %v8460, %v8572
      %8574 = vmatmul.bf16.gmra.mxu0 %v8260
      %v8575 = vpop.f32.mrf.mxu0
      %v8576 = vadd.f32 %v8463, %v8575
      %v8577 = vpop.f32.mrf.mxu0
      %v8578 = vadd.f32 %v8465, %v8577
      %8579 = vmatmul.bf16.gmra.mxu0 %v8263
      %v8580 = vpop.f32.mrf.mxu0
      %v8581 = vadd.f32 %v8468, %v8580
      %v8582 = vpop.f32.mrf.mxu0
      %v8583 = vadd.f32 %v8470, %v8582
      %8584 = vmatmul.bf16.gmra.mxu0 %v8266
      %v8585 = vpop.f32.mrf.mxu0
      %v8586 = vadd.f32 %v8473, %v8585
      %v8587 = vpop.f32.mrf.mxu0
      %v8588 = vadd.f32 %v8475, %v8587
      %8589 = vmatmul.bf16.gmra.mxu0 %v8269
      %v8590 = vpop.f32.mrf.mxu0
      %v8591 = vadd.f32 %v8478, %v8590
      %v8592 = vpop.f32.mrf.mxu0
      %v8593 = vadd.f32 %v8480, %v8592
      %8594 = vmatmul.bf16.gmra.mxu0 %v8272
      %v8595 = vpop.f32.mrf.mxu0
      %v8596 = vadd.f32 %v8483, %v8595
      %v8597 = vpop.f32.mrf.mxu0
      %v8598 = vadd.f32 %v8485, %v8597
      %8599 = vmatmul.bf16.gmra.mxu0 %v8275
      %v8600 = vpop.f32.mrf.mxu0
      %v8601 = vadd.f32 %v8488, %v8600
      %v8602 = vpop.f32.mrf.mxu0
      %v8603 = vadd.f32 %v8490, %v8602
      %8604 = vmatmul.bf16.gmra.mxu0 %v8278
      %v8605 = vpop.f32.mrf.mxu0
      %v8606 = vadd.f32 %v8493, %v8605
      %v8607 = vpop.f32.mrf.mxu0
      %v8608 = vadd.f32 %v8495, %v8607
      %8609 = vmatmul.bf16.gmra.mxu0 %v8281
      %v8610 = vpop.f32.mrf.mxu0
      %v8611 = vadd.f32 %v8498, %v8610
      %v8612 = vpop.f32.mrf.mxu0
      %v8613 = vadd.f32 %v8500, %v8612
      %8614 = vmatmul.bf16.gmra.mxu0 %v8284
      %v8615 = vpop.f32.mrf.mxu0
      %v8616 = vadd.f32 %v8503, %v8615
      %v8617 = vpop.f32.mrf.mxu0
      %v8618 = vadd.f32 %v8505, %v8617
      %8619 = vmatmul.bf16.gmra.mxu0 %v8287
      %v8620 = vpop.f32.mrf.mxu0
      %v8621 = vadd.f32 %v8508, %v8620
      %v8622 = vpop.f32.mrf.mxu0
      %v8623 = vadd.f32 %v8510, %v8622
      %8624 = vmatmul.bf16.gmra.mxu0 %v8290
      %v8625 = vpop.f32.mrf.mxu0
      %v8626 = vadd.f32 %v8513, %v8625
      %v8627 = vpop.f32.mrf.mxu0
      %v8628 = vadd.f32 %v8515, %v8627
      %8629 = vmatmul.bf16.gmra.mxu0 %v8293
      %v8630 = vpop.f32.mrf.mxu0
      %v8631 = vadd.f32 %v8518, %v8630
      %v8632 = vpop.f32.mrf.mxu0
      %8633 = vdwg.mxu0
      %8634 = vst.msk [vmem:[#allocation4] sm:$0xff] %vm496, %v8531
      %8635 = vst.msk [vmem:[#allocation4 + $0x8] sm:$0xff] %vm496, %v8533
      %8636 = vst.msk [vmem:[#allocation4 + $0x10] sm:$0xff] %vm496, %v8536
      %8637 = vst.msk [vmem:[#allocation4 + $0x18] sm:$0xff] %vm496, %v8538
      %8638 = vst.msk [vmem:[#allocation4 + $0x20] sm:$0xff] %vm496, %v8541
      %8639 = vst.msk [vmem:[#allocation4 + $0x28] sm:$0xff] %vm496, %v8543
      %8640 = vst.msk [vmem:[#allocation4 + $0x30] sm:$0xff] %vm496, %v8546
      %8641 = vst.msk [vmem:[#allocation4 + $0x38] sm:$0xff] %vm496, %v8548
      %8642 = vst.msk [vmem:[#allocation4 + $0x40] sm:$0xff] %vm496, %v8551
      %8643 = vst.msk [vmem:[#allocation4 + $0x48] sm:$0xff] %vm496, %v8553
      %8644 = vst.msk [vmem:[#allocation4 + $0x50] sm:$0xff] %vm496, %v8556
      %8645 = vst.msk [vmem:[#allocation4 + $0x58] sm:$0xff] %vm496, %v8558
      %8646 = vst.msk [vmem:[#allocation4 + $0x60] sm:$0xff] %vm496, %v8561
      %8647 = vst.msk [vmem:[#allocation4 + $0x68] sm:$0xff] %vm496, %v8563
      %8648 = vst.msk [vmem:[#allocation4 + $0x70] sm:$0xff] %vm496, %v8566
      %8649 = vst.msk [vmem:[#allocation4 + $0x78] sm:$0xff] %vm496, %v8568
      %8650 = vst.msk [vmem:[#allocation4 + $0x80] sm:$0xff] %vm496, %v8571
      %8651 = vst.msk [vmem:[#allocation4 + $0x88] sm:$0xff] %vm496, %v8573
      %8652 = vst.msk [vmem:[#allocation4 + $0x90] sm:$0xff] %vm496, %v8576
      %8653 = vst.msk [vmem:[#allocation4 + $0x98] sm:$0xff] %vm496, %v8578
      %8654 = vst.msk [vmem:[#allocation4 + $0xa0] sm:$0xff] %vm496, %v8581
      %8655 = vst.msk [vmem:[#allocation4 + $0xa8] sm:$0xff] %vm496, %v8583
      %8656 = vst.msk [vmem:[#allocation4 + $0xb0] sm:$0xff] %vm496, %v8586
      %8657 = vst.msk [vmem:[#allocation4 + $0xb8] sm:$0xff] %vm496, %v8588
      %8658 = vst.msk [vmem:[#allocation4 + $0xc0] sm:$0xff] %vm496, %v8591
      %8659 = vst.msk [vmem:[#allocation4 + $0xc8] sm:$0xff] %vm496, %v8593
      %8660 = vst.msk [vmem:[#allocation4 + $0xd0] sm:$0xff] %vm496, %v8596
      %8661 = vst.msk [vmem:[#allocation4 + $0xd8] sm:$0xff] %vm496, %v8598
      %8662 = vst.msk [vmem:[#allocation4 + $0xe0] sm:$0xff] %vm496, %v8601
      %8663 = vst.msk [vmem:[#allocation4 + $0xe8] sm:$0xff] %vm496, %v8603
      %8664 = vst.msk [vmem:[#allocation4 + $0xf0] sm:$0xff] %vm496, %v8606
      %8665 = vst.msk [vmem:[#allocation4 + $0xf8] sm:$0xff] %vm496, %v8608
      %8666 = vst.msk [vmem:[#allocation4 + $0x100] sm:$0xff] %vm496, %v8611
      %8667 = vst.msk [vmem:[#allocation4 + $0x108] sm:$0xff] %vm496, %v8613
      %8668 = vst.msk [vmem:[#allocation4 + $0x110] sm:$0xff] %vm496, %v8616
      %8669 = vst.msk [vmem:[#allocation4 + $0x118] sm:$0xff] %vm496, %v8618
      %8670 = vst.msk [vmem:[#allocation4 + $0x120] sm:$0xff] %vm496, %v8621
      %8671 = vst.msk [vmem:[#allocation4 + $0x128] sm:$0xff] %vm496, %v8623
      %8672 = vst.msk [vmem:[#allocation4 + $0x130] sm:$0xff] %vm496, %v8626
      %8673 = vst.msk [vmem:[#allocation4 + $0x138] sm:$0xff] %vm496, %v8628
      %8674 = vst.msk [vmem:[#allocation4 + $0x140] sm:$0xf] %vm1583, %v8631
      %v8675 = vld [vmem:[#allocation4] sm:$0xff]
      %v8676 = vld [vmem:[#allocation4 + $0x8] sm:$0xff]
      %v8677 = vld [vmem:[#allocation4 + $0x10] sm:$0xff]
      %v8678 = vld [vmem:[#allocation4 + $0x18] sm:$0xff]
      %v8679 = vld [vmem:[#allocation4 + $0x20] sm:$0xff]
      %v8680 = vld [vmem:[#allocation4 + $0x28] sm:$0xff]
      %v8681 = vld [vmem:[#allocation4 + $0x30] sm:$0xff]
      %v8682 = vld [vmem:[#allocation4 + $0x38] sm:$0xff]
      %v8683 = vld [vmem:[#allocation4 + $0x40] sm:$0xff]
      %v8684 = vld [vmem:[#allocation4 + $0x48] sm:$0xff]
      %v8685 = vld [vmem:[#allocation4 + $0x50] sm:$0xff]
      %v8686 = vld [vmem:[#allocation4 + $0x58] sm:$0xff]
      %v8687 = vld [vmem:[#allocation4 + $0x60] sm:$0xff]
      %v8688 = vld [vmem:[#allocation4 + $0x68] sm:$0xff]
      %v8689 = vld [vmem:[#allocation4 + $0x70] sm:$0xff]
      %v8690 = vld [vmem:[#allocation4 + $0x78] sm:$0xff]
      %v8691 = vld [vmem:[#allocation4 + $0x80] sm:$0xff]
      %v8692 = vld [vmem:[#allocation4 + $0x88] sm:$0xff]
      %v8693 = vld [vmem:[#allocation4 + $0x90] sm:$0xff]
      %v8694 = vld [vmem:[#allocation4 + $0x98] sm:$0xff]
      %v8695 = vld [vmem:[#allocation4 + $0xa0] sm:$0xff]
      %v8696 = vld [vmem:[#allocation4 + $0xa8] sm:$0xff]
      %v8697 = vld [vmem:[#allocation4 + $0xb0] sm:$0xff]
      %v8698 = vld [vmem:[#allocation4 + $0xb8] sm:$0xff]
      %v8699 = vld [vmem:[#allocation4 + $0xc0] sm:$0xff]
      %v8700 = vld [vmem:[#allocation4 + $0xc8] sm:$0xff]
      %v8701 = vld [vmem:[#allocation4 + $0xd0] sm:$0xff]
      %v8702 = vld [vmem:[#allocation4 + $0xd8] sm:$0xff]
      %v8703 = vld [vmem:[#allocation4 + $0xe0] sm:$0xff]
      %v8704 = vld [vmem:[#allocation4 + $0xe8] sm:$0xff]
      %v8705 = vld [vmem:[#allocation4 + $0xf0] sm:$0xff]
      %v8706 = vld [vmem:[#allocation4 + $0xf8] sm:$0xff]
      %v8707 = vld [vmem:[#allocation4 + $0x100] sm:$0xff]
      %v8708 = vld [vmem:[#allocation4 + $0x108] sm:$0xff]
      %v8709 = vld [vmem:[#allocation4 + $0x110] sm:$0xff]
      %v8710 = vld [vmem:[#allocation4 + $0x118] sm:$0xff]
      %v8711 = vld [vmem:[#allocation4 + $0x120] sm:$0xff]
      %v8712 = vld [vmem:[#allocation4 + $0x128] sm:$0xff]
      %v8713 = vld [vmem:[#allocation4 + $0x130] sm:$0xff]
      %v8714 = vld [vmem:[#allocation4 + $0x138] sm:$0xff]
      %v8715 = vld [vmem:[#allocation4 + $0x140] sm:$0xf]
      %v8716 = vld [vmem:[%s9] sm:$0x1]
      %v8718 = vperm.slane %v8716, 0
      %v8720 = vadd.f32 %v8675, %v8718
      %v8721 = vadd.f32 %v8676, %v8718
      %v8722 = vadd.f32 %v8677, %v8718
      %v8723 = vadd.f32 %v8678, %v8718
      %v8724 = vadd.f32 %v8679, %v8718
      %v8725 = vadd.f32 %v8680, %v8718
      %v8726 = vadd.f32 %v8681, %v8718
      %v8727 = vadd.f32 %v8682, %v8718
      %v8728 = vadd.f32 %v8683, %v8718
      %v8729 = vadd.f32 %v8684, %v8718
      %v8730 = vadd.f32 %v8685, %v8718
      %v8731 = vadd.f32 %v8686, %v8718
      %v8732 = vadd.f32 %v8687, %v8718
      %v8733 = vadd.f32 %v8688, %v8718
      %v8734 = vadd.f32 %v8689, %v8718
      %v8735 = vadd.f32 %v8690, %v8718
      %v8736 = vadd.f32 %v8691, %v8718
      %v8737 = vadd.f32 %v8692, %v8718
      %v8738 = vadd.f32 %v8693, %v8718
      %v8739 = vadd.f32 %v8694, %v8718
      %v8740 = vadd.f32 %v8695, %v8718
      %v8741 = vadd.f32 %v8696, %v8718
      %v8742 = vadd.f32 %v8697, %v8718
      %v8743 = vadd.f32 %v8698, %v8718
      %v8744 = vadd.f32 %v8699, %v8718
      %v8745 = vadd.f32 %v8700, %v8718
      %v8746 = vadd.f32 %v8701, %v8718
      %v8747 = vadd.f32 %v8702, %v8718
      %v8748 = vadd.f32 %v8703, %v8718
      %v8749 = vadd.f32 %v8704, %v8718
      %v8750 = vadd.f32 %v8705, %v8718
      %v8751 = vadd.f32 %v8706, %v8718
      %v8752 = vadd.f32 %v8707, %v8718
      %v8753 = vadd.f32 %v8708, %v8718
      %v8754 = vadd.f32 %v8709, %v8718
      %v8755 = vadd.f32 %v8710, %v8718
      %v8756 = vadd.f32 %v8711, %v8718
      %v8757 = vadd.f32 %v8712, %v8718
      %v8758 = vadd.f32 %v8713, %v8718
      %v8759 = vadd.f32 %v8714, %v8718
      %v8760 = vadd.f32 %v8715, %v8718
      %v8761 = vld [vmem:[%s354 + $0x13] sm:$0xff]
      %v8762 = vld [vmem:[%s354 + $0x1b] sm:$0xff]
      %v8763 = vld [vmem:[%s354 + $0x23] sm:$0xff]
      %v8764 = vld [vmem:[%s354 + $0x2b] sm:$0xff]
      %v8765 = vld [vmem:[%s354 + $0x33] sm:$0xff]
      %v8766 = vld [vmem:[%s354 + $0x3b] sm:$0xff]
      %v8767 = vld [vmem:[%s354 + $0x43] sm:$0xff]
      %v8768 = vld [vmem:[%s354 + $0x4b] sm:$0xff]
      %v8769 = vld [vmem:[%s354 + $0x53] sm:$0xff]
      %v8770 = vld [vmem:[%s354 + $0x5b] sm:$0xff]
      %v8771 = vld [vmem:[%s354 + $0x63] sm:$0xff]
      %v8772 = vld [vmem:[%s354 + $0x6b] sm:$0xff]
      %v8773 = vld [vmem:[%s354 + $0x73] sm:$0xff]
      %v8774 = vld [vmem:[%s354 + $0x7b] sm:$0xff]
      %v8775 = vld [vmem:[%s354 + $0x83] sm:$0xff]
      %v8776 = vld [vmem:[%s354 + $0x8b] sm:$0xff]
      %v8777 = vld [vmem:[%s354 + $0x93] sm:$0xff]
      %v8778 = vld [vmem:[%s354 + $0x9b] sm:$0xff]
      %v8779 = vld [vmem:[%s354 + $0xa3] sm:$0xff]
      %v8780 = vld [vmem:[%s354 + $0xab] sm:$0xff]
      %v8781 = vld [vmem:[%s354 + $0xb3] sm:$0xff]
      %v8782 = vld [vmem:[%s354 + $0xbb] sm:$0xff]
      %v8783 = vld [vmem:[%s354 + $0xc3] sm:$0xff]
      %v8784 = vld [vmem:[%s354 + $0xcb] sm:$0xff]
      %v8785 = vld [vmem:[%s354 + $0xd3] sm:$0xff]
      %v8786 = vld [vmem:[%s354 + $0xdb] sm:$0xff]
      %v8787 = vld [vmem:[%s354 + $0xe3] sm:$0xff]
      %v8788 = vld [vmem:[%s354 + $0xeb] sm:$0xff]
      %v8789 = vld [vmem:[%s354 + $0xf3] sm:$0xff]
      %v8790 = vld [vmem:[%s354 + $0xfb] sm:$0xff]
      %v8791 = vld [vmem:[%s354 + $0x103] sm:$0xff]
      %v8792 = vld [vmem:[%s354 + $0x10b] sm:$0xff]
      %v8793 = vld [vmem:[%s354 + $0x113] sm:$0xff]
      %v8794 = vld [vmem:[%s354 + $0x11b] sm:$0xff]
      %v8795 = vld [vmem:[%s354 + $0x123] sm:$0xff]
      %v8796 = vld [vmem:[%s354 + $0x12b] sm:$0xff]
      %v8797 = vld [vmem:[%s354 + $0x133] sm:$0xff]
      %v8798 = vld [vmem:[%s354 + $0x13b] sm:$0xff]
      %v8799 = vld [vmem:[%s354 + $0x143] sm:$0xff]
      %v8800 = vld [vmem:[%s354 + $0x14b] sm:$0xff]
      %v8801 = vld [vmem:[%s354 + $0x153] sm:$0xf]
      %v8802 = vadd.f32 %v8720, %v8761
      %v8803 = vadd.f32 %v8721, %v8762
      %v8804 = vadd.f32 %v8722, %v8763
      %v8805 = vadd.f32 %v8723, %v8764
      %v8806 = vadd.f32 %v8724, %v8765
      %v8807 = vadd.f32 %v8725, %v8766
      %v8808 = vadd.f32 %v8726, %v8767
      %v8809 = vadd.f32 %v8727, %v8768
      %v8810 = vadd.f32 %v8728, %v8769
      %v8811 = vadd.f32 %v8729, %v8770
      %v8812 = vadd.f32 %v8730, %v8771
      %v8813 = vadd.f32 %v8731, %v8772
      %v8814 = vadd.f32 %v8732, %v8773
      %v8815 = vadd.f32 %v8733, %v8774
      %v8816 = vadd.f32 %v8734, %v8775
      %v8817 = vadd.f32 %v8735, %v8776
      %v8818 = vadd.f32 %v8736, %v8777
      %v8819 = vadd.f32 %v8737, %v8778
      %v8820 = vadd.f32 %v8738, %v8779
      %v8821 = vadd.f32 %v8739, %v8780
      %v8822 = vadd.f32 %v8740, %v8781
      %v8823 = vadd.f32 %v8741, %v8782
      %v8824 = vadd.f32 %v8742, %v8783
      %v8825 = vadd.f32 %v8743, %v8784
      %v8826 = vadd.f32 %v8744, %v8785
      %v8827 = vadd.f32 %v8745, %v8786
      %v8828 = vadd.f32 %v8746, %v8787
      %v8829 = vadd.f32 %v8747, %v8788
      %v8830 = vadd.f32 %v8748, %v8789
      %v8831 = vadd.f32 %v8749, %v8790
      %v8832 = vadd.f32 %v8750, %v8791
      %v8833 = vadd.f32 %v8751, %v8792
      %v8834 = vadd.f32 %v8752, %v8793
      %v8835 = vadd.f32 %v8753, %v8794
      %v8836 = vadd.f32 %v8754, %v8795
      %v8837 = vadd.f32 %v8755, %v8796
      %v8838 = vadd.f32 %v8756, %v8797
      %v8839 = vadd.f32 %v8757, %v8798
      %v8840 = vadd.f32 %v8758, %v8799
      %v8841 = vadd.f32 %v8759, %v8800
      %v8842 = vadd.f32 %v8760, %v8801
      %8843 = vst.msk [vmem:[%s359] sm:$0xff] %vm496, %v8802
      %8844 = vst.msk [vmem:[%s359 + $0x8] sm:$0xff] %vm496, %v8803
      %8845 = vst.msk [vmem:[%s359 + $0x10] sm:$0xff] %vm496, %v8804
      %8846 = vst.msk [vmem:[%s359 + $0x18] sm:$0xff] %vm496, %v8805
      %8847 = vst.msk [vmem:[%s359 + $0x20] sm:$0xff] %vm496, %v8806
      %8848 = vst.msk [vmem:[%s359 + $0x28] sm:$0xff] %vm496, %v8807
      %8849 = vst.msk [vmem:[%s359 + $0x30] sm:$0xff] %vm496, %v8808
      %8850 = vst.msk [vmem:[%s359 + $0x38] sm:$0xff] %vm496, %v8809
      %8851 = vst.msk [vmem:[%s359 + $0x40] sm:$0xff] %vm496, %v8810
      %8852 = vst.msk [vmem:[%s359 + $0x48] sm:$0xff] %vm496, %v8811
      %8853 = vst.msk [vmem:[%s359 + $0x50] sm:$0xff] %vm496, %v8812
      %8854 = vst.msk [vmem:[%s359 + $0x58] sm:$0xff] %vm496, %v8813
      %8855 = vst.msk [vmem:[%s359 + $0x60] sm:$0xff] %vm496, %v8814
      %8856 = vst.msk [vmem:[%s359 + $0x68] sm:$0xff] %vm496, %v8815
      %8857 = vst.msk [vmem:[%s359 + $0x70] sm:$0xff] %vm496, %v8816
      %8858 = vst.msk [vmem:[%s359 + $0x78] sm:$0xff] %vm496, %v8817
      %8859 = vst.msk [vmem:[%s359 + $0x80] sm:$0xff] %vm496, %v8818
      %8860 = vst.msk [vmem:[%s359 + $0x88] sm:$0xff] %vm496, %v8819
      %8861 = vst.msk [vmem:[%s359 + $0x90] sm:$0xff] %vm496, %v8820
      %8862 = vst.msk [vmem:[%s359 + $0x98] sm:$0xff] %vm496, %v8821
      %8863 = vst.msk [vmem:[%s359 + $0xa0] sm:$0xff] %vm496, %v8822
      %8864 = vst.msk [vmem:[%s359 + $0xa8] sm:$0xff] %vm496, %v8823
      %8865 = vst.msk [vmem:[%s359 + $0xb0] sm:$0xff] %vm496, %v8824
      %8866 = vst.msk [vmem:[%s359 + $0xb8] sm:$0xff] %vm496, %v8825
      %8867 = vst.msk [vmem:[%s359 + $0xc0] sm:$0xff] %vm496, %v8826
      %8868 = vst.msk [vmem:[%s359 + $0xc8] sm:$0xff] %vm496, %v8827
      %8869 = vst.msk [vmem:[%s359 + $0xd0] sm:$0xff] %vm496, %v8828
      %8870 = vst.msk [vmem:[%s359 + $0xd8] sm:$0xff] %vm496, %v8829
      %8871 = vst.msk [vmem:[%s359 + $0xe0] sm:$0xff] %vm496, %v8830
      %8872 = vst.msk [vmem:[%s359 + $0xe8] sm:$0xff] %vm496, %v8831
      %8873 = vst.msk [vmem:[%s359 + $0xf0] sm:$0xff] %vm496, %v8832
      %8874 = vst.msk [vmem:[%s359 + $0xf8] sm:$0xff] %vm496, %v8833
      %8875 = vst.msk [vmem:[%s359 + $0x100] sm:$0xff] %vm496, %v8834
      %8876 = vst.msk [vmem:[%s359 + $0x108] sm:$0xff] %vm496, %v8835
      %8877 = vst.msk [vmem:[%s359 + $0x110] sm:$0xff] %vm496, %v8836
      %8878 = vst.msk [vmem:[%s359 + $0x118] sm:$0xff] %vm496, %v8837
      %8879 = vst.msk [vmem:[%s359 + $0x120] sm:$0xff] %vm496, %v8838
      %8880 = vst.msk [vmem:[%s359 + $0x128] sm:$0xff] %vm496, %v8839
      %8881 = vst.msk [vmem:[%s359 + $0x130] sm:$0xff] %vm496, %v8840
      %8882 = vst.msk [vmem:[%s359 + $0x138] sm:$0xff] %vm496, %v8841
      %8883 = vst.msk [vmem:[%s359 + $0x140] sm:$0xf] %vm1583, %v8842
      %p8884 = scmp.lt.s32.totalorder %s21, 3
      %s8885 = scalar_select %p8884, %s21, 3
      %s8886 = smul.addr %s8885, 41
      %s8887 = smul.addr %s8886, 8
      %s8888 = scalar_lea.vmem %s10, %s8887
      // Predicated region
      $region61: #{green_block_forward.1} parent=59 // pred_check
        %p8889 = pneg %p254
      $region62: #{green_block_forward.1} parent=59 // pred_check_branch
        %8891 = sbr.rel (%p8889) target = $region64
      $region63: #{green_block_forward.1} parent=59 // pred_region
        _
      $region64: #{green_block_forward.1} parent=59 // pred_fallthru
        _
    $region60: #{green_block_forward.1} parent=5 // pred_fallthru
      _
    %p8892 = scmp.le.s32.totalorder 2, %s16
    // Predicated region
    $region65: #{green_block_forward.1} parent=5 // pred_check
      %p8893 = pneg %p8892
    $region66: #{green_block_forward.1} parent=5 // pred_check_branch
      %8895 = sbr.rel (%p8893) target = $region68
    $region67: #{green_block_forward.1} parent=5 // pred_region
      %s8896 = ssub.s32 %s16, 2
      // Predicated region
      $region69: #{green_block_forward.1} parent=67 // pred_check
        %p8897 = pneg %p260
      $region70: #{green_block_forward.1} parent=67 // pred_check_branch
        %8899 = sbr.rel (%p8897) target = $region72
      $region71: #{green_block_forward.1} parent=67 // pred_region
        %p8900 = scmp.lt.s32.totalorder %s22, 3
        %s8901 = scalar_select %p8900, %s22, 3
        %s8902 = smul.addr %s8901, 41
        %s8903 = smul.addr %s8902, 8
        %s8904 = scalar_lea.vmem %s10, %s8903
      $region72: #{green_block_forward.1} parent=67 // pred_fallthru
        _
    $region68: #{green_block_forward.1} parent=5 // pred_fallthru
      _
  $region6: #{green_block_forward.1} parent=0 // loop_footer
    %s20 = sadd.s32 1, %s16
  $region7: #{green_block_forward.1} parent=0 // loop_footer_branch
    %15 = sbr.rel target = $region3
  $region8: #{green_block_forward.1} parent=0 // loop_exit
    _

</llo_original>
